<compile_context>
chip_gen: v7x
topology: tpu7x:2x2x1
jax: 0.10.0
libtpu: 0.0.40
codegen_flags: <defaults>
</compile_context>

<pallas_src>
import jax
import jax.numpy as jnp
from jax.experimental import pallas as pl
from jax.experimental.pallas import tpu as pltpu  # noqa: F401

# ----------------------- config (consistent with the module) ----------------
B = 2              # batch_size
C_IN = 4           # configs.enc_in (n_vars)
SEQ_LEN = 16       # configs.seq_len  (context_window)
PRED_LEN = 8       # configs.pred_len (target_window)
N_LAYERS = 2       # configs.e_layers
N_HEADS = 2        # configs.n_heads
D_MODEL = 16       # configs.d_model
D_FF = 32          # configs.d_ff
PATCH_LEN = 4      # configs.patch_len
STRIDE = 2         # configs.stride
D_K = D_MODEL // N_HEADS
D_V = D_MODEL // N_HEADS
PATCH_NUM = (SEQ_LEN - PATCH_LEN) // STRIDE + 1 + 1   # +1 from padding_patch='end'
HEAD_NF = D_MODEL * PATCH_NUM
BN = B * C_IN                  # number of (batch, variable) sequences
ROWS = BN * PATCH_NUM          # all patch tokens; seq-major: row = s*PATCH_NUM + p
D_FEAT = 6         # configs.d_feat       (self.linear, unused in forward)
EMB_FEAT_IN = 5    # configs.emb_feat_in  (self.emb_linear, unused in forward)
EMB_FEAT_OUT = 3   # configs.emb_feat_out
EPS_REVIN = 1e-5
EPS_LN = 1e-5


# ------------------------------- Pallas kernel -------------------------------
def _layernorm(x, w, b):
    mu = jnp.mean(x, axis=-1, keepdims=True)
    var = jnp.mean((x - mu) ** 2, axis=-1, keepdims=True)
    return (x - mu) * jax.lax.rsqrt(var + EPS_LN) * w + b


def _gelu_exact(x):
    # matches nn.GELU() (erf-based, not tanh approximation)
    return 0.5 * x * (1.0 + jax.lax.erf(x * (2.0 ** -0.5)))


def backbone_kernel(x_ref, mean_ref, std_ref, wp_ref, posb_ref,
                    wq_ref, bq_ref, wk_ref, bk_ref, wv_ref, bv_ref,
                    wo_ref, bo_ref, ln1w_ref, ln1b_ref,
                    w1_ref, b1_ref, w2_ref, b2_ref, ln2w_ref, ln2b_ref,
                    wh_ref, bh_ref, out_ref):
    # All B*C_IN sequences in one shot; x is (ROWS, PATCH_LEN), RevIN-normalized.
    xp = x_ref[...]                                              # (64, 4)

    # patch embedding; posb = bp + learnable pos-encoding, pre-broadcast to rows
    u = jnp.dot(xp, wp_ref[...], preferred_element_type=jnp.float32) + posb_ref[...]

    scale = D_K ** -0.5
    prev = [None] * N_HEADS                                      # res_attention scores

    for l in range(N_LAYERS):
        attn_acc = jnp.zeros((ROWS, D_MODEL), jnp.float32)
        for h in range(N_HEADS):
            # per-head pre-split weights -> full-width dots, no lane slicing
            qh = jnp.dot(u, wq_ref[l, h], preferred_element_type=jnp.float32) + bq_ref[l, h]
            kh = jnp.dot(u, wk_ref[l, h], preferred_element_type=jnp.float32) + bk_ref[l, h]
            vh = jnp.dot(u, wv_ref[l, h], preferred_element_type=jnp.float32) + bv_ref[l, h]

            # leading-dim split only (layout no-op): (ROWS, D_K) -> (BN, PATCH_NUM, D_K)
            q3 = qh.reshape(BN, PATCH_NUM, D_K)
            k3 = kh.reshape(BN, PATCH_NUM, D_K)
            v3 = vh.reshape(BN, PATCH_NUM, D_V)

            scores = jnp.einsum('bqd,bkd->bqk', q3, k3,
                                preferred_element_type=jnp.float32) * scale
            if prev[h] is not None:                              # residual attention
                scores = scores + prev[h]
            prev[h] = scores

            m = jnp.max(scores, axis=-1, keepdims=True)
            e = jnp.exp(scores - m)
            attn = e * pl.reciprocal(jnp.sum(e, axis=-1, keepdims=True), approx=True)

            o3 = jnp.einsum('bqk,bkd->bqd', attn, v3,
                            preferred_element_type=jnp.float32)  # (BN, PATCH_NUM, D_V)
            attn_acc = attn_acc + jnp.dot(o3.reshape(ROWS, D_V), wo_ref[l, h],
                                          preferred_element_type=jnp.float32)

        attn_out = attn_acc + bo_ref[l]
        src = _layernorm(u + attn_out, ln1w_ref[l], ln1b_ref[l])

        ff = jnp.dot(src, w1_ref[l], preferred_element_type=jnp.float32) + b1_ref[l]
        ff = _gelu_exact(ff)
        ff = jnp.dot(ff, w2_ref[l], preferred_element_type=jnp.float32) + b2_ref[l]

        u = _layernorm(src + ff, ln2w_ref[l], ln2b_ref[l])

    # Flatten_Head: per-sequence flatten over (patch, d_model) -> one 128-deep matmul.
    u3 = u.reshape(BN, PATCH_NUM, D_MODEL)
    u_flat = jnp.concatenate([u3[:, p, :] for p in range(PATCH_NUM)], axis=-1)  # (BN, 128)
    y = jnp.dot(u_flat, wh_ref[...], preferred_element_type=jnp.float32) + bh_ref[...]

    # fused RevIN denorm (affine=False): y * stdev + mean, per sequence
    out_ref[...] = y * std_ref[...] + mean_ref[...]


_WEIGHT_ORDER = ("wq", "bq", "wk", "bk", "wv", "bv", "wo", "bo",
                 "ln1w", "ln1b", "w1", "b1", "w2", "b2", "ln2w", "ln2b",
                 "wh", "bh")


def run_backbone_kernel(patches, mean_bc, std_bc, wp, posb, params):
    weights = [params[k] for k in _WEIGHT_ORDER]
    # Single invocation (no grid): every operand fits in VMEM with huge margin,
    # so there is no pipelining / per-step overhead and one batched output store.
    return pl.pallas_call(
        backbone_kernel,
        out_shape=jax.ShapeDtypeStruct((BN, PRED_LEN), jnp.float32),
    )(patches, mean_bc, std_bc, wp, posb, *weights)


# ------------------------------ model wrapper --------------------------------
def patchtst_forward(x, emb_x, params):
    # x: (B, SEQ_LEN, C_IN);  emb_x unused (matches the PyTorch forward).
    del emb_x
    x = x.astype(jnp.float32)

    # RevIN 'norm' (affine=False, subtract_last=False)
    mean = jnp.mean(x, axis=1, keepdims=True)                 # (B, 1, C)
    var = jnp.mean((x - mean) ** 2, axis=1, keepdims=True)
    stdev = jnp.sqrt(var + EPS_REVIN)
    z = (x - mean) / stdev                                    # (B, L, C)

    z = jnp.transpose(z, (0, 2, 1))                           # (B, C, L)
    # padding_patch='end': ReplicationPad1d((0, stride)); then unfold(size, step)
    z = jnp.concatenate([z, jnp.repeat(z[:, :, -1:], STRIDE, axis=-1)], axis=-1)
    patches = jnp.stack([z[:, :, p * STRIDE:p * STRIDE + PATCH_LEN]
                         for p in range(PATCH_NUM)], axis=2)  # (B, C, PN, PL)
    patches = patches.reshape(ROWS, PATCH_LEN)                # row = (b*C + c)*PN + p

    mean_bc = jnp.transpose(mean, (0, 2, 1)).reshape(BN, 1)   # per-sequence stats
    std_bc = jnp.transpose(stdev, (0, 2, 1)).reshape(BN, 1)

    # fold patch-embedding bias into the learnable pos encoding, broadcast to rows
    posb = jnp.tile(params["bp"] + params["wpos"], (BN, 1))   # (ROWS, D_MODEL)

    # ---- hot path in Pallas (embedding + encoder + head + RevIN denorm) ------
    y = run_backbone_kernel(patches, mean_bc, std_bc, params["wp"], posb, params)

    y = y.reshape(B, C_IN, PRED_LEN)
    y = jnp.transpose(y, (0, 2, 1))                           # (B, T, C)
    return y[:, -1:, :]                                       # (B, 1, C)


# ------------------------------ parameter init -------------------------------
def init_params(key):
    ks = iter(jax.random.split(key, 48))

    def n(shape, scale=0.1):
        return (scale * jax.random.normal(next(ks), shape)).astype(jnp.float32)

    p = {}
    p["wp"] = n((PATCH_LEN, D_MODEL))
    p["bp"] = n((1, D_MODEL))
    # pe='zeros', learn_pe=True -> uniform(-0.02, 0.02) learnable pos encoding
    p["wpos"] = jax.random.uniform(next(ks), (PATCH_NUM, D_MODEL),
                                   jnp.float32, -0.02, 0.02)
    # Per-head pre-split attention weights (math layout, in_features x out_features):
    #   wq[l, h] == Wq_full[l][:, h*D_K:(h+1)*D_K], wo[l, h] == Wo_full[l][h*D_V:(h+1)*D_V, :]
    p["wq"] = n((N_LAYERS, N_HEADS, D_MODEL, D_K)); p["bq"] = n((N_LAYERS, N_HEADS, 1, D_K))
    p["wk"] = n((N_LAYERS, N_HEADS, D_MODEL, D_K)); p["bk"] = n((N_LAYERS, N_HEADS, 1, D_K))
    p["wv"] = n((N_LAYERS, N_HEADS, D_MODEL, D_V)); p["bv"] = n((N_LAYERS, N_HEADS, 1, D_V))
    p["wo"] = n((N_LAYERS, N_HEADS, D_V, D_MODEL)); p["bo"] = n((N_LAYERS, 1, D_MODEL))
    p["ln1w"] = jnp.ones((N_LAYERS, 1, D_MODEL), jnp.float32)
    p["ln1b"] = jnp.zeros((N_LAYERS, 1, D_MODEL), jnp.float32)
    p["w1"] = n((N_LAYERS, D_MODEL, D_FF)); p["b1"] = n((N_LAYERS, 1, D_FF))
    p["w2"] = n((N_LAYERS, D_FF, D_MODEL)); p["b2"] = n((N_LAYERS, 1, D_MODEL))
    p["ln2w"] = jnp.ones((N_LAYERS, 1, D_MODEL), jnp.float32)
    p["ln2b"] = jnp.zeros((N_LAYERS, 1, D_MODEL), jnp.float32)
    # Flatten-head weight with row order (patch, d_model):
    #   wh[p*D_MODEL + d, :] == W_pt[:, d*PATCH_NUM + p]  (PyTorch flatten order is (d_model, patch));
    #   anyone loading real PyTorch weights must apply exactly this permutation.
    p["wh"] = n((HEAD_NF, PRED_LEN))
    p["bh"] = n((1, PRED_LEN))
    # self.linear / self.emb_linear exist in the module but are unused in forward()
    p["lin_w"] = n((D_FEAT, 1)); p["lin_b"] = n((1, 1))
    p["emb_w"] = n((EMB_FEAT_IN, EMB_FEAT_OUT)); p["emb_b"] = n((1, EMB_FEAT_OUT))
    return p


# ----------------------------------- main -------------------------------------
if __name__ == "__main__":
    key = jax.random.PRNGKey(0)
    kx, ke, kp = jax.random.split(key, 3)

    x = jax.random.normal(kx, (B, SEQ_LEN, C_IN), jnp.float32)
    emb_x = jax.random.normal(ke, (B, SEQ_LEN, EMB_FEAT_IN), jnp.float32)
    params = init_params(kp)

    out = jax.jit(patchtst_forward)(x, emb_x, params)
    out = jax.block_until_ready(out)
    assert out.shape == (B, 1, C_IN), out.shape
    assert bool(jnp.all(jnp.isfinite(out)))
    print("KERNEL_OK")
</pallas_src>

<mosaic_0001>
module attributes {stable_mosaic.version = 11 : i64} {
  func.func @backbone_kernel(%arg0: memref<64x4xf32, #tpu.memory_space<vmem>>, %arg1: memref<8x1xf32, #tpu.memory_space<vmem>>, %arg2: memref<8x1xf32, #tpu.memory_space<vmem>>, %arg3: memref<4x16xf32, #tpu.memory_space<vmem>>, %arg4: memref<64x16xf32, #tpu.memory_space<vmem>>, %arg5: memref<2x2x16x8xf32, #tpu.memory_space<vmem>>, %arg6: memref<2x2x1x8xf32, #tpu.memory_space<vmem>>, %arg7: memref<2x2x16x8xf32, #tpu.memory_space<vmem>>, %arg8: memref<2x2x1x8xf32, #tpu.memory_space<vmem>>, %arg9: memref<2x2x16x8xf32, #tpu.memory_space<vmem>>, %arg10: memref<2x2x1x8xf32, #tpu.memory_space<vmem>>, %arg11: memref<2x2x8x16xf32, #tpu.memory_space<vmem>>, %arg12: memref<2x1x16xf32, #tpu.memory_space<vmem>>, %arg13: memref<2x1x16xf32, #tpu.memory_space<vmem>>, %arg14: memref<2x1x16xf32, #tpu.memory_space<vmem>>, %arg15: memref<2x16x32xf32, #tpu.memory_space<vmem>>, %arg16: memref<2x1x32xf32, #tpu.memory_space<vmem>>, %arg17: memref<2x32x16xf32, #tpu.memory_space<vmem>>, %arg18: memref<2x1x16xf32, #tpu.memory_space<vmem>>, %arg19: memref<2x1x16xf32, #tpu.memory_space<vmem>>, %arg20: memref<2x1x16xf32, #tpu.memory_space<vmem>>, %arg21: memref<128x8xf32, #tpu.memory_space<vmem>>, %arg22: memref<1x8xf32, #tpu.memory_space<vmem>>, %arg23: memref<8x8xf32, #tpu.memory_space<vmem>>) attributes {dimension_semantics = [], scalar_prefetch = 0 : i64, scratch_operands = 0 : i64, tpu.core_type = #tpu.core_type<tc>} {
    %c0 = arith.constant 0 : index
    %c0_0 = arith.constant 0 : index
    %0 = vector.load %arg0[%c0, %c0_0] : memref<64x4xf32, #tpu.memory_space<vmem>>, vector<64x4xf32>
    %c0_1 = arith.constant 0 : index
    %c0_2 = arith.constant 0 : index
    %1 = vector.load %arg3[%c0_1, %c0_2] : memref<4x16xf32, #tpu.memory_space<vmem>>, vector<4x16xf32>
    %cst = arith.constant dense<0.000000e+00> : vector<64x16xf32>
    %2 = tpu.matmul %0, %1, %cst {dimension_numbers = #tpu.dot_dimension_numbers<[1], [0], [0], [1], [0, 0, 1, 1], [], []>} : vector<64x4xf32>, vector<4x16xf32>, vector<64x16xf32> -> vector<64x16xf32>
    %c0_3 = arith.constant 0 : index
    %c0_4 = arith.constant 0 : index
    %3 = vector.load %arg4[%c0_3, %c0_4] : memref<64x16xf32, #tpu.memory_space<vmem>>, vector<64x16xf32>
    %4 = arith.addf %2, %3 : vector<64x16xf32>
    %cst_5 = arith.constant 0.000000e+00 : f32
    %5 = vector.broadcast %cst_5 : f32 to vector<64x16xf32>
    %c0_6 = arith.constant 0 : index
    %c0_7 = arith.constant 0 : index
    %c0_8 = arith.constant 0 : index
    %c0_9 = arith.constant 0 : index
    %6 = vector.load %arg5[%c0_6, %c0_7, %c0_8, %c0_9] : memref<2x2x16x8xf32, #tpu.memory_space<vmem>>, vector<1x1x16x8xf32>
    %7 = vector.shape_cast %6 : vector<1x1x16x8xf32> to vector<16x8xf32>
    %cst_10 = arith.constant dense<0.000000e+00> : vector<64x8xf32>
    %8 = tpu.matmul %4, %7, %cst_10 {dimension_numbers = #tpu.dot_dimension_numbers<[1], [0], [0], [1], [0, 0, 1, 1], [], []>} : vector<64x16xf32>, vector<16x8xf32>, vector<64x8xf32> -> vector<64x8xf32>
    %c0_11 = arith.constant 0 : index
    %c0_12 = arith.constant 0 : index
    %c0_13 = arith.constant 0 : index
    %c0_14 = arith.constant 0 : index
    %9 = vector.load %arg6[%c0_11, %c0_12, %c0_13, %c0_14] : memref<2x2x1x8xf32, #tpu.memory_space<vmem>>, vector<1x1x1x8xf32>
    %10 = vector.shape_cast %9 : vector<1x1x1x8xf32> to vector<1x8xf32>
    %11 = vector.broadcast %10 : vector<1x8xf32> to vector<64x8xf32>
    %12 = arith.addf %8, %11 : vector<64x8xf32>
    %c0_15 = arith.constant 0 : index
    %c0_16 = arith.constant 0 : index
    %c0_17 = arith.constant 0 : index
    %c0_18 = arith.constant 0 : index
    %13 = vector.load %arg7[%c0_15, %c0_16, %c0_17, %c0_18] : memref<2x2x16x8xf32, #tpu.memory_space<vmem>>, vector<1x1x16x8xf32>
    %14 = vector.shape_cast %13 : vector<1x1x16x8xf32> to vector<16x8xf32>
    %cst_19 = arith.constant dense<0.000000e+00> : vector<64x8xf32>
    %15 = tpu.matmul %4, %14, %cst_19 {dimension_numbers = #tpu.dot_dimension_numbers<[1], [0], [0], [1], [0, 0, 1, 1], [], []>} : vector<64x16xf32>, vector<16x8xf32>, vector<64x8xf32> -> vector<64x8xf32>
    %c0_20 = arith.constant 0 : index
    %c0_21 = arith.constant 0 : index
    %c0_22 = arith.constant 0 : index
    %c0_23 = arith.constant 0 : index
    %16 = vector.load %arg8[%c0_20, %c0_21, %c0_22, %c0_23] : memref<2x2x1x8xf32, #tpu.memory_space<vmem>>, vector<1x1x1x8xf32>
    %17 = vector.shape_cast %16 : vector<1x1x1x8xf32> to vector<1x8xf32>
    %18 = vector.broadcast %17 : vector<1x8xf32> to vector<64x8xf32>
    %19 = arith.addf %15, %18 : vector<64x8xf32>
    %c0_24 = arith.constant 0 : index
    %c0_25 = arith.constant 0 : index
    %c0_26 = arith.constant 0 : index
    %c0_27 = arith.constant 0 : index
    %20 = vector.load %arg9[%c0_24, %c0_25, %c0_26, %c0_27] : memref<2x2x16x8xf32, #tpu.memory_space<vmem>>, vector<1x1x16x8xf32>
    %21 = vector.shape_cast %20 : vector<1x1x16x8xf32> to vector<16x8xf32>
    %cst_28 = arith.constant dense<0.000000e+00> : vector<64x8xf32>
    %22 = tpu.matmul %4, %21, %cst_28 {dimension_numbers = #tpu.dot_dimension_numbers<[1], [0], [0], [1], [0, 0, 1, 1], [], []>} : vector<64x16xf32>, vector<16x8xf32>, vector<64x8xf32> -> vector<64x8xf32>
    %c0_29 = arith.constant 0 : index
    %c0_30 = arith.constant 0 : index
    %c0_31 = arith.constant 0 : index
    %c0_32 = arith.constant 0 : index
    %23 = vector.load %arg10[%c0_29, %c0_30, %c0_31, %c0_32] : memref<2x2x1x8xf32, #tpu.memory_space<vmem>>, vector<1x1x1x8xf32>
    %24 = vector.shape_cast %23 : vector<1x1x1x8xf32> to vector<1x8xf32>
    %25 = vector.broadcast %24 : vector<1x8xf32> to vector<64x8xf32>
    %26 = arith.addf %22, %25 : vector<64x8xf32>
    %27 = vector.shape_cast %12 : vector<64x8xf32> to vector<8x8x8xf32>
    %28 = vector.shape_cast %19 : vector<64x8xf32> to vector<8x8x8xf32>
    %29 = vector.shape_cast %26 : vector<64x8xf32> to vector<8x8x8xf32>
    "tpu.trace_start"() <{level = 10 : i32, message = "bqd,bkd->bqk"}> : () -> ()
    %cst_33 = arith.constant dense<0.000000e+00> : vector<8x8x8xf32>
    %30 = tpu.matmul %27, %28, %cst_33 {dimension_numbers = #tpu.dot_dimension_numbers<[2], [2], [1], [1], [0, 0, 0, 1, 1, 1], [0], [0]>} : vector<8x8x8xf32>, vector<8x8x8xf32>, vector<8x8x8xf32> -> vector<8x8x8xf32>
    "tpu.trace_stop"() : () -> ()
    %cst_34 = arith.constant 0.353553385 : f32
    %31 = vector.broadcast %cst_34 : f32 to vector<8x8x8xf32>
    %32 = arith.mulf %30, %31 : vector<8x8x8xf32>
    %cst_35 = arith.constant dense<0xFF800000> : vector<8x8xf32>
    %33 = vector.multi_reduction <maximumf>, %32, %cst_35 [2] : vector<8x8x8xf32> to vector<8x8xf32>
    %34 = vector.shape_cast %33 : vector<8x8xf32> to vector<8x8x1xf32>
    %35 = vector.broadcast %34 : vector<8x8x1xf32> to vector<8x8x8xf32>
    %36 = arith.subf %32, %35 : vector<8x8x8xf32>
    %37 = math.exp %36 : vector<8x8x8xf32>
    %cst_36 = arith.constant dense<0.000000e+00> : vector<8x8xf32>
    %38 = vector.multi_reduction <add>, %37, %cst_36 [2] : vector<8x8x8xf32> to vector<8x8xf32>
    %39 = vector.shape_cast %38 : vector<8x8xf32> to vector<8x8x1xf32>
    %40 = tpu.reciprocal %39 {approx = true} : vector<8x8x1xf32> -> vector<8x8x1xf32>
    %41 = vector.broadcast %40 : vector<8x8x1xf32> to vector<8x8x8xf32>
    %42 = arith.mulf %37, %41 : vector<8x8x8xf32>
    "tpu.trace_start"() <{level = 10 : i32, message = "bqk,bkd->bqd"}> : () -> ()
    %cst_37 = arith.constant dense<0.000000e+00> : vector<8x8x8xf32>
    %43 = tpu.matmul %42, %29, %cst_37 {dimension_numbers = #tpu.dot_dimension_numbers<[2], [1], [1], [2], [0, 0, 0, 1, 1, 2], [0], [0]>} : vector<8x8x8xf32>, vector<8x8x8xf32>, vector<8x8x8xf32> -> vector<8x8x8xf32>
    "tpu.trace_stop"() : () -> ()
    %44 = vector.shape_cast %43 : vector<8x8x8xf32> to vector<64x8xf32>
    %c0_38 = arith.constant 0 : index
    %c0_39 = arith.constant 0 : index
    %c0_40 = arith.constant 0 : index
    %c0_41 = arith.constant 0 : index
    %45 = vector.load %arg11[%c0_38, %c0_39, %c0_40, %c0_41] : memref<2x2x8x16xf32, #tpu.memory_space<vmem>>, vector<1x1x8x16xf32>
    %46 = vector.shape_cast %45 : vector<1x1x8x16xf32> to vector<8x16xf32>
    %cst_42 = arith.constant dense<0.000000e+00> : vector<64x16xf32>
    %47 = tpu.matmul %44, %46, %cst_42 {dimension_numbers = #tpu.dot_dimension_numbers<[1], [0], [0], [1], [0, 0, 1, 1], [], []>} : vector<64x8xf32>, vector<8x16xf32>, vector<64x16xf32> -> vector<64x16xf32>
    %48 = arith.addf %5, %47 : vector<64x16xf32>
    %c0_43 = arith.constant 0 : index
    %c1 = arith.constant 1 : index
    %c0_44 = arith.constant 0 : index
    %c0_45 = arith.constant 0 : index
    %49 = vector.load %arg5[%c0_43, %c1, %c0_44, %c0_45] : memref<2x2x16x8xf32, #tpu.memory_space<vmem>>, vector<1x1x16x8xf32>
    %50 = vector.shape_cast %49 : vector<1x1x16x8xf32> to vector<16x8xf32>
    %cst_46 = arith.constant dense<0.000000e+00> : vector<64x8xf32>
    %51 = tpu.matmul %4, %50, %cst_46 {dimension_numbers = #tpu.dot_dimension_numbers<[1], [0], [0], [1], [0, 0, 1, 1], [], []>} : vector<64x16xf32>, vector<16x8xf32>, vector<64x8xf32> -> vector<64x8xf32>
    %c0_47 = arith.constant 0 : index
    %c1_48 = arith.constant 1 : index
    %c0_49 = arith.constant 0 : index
    %c0_50 = arith.constant 0 : index
    %52 = vector.load %arg6[%c0_47, %c1_48, %c0_49, %c0_50] : memref<2x2x1x8xf32, #tpu.memory_space<vmem>>, vector<1x1x1x8xf32>
    %53 = vector.shape_cast %52 : vector<1x1x1x8xf32> to vector<1x8xf32>
    %54 = vector.broadcast %53 : vector<1x8xf32> to vector<64x8xf32>
    %55 = arith.addf %51, %54 : vector<64x8xf32>
    %c0_51 = arith.constant 0 : index
    %c1_52 = arith.constant 1 : index
    %c0_53 = arith.constant 0 : index
    %c0_54 = arith.constant 0 : index
    %56 = vector.load %arg7[%c0_51, %c1_52, %c0_53, %c0_54] : memref<2x2x16x8xf32, #tpu.memory_space<vmem>>, vector<1x1x16x8xf32>
    %57 = vector.shape_cast %56 : vector<1x1x16x8xf32> to vector<16x8xf32>
    %cst_55 = arith.constant dense<0.000000e+00> : vector<64x8xf32>
    %58 = tpu.matmul %4, %57, %cst_55 {dimension_numbers = #tpu.dot_dimension_numbers<[1], [0], [0], [1], [0, 0, 1, 1], [], []>} : vector<64x16xf32>, vector<16x8xf32>, vector<64x8xf32> -> vector<64x8xf32>
    %c0_56 = arith.constant 0 : index
    %c1_57 = arith.constant 1 : index
    %c0_58 = arith.constant 0 : index
    %c0_59 = arith.constant 0 : index
    %59 = vector.load %arg8[%c0_56, %c1_57, %c0_58, %c0_59] : memref<2x2x1x8xf32, #tpu.memory_space<vmem>>, vector<1x1x1x8xf32>
    %60 = vector.shape_cast %59 : vector<1x1x1x8xf32> to vector<1x8xf32>
    %61 = vector.broadcast %60 : vector<1x8xf32> to vector<64x8xf32>
    %62 = arith.addf %58, %61 : vector<64x8xf32>
    %c0_60 = arith.constant 0 : index
    %c1_61 = arith.constant 1 : index
    %c0_62 = arith.constant 0 : index
    %c0_63 = arith.constant 0 : index
    %63 = vector.load %arg9[%c0_60, %c1_61, %c0_62, %c0_63] : memref<2x2x16x8xf32, #tpu.memory_space<vmem>>, vector<1x1x16x8xf32>
    %64 = vector.shape_cast %63 : vector<1x1x16x8xf32> to vector<16x8xf32>
    %cst_64 = arith.constant dense<0.000000e+00> : vector<64x8xf32>
    %65 = tpu.matmul %4, %64, %cst_64 {dimension_numbers = #tpu.dot_dimension_numbers<[1], [0], [0], [1], [0, 0, 1, 1], [], []>} : vector<64x16xf32>, vector<16x8xf32>, vector<64x8xf32> -> vector<64x8xf32>
    %c0_65 = arith.constant 0 : index
    %c1_66 = arith.constant 1 : index
    %c0_67 = arith.constant 0 : index
    %c0_68 = arith.constant 0 : index
    %66 = vector.load %arg10[%c0_65, %c1_66, %c0_67, %c0_68] : memref<2x2x1x8xf32, #tpu.memory_space<vmem>>, vector<1x1x1x8xf32>
    %67 = vector.shape_cast %66 : vector<1x1x1x8xf32> to vector<1x8xf32>
    %68 = vector.broadcast %67 : vector<1x8xf32> to vector<64x8xf32>
    %69 = arith.addf %65, %68 : vector<64x8xf32>
    %70 = vector.shape_cast %55 : vector<64x8xf32> to vector<8x8x8xf32>
    %71 = vector.shape_cast %62 : vector<64x8xf32> to vector<8x8x8xf32>
    %72 = vector.shape_cast %69 : vector<64x8xf32> to vector<8x8x8xf32>
    "tpu.trace_start"() <{level = 10 : i32, message = "bqd,bkd->bqk"}> : () -> ()
    %cst_69 = arith.constant dense<0.000000e+00> : vector<8x8x8xf32>
    %73 = tpu.matmul %70, %71, %cst_69 {dimension_numbers = #tpu.dot_dimension_numbers<[2], [2], [1], [1], [0, 0, 0, 1, 1, 1], [0], [0]>} : vector<8x8x8xf32>, vector<8x8x8xf32>, vector<8x8x8xf32> -> vector<8x8x8xf32>
    "tpu.trace_stop"() : () -> ()
    %cst_70 = arith.constant 0.353553385 : f32
    %74 = vector.broadcast %cst_70 : f32 to vector<8x8x8xf32>
    %75 = arith.mulf %73, %74 : vector<8x8x8xf32>
    %cst_71 = arith.constant dense<0xFF800000> : vector<8x8xf32>
    %76 = vector.multi_reduction <maximumf>, %75, %cst_71 [2] : vector<8x8x8xf32> to vector<8x8xf32>
    %77 = vector.shape_cast %76 : vector<8x8xf32> to vector<8x8x1xf32>
    %78 = vector.broadcast %77 : vector<8x8x1xf32> to vector<8x8x8xf32>
    %79 = arith.subf %75, %78 : vector<8x8x8xf32>
    %80 = math.exp %79 : vector<8x8x8xf32>
    %cst_72 = arith.constant dense<0.000000e+00> : vector<8x8xf32>
    %81 = vector.multi_reduction <add>, %80, %cst_72 [2] : vector<8x8x8xf32> to vector<8x8xf32>
    %82 = vector.shape_cast %81 : vector<8x8xf32> to vector<8x8x1xf32>
    %83 = tpu.reciprocal %82 {approx = true} : vector<8x8x1xf32> -> vector<8x8x1xf32>
    %84 = vector.broadcast %83 : vector<8x8x1xf32> to vector<8x8x8xf32>
    %85 = arith.mulf %80, %84 : vector<8x8x8xf32>
    "tpu.trace_start"() <{level = 10 : i32, message = "bqk,bkd->bqd"}> : () -> ()
    %cst_73 = arith.constant dense<0.000000e+00> : vector<8x8x8xf32>
    %86 = tpu.matmul %85, %72, %cst_73 {dimension_numbers = #tpu.dot_dimension_numbers<[2], [1], [1], [2], [0, 0, 0, 1, 1, 2], [0], [0]>} : vector<8x8x8xf32>, vector<8x8x8xf32>, vector<8x8x8xf32> -> vector<8x8x8xf32>
    "tpu.trace_stop"() : () -> ()
    %87 = vector.shape_cast %86 : vector<8x8x8xf32> to vector<64x8xf32>
    %c0_74 = arith.constant 0 : index
    %c1_75 = arith.constant 1 : index
    %c0_76 = arith.constant 0 : index
    %c0_77 = arith.constant 0 : index
    %88 = vector.load %arg11[%c0_74, %c1_75, %c0_76, %c0_77] : memref<2x2x8x16xf32, #tpu.memory_space<vmem>>, vector<1x1x8x16xf32>
    %89 = vector.shape_cast %88 : vector<1x1x8x16xf32> to vector<8x16xf32>
    %cst_78 = arith.constant dense<0.000000e+00> : vector<64x16xf32>
    %90 = tpu.matmul %87, %89, %cst_78 {dimension_numbers = #tpu.dot_dimension_numbers<[1], [0], [0], [1], [0, 0, 1, 1], [], []>} : vector<64x8xf32>, vector<8x16xf32>, vector<64x16xf32> -> vector<64x16xf32>
    %91 = arith.addf %48, %90 : vector<64x16xf32>
    %c0_79 = arith.constant 0 : index
    %c0_80 = arith.constant 0 : index
    %c0_81 = arith.constant 0 : index
    %92 = vector.load %arg12[%c0_79, %c0_80, %c0_81] : memref<2x1x16xf32, #tpu.memory_space<vmem>>, vector<1x1x16xf32>
    %93 = vector.shape_cast %92 : vector<1x1x16xf32> to vector<1x16xf32>
    %94 = vector.broadcast %93 : vector<1x16xf32> to vector<64x16xf32>
    %95 = arith.addf %91, %94 : vector<64x16xf32>
    %96 = arith.addf %4, %95 : vector<64x16xf32>
    %c0_82 = arith.constant 0 : index
    %c0_83 = arith.constant 0 : index
    %c0_84 = arith.constant 0 : index
    %97 = vector.load %arg13[%c0_82, %c0_83, %c0_84] : memref<2x1x16xf32, #tpu.memory_space<vmem>>, vector<1x1x16xf32>
    %98 = vector.shape_cast %97 : vector<1x1x16xf32> to vector<1x16xf32>
    %c0_85 = arith.constant 0 : index
    %c0_86 = arith.constant 0 : index
    %c0_87 = arith.constant 0 : index
    %99 = vector.load %arg14[%c0_85, %c0_86, %c0_87] : memref<2x1x16xf32, #tpu.memory_space<vmem>>, vector<1x1x16xf32>
    %100 = vector.shape_cast %99 : vector<1x1x16xf32> to vector<1x16xf32>
    %cst_88 = arith.constant dense<0.000000e+00> : vector<64xf32>
    %101 = vector.multi_reduction <add>, %96, %cst_88 [1] : vector<64x16xf32> to vector<64xf32>
    %102 = vector.shape_cast %101 : vector<64xf32> to vector<64x1xf32>
    %cst_89 = arith.constant 1.600000e+01 : f32
    %103 = vector.broadcast %cst_89 : f32 to vector<64x1xf32>
    %104 = arith.divf %102, %103 : vector<64x1xf32>
    %105 = vector.broadcast %104 : vector<64x1xf32> to vector<64x16xf32>
    %106 = arith.subf %96, %105 : vector<64x16xf32>
    %107 = arith.mulf %106, %106 : vector<64x16xf32>
    %cst_90 = arith.constant dense<0.000000e+00> : vector<64xf32>
    %108 = vector.multi_reduction <add>, %107, %cst_90 [1] : vector<64x16xf32> to vector<64xf32>
    %109 = vector.shape_cast %108 : vector<64xf32> to vector<64x1xf32>
    %cst_91 = arith.constant 1.600000e+01 : f32
    %110 = vector.broadcast %cst_91 : f32 to vector<64x1xf32>
    %111 = arith.divf %109, %110 : vector<64x1xf32>
    %112 = vector.broadcast %104 : vector<64x1xf32> to vector<64x16xf32>
    %113 = arith.subf %96, %112 : vector<64x16xf32>
    %cst_92 = arith.constant 9.99999974E-6 : f32
    %114 = vector.broadcast %cst_92 : f32 to vector<64x1xf32>
    %115 = arith.addf %111, %114 : vector<64x1xf32>
    %116 = math.rsqrt %115 : vector<64x1xf32>
    %117 = vector.broadcast %116 : vector<64x1xf32> to vector<64x16xf32>
    %118 = arith.mulf %113, %117 : vector<64x16xf32>
    %119 = vector.broadcast %98 : vector<1x16xf32> to vector<64x16xf32>
    %120 = arith.mulf %118, %119 : vector<64x16xf32>
    %121 = vector.broadcast %100 : vector<1x16xf32> to vector<64x16xf32>
    %122 = arith.addf %120, %121 : vector<64x16xf32>
    %c0_93 = arith.constant 0 : index
    %c0_94 = arith.constant 0 : index
    %c0_95 = arith.constant 0 : index
    %123 = vector.load %arg15[%c0_93, %c0_94, %c0_95] : memref<2x16x32xf32, #tpu.memory_space<vmem>>, vector<1x16x32xf32>
    %124 = vector.shape_cast %123 : vector<1x16x32xf32> to vector<16x32xf32>
    %cst_96 = arith.constant dense<0.000000e+00> : vector<64x32xf32>
    %125 = tpu.matmul %122, %124, %cst_96 {dimension_numbers = #tpu.dot_dimension_numbers<[1], [0], [0], [1], [0, 0, 1, 1], [], []>} : vector<64x16xf32>, vector<16x32xf32>, vector<64x32xf32> -> vector<64x32xf32>
    %c0_97 = arith.constant 0 : index
    %c0_98 = arith.constant 0 : index
    %c0_99 = arith.constant 0 : index
    %126 = vector.load %arg16[%c0_97, %c0_98, %c0_99] : memref<2x1x32xf32, #tpu.memory_space<vmem>>, vector<1x1x32xf32>
    %127 = vector.shape_cast %126 : vector<1x1x32xf32> to vector<1x32xf32>
    %128 = vector.broadcast %127 : vector<1x32xf32> to vector<64x32xf32>
    %129 = arith.addf %125, %128 : vector<64x32xf32>
    %cst_100 = arith.constant 5.000000e-01 : f32
    %130 = vector.broadcast %cst_100 : f32 to vector<64x32xf32>
    %131 = arith.mulf %130, %129 : vector<64x32xf32>
    %cst_101 = arith.constant 0.707106769 : f32
    %132 = vector.broadcast %cst_101 : f32 to vector<64x32xf32>
    %133 = arith.mulf %129, %132 : vector<64x32xf32>
    %134 = math.erf %133 : vector<64x32xf32>
    %cst_102 = arith.constant 1.000000e+00 : f32
    %135 = vector.broadcast %cst_102 : f32 to vector<64x32xf32>
    %136 = arith.addf %135, %134 : vector<64x32xf32>
    %137 = arith.mulf %131, %136 : vector<64x32xf32>
    %c0_103 = arith.constant 0 : index
    %c0_104 = arith.constant 0 : index
    %c0_105 = arith.constant 0 : index
    %138 = vector.load %arg17[%c0_103, %c0_104, %c0_105] : memref<2x32x16xf32, #tpu.memory_space<vmem>>, vector<1x32x16xf32>
    %139 = vector.shape_cast %138 : vector<1x32x16xf32> to vector<32x16xf32>
    %cst_106 = arith.constant dense<0.000000e+00> : vector<64x16xf32>
    %140 = tpu.matmul %137, %139, %cst_106 {dimension_numbers = #tpu.dot_dimension_numbers<[1], [0], [0], [1], [0, 0, 1, 1], [], []>} : vector<64x32xf32>, vector<32x16xf32>, vector<64x16xf32> -> vector<64x16xf32>
    %c0_107 = arith.constant 0 : index
    %c0_108 = arith.constant 0 : index
    %c0_109 = arith.constant 0 : index
    %141 = vector.load %arg18[%c0_107, %c0_108, %c0_109] : memref<2x1x16xf32, #tpu.memory_space<vmem>>, vector<1x1x16xf32>
    %142 = vector.shape_cast %141 : vector<1x1x16xf32> to vector<1x16xf32>
    %143 = vector.broadcast %142 : vector<1x16xf32> to vector<64x16xf32>
    %144 = arith.addf %140, %143 : vector<64x16xf32>
    %145 = arith.addf %122, %144 : vector<64x16xf32>
    %c0_110 = arith.constant 0 : index
    %c0_111 = arith.constant 0 : index
    %c0_112 = arith.constant 0 : index
    %146 = vector.load %arg19[%c0_110, %c0_111, %c0_112] : memref<2x1x16xf32, #tpu.memory_space<vmem>>, vector<1x1x16xf32>
    %147 = vector.shape_cast %146 : vector<1x1x16xf32> to vector<1x16xf32>
    %c0_113 = arith.constant 0 : index
    %c0_114 = arith.constant 0 : index
    %c0_115 = arith.constant 0 : index
    %148 = vector.load %arg20[%c0_113, %c0_114, %c0_115] : memref<2x1x16xf32, #tpu.memory_space<vmem>>, vector<1x1x16xf32>
    %149 = vector.shape_cast %148 : vector<1x1x16xf32> to vector<1x16xf32>
    %cst_116 = arith.constant dense<0.000000e+00> : vector<64xf32>
    %150 = vector.multi_reduction <add>, %145, %cst_116 [1] : vector<64x16xf32> to vector<64xf32>
    %151 = vector.shape_cast %150 : vector<64xf32> to vector<64x1xf32>
    %cst_117 = arith.constant 1.600000e+01 : f32
    %152 = vector.broadcast %cst_117 : f32 to vector<64x1xf32>
    %153 = arith.divf %151, %152 : vector<64x1xf32>
    %154 = vector.broadcast %153 : vector<64x1xf32> to vector<64x16xf32>
    %155 = arith.subf %145, %154 : vector<64x16xf32>
    %156 = arith.mulf %155, %155 : vector<64x16xf32>
    %cst_118 = arith.constant dense<0.000000e+00> : vector<64xf32>
    %157 = vector.multi_reduction <add>, %156, %cst_118 [1] : vector<64x16xf32> to vector<64xf32>
    %158 = vector.shape_cast %157 : vector<64xf32> to vector<64x1xf32>
    %cst_119 = arith.constant 1.600000e+01 : f32
    %159 = vector.broadcast %cst_119 : f32 to vector<64x1xf32>
    %160 = arith.divf %158, %159 : vector<64x1xf32>
    %161 = vector.broadcast %153 : vector<64x1xf32> to vector<64x16xf32>
    %162 = arith.subf %145, %161 : vector<64x16xf32>
    %cst_120 = arith.constant 9.99999974E-6 : f32
    %163 = vector.broadcast %cst_120 : f32 to vector<64x1xf32>
    %164 = arith.addf %160, %163 : vector<64x1xf32>
    %165 = math.rsqrt %164 : vector<64x1xf32>
    %166 = vector.broadcast %165 : vector<64x1xf32> to vector<64x16xf32>
    %167 = arith.mulf %162, %166 : vector<64x16xf32>
    %168 = vector.broadcast %147 : vector<1x16xf32> to vector<64x16xf32>
    %169 = arith.mulf %167, %168 : vector<64x16xf32>
    %170 = vector.broadcast %149 : vector<1x16xf32> to vector<64x16xf32>
    %171 = arith.addf %169, %170 : vector<64x16xf32>
    %cst_121 = arith.constant 0.000000e+00 : f32
    %172 = vector.broadcast %cst_121 : f32 to vector<64x16xf32>
    %c1_122 = arith.constant 1 : index
    %c0_123 = arith.constant 0 : index
    %c0_124 = arith.constant 0 : index
    %c0_125 = arith.constant 0 : index
    %173 = vector.load %arg5[%c1_122, %c0_123, %c0_124, %c0_125] : memref<2x2x16x8xf32, #tpu.memory_space<vmem>>, vector<1x1x16x8xf32>
    %174 = vector.shape_cast %173 : vector<1x1x16x8xf32> to vector<16x8xf32>
    %cst_126 = arith.constant dense<0.000000e+00> : vector<64x8xf32>
    %175 = tpu.matmul %171, %174, %cst_126 {dimension_numbers = #tpu.dot_dimension_numbers<[1], [0], [0], [1], [0, 0, 1, 1], [], []>} : vector<64x16xf32>, vector<16x8xf32>, vector<64x8xf32> -> vector<64x8xf32>
    %c1_127 = arith.constant 1 : index
    %c0_128 = arith.constant 0 : index
    %c0_129 = arith.constant 0 : index
    %c0_130 = arith.constant 0 : index
    %176 = vector.load %arg6[%c1_127, %c0_128, %c0_129, %c0_130] : memref<2x2x1x8xf32, #tpu.memory_space<vmem>>, vector<1x1x1x8xf32>
    %177 = vector.shape_cast %176 : vector<1x1x1x8xf32> to vector<1x8xf32>
    %178 = vector.broadcast %177 : vector<1x8xf32> to vector<64x8xf32>
    %179 = arith.addf %175, %178 : vector<64x8xf32>
    %c1_131 = arith.constant 1 : index
    %c0_132 = arith.constant 0 : index
    %c0_133 = arith.constant 0 : index
    %c0_134 = arith.constant 0 : index
    %180 = vector.load %arg7[%c1_131, %c0_132, %c0_133, %c0_134] : memref<2x2x16x8xf32, #tpu.memory_space<vmem>>, vector<1x1x16x8xf32>
    %181 = vector.shape_cast %180 : vector<1x1x16x8xf32> to vector<16x8xf32>
    %cst_135 = arith.constant dense<0.000000e+00> : vector<64x8xf32>
    %182 = tpu.matmul %171, %181, %cst_135 {dimension_numbers = #tpu.dot_dimension_numbers<[1], [0], [0], [1], [0, 0, 1, 1], [], []>} : vector<64x16xf32>, vector<16x8xf32>, vector<64x8xf32> -> vector<64x8xf32>
    %c1_136 = arith.constant 1 : index
    %c0_137 = arith.constant 0 : index
    %c0_138 = arith.constant 0 : index
    %c0_139 = arith.constant 0 : index
    %183 = vector.load %arg8[%c1_136, %c0_137, %c0_138, %c0_139] : memref<2x2x1x8xf32, #tpu.memory_space<vmem>>, vector<1x1x1x8xf32>
    %184 = vector.shape_cast %183 : vector<1x1x1x8xf32> to vector<1x8xf32>
    %185 = vector.broadcast %184 : vector<1x8xf32> to vector<64x8xf32>
    %186 = arith.addf %182, %185 : vector<64x8xf32>
    %c1_140 = arith.constant 1 : index
    %c0_141 = arith.constant 0 : index
    %c0_142 = arith.constant 0 : index
    %c0_143 = arith.constant 0 : index
    %187 = vector.load %arg9[%c1_140, %c0_141, %c0_142, %c0_143] : memref<2x2x16x8xf32, #tpu.memory_space<vmem>>, vector<1x1x16x8xf32>
    %188 = vector.shape_cast %187 : vector<1x1x16x8xf32> to vector<16x8xf32>
    %cst_144 = arith.constant dense<0.000000e+00> : vector<64x8xf32>
    %189 = tpu.matmul %171, %188, %cst_144 {dimension_numbers = #tpu.dot_dimension_numbers<[1], [0], [0], [1], [0, 0, 1, 1], [], []>} : vector<64x16xf32>, vector<16x8xf32>, vector<64x8xf32> -> vector<64x8xf32>
    %c1_145 = arith.constant 1 : index
    %c0_146 = arith.constant 0 : index
    %c0_147 = arith.constant 0 : index
    %c0_148 = arith.constant 0 : index
    %190 = vector.load %arg10[%c1_145, %c0_146, %c0_147, %c0_148] : memref<2x2x1x8xf32, #tpu.memory_space<vmem>>, vector<1x1x1x8xf32>
    %191 = vector.shape_cast %190 : vector<1x1x1x8xf32> to vector<1x8xf32>
    %192 = vector.broadcast %191 : vector<1x8xf32> to vector<64x8xf32>
    %193 = arith.addf %189, %192 : vector<64x8xf32>
    %194 = vector.shape_cast %179 : vector<64x8xf32> to vector<8x8x8xf32>
    %195 = vector.shape_cast %186 : vector<64x8xf32> to vector<8x8x8xf32>
    %196 = vector.shape_cast %193 : vector<64x8xf32> to vector<8x8x8xf32>
    "tpu.trace_start"() <{level = 10 : i32, message = "bqd,bkd->bqk"}> : () -> ()
    %cst_149 = arith.constant dense<0.000000e+00> : vector<8x8x8xf32>
    %197 = tpu.matmul %194, %195, %cst_149 {dimension_numbers = #tpu.dot_dimension_numbers<[2], [2], [1], [1], [0, 0, 0, 1, 1, 1], [0], [0]>} : vector<8x8x8xf32>, vector<8x8x8xf32>, vector<8x8x8xf32> -> vector<8x8x8xf32>
    "tpu.trace_stop"() : () -> ()
    %cst_150 = arith.constant 0.353553385 : f32
    %198 = vector.broadcast %cst_150 : f32 to vector<8x8x8xf32>
    %199 = arith.mulf %197, %198 : vector<8x8x8xf32>
    %200 = arith.addf %199, %32 : vector<8x8x8xf32>
    %cst_151 = arith.constant dense<0xFF800000> : vector<8x8xf32>
    %201 = vector.multi_reduction <maximumf>, %200, %cst_151 [2] : vector<8x8x8xf32> to vector<8x8xf32>
    %202 = vector.shape_cast %201 : vector<8x8xf32> to vector<8x8x1xf32>
    %203 = vector.broadcast %202 : vector<8x8x1xf32> to vector<8x8x8xf32>
    %204 = arith.subf %200, %203 : vector<8x8x8xf32>
    %205 = math.exp %204 : vector<8x8x8xf32>
    %cst_152 = arith.constant dense<0.000000e+00> : vector<8x8xf32>
    %206 = vector.multi_reduction <add>, %205, %cst_152 [2] : vector<8x8x8xf32> to vector<8x8xf32>
    %207 = vector.shape_cast %206 : vector<8x8xf32> to vector<8x8x1xf32>
    %208 = tpu.reciprocal %207 {approx = true} : vector<8x8x1xf32> -> vector<8x8x1xf32>
    %209 = vector.broadcast %208 : vector<8x8x1xf32> to vector<8x8x8xf32>
    %210 = arith.mulf %205, %209 : vector<8x8x8xf32>
    "tpu.trace_start"() <{level = 10 : i32, message = "bqk,bkd->bqd"}> : () -> ()
    %cst_153 = arith.constant dense<0.000000e+00> : vector<8x8x8xf32>
    %211 = tpu.matmul %210, %196, %cst_153 {dimension_numbers = #tpu.dot_dimension_numbers<[2], [1], [1], [2], [0, 0, 0, 1, 1, 2], [0], [0]>} : vector<8x8x8xf32>, vector<8x8x8xf32>, vector<8x8x8xf32> -> vector<8x8x8xf32>
    "tpu.trace_stop"() : () -> ()
    %212 = vector.shape_cast %211 : vector<8x8x8xf32> to vector<64x8xf32>
    %c1_154 = arith.constant 1 : index
    %c0_155 = arith.constant 0 : index
    %c0_156 = arith.constant 0 : index
    %c0_157 = arith.constant 0 : index
    %213 = vector.load %arg11[%c1_154, %c0_155, %c0_156, %c0_157] : memref<2x2x8x16xf32, #tpu.memory_space<vmem>>, vector<1x1x8x16xf32>
    %214 = vector.shape_cast %213 : vector<1x1x8x16xf32> to vector<8x16xf32>
    %cst_158 = arith.constant dense<0.000000e+00> : vector<64x16xf32>
    %215 = tpu.matmul %212, %214, %cst_158 {dimension_numbers = #tpu.dot_dimension_numbers<[1], [0], [0], [1], [0, 0, 1, 1], [], []>} : vector<64x8xf32>, vector<8x16xf32>, vector<64x16xf32> -> vector<64x16xf32>
    %216 = arith.addf %172, %215 : vector<64x16xf32>
    %c1_159 = arith.constant 1 : index
    %c1_160 = arith.constant 1 : index
    %c0_161 = arith.constant 0 : index
    %c0_162 = arith.constant 0 : index
    %217 = vector.load %arg5[%c1_159, %c1_160, %c0_161, %c0_162] : memref<2x2x16x8xf32, #tpu.memory_space<vmem>>, vector<1x1x16x8xf32>
    %218 = vector.shape_cast %217 : vector<1x1x16x8xf32> to vector<16x8xf32>
    %cst_163 = arith.constant dense<0.000000e+00> : vector<64x8xf32>
    %219 = tpu.matmul %171, %218, %cst_163 {dimension_numbers = #tpu.dot_dimension_numbers<[1], [0], [0], [1], [0, 0, 1, 1], [], []>} : vector<64x16xf32>, vector<16x8xf32>, vector<64x8xf32> -> vector<64x8xf32>
    %c1_164 = arith.constant 1 : index
    %c1_165 = arith.constant 1 : index
    %c0_166 = arith.constant 0 : index
    %c0_167 = arith.constant 0 : index
    %220 = vector.load %arg6[%c1_164, %c1_165, %c0_166, %c0_167] : memref<2x2x1x8xf32, #tpu.memory_space<vmem>>, vector<1x1x1x8xf32>
    %221 = vector.shape_cast %220 : vector<1x1x1x8xf32> to vector<1x8xf32>
    %222 = vector.broadcast %221 : vector<1x8xf32> to vector<64x8xf32>
    %223 = arith.addf %219, %222 : vector<64x8xf32>
    %c1_168 = arith.constant 1 : index
    %c1_169 = arith.constant 1 : index
    %c0_170 = arith.constant 0 : index
    %c0_171 = arith.constant 0 : index
    %224 = vector.load %arg7[%c1_168, %c1_169, %c0_170, %c0_171] : memref<2x2x16x8xf32, #tpu.memory_space<vmem>>, vector<1x1x16x8xf32>
    %225 = vector.shape_cast %224 : vector<1x1x16x8xf32> to vector<16x8xf32>
    %cst_172 = arith.constant dense<0.000000e+00> : vector<64x8xf32>
    %226 = tpu.matmul %171, %225, %cst_172 {dimension_numbers = #tpu.dot_dimension_numbers<[1], [0], [0], [1], [0, 0, 1, 1], [], []>} : vector<64x16xf32>, vector<16x8xf32>, vector<64x8xf32> -> vector<64x8xf32>
    %c1_173 = arith.constant 1 : index
    %c1_174 = arith.constant 1 : index
    %c0_175 = arith.constant 0 : index
    %c0_176 = arith.constant 0 : index
    %227 = vector.load %arg8[%c1_173, %c1_174, %c0_175, %c0_176] : memref<2x2x1x8xf32, #tpu.memory_space<vmem>>, vector<1x1x1x8xf32>
    %228 = vector.shape_cast %227 : vector<1x1x1x8xf32> to vector<1x8xf32>
    %229 = vector.broadcast %228 : vector<1x8xf32> to vector<64x8xf32>
    %230 = arith.addf %226, %229 : vector<64x8xf32>
    %c1_177 = arith.constant 1 : index
    %c1_178 = arith.constant 1 : index
    %c0_179 = arith.constant 0 : index
    %c0_180 = arith.constant 0 : index
    %231 = vector.load %arg9[%c1_177, %c1_178, %c0_179, %c0_180] : memref<2x2x16x8xf32, #tpu.memory_space<vmem>>, vector<1x1x16x8xf32>
    %232 = vector.shape_cast %231 : vector<1x1x16x8xf32> to vector<16x8xf32>
    %cst_181 = arith.constant dense<0.000000e+00> : vector<64x8xf32>
    %233 = tpu.matmul %171, %232, %cst_181 {dimension_numbers = #tpu.dot_dimension_numbers<[1], [0], [0], [1], [0, 0, 1, 1], [], []>} : vector<64x16xf32>, vector<16x8xf32>, vector<64x8xf32> -> vector<64x8xf32>
    %c1_182 = arith.constant 1 : index
    %c1_183 = arith.constant 1 : index
    %c0_184 = arith.constant 0 : index
    %c0_185 = arith.constant 0 : index
    %234 = vector.load %arg10[%c1_182, %c1_183, %c0_184, %c0_185] : memref<2x2x1x8xf32, #tpu.memory_space<vmem>>, vector<1x1x1x8xf32>
    %235 = vector.shape_cast %234 : vector<1x1x1x8xf32> to vector<1x8xf32>
    %236 = vector.broadcast %235 : vector<1x8xf32> to vector<64x8xf32>
    %237 = arith.addf %233, %236 : vector<64x8xf32>
    %238 = vector.shape_cast %223 : vector<64x8xf32> to vector<8x8x8xf32>
    %239 = vector.shape_cast %230 : vector<64x8xf32> to vector<8x8x8xf32>
    %240 = vector.shape_cast %237 : vector<64x8xf32> to vector<8x8x8xf32>
    "tpu.trace_start"() <{level = 10 : i32, message = "bqd,bkd->bqk"}> : () -> ()
    %cst_186 = arith.constant dense<0.000000e+00> : vector<8x8x8xf32>
    %241 = tpu.matmul %238, %239, %cst_186 {dimension_numbers = #tpu.dot_dimension_numbers<[2], [2], [1], [1], [0, 0, 0, 1, 1, 1], [0], [0]>} : vector<8x8x8xf32>, vector<8x8x8xf32>, vector<8x8x8xf32> -> vector<8x8x8xf32>
    "tpu.trace_stop"() : () -> ()
    %cst_187 = arith.constant 0.353553385 : f32
    %242 = vector.broadcast %cst_187 : f32 to vector<8x8x8xf32>
    %243 = arith.mulf %241, %242 : vector<8x8x8xf32>
    %244 = arith.addf %243, %75 : vector<8x8x8xf32>
    %cst_188 = arith.constant dense<0xFF800000> : vector<8x8xf32>
    %245 = vector.multi_reduction <maximumf>, %244, %cst_188 [2] : vector<8x8x8xf32> to vector<8x8xf32>
    %246 = vector.shape_cast %245 : vector<8x8xf32> to vector<8x8x1xf32>
    %247 = vector.broadcast %246 : vector<8x8x1xf32> to vector<8x8x8xf32>
    %248 = arith.subf %244, %247 : vector<8x8x8xf32>
    %249 = math.exp %248 : vector<8x8x8xf32>
    %cst_189 = arith.constant dense<0.000000e+00> : vector<8x8xf32>
    %250 = vector.multi_reduction <add>, %249, %cst_189 [2] : vector<8x8x8xf32> to vector<8x8xf32>
    %251 = vector.shape_cast %250 : vector<8x8xf32> to vector<8x8x1xf32>
    %252 = tpu.reciprocal %251 {approx = true} : vector<8x8x1xf32> -> vector<8x8x1xf32>
    %253 = vector.broadcast %252 : vector<8x8x1xf32> to vector<8x8x8xf32>
    %254 = arith.mulf %249, %253 : vector<8x8x8xf32>
    "tpu.trace_start"() <{level = 10 : i32, message = "bqk,bkd->bqd"}> : () -> ()
    %cst_190 = arith.constant dense<0.000000e+00> : vector<8x8x8xf32>
    %255 = tpu.matmul %254, %240, %cst_190 {dimension_numbers = #tpu.dot_dimension_numbers<[2], [1], [1], [2], [0, 0, 0, 1, 1, 2], [0], [0]>} : vector<8x8x8xf32>, vector<8x8x8xf32>, vector<8x8x8xf32> -> vector<8x8x8xf32>
    "tpu.trace_stop"() : () -> ()
    %256 = vector.shape_cast %255 : vector<8x8x8xf32> to vector<64x8xf32>
    %c1_191 = arith.constant 1 : index
    %c1_192 = arith.constant 1 : index
    %c0_193 = arith.constant 0 : index
    %c0_194 = arith.constant 0 : index
    %257 = vector.load %arg11[%c1_191, %c1_192, %c0_193, %c0_194] : memref<2x2x8x16xf32, #tpu.memory_space<vmem>>, vector<1x1x8x16xf32>
    %258 = vector.shape_cast %257 : vector<1x1x8x16xf32> to vector<8x16xf32>
    %cst_195 = arith.constant dense<0.000000e+00> : vector<64x16xf32>
    %259 = tpu.matmul %256, %258, %cst_195 {dimension_numbers = #tpu.dot_dimension_numbers<[1], [0], [0], [1], [0, 0, 1, 1], [], []>} : vector<64x8xf32>, vector<8x16xf32>, vector<64x16xf32> -> vector<64x16xf32>
    %260 = arith.addf %216, %259 : vector<64x16xf32>
    %c1_196 = arith.constant 1 : index
    %c0_197 = arith.constant 0 : index
    %c0_198 = arith.constant 0 : index
    %261 = vector.load %arg12[%c1_196, %c0_197, %c0_198] : memref<2x1x16xf32, #tpu.memory_space<vmem>>, vector<1x1x16xf32>
    %262 = vector.shape_cast %261 : vector<1x1x16xf32> to vector<1x16xf32>
    %263 = vector.broadcast %262 : vector<1x16xf32> to vector<64x16xf32>
    %264 = arith.addf %260, %263 : vector<64x16xf32>
    %265 = arith.addf %171, %264 : vector<64x16xf32>
    %c1_199 = arith.constant 1 : index
    %c0_200 = arith.constant 0 : index
    %c0_201 = arith.constant 0 : index
    %266 = vector.load %arg13[%c1_199, %c0_200, %c0_201] : memref<2x1x16xf32, #tpu.memory_space<vmem>>, vector<1x1x16xf32>
    %267 = vector.shape_cast %266 : vector<1x1x16xf32> to vector<1x16xf32>
    %c1_202 = arith.constant 1 : index
    %c0_203 = arith.constant 0 : index
    %c0_204 = arith.constant 0 : index
    %268 = vector.load %arg14[%c1_202, %c0_203, %c0_204] : memref<2x1x16xf32, #tpu.memory_space<vmem>>, vector<1x1x16xf32>
    %269 = vector.shape_cast %268 : vector<1x1x16xf32> to vector<1x16xf32>
    %cst_205 = arith.constant dense<0.000000e+00> : vector<64xf32>
    %270 = vector.multi_reduction <add>, %265, %cst_205 [1] : vector<64x16xf32> to vector<64xf32>
    %271 = vector.shape_cast %270 : vector<64xf32> to vector<64x1xf32>
    %cst_206 = arith.constant 1.600000e+01 : f32
    %272 = vector.broadcast %cst_206 : f32 to vector<64x1xf32>
    %273 = arith.divf %271, %272 : vector<64x1xf32>
    %274 = vector.broadcast %273 : vector<64x1xf32> to vector<64x16xf32>
    %275 = arith.subf %265, %274 : vector<64x16xf32>
    %276 = arith.mulf %275, %275 : vector<64x16xf32>
    %cst_207 = arith.constant dense<0.000000e+00> : vector<64xf32>
    %277 = vector.multi_reduction <add>, %276, %cst_207 [1] : vector<64x16xf32> to vector<64xf32>
    %278 = vector.shape_cast %277 : vector<64xf32> to vector<64x1xf32>
    %cst_208 = arith.constant 1.600000e+01 : f32
    %279 = vector.broadcast %cst_208 : f32 to vector<64x1xf32>
    %280 = arith.divf %278, %279 : vector<64x1xf32>
    %281 = vector.broadcast %273 : vector<64x1xf32> to vector<64x16xf32>
    %282 = arith.subf %265, %281 : vector<64x16xf32>
    %cst_209 = arith.constant 9.99999974E-6 : f32
    %283 = vector.broadcast %cst_209 : f32 to vector<64x1xf32>
    %284 = arith.addf %280, %283 : vector<64x1xf32>
    %285 = math.rsqrt %284 : vector<64x1xf32>
    %286 = vector.broadcast %285 : vector<64x1xf32> to vector<64x16xf32>
    %287 = arith.mulf %282, %286 : vector<64x16xf32>
    %288 = vector.broadcast %267 : vector<1x16xf32> to vector<64x16xf32>
    %289 = arith.mulf %287, %288 : vector<64x16xf32>
    %290 = vector.broadcast %269 : vector<1x16xf32> to vector<64x16xf32>
    %291 = arith.addf %289, %290 : vector<64x16xf32>
    %c1_210 = arith.constant 1 : index
    %c0_211 = arith.constant 0 : index
    %c0_212 = arith.constant 0 : index
    %292 = vector.load %arg15[%c1_210, %c0_211, %c0_212] : memref<2x16x32xf32, #tpu.memory_space<vmem>>, vector<1x16x32xf32>
    %293 = vector.shape_cast %292 : vector<1x16x32xf32> to vector<16x32xf32>
    %cst_213 = arith.constant dense<0.000000e+00> : vector<64x32xf32>
    %294 = tpu.matmul %291, %293, %cst_213 {dimension_numbers = #tpu.dot_dimension_numbers<[1], [0], [0], [1], [0, 0, 1, 1], [], []>} : vector<64x16xf32>, vector<16x32xf32>, vector<64x32xf32> -> vector<64x32xf32>
    %c1_214 = arith.constant 1 : index
    %c0_215 = arith.constant 0 : index
    %c0_216 = arith.constant 0 : index
    %295 = vector.load %arg16[%c1_214, %c0_215, %c0_216] : memref<2x1x32xf32, #tpu.memory_space<vmem>>, vector<1x1x32xf32>
    %296 = vector.shape_cast %295 : vector<1x1x32xf32> to vector<1x32xf32>
    %297 = vector.broadcast %296 : vector<1x32xf32> to vector<64x32xf32>
    %298 = arith.addf %294, %297 : vector<64x32xf32>
    %cst_217 = arith.constant 5.000000e-01 : f32
    %299 = vector.broadcast %cst_217 : f32 to vector<64x32xf32>
    %300 = arith.mulf %299, %298 : vector<64x32xf32>
    %cst_218 = arith.constant 0.707106769 : f32
    %301 = vector.broadcast %cst_218 : f32 to vector<64x32xf32>
    %302 = arith.mulf %298, %301 : vector<64x32xf32>
    %303 = math.erf %302 : vector<64x32xf32>
    %cst_219 = arith.constant 1.000000e+00 : f32
    %304 = vector.broadcast %cst_219 : f32 to vector<64x32xf32>
    %305 = arith.addf %304, %303 : vector<64x32xf32>
    %306 = arith.mulf %300, %305 : vector<64x32xf32>
    %c1_220 = arith.constant 1 : index
    %c0_221 = arith.constant 0 : index
    %c0_222 = arith.constant 0 : index
    %307 = vector.load %arg17[%c1_220, %c0_221, %c0_222] : memref<2x32x16xf32, #tpu.memory_space<vmem>>, vector<1x32x16xf32>
    %308 = vector.shape_cast %307 : vector<1x32x16xf32> to vector<32x16xf32>
    %cst_223 = arith.constant dense<0.000000e+00> : vector<64x16xf32>
    %309 = tpu.matmul %306, %308, %cst_223 {dimension_numbers = #tpu.dot_dimension_numbers<[1], [0], [0], [1], [0, 0, 1, 1], [], []>} : vector<64x32xf32>, vector<32x16xf32>, vector<64x16xf32> -> vector<64x16xf32>
    %c1_224 = arith.constant 1 : index
    %c0_225 = arith.constant 0 : index
    %c0_226 = arith.constant 0 : index
    %310 = vector.load %arg18[%c1_224, %c0_225, %c0_226] : memref<2x1x16xf32, #tpu.memory_space<vmem>>, vector<1x1x16xf32>
    %311 = vector.shape_cast %310 : vector<1x1x16xf32> to vector<1x16xf32>
    %312 = vector.broadcast %311 : vector<1x16xf32> to vector<64x16xf32>
    %313 = arith.addf %309, %312 : vector<64x16xf32>
    %314 = arith.addf %291, %313 : vector<64x16xf32>
    %c1_227 = arith.constant 1 : index
    %c0_228 = arith.constant 0 : index
    %c0_229 = arith.constant 0 : index
    %315 = vector.load %arg19[%c1_227, %c0_228, %c0_229] : memref<2x1x16xf32, #tpu.memory_space<vmem>>, vector<1x1x16xf32>
    %316 = vector.shape_cast %315 : vector<1x1x16xf32> to vector<1x16xf32>
    %c1_230 = arith.constant 1 : index
    %c0_231 = arith.constant 0 : index
    %c0_232 = arith.constant 0 : index
    %317 = vector.load %arg20[%c1_230, %c0_231, %c0_232] : memref<2x1x16xf32, #tpu.memory_space<vmem>>, vector<1x1x16xf32>
    %318 = vector.shape_cast %317 : vector<1x1x16xf32> to vector<1x16xf32>
    %cst_233 = arith.constant dense<0.000000e+00> : vector<64xf32>
    %319 = vector.multi_reduction <add>, %314, %cst_233 [1] : vector<64x16xf32> to vector<64xf32>
    %320 = vector.shape_cast %319 : vector<64xf32> to vector<64x1xf32>
    %cst_234 = arith.constant 1.600000e+01 : f32
    %321 = vector.broadcast %cst_234 : f32 to vector<64x1xf32>
    %322 = arith.divf %320, %321 : vector<64x1xf32>
    %323 = vector.broadcast %322 : vector<64x1xf32> to vector<64x16xf32>
    %324 = arith.subf %314, %323 : vector<64x16xf32>
    %325 = arith.mulf %324, %324 : vector<64x16xf32>
    %cst_235 = arith.constant dense<0.000000e+00> : vector<64xf32>
    %326 = vector.multi_reduction <add>, %325, %cst_235 [1] : vector<64x16xf32> to vector<64xf32>
    %327 = vector.shape_cast %326 : vector<64xf32> to vector<64x1xf32>
    %cst_236 = arith.constant 1.600000e+01 : f32
    %328 = vector.broadcast %cst_236 : f32 to vector<64x1xf32>
    %329 = arith.divf %327, %328 : vector<64x1xf32>
    %330 = vector.broadcast %322 : vector<64x1xf32> to vector<64x16xf32>
    %331 = arith.subf %314, %330 : vector<64x16xf32>
    %cst_237 = arith.constant 9.99999974E-6 : f32
    %332 = vector.broadcast %cst_237 : f32 to vector<64x1xf32>
    %333 = arith.addf %329, %332 : vector<64x1xf32>
    %334 = math.rsqrt %333 : vector<64x1xf32>
    %335 = vector.broadcast %334 : vector<64x1xf32> to vector<64x16xf32>
    %336 = arith.mulf %331, %335 : vector<64x16xf32>
    %337 = vector.broadcast %316 : vector<1x16xf32> to vector<64x16xf32>
    %338 = arith.mulf %336, %337 : vector<64x16xf32>
    %339 = vector.broadcast %318 : vector<1x16xf32> to vector<64x16xf32>
    %340 = arith.addf %338, %339 : vector<64x16xf32>
    %341 = vector.shape_cast %340 : vector<64x16xf32> to vector<8x8x16xf32>
    %342 = vector.extract_strided_slice %341 {offsets = [0, 0, 0], sizes = [8, 1, 16], strides = [1, 1, 1]} : vector<8x8x16xf32> to vector<8x1x16xf32>
    %343 = vector.shape_cast %342 : vector<8x1x16xf32> to vector<8x16xf32>
    %344 = vector.extract_strided_slice %341 {offsets = [0, 1, 0], sizes = [8, 1, 16], strides = [1, 1, 1]} : vector<8x8x16xf32> to vector<8x1x16xf32>
    %345 = vector.shape_cast %344 : vector<8x1x16xf32> to vector<8x16xf32>
    %346 = vector.extract_strided_slice %341 {offsets = [0, 2, 0], sizes = [8, 1, 16], strides = [1, 1, 1]} : vector<8x8x16xf32> to vector<8x1x16xf32>
    %347 = vector.shape_cast %346 : vector<8x1x16xf32> to vector<8x16xf32>
    %348 = vector.extract_strided_slice %341 {offsets = [0, 3, 0], sizes = [8, 1, 16], strides = [1, 1, 1]} : vector<8x8x16xf32> to vector<8x1x16xf32>
    %349 = vector.shape_cast %348 : vector<8x1x16xf32> to vector<8x16xf32>
    %350 = vector.extract_strided_slice %341 {offsets = [0, 4, 0], sizes = [8, 1, 16], strides = [1, 1, 1]} : vector<8x8x16xf32> to vector<8x1x16xf32>
    %351 = vector.shape_cast %350 : vector<8x1x16xf32> to vector<8x16xf32>
    %352 = vector.extract_strided_slice %341 {offsets = [0, 5, 0], sizes = [8, 1, 16], strides = [1, 1, 1]} : vector<8x8x16xf32> to vector<8x1x16xf32>
    %353 = vector.shape_cast %352 : vector<8x1x16xf32> to vector<8x16xf32>
    %354 = vector.extract_strided_slice %341 {offsets = [0, 6, 0], sizes = [8, 1, 16], strides = [1, 1, 1]} : vector<8x8x16xf32> to vector<8x1x16xf32>
    %355 = vector.shape_cast %354 : vector<8x1x16xf32> to vector<8x16xf32>
    %356 = vector.extract_strided_slice %341 {offsets = [0, 7, 0], sizes = [8, 1, 16], strides = [1, 1, 1]} : vector<8x8x16xf32> to vector<8x1x16xf32>
    %357 = vector.shape_cast %356 : vector<8x1x16xf32> to vector<8x16xf32>
    %358 = tpu.concatenate %343, %345, %347, %349, %351, %353, %355, %357 in 1 : vector<8x16xf32>, vector<8x16xf32>, vector<8x16xf32>, vector<8x16xf32>, vector<8x16xf32>, vector<8x16xf32>, vector<8x16xf32>, vector<8x16xf32> -> vector<8x128xf32>
    %c0_238 = arith.constant 0 : index
    %c0_239 = arith.constant 0 : index
    %359 = vector.load %arg21[%c0_238, %c0_239] : memref<128x8xf32, #tpu.memory_space<vmem>>, vector<128x8xf32>
    %cst_240 = arith.constant dense<0.000000e+00> : vector<8x8xf32>
    %360 = tpu.matmul %358, %359, %cst_240 {dimension_numbers = #tpu.dot_dimension_numbers<[1], [0], [0], [1], [0, 0, 1, 1], [], []>} : vector<8x128xf32>, vector<128x8xf32>, vector<8x8xf32> -> vector<8x8xf32>
    %c0_241 = arith.constant 0 : index
    %c0_242 = arith.constant 0 : index
    %361 = vector.load %arg22[%c0_241, %c0_242] : memref<1x8xf32, #tpu.memory_space<vmem>>, vector<1x8xf32>
    %362 = vector.broadcast %361 : vector<1x8xf32> to vector<8x8xf32>
    %363 = arith.addf %360, %362 : vector<8x8xf32>
    %c0_243 = arith.constant 0 : index
    %c0_244 = arith.constant 0 : index
    %364 = vector.load %arg2[%c0_243, %c0_244] : memref<8x1xf32, #tpu.memory_space<vmem>>, vector<8x1xf32>
    %365 = vector.broadcast %364 : vector<8x1xf32> to vector<8x8xf32>
    %366 = arith.mulf %363, %365 : vector<8x8xf32>
    %c0_245 = arith.constant 0 : index
    %c0_246 = arith.constant 0 : index
    %367 = vector.load %arg1[%c0_245, %c0_246] : memref<8x1xf32, #tpu.memory_space<vmem>>, vector<8x1xf32>
    %368 = vector.broadcast %367 : vector<8x1xf32> to vector<8x8xf32>
    %369 = arith.addf %366, %368 : vector<8x8xf32>
    %c0_247 = arith.constant 0 : index
    %c0_248 = arith.constant 0 : index
    %370 = vector.load %arg23[%c0_247, %c0_248] : memref<8x8xf32, #tpu.memory_space<vmem>>, vector<8x8xf32>
    tpu.vector_store %arg23[%c0_247, %c0_248], %369 {strides = array<i32>} : memref<8x8xf32, #tpu.memory_space<vmem>>, vector<8x8xf32>,
    return
  }
}

</mosaic_0001>

<llo_original>
// kernel: patchtst_forward.1
$region0: #{patchtst_forward.1}
  #allocation0 [shape = 'u32[]', space=smem, size = 0x4, offset = 0x4, fixed_abs, tag = 'smem constant byte address 0x4 - core index']
  #allocation1 [shape = 'u32[144,128]{1,0:T(1,128)}', space=vmem, size = 0x12000, scoped, tag = 'internal scratch']
  %s0 = inlined_call_operand.vmem [shape: f32[64,4], index: 0, kind: input, shape index: {}]
  %s1 = inlined_call_operand.vmem [shape: f32[8,1], index: 1, kind: input, shape index: {}]
  %s2 = inlined_call_operand.vmem [shape: f32[8,1], index: 2, kind: input, shape index: {}]
  %s3 = inlined_call_operand.vmem [shape: f32[4,16], index: 3, kind: input, shape index: {}]
  %s4 = inlined_call_operand.vmem [shape: f32[64,16], index: 4, kind: input, shape index: {}]
  %s5 = inlined_call_operand.vmem [shape: f32[2,2,16,8], index: 5, kind: input, shape index: {}]
  %s6 = inlined_call_operand.vmem [shape: f32[2,2,1,8], index: 6, kind: input, shape index: {}]
  %s7 = inlined_call_operand.vmem [shape: f32[2,2,16,8], index: 7, kind: input, shape index: {}]
  %s8 = inlined_call_operand.vmem [shape: f32[2,2,1,8], index: 8, kind: input, shape index: {}]
  %s9 = inlined_call_operand.vmem [shape: f32[2,2,16,8], index: 9, kind: input, shape index: {}]
  %s10 = inlined_call_operand.vmem [shape: f32[2,2,1,8], index: 10, kind: input, shape index: {}]
  %s11 = inlined_call_operand.vmem [shape: f32[2,2,8,16], index: 11, kind: input, shape index: {}]
  %s12 = inlined_call_operand.vmem [shape: f32[2,1,16], index: 12, kind: input, shape index: {}]
  %s13 = inlined_call_operand.vmem [shape: f32[2,1,16], index: 13, kind: input, shape index: {}]
  %s14 = inlined_call_operand.vmem [shape: f32[2,1,16], index: 14, kind: input, shape index: {}]
  %s15 = inlined_call_operand.vmem [shape: f32[2,16,32], index: 15, kind: input, shape index: {}]
  %s16 = inlined_call_operand.vmem [shape: f32[2,1,32], index: 16, kind: input, shape index: {}]
  %s17 = inlined_call_operand.vmem [shape: f32[2,32,16], index: 17, kind: input, shape index: {}]
  %s18 = inlined_call_operand.vmem [shape: f32[2,1,16], index: 18, kind: input, shape index: {}]
  %s19 = inlined_call_operand.vmem [shape: f32[2,1,16], index: 19, kind: input, shape index: {}]
  %s20 = inlined_call_operand.vmem [shape: f32[2,1,16], index: 20, kind: input, shape index: {}]
  %s21 = inlined_call_operand.vmem [shape: f32[128,8], index: 21, kind: input, shape index: {}]
  %s22 = inlined_call_operand.vmem [shape: f32[1,8], index: 22, kind: input, shape index: {}]
  %s23 = inlined_call_operand.vmem [shape: f32[8,8], index: 23, kind: output, shape index: {}]
  %s24 = sld [smem:[#allocation0]]
  $region102: #{patchtst_forward.1} parent=0
    _
  %s26 = ssub.s32 1, %s24
  %s27 = scalar_select 0, %s26, %s24
  // Predicated region
  $region2: #{patchtst_forward.1} parent=0 // pred_check
    _
  $region3: #{patchtst_forward.1} parent=0 // pred_check_branch
    %29 = sbr.rel (0) target = $region5
  $region4: #{patchtst_forward.1} parent=0 // pred_region
    _
  $region5: #{patchtst_forward.1} parent=0 // pred_fallthru
    _
  // Predicated region
  $region6: #{patchtst_forward.1} parent=0 // pred_check
    _
  $region7: #{patchtst_forward.1} parent=0 // pred_check_branch
    %31 = sbr.rel (0) target = $region9
  $region8: #{patchtst_forward.1} parent=0 // pred_region
    _
  $region9: #{patchtst_forward.1} parent=0 // pred_fallthru
    _
  // Predicated region
  $region10: #{patchtst_forward.1} parent=0 // pred_check
    _
  $region11: #{patchtst_forward.1} parent=0 // pred_check_branch
    %33 = sbr.rel (0) target = $region13
  $region12: #{patchtst_forward.1} parent=0 // pred_region
    _
  $region13: #{patchtst_forward.1} parent=0 // pred_fallthru
    _
  // Predicated region
  $region14: #{patchtst_forward.1} parent=0 // pred_check
    _
  $region15: #{patchtst_forward.1} parent=0 // pred_check_branch
    %35 = sbr.rel (0) target = $region17
  $region16: #{patchtst_forward.1} parent=0 // pred_region
    _
  $region17: #{patchtst_forward.1} parent=0 // pred_fallthru
    _
  // Predicated region
  $region18: #{patchtst_forward.1} parent=0 // pred_check
    _
  $region19: #{patchtst_forward.1} parent=0 // pred_check_branch
    %37 = sbr.rel (0) target = $region21
  $region20: #{patchtst_forward.1} parent=0 // pred_region
    _
  $region21: #{patchtst_forward.1} parent=0 // pred_fallthru
    _
  // Predicated region
  $region22: #{patchtst_forward.1} parent=0 // pred_check
    _
  $region23: #{patchtst_forward.1} parent=0 // pred_check_branch
    %39 = sbr.rel (0) target = $region25
  $region24: #{patchtst_forward.1} parent=0 // pred_region
    _
  $region25: #{patchtst_forward.1} parent=0 // pred_fallthru
    _
  // Predicated region
  $region26: #{patchtst_forward.1} parent=0 // pred_check
    _
  $region27: #{patchtst_forward.1} parent=0 // pred_check_branch
    %41 = sbr.rel (0) target = $region29
  $region28: #{patchtst_forward.1} parent=0 // pred_region
    _
  $region29: #{patchtst_forward.1} parent=0 // pred_fallthru
    _
  // Predicated region
  $region30: #{patchtst_forward.1} parent=0 // pred_check
    _
  $region31: #{patchtst_forward.1} parent=0 // pred_check_branch
    %43 = sbr.rel (0) target = $region33
  $region32: #{patchtst_forward.1} parent=0 // pred_region
    _
  $region33: #{patchtst_forward.1} parent=0 // pred_fallthru
    _
  // Predicated region
  $region34: #{patchtst_forward.1} parent=0 // pred_check
    _
  $region35: #{patchtst_forward.1} parent=0 // pred_check_branch
    %45 = sbr.rel (0) target = $region37
  $region36: #{patchtst_forward.1} parent=0 // pred_region
    _
  $region37: #{patchtst_forward.1} parent=0 // pred_fallthru
    _
  // Predicated region
  $region38: #{patchtst_forward.1} parent=0 // pred_check
    _
  $region39: #{patchtst_forward.1} parent=0 // pred_check_branch
    %47 = sbr.rel (0) target = $region41
  $region40: #{patchtst_forward.1} parent=0 // pred_region
    _
  $region41: #{patchtst_forward.1} parent=0 // pred_fallthru
    _
  // Predicated region
  $region42: #{patchtst_forward.1} parent=0 // pred_check
    _
  $region43: #{patchtst_forward.1} parent=0 // pred_check_branch
    %49 = sbr.rel (0) target = $region45
  $region44: #{patchtst_forward.1} parent=0 // pred_region
    _
  $region45: #{patchtst_forward.1} parent=0 // pred_fallthru
    _
  // Predicated region
  $region46: #{patchtst_forward.1} parent=0 // pred_check
    _
  $region47: #{patchtst_forward.1} parent=0 // pred_check_branch
    %51 = sbr.rel (0) target = $region49
  $region48: #{patchtst_forward.1} parent=0 // pred_region
    _
  $region49: #{patchtst_forward.1} parent=0 // pred_fallthru
    _
  // Predicated region
  $region50: #{patchtst_forward.1} parent=0 // pred_check
    _
  $region51: #{patchtst_forward.1} parent=0 // pred_check_branch
    %53 = sbr.rel (0) target = $region53
  $region52: #{patchtst_forward.1} parent=0 // pred_region
    _
  $region53: #{patchtst_forward.1} parent=0 // pred_fallthru
    _
  // Predicated region
  $region54: #{patchtst_forward.1} parent=0 // pred_check
    _
  $region55: #{patchtst_forward.1} parent=0 // pred_check_branch
    %55 = sbr.rel (0) target = $region57
  $region56: #{patchtst_forward.1} parent=0 // pred_region
    _
  $region57: #{patchtst_forward.1} parent=0 // pred_fallthru
    _
  // Predicated region
  $region58: #{patchtst_forward.1} parent=0 // pred_check
    _
  $region59: #{patchtst_forward.1} parent=0 // pred_check_branch
    %57 = sbr.rel (0) target = $region61
  $region60: #{patchtst_forward.1} parent=0 // pred_region
    _
  $region61: #{patchtst_forward.1} parent=0 // pred_fallthru
    _
  // Predicated region
  $region62: #{patchtst_forward.1} parent=0 // pred_check
    _
  $region63: #{patchtst_forward.1} parent=0 // pred_check_branch
    %59 = sbr.rel (0) target = $region65
  $region64: #{patchtst_forward.1} parent=0 // pred_region
    _
  $region65: #{patchtst_forward.1} parent=0 // pred_fallthru
    _
  // Predicated region
  $region66: #{patchtst_forward.1} parent=0 // pred_check
    _
  $region67: #{patchtst_forward.1} parent=0 // pred_check_branch
    %61 = sbr.rel (0) target = $region69
  $region68: #{patchtst_forward.1} parent=0 // pred_region
    _
  $region69: #{patchtst_forward.1} parent=0 // pred_fallthru
    _
  // Predicated region
  $region70: #{patchtst_forward.1} parent=0 // pred_check
    _
  $region71: #{patchtst_forward.1} parent=0 // pred_check_branch
    %63 = sbr.rel (0) target = $region73
  $region72: #{patchtst_forward.1} parent=0 // pred_region
    _
  $region73: #{patchtst_forward.1} parent=0 // pred_fallthru
    _
  // Predicated region
  $region74: #{patchtst_forward.1} parent=0 // pred_check
    _
  $region75: #{patchtst_forward.1} parent=0 // pred_check_branch
    %65 = sbr.rel (0) target = $region77
  $region76: #{patchtst_forward.1} parent=0 // pred_region
    _
  $region77: #{patchtst_forward.1} parent=0 // pred_fallthru
    _
  // Predicated region
  $region78: #{patchtst_forward.1} parent=0 // pred_check
    _
  $region79: #{patchtst_forward.1} parent=0 // pred_check_branch
    %67 = sbr.rel (0) target = $region81
  $region80: #{patchtst_forward.1} parent=0 // pred_region
    _
  $region81: #{patchtst_forward.1} parent=0 // pred_fallthru
    _
  // Predicated region
  $region82: #{patchtst_forward.1} parent=0 // pred_check
    _
  $region83: #{patchtst_forward.1} parent=0 // pred_check_branch
    %69 = sbr.rel (0) target = $region85
  $region84: #{patchtst_forward.1} parent=0 // pred_region
    _
  $region85: #{patchtst_forward.1} parent=0 // pred_fallthru
    _
  // Predicated region
  $region86: #{patchtst_forward.1} parent=0 // pred_check
    _
  $region87: #{patchtst_forward.1} parent=0 // pred_check_branch
    %71 = sbr.rel (0) target = $region89
  $region88: #{patchtst_forward.1} parent=0 // pred_region
    _
  $region89: #{patchtst_forward.1} parent=0 // pred_fallthru
    _
  // Predicated region
  $region90: #{patchtst_forward.1} parent=0 // pred_check
    _
  $region91: #{patchtst_forward.1} parent=0 // pred_check_branch
    %73 = sbr.rel (0) target = $region93
  $region92: #{patchtst_forward.1} parent=0 // pred_region
    _
  $region93: #{patchtst_forward.1} parent=0 // pred_fallthru
    _
  %v74 = vld [vmem:[%s0] sm:$0xff]
  %v75 = vld [vmem:[%s0 + $0x8] sm:$0xff]
  %v76 = vld [vmem:[%s0 + $0x10] sm:$0xff]
  %v77 = vld [vmem:[%s0 + $0x18] sm:$0xff]
  %v78 = vld [vmem:[%s0 + $0x20] sm:$0xff]
  %v79 = vld [vmem:[%s0 + $0x28] sm:$0xff]
  %v80 = vld [vmem:[%s0 + $0x30] sm:$0xff]
  %v81 = vld [vmem:[%s0 + $0x38] sm:$0xff]
  %v82 = vld [vmem:[%s3] sm:$0xf]
  %v83 = vld [vmem:[%s4] sm:$0xff]
  %v84 = vld [vmem:[%s4 + $0x8] sm:$0xff]
  %v85 = vld [vmem:[%s4 + $0x10] sm:$0xff]
  %v86 = vld [vmem:[%s4 + $0x18] sm:$0xff]
  %v87 = vld [vmem:[%s4 + $0x20] sm:$0xff]
  %v88 = vld [vmem:[%s4 + $0x28] sm:$0xff]
  %v89 = vld [vmem:[%s4 + $0x30] sm:$0xff]
  %v90 = vld [vmem:[%s4 + $0x38] sm:$0xff]
  %vm91 = vcmask 31744
  %v93 = vsel %vm91, %v74, 0
  %v96 = vsel %vm91, %v75, 0
  %v99 = vsel %vm91, %v76, 0
  %v102 = vsel %vm91, %v77, 0
  %v105 = vsel %vm91, %v78, 0
  %v108 = vsel %vm91, %v79, 0
  %v111 = vsel %vm91, %v80, 0
  %v114 = vsel %vm91, %v81, 0
  %vm116 = vcmask 1043456
  %v118 = vsel %vm116, %v82, 0
  %120 = vmatprep.subr.mxu0 0.0
  %121 = vmatpush1.msra.mxu0 %v118
  %122 = vmatprep.subr.mxu0 0.0
  %123 = vmatpush1.msra.mxu0 0.0
  %124 = vmatprep.subr.mxu0 0.0
  %125 = vmatpush1.msra.mxu0 0.0
  %126 = vmatprep.subr.mxu0 0.0
  %127 = vmatpush1.msra.mxu0 0.0
  %128 = vmatprep.subr.mxu0 0.0
  %129 = vmatpush1.msra.mxu0 0.0
  %130 = vmatprep.subr.mxu0 0.0
  %131 = vmatpush1.msra.mxu0 0.0
  %132 = vmatprep.subr.mxu0 0.0
  %133 = vmatpush1.msra.mxu0 0.0
  %134 = vmatprep.subr.mxu0 0.0
  %135 = vmatpush1.msra.mxu0 0.0
  %136 = vmatprep.subr.mxu0 0.0
  %137 = vmatpush1.msra.mxu0 0.0
  %138 = vmatprep.subr.mxu0 0.0
  %139 = vmatpush1.msra.mxu0 0.0
  %140 = vmatprep.subr.mxu0 0.0
  %141 = vmatpush1.msra.mxu0 0.0
  %142 = vmatprep.subr.mxu0 0.0
  %143 = vmatpush1.msra.mxu0 0.0
  %144 = vmatprep.subr.mxu0 0.0
  %145 = vmatpush1.msra.mxu0 0.0
  %146 = vmatprep.subr.mxu0 0.0
  %147 = vmatpush1.msra.mxu0 0.0
  %148 = vmatprep.subr.mxu0 0.0
  %149 = vmatpush1.msra.mxu0 0.0
  %150 = vmatprep.subr.mxu0 0.0
  %151 = vmatpush1.msra.mxu0 0.0
  %152 = vmatprep.subr.mxu0 0.0
  %153 = vmatpush1.msra.mxu0 0.0
  %154 = vmatprep.subr.mxu0 0.0
  %155 = vmatpush1.msra.mxu0 0.0
  %156 = vmatprep.subr.mxu0 0.0
  %157 = vmatpush1.msra.mxu0 0.0
  %158 = vmatprep.subr.mxu0 0.0
  %159 = vmatpush1.msra.mxu0 0.0
  %160 = vmatprep.subr.mxu0 0.0
  %161 = vmatpush1.msra.mxu0 0.0
  %162 = vmatprep.subr.mxu0 0.0
  %163 = vmatpush1.msra.mxu0 0.0
  %164 = vmatprep.subr.mxu0 0.0
  %165 = vmatpush1.msra.mxu0 0.0
  %166 = vmatprep.subr.mxu0 0.0
  %167 = vmatpush1.msra.mxu0 0.0
  %168 = vmatprep.subr.mxu0 0.0
  %169 = vmatpush1.msra.mxu0 0.0
  %170 = vmatprep.subr.mxu0 0.0
  %171 = vmatpush1.msra.mxu0 0.0
  %172 = vmatprep.subr.mxu0 0.0
  %173 = vmatpush1.msra.mxu0 0.0
  %174 = vmatprep.subr.mxu0 0.0
  %175 = vmatpush1.msra.mxu0 0.0
  %176 = vmatprep.subr.mxu0 0.0
  %177 = vmatpush1.msra.mxu0 0.0
  %178 = vmatprep.subr.mxu0 0.0
  %179 = vmatpush1.msra.mxu0 0.0
  %180 = vmatprep.subr.mxu0 0.0
  %181 = vmatpush1.msra.mxu0 0.0
  %182 = vmatprep.subr.mxu0 0.0
  %183 = vmatpush1.msra.mxu0 0.0
  %184 = vmatprep.mubr.f32.mxu0 0.0
  %185 = vmatmul.mubr.f32.gmra.mrb[0].mxu0 %v93
  %v186 = vpop.f32.mrb[0].mxu0
  %v187 = vadd.f32 %v83, %v186
  %v188 = vpop.f32.mrb[0].mxu0
  %189 = vmatprep.mubr.f32.mxu0 0.0
  %190 = vmatmul.mubr.f32.gmra.mrb[0].mxu0 %v96
  %v191 = vpop.f32.mrb[0].mxu0
  %v192 = vadd.f32 %v84, %v191
  %v193 = vpop.f32.mrb[0].mxu0
  %194 = vmatprep.mubr.f32.mxu0 0.0
  %195 = vmatmul.mubr.f32.gmra.mrb[0].mxu0 %v99
  %v196 = vpop.f32.mrb[0].mxu0
  %v197 = vadd.f32 %v85, %v196
  %v198 = vpop.f32.mrb[0].mxu0
  %199 = vmatprep.mubr.f32.mxu0 0.0
  %200 = vmatmul.mubr.f32.gmra.mrb[0].mxu0 %v102
  %v201 = vpop.f32.mrb[0].mxu0
  %v202 = vadd.f32 %v86, %v201
  %v203 = vpop.f32.mrb[0].mxu0
  %204 = vmatprep.mubr.f32.mxu0 0.0
  %205 = vmatmul.mubr.f32.gmra.mrb[0].mxu0 %v105
  %v206 = vpop.f32.mrb[0].mxu0
  %v207 = vadd.f32 %v87, %v206
  %v208 = vpop.f32.mrb[0].mxu0
  %209 = vmatprep.mubr.f32.mxu0 0.0
  %210 = vmatmul.mubr.f32.gmra.mrb[0].mxu0 %v108
  %v211 = vpop.f32.mrb[0].mxu0
  %v212 = vadd.f32 %v88, %v211
  %v213 = vpop.f32.mrb[0].mxu0
  %214 = vmatprep.mubr.f32.mxu0 0.0
  %215 = vmatmul.mubr.f32.gmra.mrb[0].mxu0 %v111
  %v216 = vpop.f32.mrb[0].mxu0
  %v217 = vadd.f32 %v89, %v216
  %v218 = vpop.f32.mrb[0].mxu0
  %219 = vmatprep.mubr.f32.mxu0 0.0
  %220 = vmatmul.mubr.f32.gmra.mrb[0].mxu0 %v114
  %v221 = vpop.f32.mrb[0].mxu0
  %v222 = vadd.f32 %v90, %v221
  %v223 = vpop.f32.mrb[0].mxu0
  %224 = vdwg.mxu0
  %v225 = vld [vmem:[%s5] sm:$0xff]
  %v226 = vld [vmem:[%s5 + $0x8] sm:$0xff]
  %v227 = vld [vmem:[%s6] sm:$0x1]
  %v229 = vlaneseq
  %v230 = vshrl.u32 %v229, 7
  %v231 = vsub.s32 0, %v230
  %v232 = vrot.slane %v227, %v231
  %vm234 = vcmask 130048
  %v236 = vsel %vm234, %v187, 0
  %v239 = vsel %vm234, %v192, 0
  %v242 = vsel %vm234, %v197, 0
  %v245 = vsel %vm234, %v202, 0
  %v248 = vsel %vm234, %v207, 0
  %v251 = vsel %vm234, %v212, 0
  %v254 = vsel %vm234, %v217, 0
  %v257 = vsel %vm234, %v222, 0
  %259 = vmatprep.subr.mxu0 0.0
  %260 = vmatpush1.msra.mxu0 %v225
  %261 = vmatprep.subr.mxu0 0.0
  %262 = vmatpush1.msra.mxu0 %v226
  %263 = vmatprep.subr.mxu0 0.0
  %264 = vmatpush1.msra.mxu0 0.0
  %265 = vmatprep.subr.mxu0 0.0
  %266 = vmatpush1.msra.mxu0 0.0
  %267 = vmatprep.subr.mxu0 0.0
  %268 = vmatpush1.msra.mxu0 0.0
  %269 = vmatprep.subr.mxu0 0.0
  %270 = vmatpush1.msra.mxu0 0.0
  %271 = vmatprep.subr.mxu0 0.0
  %272 = vmatpush1.msra.mxu0 0.0
  %273 = vmatprep.subr.mxu0 0.0
  %274 = vmatpush1.msra.mxu0 0.0
  %275 = vmatprep.subr.mxu0 0.0
  %276 = vmatpush1.msra.mxu0 0.0
  %277 = vmatprep.subr.mxu0 0.0
  %278 = vmatpush1.msra.mxu0 0.0
  %279 = vmatprep.subr.mxu0 0.0
  %280 = vmatpush1.msra.mxu0 0.0
  %281 = vmatprep.subr.mxu0 0.0
  %282 = vmatpush1.msra.mxu0 0.0
  %283 = vmatprep.subr.mxu0 0.0
  %284 = vmatpush1.msra.mxu0 0.0
  %285 = vmatprep.subr.mxu0 0.0
  %286 = vmatpush1.msra.mxu0 0.0
  %287 = vmatprep.subr.mxu0 0.0
  %288 = vmatpush1.msra.mxu0 0.0
  %289 = vmatprep.subr.mxu0 0.0
  %290 = vmatpush1.msra.mxu0 0.0
  %291 = vmatprep.subr.mxu0 0.0
  %292 = vmatpush1.msra.mxu0 0.0
  %293 = vmatprep.subr.mxu0 0.0
  %294 = vmatpush1.msra.mxu0 0.0
  %295 = vmatprep.subr.mxu0 0.0
  %296 = vmatpush1.msra.mxu0 0.0
  %297 = vmatprep.subr.mxu0 0.0
  %298 = vmatpush1.msra.mxu0 0.0
  %299 = vmatprep.subr.mxu0 0.0
  %300 = vmatpush1.msra.mxu0 0.0
  %301 = vmatprep.subr.mxu0 0.0
  %302 = vmatpush1.msra.mxu0 0.0
  %303 = vmatprep.subr.mxu0 0.0
  %304 = vmatpush1.msra.mxu0 0.0
  %305 = vmatprep.subr.mxu0 0.0
  %306 = vmatpush1.msra.mxu0 0.0
  %307 = vmatprep.subr.mxu0 0.0
  %308 = vmatpush1.msra.mxu0 0.0
  %309 = vmatprep.subr.mxu0 0.0
  %310 = vmatpush1.msra.mxu0 0.0
  %311 = vmatprep.subr.mxu0 0.0
  %312 = vmatpush1.msra.mxu0 0.0
  %313 = vmatprep.subr.mxu0 0.0
  %314 = vmatpush1.msra.mxu0 0.0
  %315 = vmatprep.subr.mxu0 0.0
  %316 = vmatpush1.msra.mxu0 0.0
  %317 = vmatprep.subr.mxu0 0.0
  %318 = vmatpush1.msra.mxu0 0.0
  %319 = vmatprep.subr.mxu0 0.0
  %320 = vmatpush1.msra.mxu0 0.0
  %321 = vmatprep.subr.mxu0 0.0
  %322 = vmatpush1.msra.mxu0 0.0
  %323 = vmatprep.mubr.f32.mxu0 0.0
  %324 = vmatmul.mubr.f32.gmra.mrb[0].mxu0 %v236
  %v325 = vpop.f32.mrb[0].mxu0
  %v326 = vadd.f32 %v232, %v325
  %v327 = vpop.f32.mrb[0].mxu0
  %328 = vmatprep.mubr.f32.mxu0 0.0
  %329 = vmatmul.mubr.f32.gmra.mrb[0].mxu0 %v239
  %v330 = vpop.f32.mrb[0].mxu0
  %v331 = vadd.f32 %v232, %v330
  %v332 = vpop.f32.mrb[0].mxu0
  %333 = vmatprep.mubr.f32.mxu0 0.0
  %334 = vmatmul.mubr.f32.gmra.mrb[0].mxu0 %v242
  %v335 = vpop.f32.mrb[0].mxu0
  %v336 = vadd.f32 %v232, %v335
  %v337 = vpop.f32.mrb[0].mxu0
  %338 = vmatprep.mubr.f32.mxu0 0.0
  %339 = vmatmul.mubr.f32.gmra.mrb[0].mxu0 %v245
  %v340 = vpop.f32.mrb[0].mxu0
  %v341 = vadd.f32 %v232, %v340
  %v342 = vpop.f32.mrb[0].mxu0
  %343 = vmatprep.mubr.f32.mxu0 0.0
  %344 = vmatmul.mubr.f32.gmra.mrb[0].mxu0 %v248
  %v345 = vpop.f32.mrb[0].mxu0
  %v346 = vadd.f32 %v232, %v345
  %v347 = vpop.f32.mrb[0].mxu0
  %348 = vmatprep.mubr.f32.mxu0 0.0
  %349 = vmatmul.mubr.f32.gmra.mrb[0].mxu0 %v251
  %v350 = vpop.f32.mrb[0].mxu0
  %v351 = vadd.f32 %v232, %v350
  %v352 = vpop.f32.mrb[0].mxu0
  %353 = vmatprep.mubr.f32.mxu0 0.0
  %354 = vmatmul.mubr.f32.gmra.mrb[0].mxu0 %v254
  %v355 = vpop.f32.mrb[0].mxu0
  %v356 = vadd.f32 %v232, %v355
  %v357 = vpop.f32.mrb[0].mxu0
  %358 = vmatprep.mubr.f32.mxu0 0.0
  %359 = vmatmul.mubr.f32.gmra.mrb[0].mxu0 %v257
  %v360 = vpop.f32.mrb[0].mxu0
  %v361 = vadd.f32 %v232, %v360
  %v362 = vpop.f32.mrb[0].mxu0
  %363 = vdwg.mxu0
  %v364 = vld [vmem:[%s7] sm:$0xff]
  %v365 = vld [vmem:[%s7 + $0x8] sm:$0xff]
  %v366 = vld [vmem:[%s8] sm:$0x1]
  %v368 = vlaneseq
  %v369 = vshrl.u32 %v368, 7
  %v370 = vsub.s32 0, %v369
  %v371 = vrot.slane %v366, %v370
  %373 = vmatprep.subr.mxu0 0.0
  %374 = vmatpush1.msra.mxu0 %v364
  %375 = vmatprep.subr.mxu0 0.0
  %376 = vmatpush1.msra.mxu0 %v365
  %377 = vmatprep.subr.mxu0 0.0
  %378 = vmatpush1.msra.mxu0 0.0
  %379 = vmatprep.subr.mxu0 0.0
  %380 = vmatpush1.msra.mxu0 0.0
  %381 = vmatprep.subr.mxu0 0.0
  %382 = vmatpush1.msra.mxu0 0.0
  %383 = vmatprep.subr.mxu0 0.0
  %384 = vmatpush1.msra.mxu0 0.0
  %385 = vmatprep.subr.mxu0 0.0
  %386 = vmatpush1.msra.mxu0 0.0
  %387 = vmatprep.subr.mxu0 0.0
  %388 = vmatpush1.msra.mxu0 0.0
  %389 = vmatprep.subr.mxu0 0.0
  %390 = vmatpush1.msra.mxu0 0.0
  %391 = vmatprep.subr.mxu0 0.0
  %392 = vmatpush1.msra.mxu0 0.0
  %393 = vmatprep.subr.mxu0 0.0
  %394 = vmatpush1.msra.mxu0 0.0
  %395 = vmatprep.subr.mxu0 0.0
  %396 = vmatpush1.msra.mxu0 0.0
  %397 = vmatprep.subr.mxu0 0.0
  %398 = vmatpush1.msra.mxu0 0.0
  %399 = vmatprep.subr.mxu0 0.0
  %400 = vmatpush1.msra.mxu0 0.0
  %401 = vmatprep.subr.mxu0 0.0
  %402 = vmatpush1.msra.mxu0 0.0
  %403 = vmatprep.subr.mxu0 0.0
  %404 = vmatpush1.msra.mxu0 0.0
  %405 = vmatprep.subr.mxu0 0.0
  %406 = vmatpush1.msra.mxu0 0.0
  %407 = vmatprep.subr.mxu0 0.0
  %408 = vmatpush1.msra.mxu0 0.0
  %409 = vmatprep.subr.mxu0 0.0
  %410 = vmatpush1.msra.mxu0 0.0
  %411 = vmatprep.subr.mxu0 0.0
  %412 = vmatpush1.msra.mxu0 0.0
  %413 = vmatprep.subr.mxu0 0.0
  %414 = vmatpush1.msra.mxu0 0.0
  %415 = vmatprep.subr.mxu0 0.0
  %416 = vmatpush1.msra.mxu0 0.0
  %417 = vmatprep.subr.mxu0 0.0
  %418 = vmatpush1.msra.mxu0 0.0
  %419 = vmatprep.subr.mxu0 0.0
  %420 = vmatpush1.msra.mxu0 0.0
  %421 = vmatprep.subr.mxu0 0.0
  %422 = vmatpush1.msra.mxu0 0.0
  %423 = vmatprep.subr.mxu0 0.0
  %424 = vmatpush1.msra.mxu0 0.0
  %425 = vmatprep.subr.mxu0 0.0
  %426 = vmatpush1.msra.mxu0 0.0
  %427 = vmatprep.subr.mxu0 0.0
  %428 = vmatpush1.msra.mxu0 0.0
  %429 = vmatprep.subr.mxu0 0.0
  %430 = vmatpush1.msra.mxu0 0.0
  %431 = vmatprep.subr.mxu0 0.0
  %432 = vmatpush1.msra.mxu0 0.0
  %433 = vmatprep.subr.mxu0 0.0
  %434 = vmatpush1.msra.mxu0 0.0
  %435 = vmatprep.subr.mxu0 0.0
  %436 = vmatpush1.msra.mxu0 0.0
  %437 = vmatprep.mubr.f32.mxu0 0.0
  %438 = vmatmul.mubr.f32.gmra.mrb[0].mxu0 %v236
  %v439 = vpop.f32.mrb[0].mxu0
  %v440 = vadd.f32 %v371, %v439
  %v441 = vpop.f32.mrb[0].mxu0
  %442 = vmatprep.mubr.f32.mxu0 0.0
  %443 = vmatmul.mubr.f32.gmra.mrb[0].mxu0 %v239
  %v444 = vpop.f32.mrb[0].mxu0
  %v445 = vadd.f32 %v371, %v444
  %v446 = vpop.f32.mrb[0].mxu0
  %447 = vmatprep.mubr.f32.mxu0 0.0
  %448 = vmatmul.mubr.f32.gmra.mrb[0].mxu0 %v242
  %v449 = vpop.f32.mrb[0].mxu0
  %v450 = vadd.f32 %v371, %v449
  %v451 = vpop.f32.mrb[0].mxu0
  %452 = vmatprep.mubr.f32.mxu0 0.0
  %453 = vmatmul.mubr.f32.gmra.mrb[0].mxu0 %v245
  %v454 = vpop.f32.mrb[0].mxu0
  %v455 = vadd.f32 %v371, %v454
  %v456 = vpop.f32.mrb[0].mxu0
  %457 = vmatprep.mubr.f32.mxu0 0.0
  %458 = vmatmul.mubr.f32.gmra.mrb[0].mxu0 %v248
  %v459 = vpop.f32.mrb[0].mxu0
  %v460 = vadd.f32 %v371, %v459
  %v461 = vpop.f32.mrb[0].mxu0
  %462 = vmatprep.mubr.f32.mxu0 0.0
  %463 = vmatmul.mubr.f32.gmra.mrb[0].mxu0 %v251
  %v464 = vpop.f32.mrb[0].mxu0
  %v465 = vadd.f32 %v371, %v464
  %v466 = vpop.f32.mrb[0].mxu0
  %467 = vmatprep.mubr.f32.mxu0 0.0
  %468 = vmatmul.mubr.f32.gmra.mrb[0].mxu0 %v254
  %v469 = vpop.f32.mrb[0].mxu0
  %v470 = vadd.f32 %v371, %v469
  %v471 = vpop.f32.mrb[0].mxu0
  %472 = vmatprep.mubr.f32.mxu0 0.0
  %473 = vmatmul.mubr.f32.gmra.mrb[0].mxu0 %v257
  %v474 = vpop.f32.mrb[0].mxu0
  %v475 = vadd.f32 %v371, %v474
  %v476 = vpop.f32.mrb[0].mxu0
  %477 = vdwg.mxu0
  %v478 = vld [vmem:[%s9] sm:$0xff]
  %v479 = vld [vmem:[%s9 + $0x8] sm:$0xff]
  %v480 = vld [vmem:[%s10] sm:$0x1]
  %v482 = vlaneseq
  %v483 = vshrl.u32 %v482, 7
  %v484 = vsub.s32 0, %v483
  %v485 = vrot.slane %v480, %v484
  %487 = vmatprep.subr.mxu0 0.0
  %488 = vmatpush1.msra.mxu0 %v478
  %489 = vmatprep.subr.mxu0 0.0
  %490 = vmatpush1.msra.mxu0 %v479
  %491 = vmatprep.subr.mxu0 0.0
  %492 = vmatpush1.msra.mxu0 0.0
  %493 = vmatprep.subr.mxu0 0.0
  %494 = vmatpush1.msra.mxu0 0.0
  %495 = vmatprep.subr.mxu0 0.0
  %496 = vmatpush1.msra.mxu0 0.0
  %497 = vmatprep.subr.mxu0 0.0
  %498 = vmatpush1.msra.mxu0 0.0
  %499 = vmatprep.subr.mxu0 0.0
  %500 = vmatpush1.msra.mxu0 0.0
  %501 = vmatprep.subr.mxu0 0.0
  %502 = vmatpush1.msra.mxu0 0.0
  %503 = vmatprep.subr.mxu0 0.0
  %504 = vmatpush1.msra.mxu0 0.0
  %505 = vmatprep.subr.mxu0 0.0
  %506 = vmatpush1.msra.mxu0 0.0
  %507 = vmatprep.subr.mxu0 0.0
  %508 = vmatpush1.msra.mxu0 0.0
  %509 = vmatprep.subr.mxu0 0.0
  %510 = vmatpush1.msra.mxu0 0.0
  %511 = vmatprep.subr.mxu0 0.0
  %512 = vmatpush1.msra.mxu0 0.0
  %513 = vmatprep.subr.mxu0 0.0
  %514 = vmatpush1.msra.mxu0 0.0
  %515 = vmatprep.subr.mxu0 0.0
  %516 = vmatpush1.msra.mxu0 0.0
  %517 = vmatprep.subr.mxu0 0.0
  %518 = vmatpush1.msra.mxu0 0.0
  %519 = vmatprep.subr.mxu0 0.0
  %520 = vmatpush1.msra.mxu0 0.0
  %521 = vmatprep.subr.mxu0 0.0
  %522 = vmatpush1.msra.mxu0 0.0
  %523 = vmatprep.subr.mxu0 0.0
  %524 = vmatpush1.msra.mxu0 0.0
  %525 = vmatprep.subr.mxu0 0.0
  %526 = vmatpush1.msra.mxu0 0.0
  %527 = vmatprep.subr.mxu0 0.0
  %528 = vmatpush1.msra.mxu0 0.0
  %529 = vmatprep.subr.mxu0 0.0
  %530 = vmatpush1.msra.mxu0 0.0
  %531 = vmatprep.subr.mxu0 0.0
  %532 = vmatpush1.msra.mxu0 0.0
  %533 = vmatprep.subr.mxu0 0.0
  %534 = vmatpush1.msra.mxu0 0.0
  %535 = vmatprep.subr.mxu0 0.0
  %536 = vmatpush1.msra.mxu0 0.0
  %537 = vmatprep.subr.mxu0 0.0
  %538 = vmatpush1.msra.mxu0 0.0
  %539 = vmatprep.subr.mxu0 0.0
  %540 = vmatpush1.msra.mxu0 0.0
  %541 = vmatprep.subr.mxu0 0.0
  %542 = vmatpush1.msra.mxu0 0.0
  %543 = vmatprep.subr.mxu0 0.0
  %544 = vmatpush1.msra.mxu0 0.0
  %545 = vmatprep.subr.mxu0 0.0
  %546 = vmatpush1.msra.mxu0 0.0
  %547 = vmatprep.subr.mxu0 0.0
  %548 = vmatpush1.msra.mxu0 0.0
  %549 = vmatprep.subr.mxu0 0.0
  %550 = vmatpush1.msra.mxu0 0.0
  %551 = vmatprep.mubr.f32.mxu0 0.0
  %552 = vmatmul.mubr.f32.gmra.mrb[0].mxu0 %v236
  %v553 = vpop.f32.mrb[0].mxu0
  %v554 = vadd.f32 %v485, %v553
  %v555 = vpop.f32.mrb[0].mxu0
  %556 = vmatprep.mubr.f32.mxu0 0.0
  %557 = vmatmul.mubr.f32.gmra.mrb[0].mxu0 %v239
  %v558 = vpop.f32.mrb[0].mxu0
  %v559 = vadd.f32 %v485, %v558
  %v560 = vpop.f32.mrb[0].mxu0
  %561 = vmatprep.mubr.f32.mxu0 0.0
  %562 = vmatmul.mubr.f32.gmra.mrb[0].mxu0 %v242
  %v563 = vpop.f32.mrb[0].mxu0
  %v564 = vadd.f32 %v485, %v563
  %v565 = vpop.f32.mrb[0].mxu0
  %566 = vmatprep.mubr.f32.mxu0 0.0
  %567 = vmatmul.mubr.f32.gmra.mrb[0].mxu0 %v245
  %v568 = vpop.f32.mrb[0].mxu0
  %v569 = vadd.f32 %v485, %v568
  %v570 = vpop.f32.mrb[0].mxu0
  %571 = vmatprep.mubr.f32.mxu0 0.0
  %572 = vmatmul.mubr.f32.gmra.mrb[0].mxu0 %v248
  %v573 = vpop.f32.mrb[0].mxu0
  %v574 = vadd.f32 %v485, %v573
  %v575 = vpop.f32.mrb[0].mxu0
  %576 = vmatprep.mubr.f32.mxu0 0.0
  %577 = vmatmul.mubr.f32.gmra.mrb[0].mxu0 %v251
  %v578 = vpop.f32.mrb[0].mxu0
  %v579 = vadd.f32 %v485, %v578
  %v580 = vpop.f32.mrb[0].mxu0
  %581 = vmatprep.mubr.f32.mxu0 0.0
  %582 = vmatmul.mubr.f32.gmra.mrb[0].mxu0 %v254
  %v583 = vpop.f32.mrb[0].mxu0
  %v584 = vadd.f32 %v485, %v583
  %v585 = vpop.f32.mrb[0].mxu0
  %586 = vmatprep.mubr.f32.mxu0 0.0
  %587 = vmatmul.mubr.f32.gmra.mrb[0].mxu0 %v257
  %v588 = vpop.f32.mrb[0].mxu0
  %v589 = vadd.f32 %v485, %v588
  %v590 = vpop.f32.mrb[0].mxu0
  %591 = vdwg.mxu0
  %vm592 = vcmask 64512
  %v594 = vsel %vm592, %v326, 0
  %v597 = vsel %vm592, %v440, 0
  %599 = vmatprep.subr.mxu0 0.0
  %600 = vmatpush1.xpose.msra.mxu0 %v597
  %601 = vmatprep.subr.mxu0 0.0
  %602 = vmatpush1.xpose.msra.mxu0 0.0
  %603 = vmatprep.subr.mxu0 0.0
  %604 = vmatpush1.xpose.msra.mxu0 0.0
  %605 = vmatprep.subr.mxu0 0.0
  %606 = vmatpush1.xpose.msra.mxu0 0.0
  %607 = vmatprep.subr.mxu0 0.0
  %608 = vmatpush1.xpose.msra.mxu0 0.0
  %609 = vmatprep.subr.mxu0 0.0
  %610 = vmatpush1.xpose.msra.mxu0 0.0
  %611 = vmatprep.subr.mxu0 0.0
  %612 = vmatpush1.xpose.msra.mxu0 0.0
  %613 = vmatprep.subr.mxu0 0.0
  %614 = vmatpush1.xpose.msra.mxu0 0.0
  %615 = vmatprep.subr.mxu0 0.0
  %616 = vmatpush1.xpose.msra.mxu0 0.0
  %617 = vmatprep.subr.mxu0 0.0
  %618 = vmatpush1.xpose.msra.mxu0 0.0
  %619 = vmatprep.subr.mxu0 0.0
  %620 = vmatpush1.xpose.msra.mxu0 0.0
  %621 = vmatprep.subr.mxu0 0.0
  %622 = vmatpush1.xpose.msra.mxu0 0.0
  %623 = vmatprep.subr.mxu0 0.0
  %624 = vmatpush1.xpose.msra.mxu0 0.0
  %625 = vmatprep.subr.mxu0 0.0
  %626 = vmatpush1.xpose.msra.mxu0 0.0
  %627 = vmatprep.subr.mxu0 0.0
  %628 = vmatpush1.xpose.msra.mxu0 0.0
  %629 = vmatprep.subr.mxu0 0.0
  %630 = vmatpush1.xpose.msra.mxu0 0.0
  %631 = vmatprep.subr.mxu0 0.0
  %632 = vmatpush1.xpose.msra.mxu0 0.0
  %633 = vmatprep.subr.mxu0 0.0
  %634 = vmatpush1.xpose.msra.mxu0 0.0
  %635 = vmatprep.subr.mxu0 0.0
  %636 = vmatpush1.xpose.msra.mxu0 0.0
  %637 = vmatprep.subr.mxu0 0.0
  %638 = vmatpush1.xpose.msra.mxu0 0.0
  %639 = vmatprep.subr.mxu0 0.0
  %640 = vmatpush1.xpose.msra.mxu0 0.0
  %641 = vmatprep.subr.mxu0 0.0
  %642 = vmatpush1.xpose.msra.mxu0 0.0
  %643 = vmatprep.subr.mxu0 0.0
  %644 = vmatpush1.xpose.msra.mxu0 0.0
  %645 = vmatprep.subr.mxu0 0.0
  %646 = vmatpush1.xpose.msra.mxu0 0.0
  %647 = vmatprep.subr.mxu0 0.0
  %648 = vmatpush1.xpose.msra.mxu0 0.0
  %649 = vmatprep.subr.mxu0 0.0
  %650 = vmatpush1.xpose.msra.mxu0 0.0
  %651 = vmatprep.subr.mxu0 0.0
  %652 = vmatpush1.xpose.msra.mxu0 0.0
  %653 = vmatprep.subr.mxu0 0.0
  %654 = vmatpush1.xpose.msra.mxu0 0.0
  %655 = vmatprep.subr.mxu0 0.0
  %656 = vmatpush1.xpose.msra.mxu0 0.0
  %657 = vmatprep.subr.mxu0 0.0
  %658 = vmatpush1.xpose.msra.mxu0 0.0
  %659 = vmatprep.subr.mxu0 0.0
  %660 = vmatpush1.xpose.msra.mxu0 0.0
  %661 = vmatprep.subr.mxu0 0.0
  %662 = vmatpush1.xpose.msra.mxu0 0.0
  %663 = vmatprep.mubr.f32.mxu0 0.0
  %664 = vmatmul.mubr.f32.gmra.mrb[0].mxu0 %v594
  %v665 = vpop.f32.mrb[0].mxu0
  %v666 = vadd.f32 0.0, %v665
  %v667 = vpop.f32.mrb[0].mxu0
  %668 = vdwg.mxu0
  %v670 = vsel %vm592, %v331, 0
  %v673 = vsel %vm592, %v445, 0
  %675 = vmatprep.subr.mxu0 0.0
  %676 = vmatpush1.xpose.msra.mxu0 %v673
  %677 = vmatprep.subr.mxu0 0.0
  %678 = vmatpush1.xpose.msra.mxu0 0.0
  %679 = vmatprep.subr.mxu0 0.0
  %680 = vmatpush1.xpose.msra.mxu0 0.0
  %681 = vmatprep.subr.mxu0 0.0
  %682 = vmatpush1.xpose.msra.mxu0 0.0
  %683 = vmatprep.subr.mxu0 0.0
  %684 = vmatpush1.xpose.msra.mxu0 0.0
  %685 = vmatprep.subr.mxu0 0.0
  %686 = vmatpush1.xpose.msra.mxu0 0.0
  %687 = vmatprep.subr.mxu0 0.0
  %688 = vmatpush1.xpose.msra.mxu0 0.0
  %689 = vmatprep.subr.mxu0 0.0
  %690 = vmatpush1.xpose.msra.mxu0 0.0
  %691 = vmatprep.subr.mxu0 0.0
  %692 = vmatpush1.xpose.msra.mxu0 0.0
  %693 = vmatprep.subr.mxu0 0.0
  %694 = vmatpush1.xpose.msra.mxu0 0.0
  %695 = vmatprep.subr.mxu0 0.0
  %696 = vmatpush1.xpose.msra.mxu0 0.0
  %697 = vmatprep.subr.mxu0 0.0
  %698 = vmatpush1.xpose.msra.mxu0 0.0
  %699 = vmatprep.subr.mxu0 0.0
  %700 = vmatpush1.xpose.msra.mxu0 0.0
  %701 = vmatprep.subr.mxu0 0.0
  %702 = vmatpush1.xpose.msra.mxu0 0.0
  %703 = vmatprep.subr.mxu0 0.0
  %704 = vmatpush1.xpose.msra.mxu0 0.0
  %705 = vmatprep.subr.mxu0 0.0
  %706 = vmatpush1.xpose.msra.mxu0 0.0
  %707 = vmatprep.subr.mxu0 0.0
  %708 = vmatpush1.xpose.msra.mxu0 0.0
  %709 = vmatprep.subr.mxu0 0.0
  %710 = vmatpush1.xpose.msra.mxu0 0.0
  %711 = vmatprep.subr.mxu0 0.0
  %712 = vmatpush1.xpose.msra.mxu0 0.0
  %713 = vmatprep.subr.mxu0 0.0
  %714 = vmatpush1.xpose.msra.mxu0 0.0
  %715 = vmatprep.subr.mxu0 0.0
  %716 = vmatpush1.xpose.msra.mxu0 0.0
  %717 = vmatprep.subr.mxu0 0.0
  %718 = vmatpush1.xpose.msra.mxu0 0.0
  %719 = vmatprep.subr.mxu0 0.0
  %720 = vmatpush1.xpose.msra.mxu0 0.0
  %721 = vmatprep.subr.mxu0 0.0
  %722 = vmatpush1.xpose.msra.mxu0 0.0
  %723 = vmatprep.subr.mxu0 0.0
  %724 = vmatpush1.xpose.msra.mxu0 0.0
  %725 = vmatprep.subr.mxu0 0.0
  %726 = vmatpush1.xpose.msra.mxu0 0.0
  %727 = vmatprep.subr.mxu0 0.0
  %728 = vmatpush1.xpose.msra.mxu0 0.0
  %729 = vmatprep.subr.mxu0 0.0
  %730 = vmatpush1.xpose.msra.mxu0 0.0
  %731 = vmatprep.subr.mxu0 0.0
  %732 = vmatpush1.xpose.msra.mxu0 0.0
  %733 = vmatprep.subr.mxu0 0.0
  %734 = vmatpush1.xpose.msra.mxu0 0.0
  %735 = vmatprep.subr.mxu0 0.0
  %736 = vmatpush1.xpose.msra.mxu0 0.0
  %737 = vmatprep.subr.mxu0 0.0
  %738 = vmatpush1.xpose.msra.mxu0 0.0
  %739 = vmatprep.mubr.f32.mxu0 0.0
  %740 = vmatmul.mubr.f32.gmra.mrb[0].mxu0 %v670
  %v741 = vpop.f32.mrb[0].mxu0
  %v742 = vadd.f32 0.0, %v741
  %v743 = vpop.f32.mrb[0].mxu0
  %744 = vdwg.mxu0
  %v746 = vsel %vm592, %v336, 0
  %v749 = vsel %vm592, %v450, 0
  %751 = vmatprep.subr.mxu0 0.0
  %752 = vmatpush1.xpose.msra.mxu0 %v749
  %753 = vmatprep.subr.mxu0 0.0
  %754 = vmatpush1.xpose.msra.mxu0 0.0
  %755 = vmatprep.subr.mxu0 0.0
  %756 = vmatpush1.xpose.msra.mxu0 0.0
  %757 = vmatprep.subr.mxu0 0.0
  %758 = vmatpush1.xpose.msra.mxu0 0.0
  %759 = vmatprep.subr.mxu0 0.0
  %760 = vmatpush1.xpose.msra.mxu0 0.0
  %761 = vmatprep.subr.mxu0 0.0
  %762 = vmatpush1.xpose.msra.mxu0 0.0
  %763 = vmatprep.subr.mxu0 0.0
  %764 = vmatpush1.xpose.msra.mxu0 0.0
  %765 = vmatprep.subr.mxu0 0.0
  %766 = vmatpush1.xpose.msra.mxu0 0.0
  %767 = vmatprep.subr.mxu0 0.0
  %768 = vmatpush1.xpose.msra.mxu0 0.0
  %769 = vmatprep.subr.mxu0 0.0
  %770 = vmatpush1.xpose.msra.mxu0 0.0
  %771 = vmatprep.subr.mxu0 0.0
  %772 = vmatpush1.xpose.msra.mxu0 0.0
  %773 = vmatprep.subr.mxu0 0.0
  %774 = vmatpush1.xpose.msra.mxu0 0.0
  %775 = vmatprep.subr.mxu0 0.0
  %776 = vmatpush1.xpose.msra.mxu0 0.0
  %777 = vmatprep.subr.mxu0 0.0
  %778 = vmatpush1.xpose.msra.mxu0 0.0
  %779 = vmatprep.subr.mxu0 0.0
  %780 = vmatpush1.xpose.msra.mxu0 0.0
  %781 = vmatprep.subr.mxu0 0.0
  %782 = vmatpush1.xpose.msra.mxu0 0.0
  %783 = vmatprep.subr.mxu0 0.0
  %784 = vmatpush1.xpose.msra.mxu0 0.0
  %785 = vmatprep.subr.mxu0 0.0
  %786 = vmatpush1.xpose.msra.mxu0 0.0
  %787 = vmatprep.subr.mxu0 0.0
  %788 = vmatpush1.xpose.msra.mxu0 0.0
  %789 = vmatprep.subr.mxu0 0.0
  %790 = vmatpush1.xpose.msra.mxu0 0.0
  %791 = vmatprep.subr.mxu0 0.0
  %792 = vmatpush1.xpose.msra.mxu0 0.0
  %793 = vmatprep.subr.mxu0 0.0
  %794 = vmatpush1.xpose.msra.mxu0 0.0
  %795 = vmatprep.subr.mxu0 0.0
  %796 = vmatpush1.xpose.msra.mxu0 0.0
  %797 = vmatprep.subr.mxu0 0.0
  %798 = vmatpush1.xpose.msra.mxu0 0.0
  %799 = vmatprep.subr.mxu0 0.0
  %800 = vmatpush1.xpose.msra.mxu0 0.0
  %801 = vmatprep.subr.mxu0 0.0
  %802 = vmatpush1.xpose.msra.mxu0 0.0
  %803 = vmatprep.subr.mxu0 0.0
  %804 = vmatpush1.xpose.msra.mxu0 0.0
  %805 = vmatprep.subr.mxu0 0.0
  %806 = vmatpush1.xpose.msra.mxu0 0.0
  %807 = vmatprep.subr.mxu0 0.0
  %808 = vmatpush1.xpose.msra.mxu0 0.0
  %809 = vmatprep.subr.mxu0 0.0
  %810 = vmatpush1.xpose.msra.mxu0 0.0
  %811 = vmatprep.subr.mxu0 0.0
  %812 = vmatpush1.xpose.msra.mxu0 0.0
  %813 = vmatprep.subr.mxu0 0.0
  %814 = vmatpush1.xpose.msra.mxu0 0.0
  %815 = vmatprep.mubr.f32.mxu0 0.0
  %816 = vmatmul.mubr.f32.gmra.mrb[0].mxu0 %v746
  %v817 = vpop.f32.mrb[0].mxu0
  %v818 = vadd.f32 0.0, %v817
  %v819 = vpop.f32.mrb[0].mxu0
  %820 = vdwg.mxu0
  %v822 = vsel %vm592, %v341, 0
  %v825 = vsel %vm592, %v455, 0
  %827 = vmatprep.subr.mxu0 0.0
  %828 = vmatpush1.xpose.msra.mxu0 %v825
  %829 = vmatprep.subr.mxu0 0.0
  %830 = vmatpush1.xpose.msra.mxu0 0.0
  %831 = vmatprep.subr.mxu0 0.0
  %832 = vmatpush1.xpose.msra.mxu0 0.0
  %833 = vmatprep.subr.mxu0 0.0
  %834 = vmatpush1.xpose.msra.mxu0 0.0
  %835 = vmatprep.subr.mxu0 0.0
  %836 = vmatpush1.xpose.msra.mxu0 0.0
  %837 = vmatprep.subr.mxu0 0.0
  %838 = vmatpush1.xpose.msra.mxu0 0.0
  %839 = vmatprep.subr.mxu0 0.0
  %840 = vmatpush1.xpose.msra.mxu0 0.0
  %841 = vmatprep.subr.mxu0 0.0
  %842 = vmatpush1.xpose.msra.mxu0 0.0
  %843 = vmatprep.subr.mxu0 0.0
  %844 = vmatpush1.xpose.msra.mxu0 0.0
  %845 = vmatprep.subr.mxu0 0.0
  %846 = vmatpush1.xpose.msra.mxu0 0.0
  %847 = vmatprep.subr.mxu0 0.0
  %848 = vmatpush1.xpose.msra.mxu0 0.0
  %849 = vmatprep.subr.mxu0 0.0
  %850 = vmatpush1.xpose.msra.mxu0 0.0
  %851 = vmatprep.subr.mxu0 0.0
  %852 = vmatpush1.xpose.msra.mxu0 0.0
  %853 = vmatprep.subr.mxu0 0.0
  %854 = vmatpush1.xpose.msra.mxu0 0.0
  %855 = vmatprep.subr.mxu0 0.0
  %856 = vmatpush1.xpose.msra.mxu0 0.0
  %857 = vmatprep.subr.mxu0 0.0
  %858 = vmatpush1.xpose.msra.mxu0 0.0
  %859 = vmatprep.subr.mxu0 0.0
  %860 = vmatpush1.xpose.msra.mxu0 0.0
  %861 = vmatprep.subr.mxu0 0.0
  %862 = vmatpush1.xpose.msra.mxu0 0.0
  %863 = vmatprep.subr.mxu0 0.0
  %864 = vmatpush1.xpose.msra.mxu0 0.0
  %865 = vmatprep.subr.mxu0 0.0
  %866 = vmatpush1.xpose.msra.mxu0 0.0
  %867 = vmatprep.subr.mxu0 0.0
  %868 = vmatpush1.xpose.msra.mxu0 0.0
  %869 = vmatprep.subr.mxu0 0.0
  %870 = vmatpush1.xpose.msra.mxu0 0.0
  %871 = vmatprep.subr.mxu0 0.0
  %872 = vmatpush1.xpose.msra.mxu0 0.0
  %873 = vmatprep.subr.mxu0 0.0
  %874 = vmatpush1.xpose.msra.mxu0 0.0
  %875 = vmatprep.subr.mxu0 0.0
  %876 = vmatpush1.xpose.msra.mxu0 0.0
  %877 = vmatprep.subr.mxu0 0.0
  %878 = vmatpush1.xpose.msra.mxu0 0.0
  %879 = vmatprep.subr.mxu0 0.0
  %880 = vmatpush1.xpose.msra.mxu0 0.0
  %881 = vmatprep.subr.mxu0 0.0
  %882 = vmatpush1.xpose.msra.mxu0 0.0
  %883 = vmatprep.subr.mxu0 0.0
  %884 = vmatpush1.xpose.msra.mxu0 0.0
  %885 = vmatprep.subr.mxu0 0.0
  %886 = vmatpush1.xpose.msra.mxu0 0.0
  %887 = vmatprep.subr.mxu0 0.0
  %888 = vmatpush1.xpose.msra.mxu0 0.0
  %889 = vmatprep.subr.mxu0 0.0
  %890 = vmatpush1.xpose.msra.mxu0 0.0
  %891 = vmatprep.mubr.f32.mxu0 0.0
  %892 = vmatmul.mubr.f32.gmra.mrb[0].mxu0 %v822
  %v893 = vpop.f32.mrb[0].mxu0
  %v894 = vadd.f32 0.0, %v893
  %v895 = vpop.f32.mrb[0].mxu0
  %896 = vdwg.mxu0
  %v898 = vsel %vm592, %v346, 0
  %v901 = vsel %vm592, %v460, 0
  %903 = vmatprep.subr.mxu0 0.0
  %904 = vmatpush1.xpose.msra.mxu0 %v901
  %905 = vmatprep.subr.mxu0 0.0
  %906 = vmatpush1.xpose.msra.mxu0 0.0
  %907 = vmatprep.subr.mxu0 0.0
  %908 = vmatpush1.xpose.msra.mxu0 0.0
  %909 = vmatprep.subr.mxu0 0.0
  %910 = vmatpush1.xpose.msra.mxu0 0.0
  %911 = vmatprep.subr.mxu0 0.0
  %912 = vmatpush1.xpose.msra.mxu0 0.0
  %913 = vmatprep.subr.mxu0 0.0
  %914 = vmatpush1.xpose.msra.mxu0 0.0
  %915 = vmatprep.subr.mxu0 0.0
  %916 = vmatpush1.xpose.msra.mxu0 0.0
  %917 = vmatprep.subr.mxu0 0.0
  %918 = vmatpush1.xpose.msra.mxu0 0.0
  %919 = vmatprep.subr.mxu0 0.0
  %920 = vmatpush1.xpose.msra.mxu0 0.0
  %921 = vmatprep.subr.mxu0 0.0
  %922 = vmatpush1.xpose.msra.mxu0 0.0
  %923 = vmatprep.subr.mxu0 0.0
  %924 = vmatpush1.xpose.msra.mxu0 0.0
  %925 = vmatprep.subr.mxu0 0.0
  %926 = vmatpush1.xpose.msra.mxu0 0.0
  %927 = vmatprep.subr.mxu0 0.0
  %928 = vmatpush1.xpose.msra.mxu0 0.0
  %929 = vmatprep.subr.mxu0 0.0
  %930 = vmatpush1.xpose.msra.mxu0 0.0
  %931 = vmatprep.subr.mxu0 0.0
  %932 = vmatpush1.xpose.msra.mxu0 0.0
  %933 = vmatprep.subr.mxu0 0.0
  %934 = vmatpush1.xpose.msra.mxu0 0.0
  %935 = vmatprep.subr.mxu0 0.0
  %936 = vmatpush1.xpose.msra.mxu0 0.0
  %937 = vmatprep.subr.mxu0 0.0
  %938 = vmatpush1.xpose.msra.mxu0 0.0
  %939 = vmatprep.subr.mxu0 0.0
  %940 = vmatpush1.xpose.msra.mxu0 0.0
  %941 = vmatprep.subr.mxu0 0.0
  %942 = vmatpush1.xpose.msra.mxu0 0.0
  %943 = vmatprep.subr.mxu0 0.0
  %944 = vmatpush1.xpose.msra.mxu0 0.0
  %945 = vmatprep.subr.mxu0 0.0
  %946 = vmatpush1.xpose.msra.mxu0 0.0
  %947 = vmatprep.subr.mxu0 0.0
  %948 = vmatpush1.xpose.msra.mxu0 0.0
  %949 = vmatprep.subr.mxu0 0.0
  %950 = vmatpush1.xpose.msra.mxu0 0.0
  %951 = vmatprep.subr.mxu0 0.0
  %952 = vmatpush1.xpose.msra.mxu0 0.0
  %953 = vmatprep.subr.mxu0 0.0
  %954 = vmatpush1.xpose.msra.mxu0 0.0
  %955 = vmatprep.subr.mxu0 0.0
  %956 = vmatpush1.xpose.msra.mxu0 0.0
  %957 = vmatprep.subr.mxu0 0.0
  %958 = vmatpush1.xpose.msra.mxu0 0.0
  %959 = vmatprep.subr.mxu0 0.0
  %960 = vmatpush1.xpose.msra.mxu0 0.0
  %961 = vmatprep.subr.mxu0 0.0
  %962 = vmatpush1.xpose.msra.mxu0 0.0
  %963 = vmatprep.subr.mxu0 0.0
  %964 = vmatpush1.xpose.msra.mxu0 0.0
  %965 = vmatprep.subr.mxu0 0.0
  %966 = vmatpush1.xpose.msra.mxu0 0.0
  %967 = vmatprep.mubr.f32.mxu0 0.0
  %968 = vmatmul.mubr.f32.gmra.mrb[0].mxu0 %v898
  %v969 = vpop.f32.mrb[0].mxu0
  %v970 = vadd.f32 0.0, %v969
  %v971 = vpop.f32.mrb[0].mxu0
  %972 = vdwg.mxu0
  %v974 = vsel %vm592, %v351, 0
  %v977 = vsel %vm592, %v465, 0
  %979 = vmatprep.subr.mxu0 0.0
  %980 = vmatpush1.xpose.msra.mxu0 %v977
  %981 = vmatprep.subr.mxu0 0.0
  %982 = vmatpush1.xpose.msra.mxu0 0.0
  %983 = vmatprep.subr.mxu0 0.0
  %984 = vmatpush1.xpose.msra.mxu0 0.0
  %985 = vmatprep.subr.mxu0 0.0
  %986 = vmatpush1.xpose.msra.mxu0 0.0
  %987 = vmatprep.subr.mxu0 0.0
  %988 = vmatpush1.xpose.msra.mxu0 0.0
  %989 = vmatprep.subr.mxu0 0.0
  %990 = vmatpush1.xpose.msra.mxu0 0.0
  %991 = vmatprep.subr.mxu0 0.0
  %992 = vmatpush1.xpose.msra.mxu0 0.0
  %993 = vmatprep.subr.mxu0 0.0
  %994 = vmatpush1.xpose.msra.mxu0 0.0
  %995 = vmatprep.subr.mxu0 0.0
  %996 = vmatpush1.xpose.msra.mxu0 0.0
  %997 = vmatprep.subr.mxu0 0.0
  %998 = vmatpush1.xpose.msra.mxu0 0.0
  %999 = vmatprep.subr.mxu0 0.0
  %1000 = vmatpush1.xpose.msra.mxu0 0.0
  %1001 = vmatprep.subr.mxu0 0.0
  %1002 = vmatpush1.xpose.msra.mxu0 0.0
  %1003 = vmatprep.subr.mxu0 0.0
  %1004 = vmatpush1.xpose.msra.mxu0 0.0
  %1005 = vmatprep.subr.mxu0 0.0
  %1006 = vmatpush1.xpose.msra.mxu0 0.0
  %1007 = vmatprep.subr.mxu0 0.0
  %1008 = vmatpush1.xpose.msra.mxu0 0.0
  %1009 = vmatprep.subr.mxu0 0.0
  %1010 = vmatpush1.xpose.msra.mxu0 0.0
  %1011 = vmatprep.subr.mxu0 0.0
  %1012 = vmatpush1.xpose.msra.mxu0 0.0
  %1013 = vmatprep.subr.mxu0 0.0
  %1014 = vmatpush1.xpose.msra.mxu0 0.0
  %1015 = vmatprep.subr.mxu0 0.0
  %1016 = vmatpush1.xpose.msra.mxu0 0.0
  %1017 = vmatprep.subr.mxu0 0.0
  %1018 = vmatpush1.xpose.msra.mxu0 0.0
  %1019 = vmatprep.subr.mxu0 0.0
  %1020 = vmatpush1.xpose.msra.mxu0 0.0
  %1021 = vmatprep.subr.mxu0 0.0
  %1022 = vmatpush1.xpose.msra.mxu0 0.0
  %1023 = vmatprep.subr.mxu0 0.0
  %1024 = vmatpush1.xpose.msra.mxu0 0.0
  %1025 = vmatprep.subr.mxu0 0.0
  %1026 = vmatpush1.xpose.msra.mxu0 0.0
  %1027 = vmatprep.subr.mxu0 0.0
  %1028 = vmatpush1.xpose.msra.mxu0 0.0
  %1029 = vmatprep.subr.mxu0 0.0
  %1030 = vmatpush1.xpose.msra.mxu0 0.0
  %1031 = vmatprep.subr.mxu0 0.0
  %1032 = vmatpush1.xpose.msra.mxu0 0.0
  %1033 = vmatprep.subr.mxu0 0.0
  %1034 = vmatpush1.xpose.msra.mxu0 0.0
  %1035 = vmatprep.subr.mxu0 0.0
  %1036 = vmatpush1.xpose.msra.mxu0 0.0
  %1037 = vmatprep.subr.mxu0 0.0
  %1038 = vmatpush1.xpose.msra.mxu0 0.0
  %1039 = vmatprep.subr.mxu0 0.0
  %1040 = vmatpush1.xpose.msra.mxu0 0.0
  %1041 = vmatprep.subr.mxu0 0.0
  %1042 = vmatpush1.xpose.msra.mxu0 0.0
  %1043 = vmatprep.mubr.f32.mxu0 0.0
  %1044 = vmatmul.mubr.f32.gmra.mrb[0].mxu0 %v974
  %v1045 = vpop.f32.mrb[0].mxu0
  %v1046 = vadd.f32 0.0, %v1045
  %v1047 = vpop.f32.mrb[0].mxu0
  %1048 = vdwg.mxu0
  %v1050 = vsel %vm592, %v356, 0
  %v1053 = vsel %vm592, %v470, 0
  %1055 = vmatprep.subr.mxu0 0.0
  %1056 = vmatpush1.xpose.msra.mxu0 %v1053
  %1057 = vmatprep.subr.mxu0 0.0
  %1058 = vmatpush1.xpose.msra.mxu0 0.0
  %1059 = vmatprep.subr.mxu0 0.0
  %1060 = vmatpush1.xpose.msra.mxu0 0.0
  %1061 = vmatprep.subr.mxu0 0.0
  %1062 = vmatpush1.xpose.msra.mxu0 0.0
  %1063 = vmatprep.subr.mxu0 0.0
  %1064 = vmatpush1.xpose.msra.mxu0 0.0
  %1065 = vmatprep.subr.mxu0 0.0
  %1066 = vmatpush1.xpose.msra.mxu0 0.0
  %1067 = vmatprep.subr.mxu0 0.0
  %1068 = vmatpush1.xpose.msra.mxu0 0.0
  %1069 = vmatprep.subr.mxu0 0.0
  %1070 = vmatpush1.xpose.msra.mxu0 0.0
  %1071 = vmatprep.subr.mxu0 0.0
  %1072 = vmatpush1.xpose.msra.mxu0 0.0
  %1073 = vmatprep.subr.mxu0 0.0
  %1074 = vmatpush1.xpose.msra.mxu0 0.0
  %1075 = vmatprep.subr.mxu0 0.0
  %1076 = vmatpush1.xpose.msra.mxu0 0.0
  %1077 = vmatprep.subr.mxu0 0.0
  %1078 = vmatpush1.xpose.msra.mxu0 0.0
  %1079 = vmatprep.subr.mxu0 0.0
  %1080 = vmatpush1.xpose.msra.mxu0 0.0
  %1081 = vmatprep.subr.mxu0 0.0
  %1082 = vmatpush1.xpose.msra.mxu0 0.0
  %1083 = vmatprep.subr.mxu0 0.0
  %1084 = vmatpush1.xpose.msra.mxu0 0.0
  %1085 = vmatprep.subr.mxu0 0.0
  %1086 = vmatpush1.xpose.msra.mxu0 0.0
  %1087 = vmatprep.subr.mxu0 0.0
  %1088 = vmatpush1.xpose.msra.mxu0 0.0
  %1089 = vmatprep.subr.mxu0 0.0
  %1090 = vmatpush1.xpose.msra.mxu0 0.0
  %1091 = vmatprep.subr.mxu0 0.0
  %1092 = vmatpush1.xpose.msra.mxu0 0.0
  %1093 = vmatprep.subr.mxu0 0.0
  %1094 = vmatpush1.xpose.msra.mxu0 0.0
  %1095 = vmatprep.subr.mxu0 0.0
  %1096 = vmatpush1.xpose.msra.mxu0 0.0
  %1097 = vmatprep.subr.mxu0 0.0
  %1098 = vmatpush1.xpose.msra.mxu0 0.0
  %1099 = vmatprep.subr.mxu0 0.0
  %1100 = vmatpush1.xpose.msra.mxu0 0.0
  %1101 = vmatprep.subr.mxu0 0.0
  %1102 = vmatpush1.xpose.msra.mxu0 0.0
  %1103 = vmatprep.subr.mxu0 0.0
  %1104 = vmatpush1.xpose.msra.mxu0 0.0
  %1105 = vmatprep.subr.mxu0 0.0
  %1106 = vmatpush1.xpose.msra.mxu0 0.0
  %1107 = vmatprep.subr.mxu0 0.0
  %1108 = vmatpush1.xpose.msra.mxu0 0.0
  %1109 = vmatprep.subr.mxu0 0.0
  %1110 = vmatpush1.xpose.msra.mxu0 0.0
  %1111 = vmatprep.subr.mxu0 0.0
  %1112 = vmatpush1.xpose.msra.mxu0 0.0
  %1113 = vmatprep.subr.mxu0 0.0
  %1114 = vmatpush1.xpose.msra.mxu0 0.0
  %1115 = vmatprep.subr.mxu0 0.0
  %1116 = vmatpush1.xpose.msra.mxu0 0.0
  %1117 = vmatprep.subr.mxu0 0.0
  %1118 = vmatpush1.xpose.msra.mxu0 0.0
  %1119 = vmatprep.mubr.f32.mxu0 0.0
  %1120 = vmatmul.mubr.f32.gmra.mrb[0].mxu0 %v1050
  %v1121 = vpop.f32.mrb[0].mxu0
  %v1122 = vadd.f32 0.0, %v1121
  %v1123 = vpop.f32.mrb[0].mxu0
  %1124 = vdwg.mxu0
  %v1126 = vsel %vm592, %v361, 0
  %v1129 = vsel %vm592, %v475, 0
  %1131 = vmatprep.subr.mxu0 0.0
  %1132 = vmatpush1.xpose.msra.mxu0 %v1129
  %1133 = vmatprep.subr.mxu0 0.0
  %1134 = vmatpush1.xpose.msra.mxu0 0.0
  %1135 = vmatprep.subr.mxu0 0.0
  %1136 = vmatpush1.xpose.msra.mxu0 0.0
  %1137 = vmatprep.subr.mxu0 0.0
  %1138 = vmatpush1.xpose.msra.mxu0 0.0
  %1139 = vmatprep.subr.mxu0 0.0
  %1140 = vmatpush1.xpose.msra.mxu0 0.0
  %1141 = vmatprep.subr.mxu0 0.0
  %1142 = vmatpush1.xpose.msra.mxu0 0.0
  %1143 = vmatprep.subr.mxu0 0.0
  %1144 = vmatpush1.xpose.msra.mxu0 0.0
  %1145 = vmatprep.subr.mxu0 0.0
  %1146 = vmatpush1.xpose.msra.mxu0 0.0
  %1147 = vmatprep.subr.mxu0 0.0
  %1148 = vmatpush1.xpose.msra.mxu0 0.0
  %1149 = vmatprep.subr.mxu0 0.0
  %1150 = vmatpush1.xpose.msra.mxu0 0.0
  %1151 = vmatprep.subr.mxu0 0.0
  %1152 = vmatpush1.xpose.msra.mxu0 0.0
  %1153 = vmatprep.subr.mxu0 0.0
  %1154 = vmatpush1.xpose.msra.mxu0 0.0
  %1155 = vmatprep.subr.mxu0 0.0
  %1156 = vmatpush1.xpose.msra.mxu0 0.0
  %1157 = vmatprep.subr.mxu0 0.0
  %1158 = vmatpush1.xpose.msra.mxu0 0.0
  %1159 = vmatprep.subr.mxu0 0.0
  %1160 = vmatpush1.xpose.msra.mxu0 0.0
  %1161 = vmatprep.subr.mxu0 0.0
  %1162 = vmatpush1.xpose.msra.mxu0 0.0
  %1163 = vmatprep.subr.mxu0 0.0
  %1164 = vmatpush1.xpose.msra.mxu0 0.0
  %1165 = vmatprep.subr.mxu0 0.0
  %1166 = vmatpush1.xpose.msra.mxu0 0.0
  %1167 = vmatprep.subr.mxu0 0.0
  %1168 = vmatpush1.xpose.msra.mxu0 0.0
  %1169 = vmatprep.subr.mxu0 0.0
  %1170 = vmatpush1.xpose.msra.mxu0 0.0
  %1171 = vmatprep.subr.mxu0 0.0
  %1172 = vmatpush1.xpose.msra.mxu0 0.0
  %1173 = vmatprep.subr.mxu0 0.0
  %1174 = vmatpush1.xpose.msra.mxu0 0.0
  %1175 = vmatprep.subr.mxu0 0.0
  %1176 = vmatpush1.xpose.msra.mxu0 0.0
  %1177 = vmatprep.subr.mxu0 0.0
  %1178 = vmatpush1.xpose.msra.mxu0 0.0
  %1179 = vmatprep.subr.mxu0 0.0
  %1180 = vmatpush1.xpose.msra.mxu0 0.0
  %1181 = vmatprep.subr.mxu0 0.0
  %1182 = vmatpush1.xpose.msra.mxu0 0.0
  %1183 = vmatprep.subr.mxu0 0.0
  %1184 = vmatpush1.xpose.msra.mxu0 0.0
  %1185 = vmatprep.subr.mxu0 0.0
  %1186 = vmatpush1.xpose.msra.mxu0 0.0
  %1187 = vmatprep.subr.mxu0 0.0
  %1188 = vmatpush1.xpose.msra.mxu0 0.0
  %1189 = vmatprep.subr.mxu0 0.0
  %1190 = vmatpush1.xpose.msra.mxu0 0.0
  %1191 = vmatprep.subr.mxu0 0.0
  %1192 = vmatpush1.xpose.msra.mxu0 0.0
  %1193 = vmatprep.subr.mxu0 0.0
  %1194 = vmatpush1.xpose.msra.mxu0 0.0
  %1195 = vmatprep.mubr.f32.mxu0 0.0
  %1196 = vmatmul.mubr.f32.gmra.mrb[0].mxu0 %v1126
  %v1197 = vpop.f32.mrb[0].mxu0
  %v1198 = vadd.f32 0.0, %v1197
  %v1199 = vpop.f32.mrb[0].mxu0
  %1200 = vdwg.mxu0
  %v1201 = vmul.f32 %v666, 0.35355338
  %v1202 = vmul.f32 %v742, 0.35355338
  %v1203 = vmul.f32 %v818, 0.35355338
  %v1204 = vmul.f32 %v894, 0.35355338
  %v1205 = vmul.f32 %v970, 0.35355338
  %v1206 = vmul.f32 %v1046, 0.35355338
  %v1207 = vmul.f32 %v1122, 0.35355338
  %v1208 = vmul.f32 %v1198, 0.35355338
  %v1209 = vsel %vm592, %v1201, -inf
  %1210 = vmax.xlane.f32.xlu0 %v1209
  %v1211 = vpop.xlane.xlu0 %1210
  %v1212 = vsel %vm592, %v1202, -inf
  %1213 = vmax.xlane.f32.xlu0 %v1212
  %v1214 = vpop.xlane.xlu0 %1213
  %v1215 = vsel %vm592, %v1203, -inf
  %1216 = vmax.xlane.f32.xlu0 %v1215
  %v1217 = vpop.xlane.xlu0 %1216
  %v1218 = vsel %vm592, %v1204, -inf
  %1219 = vmax.xlane.f32.xlu0 %v1218
  %v1220 = vpop.xlane.xlu0 %1219
  %v1221 = vsel %vm592, %v1205, -inf
  %1222 = vmax.xlane.f32.xlu0 %v1221
  %v1223 = vpop.xlane.xlu0 %1222
  %v1224 = vsel %vm592, %v1206, -inf
  %1225 = vmax.xlane.f32.xlu0 %v1224
  %v1226 = vpop.xlane.xlu0 %1225
  %v1227 = vsel %vm592, %v1207, -inf
  %1228 = vmax.xlane.f32.xlu0 %v1227
  %v1229 = vpop.xlane.xlu0 %1228
  %v1230 = vsel %vm592, %v1208, -inf
  %1231 = vmax.xlane.f32.xlu0 %v1230
  %v1232 = vpop.xlane.xlu0 %1231
  %v1233 = vsub.f32 %v1201, %v1211
  %v1234 = vsub.f32 %v1202, %v1214
  %v1235 = vsub.f32 %v1203, %v1217
  %v1236 = vsub.f32 %v1204, %v1220
  %v1237 = vsub.f32 %v1205, %v1223
  %v1238 = vsub.f32 %v1206, %v1226
  %v1239 = vsub.f32 %v1207, %v1229
  %v1240 = vsub.f32 %v1208, %v1232
  %v1241 = vmul.f32 %v1233, 1.442695
  %v1242 = vpow.pop %v1241
  %v1243 = vmul.f32 %v1234, 1.442695
  %v1244 = vpow.pop %v1243
  %v1245 = vmul.f32 %v1235, 1.442695
  %v1246 = vpow.pop %v1245
  %v1247 = vmul.f32 %v1236, 1.442695
  %v1248 = vpow.pop %v1247
  %v1249 = vmul.f32 %v1237, 1.442695
  %v1250 = vpow.pop %v1249
  %v1251 = vmul.f32 %v1238, 1.442695
  %v1252 = vpow.pop %v1251
  %v1253 = vmul.f32 %v1239, 1.442695
  %v1254 = vpow.pop %v1253
  %v1255 = vmul.f32 %v1240, 1.442695
  %v1256 = vpow.pop %v1255
  %v1257 = vsel %vm592, %v1242, 0.0
  %1258 = vadd.xlane.f32.xlu0 %v1257
  %v1259 = vpop.xlane.xlu0 %1258
  %v1260 = vsel %vm592, %v1244, 0.0
  %1261 = vadd.xlane.f32.xlu0 %v1260
  %v1262 = vpop.xlane.xlu0 %1261
  %v1263 = vsel %vm592, %v1246, 0.0
  %1264 = vadd.xlane.f32.xlu0 %v1263
  %v1265 = vpop.xlane.xlu0 %1264
  %v1266 = vsel %vm592, %v1248, 0.0
  %1267 = vadd.xlane.f32.xlu0 %v1266
  %v1268 = vpop.xlane.xlu0 %1267
  %v1269 = vsel %vm592, %v1250, 0.0
  %1270 = vadd.xlane.f32.xlu0 %v1269
  %v1271 = vpop.xlane.xlu0 %1270
  %v1272 = vsel %vm592, %v1252, 0.0
  %1273 = vadd.xlane.f32.xlu0 %v1272
  %v1274 = vpop.xlane.xlu0 %1273
  %v1275 = vsel %vm592, %v1254, 0.0
  %1276 = vadd.xlane.f32.xlu0 %v1275
  %v1277 = vpop.xlane.xlu0 %1276
  %v1278 = vsel %vm592, %v1256, 0.0
  %1279 = vadd.xlane.f32.xlu0 %v1278
  %v1280 = vpop.xlane.xlu0 %1279
  %v1281 = vrcp.pop %v1259
  %v1282 = vrcp.pop %v1262
  %v1283 = vrcp.pop %v1265
  %v1284 = vrcp.pop %v1268
  %v1285 = vrcp.pop %v1271
  %v1286 = vrcp.pop %v1274
  %v1287 = vrcp.pop %v1277
  %v1288 = vrcp.pop %v1280
  %v1289 = vmul.f32 %v1242, %v1281
  %v1290 = vmul.f32 %v1244, %v1282
  %v1291 = vmul.f32 %v1246, %v1283
  %v1292 = vmul.f32 %v1248, %v1284
  %v1293 = vmul.f32 %v1250, %v1285
  %v1294 = vmul.f32 %v1252, %v1286
  %v1295 = vmul.f32 %v1254, %v1287
  %v1296 = vmul.f32 %v1256, %v1288
  %v1298 = vsel %vm592, %v1289, 0
  %1300 = vmatprep.subr.mxu0 0.0
  %1301 = vmatpush1.msra.mxu0 %v554
  %1302 = vmatprep.subr.mxu0 0.0
  %1303 = vmatpush1.msra.mxu0 0.0
  %1304 = vmatprep.subr.mxu0 0.0
  %1305 = vmatpush1.msra.mxu0 0.0
  %1306 = vmatprep.subr.mxu0 0.0
  %1307 = vmatpush1.msra.mxu0 0.0
  %1308 = vmatprep.subr.mxu0 0.0
  %1309 = vmatpush1.msra.mxu0 0.0
  %1310 = vmatprep.subr.mxu0 0.0
  %1311 = vmatpush1.msra.mxu0 0.0
  %1312 = vmatprep.subr.mxu0 0.0
  %1313 = vmatpush1.msra.mxu0 0.0
  %1314 = vmatprep.subr.mxu0 0.0
  %1315 = vmatpush1.msra.mxu0 0.0
  %1316 = vmatprep.subr.mxu0 0.0
  %1317 = vmatpush1.msra.mxu0 0.0
  %1318 = vmatprep.subr.mxu0 0.0
  %1319 = vmatpush1.msra.mxu0 0.0
  %1320 = vmatprep.subr.mxu0 0.0
  %1321 = vmatpush1.msra.mxu0 0.0
  %1322 = vmatprep.subr.mxu0 0.0
  %1323 = vmatpush1.msra.mxu0 0.0
  %1324 = vmatprep.subr.mxu0 0.0
  %1325 = vmatpush1.msra.mxu0 0.0
  %1326 = vmatprep.subr.mxu0 0.0
  %1327 = vmatpush1.msra.mxu0 0.0
  %1328 = vmatprep.subr.mxu0 0.0
  %1329 = vmatpush1.msra.mxu0 0.0
  %1330 = vmatprep.subr.mxu0 0.0
  %1331 = vmatpush1.msra.mxu0 0.0
  %1332 = vmatprep.subr.mxu0 0.0
  %1333 = vmatpush1.msra.mxu0 0.0
  %1334 = vmatprep.subr.mxu0 0.0
  %1335 = vmatpush1.msra.mxu0 0.0
  %1336 = vmatprep.subr.mxu0 0.0
  %1337 = vmatpush1.msra.mxu0 0.0
  %1338 = vmatprep.subr.mxu0 0.0
  %1339 = vmatpush1.msra.mxu0 0.0
  %1340 = vmatprep.subr.mxu0 0.0
  %1341 = vmatpush1.msra.mxu0 0.0
  %1342 = vmatprep.subr.mxu0 0.0
  %1343 = vmatpush1.msra.mxu0 0.0
  %1344 = vmatprep.subr.mxu0 0.0
  %1345 = vmatpush1.msra.mxu0 0.0
  %1346 = vmatprep.subr.mxu0 0.0
  %1347 = vmatpush1.msra.mxu0 0.0
  %1348 = vmatprep.subr.mxu0 0.0
  %1349 = vmatpush1.msra.mxu0 0.0
  %1350 = vmatprep.subr.mxu0 0.0
  %1351 = vmatpush1.msra.mxu0 0.0
  %1352 = vmatprep.subr.mxu0 0.0
  %1353 = vmatpush1.msra.mxu0 0.0
  %1354 = vmatprep.subr.mxu0 0.0
  %1355 = vmatpush1.msra.mxu0 0.0
  %1356 = vmatprep.subr.mxu0 0.0
  %1357 = vmatpush1.msra.mxu0 0.0
  %1358 = vmatprep.subr.mxu0 0.0
  %1359 = vmatpush1.msra.mxu0 0.0
  %1360 = vmatprep.subr.mxu0 0.0
  %1361 = vmatpush1.msra.mxu0 0.0
  %1362 = vmatprep.subr.mxu0 0.0
  %1363 = vmatpush1.msra.mxu0 0.0
  %1364 = vmatprep.mubr.f32.mxu0 0.0
  %1365 = vmatmul.mubr.f32.gmra.mrb[0].mxu0 %v1298
  %v1366 = vpop.f32.mrb[0].mxu0
  %v1367 = vadd.f32 0.0, %v1366
  %v1368 = vpop.f32.mrb[0].mxu0
  %1369 = vdwg.mxu0
  %v1371 = vsel %vm592, %v1290, 0
  %1373 = vmatprep.subr.mxu0 0.0
  %1374 = vmatpush1.msra.mxu0 %v559
  %1375 = vmatprep.subr.mxu0 0.0
  %1376 = vmatpush1.msra.mxu0 0.0
  %1377 = vmatprep.subr.mxu0 0.0
  %1378 = vmatpush1.msra.mxu0 0.0
  %1379 = vmatprep.subr.mxu0 0.0
  %1380 = vmatpush1.msra.mxu0 0.0
  %1381 = vmatprep.subr.mxu0 0.0
  %1382 = vmatpush1.msra.mxu0 0.0
  %1383 = vmatprep.subr.mxu0 0.0
  %1384 = vmatpush1.msra.mxu0 0.0
  %1385 = vmatprep.subr.mxu0 0.0
  %1386 = vmatpush1.msra.mxu0 0.0
  %1387 = vmatprep.subr.mxu0 0.0
  %1388 = vmatpush1.msra.mxu0 0.0
  %1389 = vmatprep.subr.mxu0 0.0
  %1390 = vmatpush1.msra.mxu0 0.0
  %1391 = vmatprep.subr.mxu0 0.0
  %1392 = vmatpush1.msra.mxu0 0.0
  %1393 = vmatprep.subr.mxu0 0.0
  %1394 = vmatpush1.msra.mxu0 0.0
  %1395 = vmatprep.subr.mxu0 0.0
  %1396 = vmatpush1.msra.mxu0 0.0
  %1397 = vmatprep.subr.mxu0 0.0
  %1398 = vmatpush1.msra.mxu0 0.0
  %1399 = vmatprep.subr.mxu0 0.0
  %1400 = vmatpush1.msra.mxu0 0.0
  %1401 = vmatprep.subr.mxu0 0.0
  %1402 = vmatpush1.msra.mxu0 0.0
  %1403 = vmatprep.subr.mxu0 0.0
  %1404 = vmatpush1.msra.mxu0 0.0
  %1405 = vmatprep.subr.mxu0 0.0
  %1406 = vmatpush1.msra.mxu0 0.0
  %1407 = vmatprep.subr.mxu0 0.0
  %1408 = vmatpush1.msra.mxu0 0.0
  %1409 = vmatprep.subr.mxu0 0.0
  %1410 = vmatpush1.msra.mxu0 0.0
  %1411 = vmatprep.subr.mxu0 0.0
  %1412 = vmatpush1.msra.mxu0 0.0
  %1413 = vmatprep.subr.mxu0 0.0
  %1414 = vmatpush1.msra.mxu0 0.0
  %1415 = vmatprep.subr.mxu0 0.0
  %1416 = vmatpush1.msra.mxu0 0.0
  %1417 = vmatprep.subr.mxu0 0.0
  %1418 = vmatpush1.msra.mxu0 0.0
  %1419 = vmatprep.subr.mxu0 0.0
  %1420 = vmatpush1.msra.mxu0 0.0
  %1421 = vmatprep.subr.mxu0 0.0
  %1422 = vmatpush1.msra.mxu0 0.0
  %1423 = vmatprep.subr.mxu0 0.0
  %1424 = vmatpush1.msra.mxu0 0.0
  %1425 = vmatprep.subr.mxu0 0.0
  %1426 = vmatpush1.msra.mxu0 0.0
  %1427 = vmatprep.subr.mxu0 0.0
  %1428 = vmatpush1.msra.mxu0 0.0
  %1429 = vmatprep.subr.mxu0 0.0
  %1430 = vmatpush1.msra.mxu0 0.0
  %1431 = vmatprep.subr.mxu0 0.0
  %1432 = vmatpush1.msra.mxu0 0.0
  %1433 = vmatprep.subr.mxu0 0.0
  %1434 = vmatpush1.msra.mxu0 0.0
  %1435 = vmatprep.subr.mxu0 0.0
  %1436 = vmatpush1.msra.mxu0 0.0
  %1437 = vmatprep.mubr.f32.mxu0 0.0
  %1438 = vmatmul.mubr.f32.gmra.mrb[0].mxu0 %v1371
  %v1439 = vpop.f32.mrb[0].mxu0
  %v1440 = vadd.f32 0.0, %v1439
  %v1441 = vpop.f32.mrb[0].mxu0
  %1442 = vdwg.mxu0
  %v1444 = vsel %vm592, %v1291, 0
  %1446 = vmatprep.subr.mxu0 0.0
  %1447 = vmatpush1.msra.mxu0 %v564
  %1448 = vmatprep.subr.mxu0 0.0
  %1449 = vmatpush1.msra.mxu0 0.0
  %1450 = vmatprep.subr.mxu0 0.0
  %1451 = vmatpush1.msra.mxu0 0.0
  %1452 = vmatprep.subr.mxu0 0.0
  %1453 = vmatpush1.msra.mxu0 0.0
  %1454 = vmatprep.subr.mxu0 0.0
  %1455 = vmatpush1.msra.mxu0 0.0
  %1456 = vmatprep.subr.mxu0 0.0
  %1457 = vmatpush1.msra.mxu0 0.0
  %1458 = vmatprep.subr.mxu0 0.0
  %1459 = vmatpush1.msra.mxu0 0.0
  %1460 = vmatprep.subr.mxu0 0.0
  %1461 = vmatpush1.msra.mxu0 0.0
  %1462 = vmatprep.subr.mxu0 0.0
  %1463 = vmatpush1.msra.mxu0 0.0
  %1464 = vmatprep.subr.mxu0 0.0
  %1465 = vmatpush1.msra.mxu0 0.0
  %1466 = vmatprep.subr.mxu0 0.0
  %1467 = vmatpush1.msra.mxu0 0.0
  %1468 = vmatprep.subr.mxu0 0.0
  %1469 = vmatpush1.msra.mxu0 0.0
  %1470 = vmatprep.subr.mxu0 0.0
  %1471 = vmatpush1.msra.mxu0 0.0
  %1472 = vmatprep.subr.mxu0 0.0
  %1473 = vmatpush1.msra.mxu0 0.0
  %1474 = vmatprep.subr.mxu0 0.0
  %1475 = vmatpush1.msra.mxu0 0.0
  %1476 = vmatprep.subr.mxu0 0.0
  %1477 = vmatpush1.msra.mxu0 0.0
  %1478 = vmatprep.subr.mxu0 0.0
  %1479 = vmatpush1.msra.mxu0 0.0
  %1480 = vmatprep.subr.mxu0 0.0
  %1481 = vmatpush1.msra.mxu0 0.0
  %1482 = vmatprep.subr.mxu0 0.0
  %1483 = vmatpush1.msra.mxu0 0.0
  %1484 = vmatprep.subr.mxu0 0.0
  %1485 = vmatpush1.msra.mxu0 0.0
  %1486 = vmatprep.subr.mxu0 0.0
  %1487 = vmatpush1.msra.mxu0 0.0
  %1488 = vmatprep.subr.mxu0 0.0
  %1489 = vmatpush1.msra.mxu0 0.0
  %1490 = vmatprep.subr.mxu0 0.0
  %1491 = vmatpush1.msra.mxu0 0.0
  %1492 = vmatprep.subr.mxu0 0.0
  %1493 = vmatpush1.msra.mxu0 0.0
  %1494 = vmatprep.subr.mxu0 0.0
  %1495 = vmatpush1.msra.mxu0 0.0
  %1496 = vmatprep.subr.mxu0 0.0
  %1497 = vmatpush1.msra.mxu0 0.0
  %1498 = vmatprep.subr.mxu0 0.0
  %1499 = vmatpush1.msra.mxu0 0.0
  %1500 = vmatprep.subr.mxu0 0.0
  %1501 = vmatpush1.msra.mxu0 0.0
  %1502 = vmatprep.subr.mxu0 0.0
  %1503 = vmatpush1.msra.mxu0 0.0
  %1504 = vmatprep.subr.mxu0 0.0
  %1505 = vmatpush1.msra.mxu0 0.0
  %1506 = vmatprep.subr.mxu0 0.0
  %1507 = vmatpush1.msra.mxu0 0.0
  %1508 = vmatprep.subr.mxu0 0.0
  %1509 = vmatpush1.msra.mxu0 0.0
  %1510 = vmatprep.mubr.f32.mxu0 0.0
  %1511 = vmatmul.mubr.f32.gmra.mrb[0].mxu0 %v1444
  %v1512 = vpop.f32.mrb[0].mxu0
  %v1513 = vadd.f32 0.0, %v1512
  %v1514 = vpop.f32.mrb[0].mxu0
  %1515 = vdwg.mxu0
  %v1517 = vsel %vm592, %v1292, 0
  %1519 = vmatprep.subr.mxu0 0.0
  %1520 = vmatpush1.msra.mxu0 %v569
  %1521 = vmatprep.subr.mxu0 0.0
  %1522 = vmatpush1.msra.mxu0 0.0
  %1523 = vmatprep.subr.mxu0 0.0
  %1524 = vmatpush1.msra.mxu0 0.0
  %1525 = vmatprep.subr.mxu0 0.0
  %1526 = vmatpush1.msra.mxu0 0.0
  %1527 = vmatprep.subr.mxu0 0.0
  %1528 = vmatpush1.msra.mxu0 0.0
  %1529 = vmatprep.subr.mxu0 0.0
  %1530 = vmatpush1.msra.mxu0 0.0
  %1531 = vmatprep.subr.mxu0 0.0
  %1532 = vmatpush1.msra.mxu0 0.0
  %1533 = vmatprep.subr.mxu0 0.0
  %1534 = vmatpush1.msra.mxu0 0.0
  %1535 = vmatprep.subr.mxu0 0.0
  %1536 = vmatpush1.msra.mxu0 0.0
  %1537 = vmatprep.subr.mxu0 0.0
  %1538 = vmatpush1.msra.mxu0 0.0
  %1539 = vmatprep.subr.mxu0 0.0
  %1540 = vmatpush1.msra.mxu0 0.0
  %1541 = vmatprep.subr.mxu0 0.0
  %1542 = vmatpush1.msra.mxu0 0.0
  %1543 = vmatprep.subr.mxu0 0.0
  %1544 = vmatpush1.msra.mxu0 0.0
  %1545 = vmatprep.subr.mxu0 0.0
  %1546 = vmatpush1.msra.mxu0 0.0
  %1547 = vmatprep.subr.mxu0 0.0
  %1548 = vmatpush1.msra.mxu0 0.0
  %1549 = vmatprep.subr.mxu0 0.0
  %1550 = vmatpush1.msra.mxu0 0.0
  %1551 = vmatprep.subr.mxu0 0.0
  %1552 = vmatpush1.msra.mxu0 0.0
  %1553 = vmatprep.subr.mxu0 0.0
  %1554 = vmatpush1.msra.mxu0 0.0
  %1555 = vmatprep.subr.mxu0 0.0
  %1556 = vmatpush1.msra.mxu0 0.0
  %1557 = vmatprep.subr.mxu0 0.0
  %1558 = vmatpush1.msra.mxu0 0.0
  %1559 = vmatprep.subr.mxu0 0.0
  %1560 = vmatpush1.msra.mxu0 0.0
  %1561 = vmatprep.subr.mxu0 0.0
  %1562 = vmatpush1.msra.mxu0 0.0
  %1563 = vmatprep.subr.mxu0 0.0
  %1564 = vmatpush1.msra.mxu0 0.0
  %1565 = vmatprep.subr.mxu0 0.0
  %1566 = vmatpush1.msra.mxu0 0.0
  %1567 = vmatprep.subr.mxu0 0.0
  %1568 = vmatpush1.msra.mxu0 0.0
  %1569 = vmatprep.subr.mxu0 0.0
  %1570 = vmatpush1.msra.mxu0 0.0
  %1571 = vmatprep.subr.mxu0 0.0
  %1572 = vmatpush1.msra.mxu0 0.0
  %1573 = vmatprep.subr.mxu0 0.0
  %1574 = vmatpush1.msra.mxu0 0.0
  %1575 = vmatprep.subr.mxu0 0.0
  %1576 = vmatpush1.msra.mxu0 0.0
  %1577 = vmatprep.subr.mxu0 0.0
  %1578 = vmatpush1.msra.mxu0 0.0
  %1579 = vmatprep.subr.mxu0 0.0
  %1580 = vmatpush1.msra.mxu0 0.0
  %1581 = vmatprep.subr.mxu0 0.0
  %1582 = vmatpush1.msra.mxu0 0.0
  %1583 = vmatprep.mubr.f32.mxu0 0.0
  %1584 = vmatmul.mubr.f32.gmra.mrb[0].mxu0 %v1517
  %v1585 = vpop.f32.mrb[0].mxu0
  %v1586 = vadd.f32 0.0, %v1585
  %v1587 = vpop.f32.mrb[0].mxu0
  %1588 = vdwg.mxu0
  %v1590 = vsel %vm592, %v1293, 0
  %1592 = vmatprep.subr.mxu0 0.0
  %1593 = vmatpush1.msra.mxu0 %v574
  %1594 = vmatprep.subr.mxu0 0.0
  %1595 = vmatpush1.msra.mxu0 0.0
  %1596 = vmatprep.subr.mxu0 0.0
  %1597 = vmatpush1.msra.mxu0 0.0
  %1598 = vmatprep.subr.mxu0 0.0
  %1599 = vmatpush1.msra.mxu0 0.0
  %1600 = vmatprep.subr.mxu0 0.0
  %1601 = vmatpush1.msra.mxu0 0.0
  %1602 = vmatprep.subr.mxu0 0.0
  %1603 = vmatpush1.msra.mxu0 0.0
  %1604 = vmatprep.subr.mxu0 0.0
  %1605 = vmatpush1.msra.mxu0 0.0
  %1606 = vmatprep.subr.mxu0 0.0
  %1607 = vmatpush1.msra.mxu0 0.0
  %1608 = vmatprep.subr.mxu0 0.0
  %1609 = vmatpush1.msra.mxu0 0.0
  %1610 = vmatprep.subr.mxu0 0.0
  %1611 = vmatpush1.msra.mxu0 0.0
  %1612 = vmatprep.subr.mxu0 0.0
  %1613 = vmatpush1.msra.mxu0 0.0
  %1614 = vmatprep.subr.mxu0 0.0
  %1615 = vmatpush1.msra.mxu0 0.0
  %1616 = vmatprep.subr.mxu0 0.0
  %1617 = vmatpush1.msra.mxu0 0.0
  %1618 = vmatprep.subr.mxu0 0.0
  %1619 = vmatpush1.msra.mxu0 0.0
  %1620 = vmatprep.subr.mxu0 0.0
  %1621 = vmatpush1.msra.mxu0 0.0
  %1622 = vmatprep.subr.mxu0 0.0
  %1623 = vmatpush1.msra.mxu0 0.0
  %1624 = vmatprep.subr.mxu0 0.0
  %1625 = vmatpush1.msra.mxu0 0.0
  %1626 = vmatprep.subr.mxu0 0.0
  %1627 = vmatpush1.msra.mxu0 0.0
  %1628 = vmatprep.subr.mxu0 0.0
  %1629 = vmatpush1.msra.mxu0 0.0
  %1630 = vmatprep.subr.mxu0 0.0
  %1631 = vmatpush1.msra.mxu0 0.0
  %1632 = vmatprep.subr.mxu0 0.0
  %1633 = vmatpush1.msra.mxu0 0.0
  %1634 = vmatprep.subr.mxu0 0.0
  %1635 = vmatpush1.msra.mxu0 0.0
  %1636 = vmatprep.subr.mxu0 0.0
  %1637 = vmatpush1.msra.mxu0 0.0
  %1638 = vmatprep.subr.mxu0 0.0
  %1639 = vmatpush1.msra.mxu0 0.0
  %1640 = vmatprep.subr.mxu0 0.0
  %1641 = vmatpush1.msra.mxu0 0.0
  %1642 = vmatprep.subr.mxu0 0.0
  %1643 = vmatpush1.msra.mxu0 0.0
  %1644 = vmatprep.subr.mxu0 0.0
  %1645 = vmatpush1.msra.mxu0 0.0
  %1646 = vmatprep.subr.mxu0 0.0
  %1647 = vmatpush1.msra.mxu0 0.0
  %1648 = vmatprep.subr.mxu0 0.0
  %1649 = vmatpush1.msra.mxu0 0.0
  %1650 = vmatprep.subr.mxu0 0.0
  %1651 = vmatpush1.msra.mxu0 0.0
  %1652 = vmatprep.subr.mxu0 0.0
  %1653 = vmatpush1.msra.mxu0 0.0
  %1654 = vmatprep.subr.mxu0 0.0
  %1655 = vmatpush1.msra.mxu0 0.0
  %1656 = vmatprep.mubr.f32.mxu0 0.0
  %1657 = vmatmul.mubr.f32.gmra.mrb[0].mxu0 %v1590
  %v1658 = vpop.f32.mrb[0].mxu0
  %v1659 = vadd.f32 0.0, %v1658
  %v1660 = vpop.f32.mrb[0].mxu0
  %1661 = vdwg.mxu0
  %v1663 = vsel %vm592, %v1294, 0
  %1665 = vmatprep.subr.mxu0 0.0
  %1666 = vmatpush1.msra.mxu0 %v579
  %1667 = vmatprep.subr.mxu0 0.0
  %1668 = vmatpush1.msra.mxu0 0.0
  %1669 = vmatprep.subr.mxu0 0.0
  %1670 = vmatpush1.msra.mxu0 0.0
  %1671 = vmatprep.subr.mxu0 0.0
  %1672 = vmatpush1.msra.mxu0 0.0
  %1673 = vmatprep.subr.mxu0 0.0
  %1674 = vmatpush1.msra.mxu0 0.0
  %1675 = vmatprep.subr.mxu0 0.0
  %1676 = vmatpush1.msra.mxu0 0.0
  %1677 = vmatprep.subr.mxu0 0.0
  %1678 = vmatpush1.msra.mxu0 0.0
  %1679 = vmatprep.subr.mxu0 0.0
  %1680 = vmatpush1.msra.mxu0 0.0
  %1681 = vmatprep.subr.mxu0 0.0
  %1682 = vmatpush1.msra.mxu0 0.0
  %1683 = vmatprep.subr.mxu0 0.0
  %1684 = vmatpush1.msra.mxu0 0.0
  %1685 = vmatprep.subr.mxu0 0.0
  %1686 = vmatpush1.msra.mxu0 0.0
  %1687 = vmatprep.subr.mxu0 0.0
  %1688 = vmatpush1.msra.mxu0 0.0
  %1689 = vmatprep.subr.mxu0 0.0
  %1690 = vmatpush1.msra.mxu0 0.0
  %1691 = vmatprep.subr.mxu0 0.0
  %1692 = vmatpush1.msra.mxu0 0.0
  %1693 = vmatprep.subr.mxu0 0.0
  %1694 = vmatpush1.msra.mxu0 0.0
  %1695 = vmatprep.subr.mxu0 0.0
  %1696 = vmatpush1.msra.mxu0 0.0
  %1697 = vmatprep.subr.mxu0 0.0
  %1698 = vmatpush1.msra.mxu0 0.0
  %1699 = vmatprep.subr.mxu0 0.0
  %1700 = vmatpush1.msra.mxu0 0.0
  %1701 = vmatprep.subr.mxu0 0.0
  %1702 = vmatpush1.msra.mxu0 0.0
  %1703 = vmatprep.subr.mxu0 0.0
  %1704 = vmatpush1.msra.mxu0 0.0
  %1705 = vmatprep.subr.mxu0 0.0
  %1706 = vmatpush1.msra.mxu0 0.0
  %1707 = vmatprep.subr.mxu0 0.0
  %1708 = vmatpush1.msra.mxu0 0.0
  %1709 = vmatprep.subr.mxu0 0.0
  %1710 = vmatpush1.msra.mxu0 0.0
  %1711 = vmatprep.subr.mxu0 0.0
  %1712 = vmatpush1.msra.mxu0 0.0
  %1713 = vmatprep.subr.mxu0 0.0
  %1714 = vmatpush1.msra.mxu0 0.0
  %1715 = vmatprep.subr.mxu0 0.0
  %1716 = vmatpush1.msra.mxu0 0.0
  %1717 = vmatprep.subr.mxu0 0.0
  %1718 = vmatpush1.msra.mxu0 0.0
  %1719 = vmatprep.subr.mxu0 0.0
  %1720 = vmatpush1.msra.mxu0 0.0
  %1721 = vmatprep.subr.mxu0 0.0
  %1722 = vmatpush1.msra.mxu0 0.0
  %1723 = vmatprep.subr.mxu0 0.0
  %1724 = vmatpush1.msra.mxu0 0.0
  %1725 = vmatprep.subr.mxu0 0.0
  %1726 = vmatpush1.msra.mxu0 0.0
  %1727 = vmatprep.subr.mxu0 0.0
  %1728 = vmatpush1.msra.mxu0 0.0
  %1729 = vmatprep.mubr.f32.mxu0 0.0
  %1730 = vmatmul.mubr.f32.gmra.mrb[0].mxu0 %v1663
  %v1731 = vpop.f32.mrb[0].mxu0
  %v1732 = vadd.f32 0.0, %v1731
  %v1733 = vpop.f32.mrb[0].mxu0
  %1734 = vdwg.mxu0
  %v1736 = vsel %vm592, %v1295, 0
  %1738 = vmatprep.subr.mxu0 0.0
  %1739 = vmatpush1.msra.mxu0 %v584
  %1740 = vmatprep.subr.mxu0 0.0
  %1741 = vmatpush1.msra.mxu0 0.0
  %1742 = vmatprep.subr.mxu0 0.0
  %1743 = vmatpush1.msra.mxu0 0.0
  %1744 = vmatprep.subr.mxu0 0.0
  %1745 = vmatpush1.msra.mxu0 0.0
  %1746 = vmatprep.subr.mxu0 0.0
  %1747 = vmatpush1.msra.mxu0 0.0
  %1748 = vmatprep.subr.mxu0 0.0
  %1749 = vmatpush1.msra.mxu0 0.0
  %1750 = vmatprep.subr.mxu0 0.0
  %1751 = vmatpush1.msra.mxu0 0.0
  %1752 = vmatprep.subr.mxu0 0.0
  %1753 = vmatpush1.msra.mxu0 0.0
  %1754 = vmatprep.subr.mxu0 0.0
  %1755 = vmatpush1.msra.mxu0 0.0
  %1756 = vmatprep.subr.mxu0 0.0
  %1757 = vmatpush1.msra.mxu0 0.0
  %1758 = vmatprep.subr.mxu0 0.0
  %1759 = vmatpush1.msra.mxu0 0.0
  %1760 = vmatprep.subr.mxu0 0.0
  %1761 = vmatpush1.msra.mxu0 0.0
  %1762 = vmatprep.subr.mxu0 0.0
  %1763 = vmatpush1.msra.mxu0 0.0
  %1764 = vmatprep.subr.mxu0 0.0
  %1765 = vmatpush1.msra.mxu0 0.0
  %1766 = vmatprep.subr.mxu0 0.0
  %1767 = vmatpush1.msra.mxu0 0.0
  %1768 = vmatprep.subr.mxu0 0.0
  %1769 = vmatpush1.msra.mxu0 0.0
  %1770 = vmatprep.subr.mxu0 0.0
  %1771 = vmatpush1.msra.mxu0 0.0
  %1772 = vmatprep.subr.mxu0 0.0
  %1773 = vmatpush1.msra.mxu0 0.0
  %1774 = vmatprep.subr.mxu0 0.0
  %1775 = vmatpush1.msra.mxu0 0.0
  %1776 = vmatprep.subr.mxu0 0.0
  %1777 = vmatpush1.msra.mxu0 0.0
  %1778 = vmatprep.subr.mxu0 0.0
  %1779 = vmatpush1.msra.mxu0 0.0
  %1780 = vmatprep.subr.mxu0 0.0
  %1781 = vmatpush1.msra.mxu0 0.0
  %1782 = vmatprep.subr.mxu0 0.0
  %1783 = vmatpush1.msra.mxu0 0.0
  %1784 = vmatprep.subr.mxu0 0.0
  %1785 = vmatpush1.msra.mxu0 0.0
  %1786 = vmatprep.subr.mxu0 0.0
  %1787 = vmatpush1.msra.mxu0 0.0
  %1788 = vmatprep.subr.mxu0 0.0
  %1789 = vmatpush1.msra.mxu0 0.0
  %1790 = vmatprep.subr.mxu0 0.0
  %1791 = vmatpush1.msra.mxu0 0.0
  %1792 = vmatprep.subr.mxu0 0.0
  %1793 = vmatpush1.msra.mxu0 0.0
  %1794 = vmatprep.subr.mxu0 0.0
  %1795 = vmatpush1.msra.mxu0 0.0
  %1796 = vmatprep.subr.mxu0 0.0
  %1797 = vmatpush1.msra.mxu0 0.0
  %1798 = vmatprep.subr.mxu0 0.0
  %1799 = vmatpush1.msra.mxu0 0.0
  %1800 = vmatprep.subr.mxu0 0.0
  %1801 = vmatpush1.msra.mxu0 0.0
  %1802 = vmatprep.mubr.f32.mxu0 0.0
  %1803 = vmatmul.mubr.f32.gmra.mrb[0].mxu0 %v1736
  %v1804 = vpop.f32.mrb[0].mxu0
  %v1805 = vadd.f32 0.0, %v1804
  %v1806 = vpop.f32.mrb[0].mxu0
  %1807 = vdwg.mxu0
  %v1809 = vsel %vm592, %v1296, 0
  %1811 = vmatprep.subr.mxu0 0.0
  %1812 = vmatpush1.msra.mxu0 %v589
  %1813 = vmatprep.subr.mxu0 0.0
  %1814 = vmatpush1.msra.mxu0 0.0
  %1815 = vmatprep.subr.mxu0 0.0
  %1816 = vmatpush1.msra.mxu0 0.0
  %1817 = vmatprep.subr.mxu0 0.0
  %1818 = vmatpush1.msra.mxu0 0.0
  %1819 = vmatprep.subr.mxu0 0.0
  %1820 = vmatpush1.msra.mxu0 0.0
  %1821 = vmatprep.subr.mxu0 0.0
  %1822 = vmatpush1.msra.mxu0 0.0
  %1823 = vmatprep.subr.mxu0 0.0
  %1824 = vmatpush1.msra.mxu0 0.0
  %1825 = vmatprep.subr.mxu0 0.0
  %1826 = vmatpush1.msra.mxu0 0.0
  %1827 = vmatprep.subr.mxu0 0.0
  %1828 = vmatpush1.msra.mxu0 0.0
  %1829 = vmatprep.subr.mxu0 0.0
  %1830 = vmatpush1.msra.mxu0 0.0
  %1831 = vmatprep.subr.mxu0 0.0
  %1832 = vmatpush1.msra.mxu0 0.0
  %1833 = vmatprep.subr.mxu0 0.0
  %1834 = vmatpush1.msra.mxu0 0.0
  %1835 = vmatprep.subr.mxu0 0.0
  %1836 = vmatpush1.msra.mxu0 0.0
  %1837 = vmatprep.subr.mxu0 0.0
  %1838 = vmatpush1.msra.mxu0 0.0
  %1839 = vmatprep.subr.mxu0 0.0
  %1840 = vmatpush1.msra.mxu0 0.0
  %1841 = vmatprep.subr.mxu0 0.0
  %1842 = vmatpush1.msra.mxu0 0.0
  %1843 = vmatprep.subr.mxu0 0.0
  %1844 = vmatpush1.msra.mxu0 0.0
  %1845 = vmatprep.subr.mxu0 0.0
  %1846 = vmatpush1.msra.mxu0 0.0
  %1847 = vmatprep.subr.mxu0 0.0
  %1848 = vmatpush1.msra.mxu0 0.0
  %1849 = vmatprep.subr.mxu0 0.0
  %1850 = vmatpush1.msra.mxu0 0.0
  %1851 = vmatprep.subr.mxu0 0.0
  %1852 = vmatpush1.msra.mxu0 0.0
  %1853 = vmatprep.subr.mxu0 0.0
  %1854 = vmatpush1.msra.mxu0 0.0
  %1855 = vmatprep.subr.mxu0 0.0
  %1856 = vmatpush1.msra.mxu0 0.0
  %1857 = vmatprep.subr.mxu0 0.0
  %1858 = vmatpush1.msra.mxu0 0.0
  %1859 = vmatprep.subr.mxu0 0.0
  %1860 = vmatpush1.msra.mxu0 0.0
  %1861 = vmatprep.subr.mxu0 0.0
  %1862 = vmatpush1.msra.mxu0 0.0
  %1863 = vmatprep.subr.mxu0 0.0
  %1864 = vmatpush1.msra.mxu0 0.0
  %1865 = vmatprep.subr.mxu0 0.0
  %1866 = vmatpush1.msra.mxu0 0.0
  %1867 = vmatprep.subr.mxu0 0.0
  %1868 = vmatpush1.msra.mxu0 0.0
  %1869 = vmatprep.subr.mxu0 0.0
  %1870 = vmatpush1.msra.mxu0 0.0
  %1871 = vmatprep.subr.mxu0 0.0
  %1872 = vmatpush1.msra.mxu0 0.0
  %1873 = vmatprep.subr.mxu0 0.0
  %1874 = vmatpush1.msra.mxu0 0.0
  %1875 = vmatprep.mubr.f32.mxu0 0.0
  %1876 = vmatmul.mubr.f32.gmra.mrb[0].mxu0 %v1809
  %v1877 = vpop.f32.mrb[0].mxu0
  %v1878 = vadd.f32 0.0, %v1877
  %v1879 = vpop.f32.mrb[0].mxu0
  %1880 = vdwg.mxu0
  %v1881 = vld [vmem:[%s11] sm:$0xff]
  %s1882 = scalar_lea.vmem %s5, 16
  %v1883 = vld [vmem:[%s1882] sm:$0xff]
  %v1884 = vld [vmem:[%s1882 + $0x8] sm:$0xff]
  %s1885 = scalar_lea.vmem %s6, 1
  %v1886 = vld [vmem:[%s1885] sm:$0x1]
  %v1888 = vlaneseq
  %v1889 = vshrl.u32 %v1888, 7
  %v1890 = vsub.s32 0, %v1889
  %v1891 = vrot.slane %v1886, %v1890
  %1893 = vmatprep.subr.mxu0 0.0
  %1894 = vmatpush1.msra.mxu0 %v1883
  %1895 = vmatprep.subr.mxu0 0.0
  %1896 = vmatpush1.msra.mxu0 %v1884
  %1897 = vmatprep.subr.mxu0 0.0
  %1898 = vmatpush1.msra.mxu0 0.0
  %1899 = vmatprep.subr.mxu0 0.0
  %1900 = vmatpush1.msra.mxu0 0.0
  %1901 = vmatprep.subr.mxu0 0.0
  %1902 = vmatpush1.msra.mxu0 0.0
  %1903 = vmatprep.subr.mxu0 0.0
  %1904 = vmatpush1.msra.mxu0 0.0
  %1905 = vmatprep.subr.mxu0 0.0
  %1906 = vmatpush1.msra.mxu0 0.0
  %1907 = vmatprep.subr.mxu0 0.0
  %1908 = vmatpush1.msra.mxu0 0.0
  %1909 = vmatprep.subr.mxu0 0.0
  %1910 = vmatpush1.msra.mxu0 0.0
  %1911 = vmatprep.subr.mxu0 0.0
  %1912 = vmatpush1.msra.mxu0 0.0
  %1913 = vmatprep.subr.mxu0 0.0
  %1914 = vmatpush1.msra.mxu0 0.0
  %1915 = vmatprep.subr.mxu0 0.0
  %1916 = vmatpush1.msra.mxu0 0.0
  %1917 = vmatprep.subr.mxu0 0.0
  %1918 = vmatpush1.msra.mxu0 0.0
  %1919 = vmatprep.subr.mxu0 0.0
  %1920 = vmatpush1.msra.mxu0 0.0
  %1921 = vmatprep.subr.mxu0 0.0
  %1922 = vmatpush1.msra.mxu0 0.0
  %1923 = vmatprep.subr.mxu0 0.0
  %1924 = vmatpush1.msra.mxu0 0.0
  %1925 = vmatprep.subr.mxu0 0.0
  %1926 = vmatpush1.msra.mxu0 0.0
  %1927 = vmatprep.subr.mxu0 0.0
  %1928 = vmatpush1.msra.mxu0 0.0
  %1929 = vmatprep.subr.mxu0 0.0
  %1930 = vmatpush1.msra.mxu0 0.0
  %1931 = vmatprep.subr.mxu0 0.0
  %1932 = vmatpush1.msra.mxu0 0.0
  %1933 = vmatprep.subr.mxu0 0.0
  %1934 = vmatpush1.msra.mxu0 0.0
  %1935 = vmatprep.subr.mxu0 0.0
  %1936 = vmatpush1.msra.mxu0 0.0
  %1937 = vmatprep.subr.mxu0 0.0
  %1938 = vmatpush1.msra.mxu0 0.0
  %1939 = vmatprep.subr.mxu0 0.0
  %1940 = vmatpush1.msra.mxu0 0.0
  %1941 = vmatprep.subr.mxu0 0.0
  %1942 = vmatpush1.msra.mxu0 0.0
  %1943 = vmatprep.subr.mxu0 0.0
  %1944 = vmatpush1.msra.mxu0 0.0
  %1945 = vmatprep.subr.mxu0 0.0
  %1946 = vmatpush1.msra.mxu0 0.0
  %1947 = vmatprep.subr.mxu0 0.0
  %1948 = vmatpush1.msra.mxu0 0.0
  %1949 = vmatprep.subr.mxu0 0.0
  %1950 = vmatpush1.msra.mxu0 0.0
  %1951 = vmatprep.subr.mxu0 0.0
  %1952 = vmatpush1.msra.mxu0 0.0
  %1953 = vmatprep.subr.mxu0 0.0
  %1954 = vmatpush1.msra.mxu0 0.0
  %1955 = vmatprep.subr.mxu0 0.0
  %1956 = vmatpush1.msra.mxu0 0.0
  %1957 = vmatprep.mubr.f32.mxu0 0.0
  %1958 = vmatmul.mubr.f32.gmra.mrb[0].mxu0 %v236
  %v1959 = vpop.f32.mrb[0].mxu0
  %v1960 = vadd.f32 %v1891, %v1959
  %v1961 = vpop.f32.mrb[0].mxu0
  %1962 = vmatprep.mubr.f32.mxu0 0.0
  %1963 = vmatmul.mubr.f32.gmra.mrb[0].mxu0 %v239
  %v1964 = vpop.f32.mrb[0].mxu0
  %v1965 = vadd.f32 %v1891, %v1964
  %v1966 = vpop.f32.mrb[0].mxu0
  %1967 = vmatprep.mubr.f32.mxu0 0.0
  %1968 = vmatmul.mubr.f32.gmra.mrb[0].mxu0 %v242
  %v1969 = vpop.f32.mrb[0].mxu0
  %v1970 = vadd.f32 %v1891, %v1969
  %v1971 = vpop.f32.mrb[0].mxu0
  %1972 = vmatprep.mubr.f32.mxu0 0.0
  %1973 = vmatmul.mubr.f32.gmra.mrb[0].mxu0 %v245
  %v1974 = vpop.f32.mrb[0].mxu0
  %v1975 = vadd.f32 %v1891, %v1974
  %v1976 = vpop.f32.mrb[0].mxu0
  %1977 = vmatprep.mubr.f32.mxu0 0.0
  %1978 = vmatmul.mubr.f32.gmra.mrb[0].mxu0 %v248
  %v1979 = vpop.f32.mrb[0].mxu0
  %v1980 = vadd.f32 %v1891, %v1979
  %v1981 = vpop.f32.mrb[0].mxu0
  %1982 = vmatprep.mubr.f32.mxu0 0.0
  %1983 = vmatmul.mubr.f32.gmra.mrb[0].mxu0 %v251
  %v1984 = vpop.f32.mrb[0].mxu0
  %v1985 = vadd.f32 %v1891, %v1984
  %v1986 = vpop.f32.mrb[0].mxu0
  %1987 = vmatprep.mubr.f32.mxu0 0.0
  %1988 = vmatmul.mubr.f32.gmra.mrb[0].mxu0 %v254
  %v1989 = vpop.f32.mrb[0].mxu0
  %v1990 = vadd.f32 %v1891, %v1989
  %v1991 = vpop.f32.mrb[0].mxu0
  %1992 = vmatprep.mubr.f32.mxu0 0.0
  %1993 = vmatmul.mubr.f32.gmra.mrb[0].mxu0 %v257
  %v1994 = vpop.f32.mrb[0].mxu0
  %v1995 = vadd.f32 %v1891, %v1994
  %v1996 = vpop.f32.mrb[0].mxu0
  %1997 = vdwg.mxu0
  %s1998 = scalar_lea.vmem %s7, 16
  %v1999 = vld [vmem:[%s1998] sm:$0xff]
  %v2000 = vld [vmem:[%s1998 + $0x8] sm:$0xff]
  %s2001 = scalar_lea.vmem %s8, 1
  %v2002 = vld [vmem:[%s2001] sm:$0x1]
  %v2004 = vlaneseq
  %v2005 = vshrl.u32 %v2004, 7
  %v2006 = vsub.s32 0, %v2005
  %v2007 = vrot.slane %v2002, %v2006
  %2009 = vmatprep.subr.mxu0 0.0
  %2010 = vmatpush1.msra.mxu0 %v1999
  %2011 = vmatprep.subr.mxu0 0.0
  %2012 = vmatpush1.msra.mxu0 %v2000
  %2013 = vmatprep.subr.mxu0 0.0
  %2014 = vmatpush1.msra.mxu0 0.0
  %2015 = vmatprep.subr.mxu0 0.0
  %2016 = vmatpush1.msra.mxu0 0.0
  %2017 = vmatprep.subr.mxu0 0.0
  %2018 = vmatpush1.msra.mxu0 0.0
  %2019 = vmatprep.subr.mxu0 0.0
  %2020 = vmatpush1.msra.mxu0 0.0
  %2021 = vmatprep.subr.mxu0 0.0
  %2022 = vmatpush1.msra.mxu0 0.0
  %2023 = vmatprep.subr.mxu0 0.0
  %2024 = vmatpush1.msra.mxu0 0.0
  %2025 = vmatprep.subr.mxu0 0.0
  %2026 = vmatpush1.msra.mxu0 0.0
  %2027 = vmatprep.subr.mxu0 0.0
  %2028 = vmatpush1.msra.mxu0 0.0
  %2029 = vmatprep.subr.mxu0 0.0
  %2030 = vmatpush1.msra.mxu0 0.0
  %2031 = vmatprep.subr.mxu0 0.0
  %2032 = vmatpush1.msra.mxu0 0.0
  %2033 = vmatprep.subr.mxu0 0.0
  %2034 = vmatpush1.msra.mxu0 0.0
  %2035 = vmatprep.subr.mxu0 0.0
  %2036 = vmatpush1.msra.mxu0 0.0
  %2037 = vmatprep.subr.mxu0 0.0
  %2038 = vmatpush1.msra.mxu0 0.0
  %2039 = vmatprep.subr.mxu0 0.0
  %2040 = vmatpush1.msra.mxu0 0.0
  %2041 = vmatprep.subr.mxu0 0.0
  %2042 = vmatpush1.msra.mxu0 0.0
  %2043 = vmatprep.subr.mxu0 0.0
  %2044 = vmatpush1.msra.mxu0 0.0
  %2045 = vmatprep.subr.mxu0 0.0
  %2046 = vmatpush1.msra.mxu0 0.0
  %2047 = vmatprep.subr.mxu0 0.0
  %2048 = vmatpush1.msra.mxu0 0.0
  %2049 = vmatprep.subr.mxu0 0.0
  %2050 = vmatpush1.msra.mxu0 0.0
  %2051 = vmatprep.subr.mxu0 0.0
  %2052 = vmatpush1.msra.mxu0 0.0
  %2053 = vmatprep.subr.mxu0 0.0
  %2054 = vmatpush1.msra.mxu0 0.0
  %2055 = vmatprep.subr.mxu0 0.0
  %2056 = vmatpush1.msra.mxu0 0.0
  %2057 = vmatprep.subr.mxu0 0.0
  %2058 = vmatpush1.msra.mxu0 0.0
  %2059 = vmatprep.subr.mxu0 0.0
  %2060 = vmatpush1.msra.mxu0 0.0
  %2061 = vmatprep.subr.mxu0 0.0
  %2062 = vmatpush1.msra.mxu0 0.0
  %2063 = vmatprep.subr.mxu0 0.0
  %2064 = vmatpush1.msra.mxu0 0.0
  %2065 = vmatprep.subr.mxu0 0.0
  %2066 = vmatpush1.msra.mxu0 0.0
  %2067 = vmatprep.subr.mxu0 0.0
  %2068 = vmatpush1.msra.mxu0 0.0
  %2069 = vmatprep.subr.mxu0 0.0
  %2070 = vmatpush1.msra.mxu0 0.0
  %2071 = vmatprep.subr.mxu0 0.0
  %2072 = vmatpush1.msra.mxu0 0.0
  %2073 = vmatprep.mubr.f32.mxu0 0.0
  %2074 = vmatmul.mubr.f32.gmra.mrb[0].mxu0 %v236
  %v2075 = vpop.f32.mrb[0].mxu0
  %v2076 = vadd.f32 %v2007, %v2075
  %v2077 = vpop.f32.mrb[0].mxu0
  %2078 = vmatprep.mubr.f32.mxu0 0.0
  %2079 = vmatmul.mubr.f32.gmra.mrb[0].mxu0 %v239
  %v2080 = vpop.f32.mrb[0].mxu0
  %v2081 = vadd.f32 %v2007, %v2080
  %v2082 = vpop.f32.mrb[0].mxu0
  %2083 = vmatprep.mubr.f32.mxu0 0.0
  %2084 = vmatmul.mubr.f32.gmra.mrb[0].mxu0 %v242
  %v2085 = vpop.f32.mrb[0].mxu0
  %v2086 = vadd.f32 %v2007, %v2085
  %v2087 = vpop.f32.mrb[0].mxu0
  %2088 = vmatprep.mubr.f32.mxu0 0.0
  %2089 = vmatmul.mubr.f32.gmra.mrb[0].mxu0 %v245
  %v2090 = vpop.f32.mrb[0].mxu0
  %v2091 = vadd.f32 %v2007, %v2090
  %v2092 = vpop.f32.mrb[0].mxu0
  %2093 = vmatprep.mubr.f32.mxu0 0.0
  %2094 = vmatmul.mubr.f32.gmra.mrb[0].mxu0 %v248
  %v2095 = vpop.f32.mrb[0].mxu0
  %v2096 = vadd.f32 %v2007, %v2095
  %v2097 = vpop.f32.mrb[0].mxu0
  %2098 = vmatprep.mubr.f32.mxu0 0.0
  %2099 = vmatmul.mubr.f32.gmra.mrb[0].mxu0 %v251
  %v2100 = vpop.f32.mrb[0].mxu0
  %v2101 = vadd.f32 %v2007, %v2100
  %v2102 = vpop.f32.mrb[0].mxu0
  %2103 = vmatprep.mubr.f32.mxu0 0.0
  %2104 = vmatmul.mubr.f32.gmra.mrb[0].mxu0 %v254
  %v2105 = vpop.f32.mrb[0].mxu0
  %v2106 = vadd.f32 %v2007, %v2105
  %v2107 = vpop.f32.mrb[0].mxu0
  %2108 = vmatprep.mubr.f32.mxu0 0.0
  %2109 = vmatmul.mubr.f32.gmra.mrb[0].mxu0 %v257
  %v2110 = vpop.f32.mrb[0].mxu0
  %v2111 = vadd.f32 %v2007, %v2110
  %v2112 = vpop.f32.mrb[0].mxu0
  %2113 = vdwg.mxu0
  %s2114 = scalar_lea.vmem %s9, 16
  %v2115 = vld [vmem:[%s2114] sm:$0xff]
  %v2116 = vld [vmem:[%s2114 + $0x8] sm:$0xff]
  %s2117 = scalar_lea.vmem %s10, 1
  %v2118 = vld [vmem:[%s2117] sm:$0x1]
  %v2120 = vlaneseq
  %v2121 = vshrl.u32 %v2120, 7
  %v2122 = vsub.s32 0, %v2121
  %v2123 = vrot.slane %v2118, %v2122
  %2125 = vmatprep.subr.mxu0 0.0
  %2126 = vmatpush1.msra.mxu0 %v2115
  %2127 = vmatprep.subr.mxu0 0.0
  %2128 = vmatpush1.msra.mxu0 %v2116
  %2129 = vmatprep.subr.mxu0 0.0
  %2130 = vmatpush1.msra.mxu0 0.0
  %2131 = vmatprep.subr.mxu0 0.0
  %2132 = vmatpush1.msra.mxu0 0.0
  %2133 = vmatprep.subr.mxu0 0.0
  %2134 = vmatpush1.msra.mxu0 0.0
  %2135 = vmatprep.subr.mxu0 0.0
  %2136 = vmatpush1.msra.mxu0 0.0
  %2137 = vmatprep.subr.mxu0 0.0
  %2138 = vmatpush1.msra.mxu0 0.0
  %2139 = vmatprep.subr.mxu0 0.0
  %2140 = vmatpush1.msra.mxu0 0.0
  %2141 = vmatprep.subr.mxu0 0.0
  %2142 = vmatpush1.msra.mxu0 0.0
  %2143 = vmatprep.subr.mxu0 0.0
  %2144 = vmatpush1.msra.mxu0 0.0
  %2145 = vmatprep.subr.mxu0 0.0
  %2146 = vmatpush1.msra.mxu0 0.0
  %2147 = vmatprep.subr.mxu0 0.0
  %2148 = vmatpush1.msra.mxu0 0.0
  %2149 = vmatprep.subr.mxu0 0.0
  %2150 = vmatpush1.msra.mxu0 0.0
  %2151 = vmatprep.subr.mxu0 0.0
  %2152 = vmatpush1.msra.mxu0 0.0
  %2153 = vmatprep.subr.mxu0 0.0
  %2154 = vmatpush1.msra.mxu0 0.0
  %2155 = vmatprep.subr.mxu0 0.0
  %2156 = vmatpush1.msra.mxu0 0.0
  %2157 = vmatprep.subr.mxu0 0.0
  %2158 = vmatpush1.msra.mxu0 0.0
  %2159 = vmatprep.subr.mxu0 0.0
  %2160 = vmatpush1.msra.mxu0 0.0
  %2161 = vmatprep.subr.mxu0 0.0
  %2162 = vmatpush1.msra.mxu0 0.0
  %2163 = vmatprep.subr.mxu0 0.0
  %2164 = vmatpush1.msra.mxu0 0.0
  %2165 = vmatprep.subr.mxu0 0.0
  %2166 = vmatpush1.msra.mxu0 0.0
  %2167 = vmatprep.subr.mxu0 0.0
  %2168 = vmatpush1.msra.mxu0 0.0
  %2169 = vmatprep.subr.mxu0 0.0
  %2170 = vmatpush1.msra.mxu0 0.0
  %2171 = vmatprep.subr.mxu0 0.0
  %2172 = vmatpush1.msra.mxu0 0.0
  %2173 = vmatprep.subr.mxu0 0.0
  %2174 = vmatpush1.msra.mxu0 0.0
  %2175 = vmatprep.subr.mxu0 0.0
  %2176 = vmatpush1.msra.mxu0 0.0
  %2177 = vmatprep.subr.mxu0 0.0
  %2178 = vmatpush1.msra.mxu0 0.0
  %2179 = vmatprep.subr.mxu0 0.0
  %2180 = vmatpush1.msra.mxu0 0.0
  %2181 = vmatprep.subr.mxu0 0.0
  %2182 = vmatpush1.msra.mxu0 0.0
  %2183 = vmatprep.subr.mxu0 0.0
  %2184 = vmatpush1.msra.mxu0 0.0
  %2185 = vmatprep.subr.mxu0 0.0
  %2186 = vmatpush1.msra.mxu0 0.0
  %2187 = vmatprep.subr.mxu0 0.0
  %2188 = vmatpush1.msra.mxu0 0.0
  %2189 = vmatprep.mubr.f32.mxu0 0.0
  %2190 = vmatmul.mubr.f32.gmra.mrb[0].mxu0 %v236
  %v2191 = vpop.f32.mrb[0].mxu0
  %v2192 = vadd.f32 %v2123, %v2191
  %v2193 = vpop.f32.mrb[0].mxu0
  %2194 = vmatprep.mubr.f32.mxu0 0.0
  %2195 = vmatmul.mubr.f32.gmra.mrb[0].mxu0 %v239
  %v2196 = vpop.f32.mrb[0].mxu0
  %v2197 = vadd.f32 %v2123, %v2196
  %v2198 = vpop.f32.mrb[0].mxu0
  %2199 = vmatprep.mubr.f32.mxu0 0.0
  %2200 = vmatmul.mubr.f32.gmra.mrb[0].mxu0 %v242
  %v2201 = vpop.f32.mrb[0].mxu0
  %v2202 = vadd.f32 %v2123, %v2201
  %v2203 = vpop.f32.mrb[0].mxu0
  %2204 = vmatprep.mubr.f32.mxu0 0.0
  %2205 = vmatmul.mubr.f32.gmra.mrb[0].mxu0 %v245
  %v2206 = vpop.f32.mrb[0].mxu0
  %v2207 = vadd.f32 %v2123, %v2206
  %v2208 = vpop.f32.mrb[0].mxu0
  %2209 = vmatprep.mubr.f32.mxu0 0.0
  %2210 = vmatmul.mubr.f32.gmra.mrb[0].mxu0 %v248
  %v2211 = vpop.f32.mrb[0].mxu0
  %v2212 = vadd.f32 %v2123, %v2211
  %v2213 = vpop.f32.mrb[0].mxu0
  %2214 = vmatprep.mubr.f32.mxu0 0.0
  %2215 = vmatmul.mubr.f32.gmra.mrb[0].mxu0 %v251
  %v2216 = vpop.f32.mrb[0].mxu0
  %v2217 = vadd.f32 %v2123, %v2216
  %v2218 = vpop.f32.mrb[0].mxu0
  %2219 = vmatprep.mubr.f32.mxu0 0.0
  %2220 = vmatmul.mubr.f32.gmra.mrb[0].mxu0 %v254
  %v2221 = vpop.f32.mrb[0].mxu0
  %v2222 = vadd.f32 %v2123, %v2221
  %v2223 = vpop.f32.mrb[0].mxu0
  %2224 = vmatprep.mubr.f32.mxu0 0.0
  %2225 = vmatmul.mubr.f32.gmra.mrb[0].mxu0 %v257
  %v2226 = vpop.f32.mrb[0].mxu0
  %v2227 = vadd.f32 %v2123, %v2226
  %v2228 = vpop.f32.mrb[0].mxu0
  %2229 = vdwg.mxu0
  %v2231 = vsel %vm592, %v1960, 0
  %v2234 = vsel %vm592, %v2076, 0
  %2236 = vmatprep.subr.mxu0 0.0
  %2237 = vmatpush1.xpose.msra.mxu0 %v2234
  %2238 = vmatprep.subr.mxu0 0.0
  %2239 = vmatpush1.xpose.msra.mxu0 0.0
  %2240 = vmatprep.subr.mxu0 0.0
  %2241 = vmatpush1.xpose.msra.mxu0 0.0
  %2242 = vmatprep.subr.mxu0 0.0
  %2243 = vmatpush1.xpose.msra.mxu0 0.0
  %2244 = vmatprep.subr.mxu0 0.0
  %2245 = vmatpush1.xpose.msra.mxu0 0.0
  %2246 = vmatprep.subr.mxu0 0.0
  %2247 = vmatpush1.xpose.msra.mxu0 0.0
  %2248 = vmatprep.subr.mxu0 0.0
  %2249 = vmatpush1.xpose.msra.mxu0 0.0
  %2250 = vmatprep.subr.mxu0 0.0
  %2251 = vmatpush1.xpose.msra.mxu0 0.0
  %2252 = vmatprep.subr.mxu0 0.0
  %2253 = vmatpush1.xpose.msra.mxu0 0.0
  %2254 = vmatprep.subr.mxu0 0.0
  %2255 = vmatpush1.xpose.msra.mxu0 0.0
  %2256 = vmatprep.subr.mxu0 0.0
  %2257 = vmatpush1.xpose.msra.mxu0 0.0
  %2258 = vmatprep.subr.mxu0 0.0
  %2259 = vmatpush1.xpose.msra.mxu0 0.0
  %2260 = vmatprep.subr.mxu0 0.0
  %2261 = vmatpush1.xpose.msra.mxu0 0.0
  %2262 = vmatprep.subr.mxu0 0.0
  %2263 = vmatpush1.xpose.msra.mxu0 0.0
  %2264 = vmatprep.subr.mxu0 0.0
  %2265 = vmatpush1.xpose.msra.mxu0 0.0
  %2266 = vmatprep.subr.mxu0 0.0
  %2267 = vmatpush1.xpose.msra.mxu0 0.0
  %2268 = vmatprep.subr.mxu0 0.0
  %2269 = vmatpush1.xpose.msra.mxu0 0.0
  %2270 = vmatprep.subr.mxu0 0.0
  %2271 = vmatpush1.xpose.msra.mxu0 0.0
  %2272 = vmatprep.subr.mxu0 0.0
  %2273 = vmatpush1.xpose.msra.mxu0 0.0
  %2274 = vmatprep.subr.mxu0 0.0
  %2275 = vmatpush1.xpose.msra.mxu0 0.0
  %2276 = vmatprep.subr.mxu0 0.0
  %2277 = vmatpush1.xpose.msra.mxu0 0.0
  %2278 = vmatprep.subr.mxu0 0.0
  %2279 = vmatpush1.xpose.msra.mxu0 0.0
  %2280 = vmatprep.subr.mxu0 0.0
  %2281 = vmatpush1.xpose.msra.mxu0 0.0
  %2282 = vmatprep.subr.mxu0 0.0
  %2283 = vmatpush1.xpose.msra.mxu0 0.0
  %2284 = vmatprep.subr.mxu0 0.0
  %2285 = vmatpush1.xpose.msra.mxu0 0.0
  %2286 = vmatprep.subr.mxu0 0.0
  %2287 = vmatpush1.xpose.msra.mxu0 0.0
  %2288 = vmatprep.subr.mxu0 0.0
  %2289 = vmatpush1.xpose.msra.mxu0 0.0
  %2290 = vmatprep.subr.mxu0 0.0
  %2291 = vmatpush1.xpose.msra.mxu0 0.0
  %2292 = vmatprep.subr.mxu0 0.0
  %2293 = vmatpush1.xpose.msra.mxu0 0.0
  %2294 = vmatprep.subr.mxu0 0.0
  %2295 = vmatpush1.xpose.msra.mxu0 0.0
  %2296 = vmatprep.subr.mxu0 0.0
  %2297 = vmatpush1.xpose.msra.mxu0 0.0
  %2298 = vmatprep.subr.mxu0 0.0
  %2299 = vmatpush1.xpose.msra.mxu0 0.0
  %2300 = vmatprep.mubr.f32.mxu0 0.0
  %2301 = vmatmul.mubr.f32.gmra.mrb[0].mxu0 %v2231
  %v2302 = vpop.f32.mrb[0].mxu0
  %v2303 = vadd.f32 0.0, %v2302
  %v2304 = vpop.f32.mrb[0].mxu0
  %2305 = vdwg.mxu0
  %v2307 = vsel %vm592, %v1965, 0
  %v2310 = vsel %vm592, %v2081, 0
  %2312 = vmatprep.subr.mxu0 0.0
  %2313 = vmatpush1.xpose.msra.mxu0 %v2310
  %2314 = vmatprep.subr.mxu0 0.0
  %2315 = vmatpush1.xpose.msra.mxu0 0.0
  %2316 = vmatprep.subr.mxu0 0.0
  %2317 = vmatpush1.xpose.msra.mxu0 0.0
  %2318 = vmatprep.subr.mxu0 0.0
  %2319 = vmatpush1.xpose.msra.mxu0 0.0
  %2320 = vmatprep.subr.mxu0 0.0
  %2321 = vmatpush1.xpose.msra.mxu0 0.0
  %2322 = vmatprep.subr.mxu0 0.0
  %2323 = vmatpush1.xpose.msra.mxu0 0.0
  %2324 = vmatprep.subr.mxu0 0.0
  %2325 = vmatpush1.xpose.msra.mxu0 0.0
  %2326 = vmatprep.subr.mxu0 0.0
  %2327 = vmatpush1.xpose.msra.mxu0 0.0
  %2328 = vmatprep.subr.mxu0 0.0
  %2329 = vmatpush1.xpose.msra.mxu0 0.0
  %2330 = vmatprep.subr.mxu0 0.0
  %2331 = vmatpush1.xpose.msra.mxu0 0.0
  %2332 = vmatprep.subr.mxu0 0.0
  %2333 = vmatpush1.xpose.msra.mxu0 0.0
  %2334 = vmatprep.subr.mxu0 0.0
  %2335 = vmatpush1.xpose.msra.mxu0 0.0
  %2336 = vmatprep.subr.mxu0 0.0
  %2337 = vmatpush1.xpose.msra.mxu0 0.0
  %2338 = vmatprep.subr.mxu0 0.0
  %2339 = vmatpush1.xpose.msra.mxu0 0.0
  %2340 = vmatprep.subr.mxu0 0.0
  %2341 = vmatpush1.xpose.msra.mxu0 0.0
  %2342 = vmatprep.subr.mxu0 0.0
  %2343 = vmatpush1.xpose.msra.mxu0 0.0
  %2344 = vmatprep.subr.mxu0 0.0
  %2345 = vmatpush1.xpose.msra.mxu0 0.0
  %2346 = vmatprep.subr.mxu0 0.0
  %2347 = vmatpush1.xpose.msra.mxu0 0.0
  %2348 = vmatprep.subr.mxu0 0.0
  %2349 = vmatpush1.xpose.msra.mxu0 0.0
  %2350 = vmatprep.subr.mxu0 0.0
  %2351 = vmatpush1.xpose.msra.mxu0 0.0
  %2352 = vmatprep.subr.mxu0 0.0
  %2353 = vmatpush1.xpose.msra.mxu0 0.0
  %2354 = vmatprep.subr.mxu0 0.0
  %2355 = vmatpush1.xpose.msra.mxu0 0.0
  %2356 = vmatprep.subr.mxu0 0.0
  %2357 = vmatpush1.xpose.msra.mxu0 0.0
  %2358 = vmatprep.subr.mxu0 0.0
  %2359 = vmatpush1.xpose.msra.mxu0 0.0
  %2360 = vmatprep.subr.mxu0 0.0
  %2361 = vmatpush1.xpose.msra.mxu0 0.0
  %2362 = vmatprep.subr.mxu0 0.0
  %2363 = vmatpush1.xpose.msra.mxu0 0.0
  %2364 = vmatprep.subr.mxu0 0.0
  %2365 = vmatpush1.xpose.msra.mxu0 0.0
  %2366 = vmatprep.subr.mxu0 0.0
  %2367 = vmatpush1.xpose.msra.mxu0 0.0
  %2368 = vmatprep.subr.mxu0 0.0
  %2369 = vmatpush1.xpose.msra.mxu0 0.0
  %2370 = vmatprep.subr.mxu0 0.0
  %2371 = vmatpush1.xpose.msra.mxu0 0.0
  %2372 = vmatprep.subr.mxu0 0.0
  %2373 = vmatpush1.xpose.msra.mxu0 0.0
  %2374 = vmatprep.subr.mxu0 0.0
  %2375 = vmatpush1.xpose.msra.mxu0 0.0
  %2376 = vmatprep.mubr.f32.mxu0 0.0
  %2377 = vmatmul.mubr.f32.gmra.mrb[0].mxu0 %v2307
  %v2378 = vpop.f32.mrb[0].mxu0
  %v2379 = vadd.f32 0.0, %v2378
  %v2380 = vpop.f32.mrb[0].mxu0
  %2381 = vdwg.mxu0
  %v2383 = vsel %vm592, %v1970, 0
  %v2386 = vsel %vm592, %v2086, 0
  %2388 = vmatprep.subr.mxu0 0.0
  %2389 = vmatpush1.xpose.msra.mxu0 %v2386
  %2390 = vmatprep.subr.mxu0 0.0
  %2391 = vmatpush1.xpose.msra.mxu0 0.0
  %2392 = vmatprep.subr.mxu0 0.0
  %2393 = vmatpush1.xpose.msra.mxu0 0.0
  %2394 = vmatprep.subr.mxu0 0.0
  %2395 = vmatpush1.xpose.msra.mxu0 0.0
  %2396 = vmatprep.subr.mxu0 0.0
  %2397 = vmatpush1.xpose.msra.mxu0 0.0
  %2398 = vmatprep.subr.mxu0 0.0
  %2399 = vmatpush1.xpose.msra.mxu0 0.0
  %2400 = vmatprep.subr.mxu0 0.0
  %2401 = vmatpush1.xpose.msra.mxu0 0.0
  %2402 = vmatprep.subr.mxu0 0.0
  %2403 = vmatpush1.xpose.msra.mxu0 0.0
  %2404 = vmatprep.subr.mxu0 0.0
  %2405 = vmatpush1.xpose.msra.mxu0 0.0
  %2406 = vmatprep.subr.mxu0 0.0
  %2407 = vmatpush1.xpose.msra.mxu0 0.0
  %2408 = vmatprep.subr.mxu0 0.0
  %2409 = vmatpush1.xpose.msra.mxu0 0.0
  %2410 = vmatprep.subr.mxu0 0.0
  %2411 = vmatpush1.xpose.msra.mxu0 0.0
  %2412 = vmatprep.subr.mxu0 0.0
  %2413 = vmatpush1.xpose.msra.mxu0 0.0
  %2414 = vmatprep.subr.mxu0 0.0
  %2415 = vmatpush1.xpose.msra.mxu0 0.0
  %2416 = vmatprep.subr.mxu0 0.0
  %2417 = vmatpush1.xpose.msra.mxu0 0.0
  %2418 = vmatprep.subr.mxu0 0.0
  %2419 = vmatpush1.xpose.msra.mxu0 0.0
  %2420 = vmatprep.subr.mxu0 0.0
  %2421 = vmatpush1.xpose.msra.mxu0 0.0
  %2422 = vmatprep.subr.mxu0 0.0
  %2423 = vmatpush1.xpose.msra.mxu0 0.0
  %2424 = vmatprep.subr.mxu0 0.0
  %2425 = vmatpush1.xpose.msra.mxu0 0.0
  %2426 = vmatprep.subr.mxu0 0.0
  %2427 = vmatpush1.xpose.msra.mxu0 0.0
  %2428 = vmatprep.subr.mxu0 0.0
  %2429 = vmatpush1.xpose.msra.mxu0 0.0
  %2430 = vmatprep.subr.mxu0 0.0
  %2431 = vmatpush1.xpose.msra.mxu0 0.0
  %2432 = vmatprep.subr.mxu0 0.0
  %2433 = vmatpush1.xpose.msra.mxu0 0.0
  %2434 = vmatprep.subr.mxu0 0.0
  %2435 = vmatpush1.xpose.msra.mxu0 0.0
  %2436 = vmatprep.subr.mxu0 0.0
  %2437 = vmatpush1.xpose.msra.mxu0 0.0
  %2438 = vmatprep.subr.mxu0 0.0
  %2439 = vmatpush1.xpose.msra.mxu0 0.0
  %2440 = vmatprep.subr.mxu0 0.0
  %2441 = vmatpush1.xpose.msra.mxu0 0.0
  %2442 = vmatprep.subr.mxu0 0.0
  %2443 = vmatpush1.xpose.msra.mxu0 0.0
  %2444 = vmatprep.subr.mxu0 0.0
  %2445 = vmatpush1.xpose.msra.mxu0 0.0
  %2446 = vmatprep.subr.mxu0 0.0
  %2447 = vmatpush1.xpose.msra.mxu0 0.0
  %2448 = vmatprep.subr.mxu0 0.0
  %2449 = vmatpush1.xpose.msra.mxu0 0.0
  %2450 = vmatprep.subr.mxu0 0.0
  %2451 = vmatpush1.xpose.msra.mxu0 0.0
  %2452 = vmatprep.mubr.f32.mxu0 0.0
  %2453 = vmatmul.mubr.f32.gmra.mrb[0].mxu0 %v2383
  %v2454 = vpop.f32.mrb[0].mxu0
  %v2455 = vadd.f32 0.0, %v2454
  %v2456 = vpop.f32.mrb[0].mxu0
  %2457 = vdwg.mxu0
  %v2459 = vsel %vm592, %v1975, 0
  %v2462 = vsel %vm592, %v2091, 0
  %2464 = vmatprep.subr.mxu0 0.0
  %2465 = vmatpush1.xpose.msra.mxu0 %v2462
  %2466 = vmatprep.subr.mxu0 0.0
  %2467 = vmatpush1.xpose.msra.mxu0 0.0
  %2468 = vmatprep.subr.mxu0 0.0
  %2469 = vmatpush1.xpose.msra.mxu0 0.0
  %2470 = vmatprep.subr.mxu0 0.0
  %2471 = vmatpush1.xpose.msra.mxu0 0.0
  %2472 = vmatprep.subr.mxu0 0.0
  %2473 = vmatpush1.xpose.msra.mxu0 0.0
  %2474 = vmatprep.subr.mxu0 0.0
  %2475 = vmatpush1.xpose.msra.mxu0 0.0
  %2476 = vmatprep.subr.mxu0 0.0
  %2477 = vmatpush1.xpose.msra.mxu0 0.0
  %2478 = vmatprep.subr.mxu0 0.0
  %2479 = vmatpush1.xpose.msra.mxu0 0.0
  %2480 = vmatprep.subr.mxu0 0.0
  %2481 = vmatpush1.xpose.msra.mxu0 0.0
  %2482 = vmatprep.subr.mxu0 0.0
  %2483 = vmatpush1.xpose.msra.mxu0 0.0
  %2484 = vmatprep.subr.mxu0 0.0
  %2485 = vmatpush1.xpose.msra.mxu0 0.0
  %2486 = vmatprep.subr.mxu0 0.0
  %2487 = vmatpush1.xpose.msra.mxu0 0.0
  %2488 = vmatprep.subr.mxu0 0.0
  %2489 = vmatpush1.xpose.msra.mxu0 0.0
  %2490 = vmatprep.subr.mxu0 0.0
  %2491 = vmatpush1.xpose.msra.mxu0 0.0
  %2492 = vmatprep.subr.mxu0 0.0
  %2493 = vmatpush1.xpose.msra.mxu0 0.0
  %2494 = vmatprep.subr.mxu0 0.0
  %2495 = vmatpush1.xpose.msra.mxu0 0.0
  %2496 = vmatprep.subr.mxu0 0.0
  %2497 = vmatpush1.xpose.msra.mxu0 0.0
  %2498 = vmatprep.subr.mxu0 0.0
  %2499 = vmatpush1.xpose.msra.mxu0 0.0
  %2500 = vmatprep.subr.mxu0 0.0
  %2501 = vmatpush1.xpose.msra.mxu0 0.0
  %2502 = vmatprep.subr.mxu0 0.0
  %2503 = vmatpush1.xpose.msra.mxu0 0.0
  %2504 = vmatprep.subr.mxu0 0.0
  %2505 = vmatpush1.xpose.msra.mxu0 0.0
  %2506 = vmatprep.subr.mxu0 0.0
  %2507 = vmatpush1.xpose.msra.mxu0 0.0
  %2508 = vmatprep.subr.mxu0 0.0
  %2509 = vmatpush1.xpose.msra.mxu0 0.0
  %2510 = vmatprep.subr.mxu0 0.0
  %2511 = vmatpush1.xpose.msra.mxu0 0.0
  %2512 = vmatprep.subr.mxu0 0.0
  %2513 = vmatpush1.xpose.msra.mxu0 0.0
  %2514 = vmatprep.subr.mxu0 0.0
  %2515 = vmatpush1.xpose.msra.mxu0 0.0
  %2516 = vmatprep.subr.mxu0 0.0
  %2517 = vmatpush1.xpose.msra.mxu0 0.0
  %2518 = vmatprep.subr.mxu0 0.0
  %2519 = vmatpush1.xpose.msra.mxu0 0.0
  %2520 = vmatprep.subr.mxu0 0.0
  %2521 = vmatpush1.xpose.msra.mxu0 0.0
  %2522 = vmatprep.subr.mxu0 0.0
  %2523 = vmatpush1.xpose.msra.mxu0 0.0
  %2524 = vmatprep.subr.mxu0 0.0
  %2525 = vmatpush1.xpose.msra.mxu0 0.0
  %2526 = vmatprep.subr.mxu0 0.0
  %2527 = vmatpush1.xpose.msra.mxu0 0.0
  %2528 = vmatprep.mubr.f32.mxu0 0.0
  %2529 = vmatmul.mubr.f32.gmra.mrb[0].mxu0 %v2459
  %v2530 = vpop.f32.mrb[0].mxu0
  %v2531 = vadd.f32 0.0, %v2530
  %v2532 = vpop.f32.mrb[0].mxu0
  %2533 = vdwg.mxu0
  %v2535 = vsel %vm592, %v1980, 0
  %v2538 = vsel %vm592, %v2096, 0
  %2540 = vmatprep.subr.mxu0 0.0
  %2541 = vmatpush1.xpose.msra.mxu0 %v2538
  %2542 = vmatprep.subr.mxu0 0.0
  %2543 = vmatpush1.xpose.msra.mxu0 0.0
  %2544 = vmatprep.subr.mxu0 0.0
  %2545 = vmatpush1.xpose.msra.mxu0 0.0
  %2546 = vmatprep.subr.mxu0 0.0
  %2547 = vmatpush1.xpose.msra.mxu0 0.0
  %2548 = vmatprep.subr.mxu0 0.0
  %2549 = vmatpush1.xpose.msra.mxu0 0.0
  %2550 = vmatprep.subr.mxu0 0.0
  %2551 = vmatpush1.xpose.msra.mxu0 0.0
  %2552 = vmatprep.subr.mxu0 0.0
  %2553 = vmatpush1.xpose.msra.mxu0 0.0
  %2554 = vmatprep.subr.mxu0 0.0
  %2555 = vmatpush1.xpose.msra.mxu0 0.0
  %2556 = vmatprep.subr.mxu0 0.0
  %2557 = vmatpush1.xpose.msra.mxu0 0.0
  %2558 = vmatprep.subr.mxu0 0.0
  %2559 = vmatpush1.xpose.msra.mxu0 0.0
  %2560 = vmatprep.subr.mxu0 0.0
  %2561 = vmatpush1.xpose.msra.mxu0 0.0
  %2562 = vmatprep.subr.mxu0 0.0
  %2563 = vmatpush1.xpose.msra.mxu0 0.0
  %2564 = vmatprep.subr.mxu0 0.0
  %2565 = vmatpush1.xpose.msra.mxu0 0.0
  %2566 = vmatprep.subr.mxu0 0.0
  %2567 = vmatpush1.xpose.msra.mxu0 0.0
  %2568 = vmatprep.subr.mxu0 0.0
  %2569 = vmatpush1.xpose.msra.mxu0 0.0
  %2570 = vmatprep.subr.mxu0 0.0
  %2571 = vmatpush1.xpose.msra.mxu0 0.0
  %2572 = vmatprep.subr.mxu0 0.0
  %2573 = vmatpush1.xpose.msra.mxu0 0.0
  %2574 = vmatprep.subr.mxu0 0.0
  %2575 = vmatpush1.xpose.msra.mxu0 0.0
  %2576 = vmatprep.subr.mxu0 0.0
  %2577 = vmatpush1.xpose.msra.mxu0 0.0
  %2578 = vmatprep.subr.mxu0 0.0
  %2579 = vmatpush1.xpose.msra.mxu0 0.0
  %2580 = vmatprep.subr.mxu0 0.0
  %2581 = vmatpush1.xpose.msra.mxu0 0.0
  %2582 = vmatprep.subr.mxu0 0.0
  %2583 = vmatpush1.xpose.msra.mxu0 0.0
  %2584 = vmatprep.subr.mxu0 0.0
  %2585 = vmatpush1.xpose.msra.mxu0 0.0
  %2586 = vmatprep.subr.mxu0 0.0
  %2587 = vmatpush1.xpose.msra.mxu0 0.0
  %2588 = vmatprep.subr.mxu0 0.0
  %2589 = vmatpush1.xpose.msra.mxu0 0.0
  %2590 = vmatprep.subr.mxu0 0.0
  %2591 = vmatpush1.xpose.msra.mxu0 0.0
  %2592 = vmatprep.subr.mxu0 0.0
  %2593 = vmatpush1.xpose.msra.mxu0 0.0
  %2594 = vmatprep.subr.mxu0 0.0
  %2595 = vmatpush1.xpose.msra.mxu0 0.0
  %2596 = vmatprep.subr.mxu0 0.0
  %2597 = vmatpush1.xpose.msra.mxu0 0.0
  %2598 = vmatprep.subr.mxu0 0.0
  %2599 = vmatpush1.xpose.msra.mxu0 0.0
  %2600 = vmatprep.subr.mxu0 0.0
  %2601 = vmatpush1.xpose.msra.mxu0 0.0
  %2602 = vmatprep.subr.mxu0 0.0
  %2603 = vmatpush1.xpose.msra.mxu0 0.0
  %2604 = vmatprep.mubr.f32.mxu0 0.0
  %2605 = vmatmul.mubr.f32.gmra.mrb[0].mxu0 %v2535
  %v2606 = vpop.f32.mrb[0].mxu0
  %v2607 = vadd.f32 0.0, %v2606
  %v2608 = vpop.f32.mrb[0].mxu0
  %2609 = vdwg.mxu0
  %v2611 = vsel %vm592, %v1985, 0
  %v2614 = vsel %vm592, %v2101, 0
  %2616 = vmatprep.subr.mxu0 0.0
  %2617 = vmatpush1.xpose.msra.mxu0 %v2614
  %2618 = vmatprep.subr.mxu0 0.0
  %2619 = vmatpush1.xpose.msra.mxu0 0.0
  %2620 = vmatprep.subr.mxu0 0.0
  %2621 = vmatpush1.xpose.msra.mxu0 0.0
  %2622 = vmatprep.subr.mxu0 0.0
  %2623 = vmatpush1.xpose.msra.mxu0 0.0
  %2624 = vmatprep.subr.mxu0 0.0
  %2625 = vmatpush1.xpose.msra.mxu0 0.0
  %2626 = vmatprep.subr.mxu0 0.0
  %2627 = vmatpush1.xpose.msra.mxu0 0.0
  %2628 = vmatprep.subr.mxu0 0.0
  %2629 = vmatpush1.xpose.msra.mxu0 0.0
  %2630 = vmatprep.subr.mxu0 0.0
  %2631 = vmatpush1.xpose.msra.mxu0 0.0
  %2632 = vmatprep.subr.mxu0 0.0
  %2633 = vmatpush1.xpose.msra.mxu0 0.0
  %2634 = vmatprep.subr.mxu0 0.0
  %2635 = vmatpush1.xpose.msra.mxu0 0.0
  %2636 = vmatprep.subr.mxu0 0.0
  %2637 = vmatpush1.xpose.msra.mxu0 0.0
  %2638 = vmatprep.subr.mxu0 0.0
  %2639 = vmatpush1.xpose.msra.mxu0 0.0
  %2640 = vmatprep.subr.mxu0 0.0
  %2641 = vmatpush1.xpose.msra.mxu0 0.0
  %2642 = vmatprep.subr.mxu0 0.0
  %2643 = vmatpush1.xpose.msra.mxu0 0.0
  %2644 = vmatprep.subr.mxu0 0.0
  %2645 = vmatpush1.xpose.msra.mxu0 0.0
  %2646 = vmatprep.subr.mxu0 0.0
  %2647 = vmatpush1.xpose.msra.mxu0 0.0
  %2648 = vmatprep.subr.mxu0 0.0
  %2649 = vmatpush1.xpose.msra.mxu0 0.0
  %2650 = vmatprep.subr.mxu0 0.0
  %2651 = vmatpush1.xpose.msra.mxu0 0.0
  %2652 = vmatprep.subr.mxu0 0.0
  %2653 = vmatpush1.xpose.msra.mxu0 0.0
  %2654 = vmatprep.subr.mxu0 0.0
  %2655 = vmatpush1.xpose.msra.mxu0 0.0
  %2656 = vmatprep.subr.mxu0 0.0
  %2657 = vmatpush1.xpose.msra.mxu0 0.0
  %2658 = vmatprep.subr.mxu0 0.0
  %2659 = vmatpush1.xpose.msra.mxu0 0.0
  %2660 = vmatprep.subr.mxu0 0.0
  %2661 = vmatpush1.xpose.msra.mxu0 0.0
  %2662 = vmatprep.subr.mxu0 0.0
  %2663 = vmatpush1.xpose.msra.mxu0 0.0
  %2664 = vmatprep.subr.mxu0 0.0
  %2665 = vmatpush1.xpose.msra.mxu0 0.0
  %2666 = vmatprep.subr.mxu0 0.0
  %2667 = vmatpush1.xpose.msra.mxu0 0.0
  %2668 = vmatprep.subr.mxu0 0.0
  %2669 = vmatpush1.xpose.msra.mxu0 0.0
  %2670 = vmatprep.subr.mxu0 0.0
  %2671 = vmatpush1.xpose.msra.mxu0 0.0
  %2672 = vmatprep.subr.mxu0 0.0
  %2673 = vmatpush1.xpose.msra.mxu0 0.0
  %2674 = vmatprep.subr.mxu0 0.0
  %2675 = vmatpush1.xpose.msra.mxu0 0.0
  %2676 = vmatprep.subr.mxu0 0.0
  %2677 = vmatpush1.xpose.msra.mxu0 0.0
  %2678 = vmatprep.subr.mxu0 0.0
  %2679 = vmatpush1.xpose.msra.mxu0 0.0
  %2680 = vmatprep.mubr.f32.mxu0 0.0
  %2681 = vmatmul.mubr.f32.gmra.mrb[0].mxu0 %v2611
  %v2682 = vpop.f32.mrb[0].mxu0
  %v2683 = vadd.f32 0.0, %v2682
  %v2684 = vpop.f32.mrb[0].mxu0
  %2685 = vdwg.mxu0
  %v2687 = vsel %vm592, %v1990, 0
  %v2690 = vsel %vm592, %v2106, 0
  %2692 = vmatprep.subr.mxu0 0.0
  %2693 = vmatpush1.xpose.msra.mxu0 %v2690
  %2694 = vmatprep.subr.mxu0 0.0
  %2695 = vmatpush1.xpose.msra.mxu0 0.0
  %2696 = vmatprep.subr.mxu0 0.0
  %2697 = vmatpush1.xpose.msra.mxu0 0.0
  %2698 = vmatprep.subr.mxu0 0.0
  %2699 = vmatpush1.xpose.msra.mxu0 0.0
  %2700 = vmatprep.subr.mxu0 0.0
  %2701 = vmatpush1.xpose.msra.mxu0 0.0
  %2702 = vmatprep.subr.mxu0 0.0
  %2703 = vmatpush1.xpose.msra.mxu0 0.0
  %2704 = vmatprep.subr.mxu0 0.0
  %2705 = vmatpush1.xpose.msra.mxu0 0.0
  %2706 = vmatprep.subr.mxu0 0.0
  %2707 = vmatpush1.xpose.msra.mxu0 0.0
  %2708 = vmatprep.subr.mxu0 0.0
  %2709 = vmatpush1.xpose.msra.mxu0 0.0
  %2710 = vmatprep.subr.mxu0 0.0
  %2711 = vmatpush1.xpose.msra.mxu0 0.0
  %2712 = vmatprep.subr.mxu0 0.0
  %2713 = vmatpush1.xpose.msra.mxu0 0.0
  %2714 = vmatprep.subr.mxu0 0.0
  %2715 = vmatpush1.xpose.msra.mxu0 0.0
  %2716 = vmatprep.subr.mxu0 0.0
  %2717 = vmatpush1.xpose.msra.mxu0 0.0
  %2718 = vmatprep.subr.mxu0 0.0
  %2719 = vmatpush1.xpose.msra.mxu0 0.0
  %2720 = vmatprep.subr.mxu0 0.0
  %2721 = vmatpush1.xpose.msra.mxu0 0.0
  %2722 = vmatprep.subr.mxu0 0.0
  %2723 = vmatpush1.xpose.msra.mxu0 0.0
  %2724 = vmatprep.subr.mxu0 0.0
  %2725 = vmatpush1.xpose.msra.mxu0 0.0
  %2726 = vmatprep.subr.mxu0 0.0
  %2727 = vmatpush1.xpose.msra.mxu0 0.0
  %2728 = vmatprep.subr.mxu0 0.0
  %2729 = vmatpush1.xpose.msra.mxu0 0.0
  %2730 = vmatprep.subr.mxu0 0.0
  %2731 = vmatpush1.xpose.msra.mxu0 0.0
  %2732 = vmatprep.subr.mxu0 0.0
  %2733 = vmatpush1.xpose.msra.mxu0 0.0
  %2734 = vmatprep.subr.mxu0 0.0
  %2735 = vmatpush1.xpose.msra.mxu0 0.0
  %2736 = vmatprep.subr.mxu0 0.0
  %2737 = vmatpush1.xpose.msra.mxu0 0.0
  %2738 = vmatprep.subr.mxu0 0.0
  %2739 = vmatpush1.xpose.msra.mxu0 0.0
  %2740 = vmatprep.subr.mxu0 0.0
  %2741 = vmatpush1.xpose.msra.mxu0 0.0
  %2742 = vmatprep.subr.mxu0 0.0
  %2743 = vmatpush1.xpose.msra.mxu0 0.0
  %2744 = vmatprep.subr.mxu0 0.0
  %2745 = vmatpush1.xpose.msra.mxu0 0.0
  %2746 = vmatprep.subr.mxu0 0.0
  %2747 = vmatpush1.xpose.msra.mxu0 0.0
  %2748 = vmatprep.subr.mxu0 0.0
  %2749 = vmatpush1.xpose.msra.mxu0 0.0
  %2750 = vmatprep.subr.mxu0 0.0
  %2751 = vmatpush1.xpose.msra.mxu0 0.0
  %2752 = vmatprep.subr.mxu0 0.0
  %2753 = vmatpush1.xpose.msra.mxu0 0.0
  %2754 = vmatprep.subr.mxu0 0.0
  %2755 = vmatpush1.xpose.msra.mxu0 0.0
  %2756 = vmatprep.mubr.f32.mxu0 0.0
  %2757 = vmatmul.mubr.f32.gmra.mrb[0].mxu0 %v2687
  %v2758 = vpop.f32.mrb[0].mxu0
  %v2759 = vadd.f32 0.0, %v2758
  %v2760 = vpop.f32.mrb[0].mxu0
  %2761 = vdwg.mxu0
  %v2763 = vsel %vm592, %v1995, 0
  %v2766 = vsel %vm592, %v2111, 0
  %2768 = vmatprep.subr.mxu0 0.0
  %2769 = vmatpush1.xpose.msra.mxu0 %v2766
  %2770 = vmatprep.subr.mxu0 0.0
  %2771 = vmatpush1.xpose.msra.mxu0 0.0
  %2772 = vmatprep.subr.mxu0 0.0
  %2773 = vmatpush1.xpose.msra.mxu0 0.0
  %2774 = vmatprep.subr.mxu0 0.0
  %2775 = vmatpush1.xpose.msra.mxu0 0.0
  %2776 = vmatprep.subr.mxu0 0.0
  %2777 = vmatpush1.xpose.msra.mxu0 0.0
  %2778 = vmatprep.subr.mxu0 0.0
  %2779 = vmatpush1.xpose.msra.mxu0 0.0
  %2780 = vmatprep.subr.mxu0 0.0
  %2781 = vmatpush1.xpose.msra.mxu0 0.0
  %2782 = vmatprep.subr.mxu0 0.0
  %2783 = vmatpush1.xpose.msra.mxu0 0.0
  %2784 = vmatprep.subr.mxu0 0.0
  %2785 = vmatpush1.xpose.msra.mxu0 0.0
  %2786 = vmatprep.subr.mxu0 0.0
  %2787 = vmatpush1.xpose.msra.mxu0 0.0
  %2788 = vmatprep.subr.mxu0 0.0
  %2789 = vmatpush1.xpose.msra.mxu0 0.0
  %2790 = vmatprep.subr.mxu0 0.0
  %2791 = vmatpush1.xpose.msra.mxu0 0.0
  %2792 = vmatprep.subr.mxu0 0.0
  %2793 = vmatpush1.xpose.msra.mxu0 0.0
  %2794 = vmatprep.subr.mxu0 0.0
  %2795 = vmatpush1.xpose.msra.mxu0 0.0
  %2796 = vmatprep.subr.mxu0 0.0
  %2797 = vmatpush1.xpose.msra.mxu0 0.0
  %2798 = vmatprep.subr.mxu0 0.0
  %2799 = vmatpush1.xpose.msra.mxu0 0.0
  %2800 = vmatprep.subr.mxu0 0.0
  %2801 = vmatpush1.xpose.msra.mxu0 0.0
  %2802 = vmatprep.subr.mxu0 0.0
  %2803 = vmatpush1.xpose.msra.mxu0 0.0
  %2804 = vmatprep.subr.mxu0 0.0
  %2805 = vmatpush1.xpose.msra.mxu0 0.0
  %2806 = vmatprep.subr.mxu0 0.0
  %2807 = vmatpush1.xpose.msra.mxu0 0.0
  %2808 = vmatprep.subr.mxu0 0.0
  %2809 = vmatpush1.xpose.msra.mxu0 0.0
  %2810 = vmatprep.subr.mxu0 0.0
  %2811 = vmatpush1.xpose.msra.mxu0 0.0
  %2812 = vmatprep.subr.mxu0 0.0
  %2813 = vmatpush1.xpose.msra.mxu0 0.0
  %2814 = vmatprep.subr.mxu0 0.0
  %2815 = vmatpush1.xpose.msra.mxu0 0.0
  %2816 = vmatprep.subr.mxu0 0.0
  %2817 = vmatpush1.xpose.msra.mxu0 0.0
  %2818 = vmatprep.subr.mxu0 0.0
  %2819 = vmatpush1.xpose.msra.mxu0 0.0
  %2820 = vmatprep.subr.mxu0 0.0
  %2821 = vmatpush1.xpose.msra.mxu0 0.0
  %2822 = vmatprep.subr.mxu0 0.0
  %2823 = vmatpush1.xpose.msra.mxu0 0.0
  %2824 = vmatprep.subr.mxu0 0.0
  %2825 = vmatpush1.xpose.msra.mxu0 0.0
  %2826 = vmatprep.subr.mxu0 0.0
  %2827 = vmatpush1.xpose.msra.mxu0 0.0
  %2828 = vmatprep.subr.mxu0 0.0
  %2829 = vmatpush1.xpose.msra.mxu0 0.0
  %2830 = vmatprep.subr.mxu0 0.0
  %2831 = vmatpush1.xpose.msra.mxu0 0.0
  %2832 = vmatprep.mubr.f32.mxu0 0.0
  %2833 = vmatmul.mubr.f32.gmra.mrb[0].mxu0 %v2763
  %v2834 = vpop.f32.mrb[0].mxu0
  %v2835 = vadd.f32 0.0, %v2834
  %v2836 = vpop.f32.mrb[0].mxu0
  %2837 = vdwg.mxu0
  %v2838 = vmul.f32 %v2303, 0.35355338
  %v2839 = vmul.f32 %v2379, 0.35355338
  %v2840 = vmul.f32 %v2455, 0.35355338
  %v2841 = vmul.f32 %v2531, 0.35355338
  %v2842 = vmul.f32 %v2607, 0.35355338
  %v2843 = vmul.f32 %v2683, 0.35355338
  %v2844 = vmul.f32 %v2759, 0.35355338
  %v2845 = vmul.f32 %v2835, 0.35355338
  %v2846 = vsel %vm592, %v2838, -inf
  %2847 = vmax.xlane.f32.xlu0 %v2846
  %v2848 = vpop.xlane.xlu0 %2847
  %v2849 = vsel %vm592, %v2839, -inf
  %2850 = vmax.xlane.f32.xlu0 %v2849
  %v2851 = vpop.xlane.xlu0 %2850
  %v2852 = vsel %vm592, %v2840, -inf
  %2853 = vmax.xlane.f32.xlu0 %v2852
  %v2854 = vpop.xlane.xlu0 %2853
  %v2855 = vsel %vm592, %v2841, -inf
  %2856 = vmax.xlane.f32.xlu0 %v2855
  %v2857 = vpop.xlane.xlu0 %2856
  %v2858 = vsel %vm592, %v2842, -inf
  %2859 = vmax.xlane.f32.xlu0 %v2858
  %v2860 = vpop.xlane.xlu0 %2859
  %v2861 = vsel %vm592, %v2843, -inf
  %2862 = vmax.xlane.f32.xlu0 %v2861
  %v2863 = vpop.xlane.xlu0 %2862
  %v2864 = vsel %vm592, %v2844, -inf
  %2865 = vmax.xlane.f32.xlu0 %v2864
  %v2866 = vpop.xlane.xlu0 %2865
  %v2867 = vsel %vm592, %v2845, -inf
  %2868 = vmax.xlane.f32.xlu0 %v2867
  %v2869 = vpop.xlane.xlu0 %2868
  %v2870 = vsub.f32 %v2838, %v2848
  %v2871 = vsub.f32 %v2839, %v2851
  %v2872 = vsub.f32 %v2840, %v2854
  %v2873 = vsub.f32 %v2841, %v2857
  %v2874 = vsub.f32 %v2842, %v2860
  %v2875 = vsub.f32 %v2843, %v2863
  %v2876 = vsub.f32 %v2844, %v2866
  %v2877 = vsub.f32 %v2845, %v2869
  %v2878 = vmul.f32 %v2870, 1.442695
  %v2879 = vpow.pop %v2878
  %v2880 = vmul.f32 %v2871, 1.442695
  %v2881 = vpow.pop %v2880
  %v2882 = vmul.f32 %v2872, 1.442695
  %v2883 = vpow.pop %v2882
  %v2884 = vmul.f32 %v2873, 1.442695
  %v2885 = vpow.pop %v2884
  %v2886 = vmul.f32 %v2874, 1.442695
  %v2887 = vpow.pop %v2886
  %v2888 = vmul.f32 %v2875, 1.442695
  %v2889 = vpow.pop %v2888
  %v2890 = vmul.f32 %v2876, 1.442695
  %v2891 = vpow.pop %v2890
  %v2892 = vmul.f32 %v2877, 1.442695
  %v2893 = vpow.pop %v2892
  %v2894 = vsel %vm592, %v2879, 0.0
  %2895 = vadd.xlane.f32.xlu0 %v2894
  %v2896 = vpop.xlane.xlu0 %2895
  %v2897 = vsel %vm592, %v2881, 0.0
  %2898 = vadd.xlane.f32.xlu0 %v2897
  %v2899 = vpop.xlane.xlu0 %2898
  %v2900 = vsel %vm592, %v2883, 0.0
  %2901 = vadd.xlane.f32.xlu0 %v2900
  %v2902 = vpop.xlane.xlu0 %2901
  %v2903 = vsel %vm592, %v2885, 0.0
  %2904 = vadd.xlane.f32.xlu0 %v2903
  %v2905 = vpop.xlane.xlu0 %2904
  %v2906 = vsel %vm592, %v2887, 0.0
  %2907 = vadd.xlane.f32.xlu0 %v2906
  %v2908 = vpop.xlane.xlu0 %2907
  %v2909 = vsel %vm592, %v2889, 0.0
  %2910 = vadd.xlane.f32.xlu0 %v2909
  %v2911 = vpop.xlane.xlu0 %2910
  %v2912 = vsel %vm592, %v2891, 0.0
  %2913 = vadd.xlane.f32.xlu0 %v2912
  %v2914 = vpop.xlane.xlu0 %2913
  %v2915 = vsel %vm592, %v2893, 0.0
  %2916 = vadd.xlane.f32.xlu0 %v2915
  %v2917 = vpop.xlane.xlu0 %2916
  %v2918 = vrcp.pop %v2896
  %v2919 = vrcp.pop %v2899
  %v2920 = vrcp.pop %v2902
  %v2921 = vrcp.pop %v2905
  %v2922 = vrcp.pop %v2908
  %v2923 = vrcp.pop %v2911
  %v2924 = vrcp.pop %v2914
  %v2925 = vrcp.pop %v2917
  %v2926 = vmul.f32 %v2879, %v2918
  %v2927 = vmul.f32 %v2881, %v2919
  %v2928 = vmul.f32 %v2883, %v2920
  %v2929 = vmul.f32 %v2885, %v2921
  %v2930 = vmul.f32 %v2887, %v2922
  %v2931 = vmul.f32 %v2889, %v2923
  %v2932 = vmul.f32 %v2891, %v2924
  %v2933 = vmul.f32 %v2893, %v2925
  %v2935 = vsel %vm592, %v2926, 0
  %2937 = vmatprep.subr.mxu0 0.0
  %2938 = vmatpush1.msra.mxu0 %v2192
  %2939 = vmatprep.subr.mxu0 0.0
  %2940 = vmatpush1.msra.mxu0 0.0
  %2941 = vmatprep.subr.mxu0 0.0
  %2942 = vmatpush1.msra.mxu0 0.0
  %2943 = vmatprep.subr.mxu0 0.0
  %2944 = vmatpush1.msra.mxu0 0.0
  %2945 = vmatprep.subr.mxu0 0.0
  %2946 = vmatpush1.msra.mxu0 0.0
  %2947 = vmatprep.subr.mxu0 0.0
  %2948 = vmatpush1.msra.mxu0 0.0
  %2949 = vmatprep.subr.mxu0 0.0
  %2950 = vmatpush1.msra.mxu0 0.0
  %2951 = vmatprep.subr.mxu0 0.0
  %2952 = vmatpush1.msra.mxu0 0.0
  %2953 = vmatprep.subr.mxu0 0.0
  %2954 = vmatpush1.msra.mxu0 0.0
  %2955 = vmatprep.subr.mxu0 0.0
  %2956 = vmatpush1.msra.mxu0 0.0
  %2957 = vmatprep.subr.mxu0 0.0
  %2958 = vmatpush1.msra.mxu0 0.0
  %2959 = vmatprep.subr.mxu0 0.0
  %2960 = vmatpush1.msra.mxu0 0.0
  %2961 = vmatprep.subr.mxu0 0.0
  %2962 = vmatpush1.msra.mxu0 0.0
  %2963 = vmatprep.subr.mxu0 0.0
  %2964 = vmatpush1.msra.mxu0 0.0
  %2965 = vmatprep.subr.mxu0 0.0
  %2966 = vmatpush1.msra.mxu0 0.0
  %2967 = vmatprep.subr.mxu0 0.0
  %2968 = vmatpush1.msra.mxu0 0.0
  %2969 = vmatprep.subr.mxu0 0.0
  %2970 = vmatpush1.msra.mxu0 0.0
  %2971 = vmatprep.subr.mxu0 0.0
  %2972 = vmatpush1.msra.mxu0 0.0
  %2973 = vmatprep.subr.mxu0 0.0
  %2974 = vmatpush1.msra.mxu0 0.0
  %2975 = vmatprep.subr.mxu0 0.0
  %2976 = vmatpush1.msra.mxu0 0.0
  %2977 = vmatprep.subr.mxu0 0.0
  %2978 = vmatpush1.msra.mxu0 0.0
  %2979 = vmatprep.subr.mxu0 0.0
  %2980 = vmatpush1.msra.mxu0 0.0
  %2981 = vmatprep.subr.mxu0 0.0
  %2982 = vmatpush1.msra.mxu0 0.0
  %2983 = vmatprep.subr.mxu0 0.0
  %2984 = vmatpush1.msra.mxu0 0.0
  %2985 = vmatprep.subr.mxu0 0.0
  %2986 = vmatpush1.msra.mxu0 0.0
  %2987 = vmatprep.subr.mxu0 0.0
  %2988 = vmatpush1.msra.mxu0 0.0
  %2989 = vmatprep.subr.mxu0 0.0
  %2990 = vmatpush1.msra.mxu0 0.0
  %2991 = vmatprep.subr.mxu0 0.0
  %2992 = vmatpush1.msra.mxu0 0.0
  %2993 = vmatprep.subr.mxu0 0.0
  %2994 = vmatpush1.msra.mxu0 0.0
  %2995 = vmatprep.subr.mxu0 0.0
  %2996 = vmatpush1.msra.mxu0 0.0
  %2997 = vmatprep.subr.mxu0 0.0
  %2998 = vmatpush1.msra.mxu0 0.0
  %2999 = vmatprep.subr.mxu0 0.0
  %3000 = vmatpush1.msra.mxu0 0.0
  %3001 = vmatprep.mubr.f32.mxu0 0.0
  %3002 = vmatmul.mubr.f32.gmra.mrb[0].mxu0 %v2935
  %v3003 = vpop.f32.mrb[0].mxu0
  %v3004 = vadd.f32 0.0, %v3003
  %v3005 = vpop.f32.mrb[0].mxu0
  %3006 = vdwg.mxu0
  %v3008 = vsel %vm592, %v2927, 0
  %3010 = vmatprep.subr.mxu0 0.0
  %3011 = vmatpush1.msra.mxu0 %v2197
  %3012 = vmatprep.subr.mxu0 0.0
  %3013 = vmatpush1.msra.mxu0 0.0
  %3014 = vmatprep.subr.mxu0 0.0
  %3015 = vmatpush1.msra.mxu0 0.0
  %3016 = vmatprep.subr.mxu0 0.0
  %3017 = vmatpush1.msra.mxu0 0.0
  %3018 = vmatprep.subr.mxu0 0.0
  %3019 = vmatpush1.msra.mxu0 0.0
  %3020 = vmatprep.subr.mxu0 0.0
  %3021 = vmatpush1.msra.mxu0 0.0
  %3022 = vmatprep.subr.mxu0 0.0
  %3023 = vmatpush1.msra.mxu0 0.0
  %3024 = vmatprep.subr.mxu0 0.0
  %3025 = vmatpush1.msra.mxu0 0.0
  %3026 = vmatprep.subr.mxu0 0.0
  %3027 = vmatpush1.msra.mxu0 0.0
  %3028 = vmatprep.subr.mxu0 0.0
  %3029 = vmatpush1.msra.mxu0 0.0
  %3030 = vmatprep.subr.mxu0 0.0
  %3031 = vmatpush1.msra.mxu0 0.0
  %3032 = vmatprep.subr.mxu0 0.0
  %3033 = vmatpush1.msra.mxu0 0.0
  %3034 = vmatprep.subr.mxu0 0.0
  %3035 = vmatpush1.msra.mxu0 0.0
  %3036 = vmatprep.subr.mxu0 0.0
  %3037 = vmatpush1.msra.mxu0 0.0
  %3038 = vmatprep.subr.mxu0 0.0
  %3039 = vmatpush1.msra.mxu0 0.0
  %3040 = vmatprep.subr.mxu0 0.0
  %3041 = vmatpush1.msra.mxu0 0.0
  %3042 = vmatprep.subr.mxu0 0.0
  %3043 = vmatpush1.msra.mxu0 0.0
  %3044 = vmatprep.subr.mxu0 0.0
  %3045 = vmatpush1.msra.mxu0 0.0
  %3046 = vmatprep.subr.mxu0 0.0
  %3047 = vmatpush1.msra.mxu0 0.0
  %3048 = vmatprep.subr.mxu0 0.0
  %3049 = vmatpush1.msra.mxu0 0.0
  %3050 = vmatprep.subr.mxu0 0.0
  %3051 = vmatpush1.msra.mxu0 0.0
  %3052 = vmatprep.subr.mxu0 0.0
  %3053 = vmatpush1.msra.mxu0 0.0
  %3054 = vmatprep.subr.mxu0 0.0
  %3055 = vmatpush1.msra.mxu0 0.0
  %3056 = vmatprep.subr.mxu0 0.0
  %3057 = vmatpush1.msra.mxu0 0.0
  %3058 = vmatprep.subr.mxu0 0.0
  %3059 = vmatpush1.msra.mxu0 0.0
  %3060 = vmatprep.subr.mxu0 0.0
  %3061 = vmatpush1.msra.mxu0 0.0
  %3062 = vmatprep.subr.mxu0 0.0
  %3063 = vmatpush1.msra.mxu0 0.0
  %3064 = vmatprep.subr.mxu0 0.0
  %3065 = vmatpush1.msra.mxu0 0.0
  %3066 = vmatprep.subr.mxu0 0.0
  %3067 = vmatpush1.msra.mxu0 0.0
  %3068 = vmatprep.subr.mxu0 0.0
  %3069 = vmatpush1.msra.mxu0 0.0
  %3070 = vmatprep.subr.mxu0 0.0
  %3071 = vmatpush1.msra.mxu0 0.0
  %3072 = vmatprep.subr.mxu0 0.0
  %3073 = vmatpush1.msra.mxu0 0.0
  %3074 = vmatprep.mubr.f32.mxu0 0.0
  %3075 = vmatmul.mubr.f32.gmra.mrb[0].mxu0 %v3008
  %v3076 = vpop.f32.mrb[0].mxu0
  %v3077 = vadd.f32 0.0, %v3076
  %v3078 = vpop.f32.mrb[0].mxu0
  %3079 = vdwg.mxu0
  %v3081 = vsel %vm592, %v2928, 0
  %3083 = vmatprep.subr.mxu0 0.0
  %3084 = vmatpush1.msra.mxu0 %v2202
  %3085 = vmatprep.subr.mxu0 0.0
  %3086 = vmatpush1.msra.mxu0 0.0
  %3087 = vmatprep.subr.mxu0 0.0
  %3088 = vmatpush1.msra.mxu0 0.0
  %3089 = vmatprep.subr.mxu0 0.0
  %3090 = vmatpush1.msra.mxu0 0.0
  %3091 = vmatprep.subr.mxu0 0.0
  %3092 = vmatpush1.msra.mxu0 0.0
  %3093 = vmatprep.subr.mxu0 0.0
  %3094 = vmatpush1.msra.mxu0 0.0
  %3095 = vmatprep.subr.mxu0 0.0
  %3096 = vmatpush1.msra.mxu0 0.0
  %3097 = vmatprep.subr.mxu0 0.0
  %3098 = vmatpush1.msra.mxu0 0.0
  %3099 = vmatprep.subr.mxu0 0.0
  %3100 = vmatpush1.msra.mxu0 0.0
  %3101 = vmatprep.subr.mxu0 0.0
  %3102 = vmatpush1.msra.mxu0 0.0
  %3103 = vmatprep.subr.mxu0 0.0
  %3104 = vmatpush1.msra.mxu0 0.0
  %3105 = vmatprep.subr.mxu0 0.0
  %3106 = vmatpush1.msra.mxu0 0.0
  %3107 = vmatprep.subr.mxu0 0.0
  %3108 = vmatpush1.msra.mxu0 0.0
  %3109 = vmatprep.subr.mxu0 0.0
  %3110 = vmatpush1.msra.mxu0 0.0
  %3111 = vmatprep.subr.mxu0 0.0
  %3112 = vmatpush1.msra.mxu0 0.0
  %3113 = vmatprep.subr.mxu0 0.0
  %3114 = vmatpush1.msra.mxu0 0.0
  %3115 = vmatprep.subr.mxu0 0.0
  %3116 = vmatpush1.msra.mxu0 0.0
  %3117 = vmatprep.subr.mxu0 0.0
  %3118 = vmatpush1.msra.mxu0 0.0
  %3119 = vmatprep.subr.mxu0 0.0
  %3120 = vmatpush1.msra.mxu0 0.0
  %3121 = vmatprep.subr.mxu0 0.0
  %3122 = vmatpush1.msra.mxu0 0.0
  %3123 = vmatprep.subr.mxu0 0.0
  %3124 = vmatpush1.msra.mxu0 0.0
  %3125 = vmatprep.subr.mxu0 0.0
  %3126 = vmatpush1.msra.mxu0 0.0
  %3127 = vmatprep.subr.mxu0 0.0
  %3128 = vmatpush1.msra.mxu0 0.0
  %3129 = vmatprep.subr.mxu0 0.0
  %3130 = vmatpush1.msra.mxu0 0.0
  %3131 = vmatprep.subr.mxu0 0.0
  %3132 = vmatpush1.msra.mxu0 0.0
  %3133 = vmatprep.subr.mxu0 0.0
  %3134 = vmatpush1.msra.mxu0 0.0
  %3135 = vmatprep.subr.mxu0 0.0
  %3136 = vmatpush1.msra.mxu0 0.0
  %3137 = vmatprep.subr.mxu0 0.0
  %3138 = vmatpush1.msra.mxu0 0.0
  %3139 = vmatprep.subr.mxu0 0.0
  %3140 = vmatpush1.msra.mxu0 0.0
  %3141 = vmatprep.subr.mxu0 0.0
  %3142 = vmatpush1.msra.mxu0 0.0
  %3143 = vmatprep.subr.mxu0 0.0
  %3144 = vmatpush1.msra.mxu0 0.0
  %3145 = vmatprep.subr.mxu0 0.0
  %3146 = vmatpush1.msra.mxu0 0.0
  %3147 = vmatprep.mubr.f32.mxu0 0.0
  %3148 = vmatmul.mubr.f32.gmra.mrb[0].mxu0 %v3081
  %v3149 = vpop.f32.mrb[0].mxu0
  %v3150 = vadd.f32 0.0, %v3149
  %v3151 = vpop.f32.mrb[0].mxu0
  %3152 = vdwg.mxu0
  %v3154 = vsel %vm592, %v2929, 0
  %3156 = vmatprep.subr.mxu0 0.0
  %3157 = vmatpush1.msra.mxu0 %v2207
  %3158 = vmatprep.subr.mxu0 0.0
  %3159 = vmatpush1.msra.mxu0 0.0
  %3160 = vmatprep.subr.mxu0 0.0
  %3161 = vmatpush1.msra.mxu0 0.0
  %3162 = vmatprep.subr.mxu0 0.0
  %3163 = vmatpush1.msra.mxu0 0.0
  %3164 = vmatprep.subr.mxu0 0.0
  %3165 = vmatpush1.msra.mxu0 0.0
  %3166 = vmatprep.subr.mxu0 0.0
  %3167 = vmatpush1.msra.mxu0 0.0
  %3168 = vmatprep.subr.mxu0 0.0
  %3169 = vmatpush1.msra.mxu0 0.0
  %3170 = vmatprep.subr.mxu0 0.0
  %3171 = vmatpush1.msra.mxu0 0.0
  %3172 = vmatprep.subr.mxu0 0.0
  %3173 = vmatpush1.msra.mxu0 0.0
  %3174 = vmatprep.subr.mxu0 0.0
  %3175 = vmatpush1.msra.mxu0 0.0
  %3176 = vmatprep.subr.mxu0 0.0
  %3177 = vmatpush1.msra.mxu0 0.0
  %3178 = vmatprep.subr.mxu0 0.0
  %3179 = vmatpush1.msra.mxu0 0.0
  %3180 = vmatprep.subr.mxu0 0.0
  %3181 = vmatpush1.msra.mxu0 0.0
  %3182 = vmatprep.subr.mxu0 0.0
  %3183 = vmatpush1.msra.mxu0 0.0
  %3184 = vmatprep.subr.mxu0 0.0
  %3185 = vmatpush1.msra.mxu0 0.0
  %3186 = vmatprep.subr.mxu0 0.0
  %3187 = vmatpush1.msra.mxu0 0.0
  %3188 = vmatprep.subr.mxu0 0.0
  %3189 = vmatpush1.msra.mxu0 0.0
  %3190 = vmatprep.subr.mxu0 0.0
  %3191 = vmatpush1.msra.mxu0 0.0
  %3192 = vmatprep.subr.mxu0 0.0
  %3193 = vmatpush1.msra.mxu0 0.0
  %3194 = vmatprep.subr.mxu0 0.0
  %3195 = vmatpush1.msra.mxu0 0.0
  %3196 = vmatprep.subr.mxu0 0.0
  %3197 = vmatpush1.msra.mxu0 0.0
  %3198 = vmatprep.subr.mxu0 0.0
  %3199 = vmatpush1.msra.mxu0 0.0
  %3200 = vmatprep.subr.mxu0 0.0
  %3201 = vmatpush1.msra.mxu0 0.0
  %3202 = vmatprep.subr.mxu0 0.0
  %3203 = vmatpush1.msra.mxu0 0.0
  %3204 = vmatprep.subr.mxu0 0.0
  %3205 = vmatpush1.msra.mxu0 0.0
  %3206 = vmatprep.subr.mxu0 0.0
  %3207 = vmatpush1.msra.mxu0 0.0
  %3208 = vmatprep.subr.mxu0 0.0
  %3209 = vmatpush1.msra.mxu0 0.0
  %3210 = vmatprep.subr.mxu0 0.0
  %3211 = vmatpush1.msra.mxu0 0.0
  %3212 = vmatprep.subr.mxu0 0.0
  %3213 = vmatpush1.msra.mxu0 0.0
  %3214 = vmatprep.subr.mxu0 0.0
  %3215 = vmatpush1.msra.mxu0 0.0
  %3216 = vmatprep.subr.mxu0 0.0
  %3217 = vmatpush1.msra.mxu0 0.0
  %3218 = vmatprep.subr.mxu0 0.0
  %3219 = vmatpush1.msra.mxu0 0.0
  %3220 = vmatprep.mubr.f32.mxu0 0.0
  %3221 = vmatmul.mubr.f32.gmra.mrb[0].mxu0 %v3154
  %v3222 = vpop.f32.mrb[0].mxu0
  %v3223 = vadd.f32 0.0, %v3222
  %v3224 = vpop.f32.mrb[0].mxu0
  %3225 = vdwg.mxu0
  %v3227 = vsel %vm592, %v2930, 0
  %3229 = vmatprep.subr.mxu0 0.0
  %3230 = vmatpush1.msra.mxu0 %v2212
  %3231 = vmatprep.subr.mxu0 0.0
  %3232 = vmatpush1.msra.mxu0 0.0
  %3233 = vmatprep.subr.mxu0 0.0
  %3234 = vmatpush1.msra.mxu0 0.0
  %3235 = vmatprep.subr.mxu0 0.0
  %3236 = vmatpush1.msra.mxu0 0.0
  %3237 = vmatprep.subr.mxu0 0.0
  %3238 = vmatpush1.msra.mxu0 0.0
  %3239 = vmatprep.subr.mxu0 0.0
  %3240 = vmatpush1.msra.mxu0 0.0
  %3241 = vmatprep.subr.mxu0 0.0
  %3242 = vmatpush1.msra.mxu0 0.0
  %3243 = vmatprep.subr.mxu0 0.0
  %3244 = vmatpush1.msra.mxu0 0.0
  %3245 = vmatprep.subr.mxu0 0.0
  %3246 = vmatpush1.msra.mxu0 0.0
  %3247 = vmatprep.subr.mxu0 0.0
  %3248 = vmatpush1.msra.mxu0 0.0
  %3249 = vmatprep.subr.mxu0 0.0
  %3250 = vmatpush1.msra.mxu0 0.0
  %3251 = vmatprep.subr.mxu0 0.0
  %3252 = vmatpush1.msra.mxu0 0.0
  %3253 = vmatprep.subr.mxu0 0.0
  %3254 = vmatpush1.msra.mxu0 0.0
  %3255 = vmatprep.subr.mxu0 0.0
  %3256 = vmatpush1.msra.mxu0 0.0
  %3257 = vmatprep.subr.mxu0 0.0
  %3258 = vmatpush1.msra.mxu0 0.0
  %3259 = vmatprep.subr.mxu0 0.0
  %3260 = vmatpush1.msra.mxu0 0.0
  %3261 = vmatprep.subr.mxu0 0.0
  %3262 = vmatpush1.msra.mxu0 0.0
  %3263 = vmatprep.subr.mxu0 0.0
  %3264 = vmatpush1.msra.mxu0 0.0
  %3265 = vmatprep.subr.mxu0 0.0
  %3266 = vmatpush1.msra.mxu0 0.0
  %3267 = vmatprep.subr.mxu0 0.0
  %3268 = vmatpush1.msra.mxu0 0.0
  %3269 = vmatprep.subr.mxu0 0.0
  %3270 = vmatpush1.msra.mxu0 0.0
  %3271 = vmatprep.subr.mxu0 0.0
  %3272 = vmatpush1.msra.mxu0 0.0
  %3273 = vmatprep.subr.mxu0 0.0
  %3274 = vmatpush1.msra.mxu0 0.0
  %3275 = vmatprep.subr.mxu0 0.0
  %3276 = vmatpush1.msra.mxu0 0.0
  %3277 = vmatprep.subr.mxu0 0.0
  %3278 = vmatpush1.msra.mxu0 0.0
  %3279 = vmatprep.subr.mxu0 0.0
  %3280 = vmatpush1.msra.mxu0 0.0
  %3281 = vmatprep.subr.mxu0 0.0
  %3282 = vmatpush1.msra.mxu0 0.0
  %3283 = vmatprep.subr.mxu0 0.0
  %3284 = vmatpush1.msra.mxu0 0.0
  %3285 = vmatprep.subr.mxu0 0.0
  %3286 = vmatpush1.msra.mxu0 0.0
  %3287 = vmatprep.subr.mxu0 0.0
  %3288 = vmatpush1.msra.mxu0 0.0
  %3289 = vmatprep.subr.mxu0 0.0
  %3290 = vmatpush1.msra.mxu0 0.0
  %3291 = vmatprep.subr.mxu0 0.0
  %3292 = vmatpush1.msra.mxu0 0.0
  %3293 = vmatprep.mubr.f32.mxu0 0.0
  %3294 = vmatmul.mubr.f32.gmra.mrb[0].mxu0 %v3227
  %v3295 = vpop.f32.mrb[0].mxu0
  %v3296 = vadd.f32 0.0, %v3295
  %v3297 = vpop.f32.mrb[0].mxu0
  %3298 = vdwg.mxu0
  %v3300 = vsel %vm592, %v2931, 0
  %3302 = vmatprep.subr.mxu0 0.0
  %3303 = vmatpush1.msra.mxu0 %v2217
  %3304 = vmatprep.subr.mxu0 0.0
  %3305 = vmatpush1.msra.mxu0 0.0
  %3306 = vmatprep.subr.mxu0 0.0
  %3307 = vmatpush1.msra.mxu0 0.0
  %3308 = vmatprep.subr.mxu0 0.0
  %3309 = vmatpush1.msra.mxu0 0.0
  %3310 = vmatprep.subr.mxu0 0.0
  %3311 = vmatpush1.msra.mxu0 0.0
  %3312 = vmatprep.subr.mxu0 0.0
  %3313 = vmatpush1.msra.mxu0 0.0
  %3314 = vmatprep.subr.mxu0 0.0
  %3315 = vmatpush1.msra.mxu0 0.0
  %3316 = vmatprep.subr.mxu0 0.0
  %3317 = vmatpush1.msra.mxu0 0.0
  %3318 = vmatprep.subr.mxu0 0.0
  %3319 = vmatpush1.msra.mxu0 0.0
  %3320 = vmatprep.subr.mxu0 0.0
  %3321 = vmatpush1.msra.mxu0 0.0
  %3322 = vmatprep.subr.mxu0 0.0
  %3323 = vmatpush1.msra.mxu0 0.0
  %3324 = vmatprep.subr.mxu0 0.0
  %3325 = vmatpush1.msra.mxu0 0.0
  %3326 = vmatprep.subr.mxu0 0.0
  %3327 = vmatpush1.msra.mxu0 0.0
  %3328 = vmatprep.subr.mxu0 0.0
  %3329 = vmatpush1.msra.mxu0 0.0
  %3330 = vmatprep.subr.mxu0 0.0
  %3331 = vmatpush1.msra.mxu0 0.0
  %3332 = vmatprep.subr.mxu0 0.0
  %3333 = vmatpush1.msra.mxu0 0.0
  %3334 = vmatprep.subr.mxu0 0.0
  %3335 = vmatpush1.msra.mxu0 0.0
  %3336 = vmatprep.subr.mxu0 0.0
  %3337 = vmatpush1.msra.mxu0 0.0
  %3338 = vmatprep.subr.mxu0 0.0
  %3339 = vmatpush1.msra.mxu0 0.0
  %3340 = vmatprep.subr.mxu0 0.0
  %3341 = vmatpush1.msra.mxu0 0.0
  %3342 = vmatprep.subr.mxu0 0.0
  %3343 = vmatpush1.msra.mxu0 0.0
  %3344 = vmatprep.subr.mxu0 0.0
  %3345 = vmatpush1.msra.mxu0 0.0
  %3346 = vmatprep.subr.mxu0 0.0
  %3347 = vmatpush1.msra.mxu0 0.0
  %3348 = vmatprep.subr.mxu0 0.0
  %3349 = vmatpush1.msra.mxu0 0.0
  %3350 = vmatprep.subr.mxu0 0.0
  %3351 = vmatpush1.msra.mxu0 0.0
  %3352 = vmatprep.subr.mxu0 0.0
  %3353 = vmatpush1.msra.mxu0 0.0
  %3354 = vmatprep.subr.mxu0 0.0
  %3355 = vmatpush1.msra.mxu0 0.0
  %3356 = vmatprep.subr.mxu0 0.0
  %3357 = vmatpush1.msra.mxu0 0.0
  %3358 = vmatprep.subr.mxu0 0.0
  %3359 = vmatpush1.msra.mxu0 0.0
  %3360 = vmatprep.subr.mxu0 0.0
  %3361 = vmatpush1.msra.mxu0 0.0
  %3362 = vmatprep.subr.mxu0 0.0
  %3363 = vmatpush1.msra.mxu0 0.0
  %3364 = vmatprep.subr.mxu0 0.0
  %3365 = vmatpush1.msra.mxu0 0.0
  %3366 = vmatprep.mubr.f32.mxu0 0.0
  %3367 = vmatmul.mubr.f32.gmra.mrb[0].mxu0 %v3300
  %v3368 = vpop.f32.mrb[0].mxu0
  %v3369 = vadd.f32 0.0, %v3368
  %v3370 = vpop.f32.mrb[0].mxu0
  %3371 = vdwg.mxu0
  %v3373 = vsel %vm592, %v2932, 0
  %3375 = vmatprep.subr.mxu0 0.0
  %3376 = vmatpush1.msra.mxu0 %v2222
  %3377 = vmatprep.subr.mxu0 0.0
  %3378 = vmatpush1.msra.mxu0 0.0
  %3379 = vmatprep.subr.mxu0 0.0
  %3380 = vmatpush1.msra.mxu0 0.0
  %3381 = vmatprep.subr.mxu0 0.0
  %3382 = vmatpush1.msra.mxu0 0.0
  %3383 = vmatprep.subr.mxu0 0.0
  %3384 = vmatpush1.msra.mxu0 0.0
  %3385 = vmatprep.subr.mxu0 0.0
  %3386 = vmatpush1.msra.mxu0 0.0
  %3387 = vmatprep.subr.mxu0 0.0
  %3388 = vmatpush1.msra.mxu0 0.0
  %3389 = vmatprep.subr.mxu0 0.0
  %3390 = vmatpush1.msra.mxu0 0.0
  %3391 = vmatprep.subr.mxu0 0.0
  %3392 = vmatpush1.msra.mxu0 0.0
  %3393 = vmatprep.subr.mxu0 0.0
  %3394 = vmatpush1.msra.mxu0 0.0
  %3395 = vmatprep.subr.mxu0 0.0
  %3396 = vmatpush1.msra.mxu0 0.0
  %3397 = vmatprep.subr.mxu0 0.0
  %3398 = vmatpush1.msra.mxu0 0.0
  %3399 = vmatprep.subr.mxu0 0.0
  %3400 = vmatpush1.msra.mxu0 0.0
  %3401 = vmatprep.subr.mxu0 0.0
  %3402 = vmatpush1.msra.mxu0 0.0
  %3403 = vmatprep.subr.mxu0 0.0
  %3404 = vmatpush1.msra.mxu0 0.0
  %3405 = vmatprep.subr.mxu0 0.0
  %3406 = vmatpush1.msra.mxu0 0.0
  %3407 = vmatprep.subr.mxu0 0.0
  %3408 = vmatpush1.msra.mxu0 0.0
  %3409 = vmatprep.subr.mxu0 0.0
  %3410 = vmatpush1.msra.mxu0 0.0
  %3411 = vmatprep.subr.mxu0 0.0
  %3412 = vmatpush1.msra.mxu0 0.0
  %3413 = vmatprep.subr.mxu0 0.0
  %3414 = vmatpush1.msra.mxu0 0.0
  %3415 = vmatprep.subr.mxu0 0.0
  %3416 = vmatpush1.msra.mxu0 0.0
  %3417 = vmatprep.subr.mxu0 0.0
  %3418 = vmatpush1.msra.mxu0 0.0
  %3419 = vmatprep.subr.mxu0 0.0
  %3420 = vmatpush1.msra.mxu0 0.0
  %3421 = vmatprep.subr.mxu0 0.0
  %3422 = vmatpush1.msra.mxu0 0.0
  %3423 = vmatprep.subr.mxu0 0.0
  %3424 = vmatpush1.msra.mxu0 0.0
  %3425 = vmatprep.subr.mxu0 0.0
  %3426 = vmatpush1.msra.mxu0 0.0
  %3427 = vmatprep.subr.mxu0 0.0
  %3428 = vmatpush1.msra.mxu0 0.0
  %3429 = vmatprep.subr.mxu0 0.0
  %3430 = vmatpush1.msra.mxu0 0.0
  %3431 = vmatprep.subr.mxu0 0.0
  %3432 = vmatpush1.msra.mxu0 0.0
  %3433 = vmatprep.subr.mxu0 0.0
  %3434 = vmatpush1.msra.mxu0 0.0
  %3435 = vmatprep.subr.mxu0 0.0
  %3436 = vmatpush1.msra.mxu0 0.0
  %3437 = vmatprep.subr.mxu0 0.0
  %3438 = vmatpush1.msra.mxu0 0.0
  %3439 = vmatprep.mubr.f32.mxu0 0.0
  %3440 = vmatmul.mubr.f32.gmra.mrb[0].mxu0 %v3373
  %v3441 = vpop.f32.mrb[0].mxu0
  %v3442 = vadd.f32 0.0, %v3441
  %v3443 = vpop.f32.mrb[0].mxu0
  %3444 = vdwg.mxu0
  %v3446 = vsel %vm592, %v2933, 0
  %3448 = vmatprep.subr.mxu0 0.0
  %3449 = vmatpush1.msra.mxu0 %v2227
  %3450 = vmatprep.subr.mxu0 0.0
  %3451 = vmatpush1.msra.mxu0 0.0
  %3452 = vmatprep.subr.mxu0 0.0
  %3453 = vmatpush1.msra.mxu0 0.0
  %3454 = vmatprep.subr.mxu0 0.0
  %3455 = vmatpush1.msra.mxu0 0.0
  %3456 = vmatprep.subr.mxu0 0.0
  %3457 = vmatpush1.msra.mxu0 0.0
  %3458 = vmatprep.subr.mxu0 0.0
  %3459 = vmatpush1.msra.mxu0 0.0
  %3460 = vmatprep.subr.mxu0 0.0
  %3461 = vmatpush1.msra.mxu0 0.0
  %3462 = vmatprep.subr.mxu0 0.0
  %3463 = vmatpush1.msra.mxu0 0.0
  %3464 = vmatprep.subr.mxu0 0.0
  %3465 = vmatpush1.msra.mxu0 0.0
  %3466 = vmatprep.subr.mxu0 0.0
  %3467 = vmatpush1.msra.mxu0 0.0
  %3468 = vmatprep.subr.mxu0 0.0
  %3469 = vmatpush1.msra.mxu0 0.0
  %3470 = vmatprep.subr.mxu0 0.0
  %3471 = vmatpush1.msra.mxu0 0.0
  %3472 = vmatprep.subr.mxu0 0.0
  %3473 = vmatpush1.msra.mxu0 0.0
  %3474 = vmatprep.subr.mxu0 0.0
  %3475 = vmatpush1.msra.mxu0 0.0
  %3476 = vmatprep.subr.mxu0 0.0
  %3477 = vmatpush1.msra.mxu0 0.0
  %3478 = vmatprep.subr.mxu0 0.0
  %3479 = vmatpush1.msra.mxu0 0.0
  %3480 = vmatprep.subr.mxu0 0.0
  %3481 = vmatpush1.msra.mxu0 0.0
  %3482 = vmatprep.subr.mxu0 0.0
  %3483 = vmatpush1.msra.mxu0 0.0
  %3484 = vmatprep.subr.mxu0 0.0
  %3485 = vmatpush1.msra.mxu0 0.0
  %3486 = vmatprep.subr.mxu0 0.0
  %3487 = vmatpush1.msra.mxu0 0.0
  %3488 = vmatprep.subr.mxu0 0.0
  %3489 = vmatpush1.msra.mxu0 0.0
  %3490 = vmatprep.subr.mxu0 0.0
  %3491 = vmatpush1.msra.mxu0 0.0
  %3492 = vmatprep.subr.mxu0 0.0
  %3493 = vmatpush1.msra.mxu0 0.0
  %3494 = vmatprep.subr.mxu0 0.0
  %3495 = vmatpush1.msra.mxu0 0.0
  %3496 = vmatprep.subr.mxu0 0.0
  %3497 = vmatpush1.msra.mxu0 0.0
  %3498 = vmatprep.subr.mxu0 0.0
  %3499 = vmatpush1.msra.mxu0 0.0
  %3500 = vmatprep.subr.mxu0 0.0
  %3501 = vmatpush1.msra.mxu0 0.0
  %3502 = vmatprep.subr.mxu0 0.0
  %3503 = vmatpush1.msra.mxu0 0.0
  %3504 = vmatprep.subr.mxu0 0.0
  %3505 = vmatpush1.msra.mxu0 0.0
  %3506 = vmatprep.subr.mxu0 0.0
  %3507 = vmatpush1.msra.mxu0 0.0
  %3508 = vmatprep.subr.mxu0 0.0
  %3509 = vmatpush1.msra.mxu0 0.0
  %3510 = vmatprep.subr.mxu0 0.0
  %3511 = vmatpush1.msra.mxu0 0.0
  %3512 = vmatprep.mubr.f32.mxu0 0.0
  %3513 = vmatmul.mubr.f32.gmra.mrb[0].mxu0 %v3446
  %v3514 = vpop.f32.mrb[0].mxu0
  %v3515 = vadd.f32 0.0, %v3514
  %v3516 = vpop.f32.mrb[0].mxu0
  %3517 = vdwg.mxu0
  %s3518 = scalar_lea.vmem %s11, 8
  %v3519 = vld [vmem:[%s3518] sm:$0xff]
  %v3521 = vsel %vm592, %v3004, 0
  %v3524 = vsel %vm592, %v3077, 0
  %v3527 = vsel %vm592, %v3150, 0
  %v3530 = vsel %vm592, %v3223, 0
  %v3533 = vsel %vm592, %v3296, 0
  %v3536 = vsel %vm592, %v3369, 0
  %v3539 = vsel %vm592, %v3442, 0
  %v3542 = vsel %vm592, %v3515, 0
  %3544 = vmatprep.subr.mxu0 0.0
  %3545 = vmatpush1.msra.mxu0 %v3519
  %3546 = vmatprep.subr.mxu0 0.0
  %3547 = vmatpush1.msra.mxu0 0.0
  %3548 = vmatprep.subr.mxu0 0.0
  %3549 = vmatpush1.msra.mxu0 0.0
  %3550 = vmatprep.subr.mxu0 0.0
  %3551 = vmatpush1.msra.mxu0 0.0
  %3552 = vmatprep.subr.mxu0 0.0
  %3553 = vmatpush1.msra.mxu0 0.0
  %3554 = vmatprep.subr.mxu0 0.0
  %3555 = vmatpush1.msra.mxu0 0.0
  %3556 = vmatprep.subr.mxu0 0.0
  %3557 = vmatpush1.msra.mxu0 0.0
  %3558 = vmatprep.subr.mxu0 0.0
  %3559 = vmatpush1.msra.mxu0 0.0
  %3560 = vmatprep.subr.mxu0 0.0
  %3561 = vmatpush1.msra.mxu0 0.0
  %3562 = vmatprep.subr.mxu0 0.0
  %3563 = vmatpush1.msra.mxu0 0.0
  %3564 = vmatprep.subr.mxu0 0.0
  %3565 = vmatpush1.msra.mxu0 0.0
  %3566 = vmatprep.subr.mxu0 0.0
  %3567 = vmatpush1.msra.mxu0 0.0
  %3568 = vmatprep.subr.mxu0 0.0
  %3569 = vmatpush1.msra.mxu0 0.0
  %3570 = vmatprep.subr.mxu0 0.0
  %3571 = vmatpush1.msra.mxu0 0.0
  %3572 = vmatprep.subr.mxu0 0.0
  %3573 = vmatpush1.msra.mxu0 0.0
  %3574 = vmatprep.subr.mxu0 0.0
  %3575 = vmatpush1.msra.mxu0 0.0
  %3576 = vmatprep.subr.mxu0 0.0
  %3577 = vmatpush1.msra.mxu0 0.0
  %3578 = vmatprep.subr.mxu0 0.0
  %3579 = vmatpush1.msra.mxu0 0.0
  %3580 = vmatprep.subr.mxu0 0.0
  %3581 = vmatpush1.msra.mxu0 0.0
  %3582 = vmatprep.subr.mxu0 0.0
  %3583 = vmatpush1.msra.mxu0 0.0
  %3584 = vmatprep.subr.mxu0 0.0
  %3585 = vmatpush1.msra.mxu0 0.0
  %3586 = vmatprep.subr.mxu0 0.0
  %3587 = vmatpush1.msra.mxu0 0.0
  %3588 = vmatprep.subr.mxu0 0.0
  %3589 = vmatpush1.msra.mxu0 0.0
  %3590 = vmatprep.subr.mxu0 0.0
  %3591 = vmatpush1.msra.mxu0 0.0
  %3592 = vmatprep.subr.mxu0 0.0
  %3593 = vmatpush1.msra.mxu0 0.0
  %3594 = vmatprep.subr.mxu0 0.0
  %3595 = vmatpush1.msra.mxu0 0.0
  %3596 = vmatprep.subr.mxu0 0.0
  %3597 = vmatpush1.msra.mxu0 0.0
  %3598 = vmatprep.subr.mxu0 0.0
  %3599 = vmatpush1.msra.mxu0 0.0
  %3600 = vmatprep.subr.mxu0 0.0
  %3601 = vmatpush1.msra.mxu0 0.0
  %3602 = vmatprep.subr.mxu0 0.0
  %3603 = vmatpush1.msra.mxu0 0.0
  %3604 = vmatprep.subr.mxu0 0.0
  %3605 = vmatpush1.msra.mxu0 0.0
  %3606 = vmatprep.subr.mxu0 0.0
  %3607 = vmatpush1.msra.mxu0 0.0
  %3608 = vmatprep.mubr.f32.mxu0 0.0
  %3609 = vmatmul.mubr.f32.gmra.mrb[0].mxu0 %v3521
  %v3610 = vpop.f32.mrb[0].mxu0
  %v3611 = vadd.f32 0.0, %v3610
  %v3612 = vpop.f32.mrb[0].mxu0
  %3613 = vmatprep.mubr.f32.mxu0 0.0
  %3614 = vmatmul.mubr.f32.gmra.mrb[0].mxu0 %v3524
  %v3615 = vpop.f32.mrb[0].mxu0
  %v3616 = vadd.f32 0.0, %v3615
  %v3617 = vpop.f32.mrb[0].mxu0
  %3618 = vmatprep.mubr.f32.mxu0 0.0
  %3619 = vmatmul.mubr.f32.gmra.mrb[0].mxu0 %v3527
  %v3620 = vpop.f32.mrb[0].mxu0
  %v3621 = vadd.f32 0.0, %v3620
  %v3622 = vpop.f32.mrb[0].mxu0
  %3623 = vmatprep.mubr.f32.mxu0 0.0
  %3624 = vmatmul.mubr.f32.gmra.mrb[0].mxu0 %v3530
  %v3625 = vpop.f32.mrb[0].mxu0
  %v3626 = vadd.f32 0.0, %v3625
  %v3627 = vpop.f32.mrb[0].mxu0
  %3628 = vmatprep.mubr.f32.mxu0 0.0
  %3629 = vmatmul.mubr.f32.gmra.mrb[0].mxu0 %v3533
  %v3630 = vpop.f32.mrb[0].mxu0
  %v3631 = vadd.f32 0.0, %v3630
  %v3632 = vpop.f32.mrb[0].mxu0
  %3633 = vmatprep.mubr.f32.mxu0 0.0
  %3634 = vmatmul.mubr.f32.gmra.mrb[0].mxu0 %v3536
  %v3635 = vpop.f32.mrb[0].mxu0
  %v3636 = vadd.f32 0.0, %v3635
  %v3637 = vpop.f32.mrb[0].mxu0
  %3638 = vmatprep.mubr.f32.mxu0 0.0
  %3639 = vmatmul.mubr.f32.gmra.mrb[0].mxu0 %v3539
  %v3640 = vpop.f32.mrb[0].mxu0
  %v3641 = vadd.f32 0.0, %v3640
  %v3642 = vpop.f32.mrb[0].mxu0
  %3643 = vmatprep.mubr.f32.mxu0 0.0
  %3644 = vmatmul.mubr.f32.gmra.mrb[0].mxu0 %v3542
  %v3645 = vpop.f32.mrb[0].mxu0
  %v3646 = vadd.f32 0.0, %v3645
  %v3647 = vpop.f32.mrb[0].mxu0
  %3648 = vdwg.mxu0
  %v3650 = vsel %vm592, %v1367, 0
  %v3653 = vsel %vm592, %v1440, 0
  %v3656 = vsel %vm592, %v1513, 0
  %v3659 = vsel %vm592, %v1586, 0
  %v3662 = vsel %vm592, %v1659, 0
  %v3665 = vsel %vm592, %v1732, 0
  %v3668 = vsel %vm592, %v1805, 0
  %v3671 = vsel %vm592, %v1878, 0
  %3673 = vmatprep.subr.mxu0 0.0
  %3674 = vmatpush1.msra.mxu0 %v1881
  %3675 = vmatprep.subr.mxu0 0.0
  %3676 = vmatpush1.msra.mxu0 0.0
  %3677 = vmatprep.subr.mxu0 0.0
  %3678 = vmatpush1.msra.mxu0 0.0
  %3679 = vmatprep.subr.mxu0 0.0
  %3680 = vmatpush1.msra.mxu0 0.0
  %3681 = vmatprep.subr.mxu0 0.0
  %3682 = vmatpush1.msra.mxu0 0.0
  %3683 = vmatprep.subr.mxu0 0.0
  %3684 = vmatpush1.msra.mxu0 0.0
  %3685 = vmatprep.subr.mxu0 0.0
  %3686 = vmatpush1.msra.mxu0 0.0
  %3687 = vmatprep.subr.mxu0 0.0
  %3688 = vmatpush1.msra.mxu0 0.0
  %3689 = vmatprep.subr.mxu0 0.0
  %3690 = vmatpush1.msra.mxu0 0.0
  %3691 = vmatprep.subr.mxu0 0.0
  %3692 = vmatpush1.msra.mxu0 0.0
  %3693 = vmatprep.subr.mxu0 0.0
  %3694 = vmatpush1.msra.mxu0 0.0
  %3695 = vmatprep.subr.mxu0 0.0
  %3696 = vmatpush1.msra.mxu0 0.0
  %3697 = vmatprep.subr.mxu0 0.0
  %3698 = vmatpush1.msra.mxu0 0.0
  %3699 = vmatprep.subr.mxu0 0.0
  %3700 = vmatpush1.msra.mxu0 0.0
  %3701 = vmatprep.subr.mxu0 0.0
  %3702 = vmatpush1.msra.mxu0 0.0
  %3703 = vmatprep.subr.mxu0 0.0
  %3704 = vmatpush1.msra.mxu0 0.0
  %3705 = vmatprep.subr.mxu0 0.0
  %3706 = vmatpush1.msra.mxu0 0.0
  %3707 = vmatprep.subr.mxu0 0.0
  %3708 = vmatpush1.msra.mxu0 0.0
  %3709 = vmatprep.subr.mxu0 0.0
  %3710 = vmatpush1.msra.mxu0 0.0
  %3711 = vmatprep.subr.mxu0 0.0
  %3712 = vmatpush1.msra.mxu0 0.0
  %3713 = vmatprep.subr.mxu0 0.0
  %3714 = vmatpush1.msra.mxu0 0.0
  %3715 = vmatprep.subr.mxu0 0.0
  %3716 = vmatpush1.msra.mxu0 0.0
  %3717 = vmatprep.subr.mxu0 0.0
  %3718 = vmatpush1.msra.mxu0 0.0
  %3719 = vmatprep.subr.mxu0 0.0
  %3720 = vmatpush1.msra.mxu0 0.0
  %3721 = vmatprep.subr.mxu0 0.0
  %3722 = vmatpush1.msra.mxu0 0.0
  %3723 = vmatprep.subr.mxu0 0.0
  %3724 = vmatpush1.msra.mxu0 0.0
  %3725 = vmatprep.subr.mxu0 0.0
  %3726 = vmatpush1.msra.mxu0 0.0
  %3727 = vmatprep.subr.mxu0 0.0
  %3728 = vmatpush1.msra.mxu0 0.0
  %3729 = vmatprep.subr.mxu0 0.0
  %3730 = vmatpush1.msra.mxu0 0.0
  %3731 = vmatprep.subr.mxu0 0.0
  %3732 = vmatpush1.msra.mxu0 0.0
  %3733 = vmatprep.subr.mxu0 0.0
  %3734 = vmatpush1.msra.mxu0 0.0
  %3735 = vmatprep.subr.mxu0 0.0
  %3736 = vmatpush1.msra.mxu0 0.0
  %3737 = vmatprep.mubr.f32.mxu0 0.0
  %3738 = vmatmul.mubr.f32.gmra.mrb[0].mxu0 %v3650
  %v3739 = vpop.f32.mrb[0].mxu0
  %v3740 = vadd.f32 %v3611, %v3739
  %v3741 = vpop.f32.mrb[0].mxu0
  %3742 = vmatprep.mubr.f32.mxu0 0.0
  %3743 = vmatmul.mubr.f32.gmra.mrb[0].mxu0 %v3653
  %v3744 = vpop.f32.mrb[0].mxu0
  %v3745 = vadd.f32 %v3616, %v3744
  %v3746 = vpop.f32.mrb[0].mxu0
  %3747 = vmatprep.mubr.f32.mxu0 0.0
  %3748 = vmatmul.mubr.f32.gmra.mrb[0].mxu0 %v3656
  %v3749 = vpop.f32.mrb[0].mxu0
  %v3750 = vadd.f32 %v3621, %v3749
  %v3751 = vpop.f32.mrb[0].mxu0
  %3752 = vmatprep.mubr.f32.mxu0 0.0
  %3753 = vmatmul.mubr.f32.gmra.mrb[0].mxu0 %v3659
  %v3754 = vpop.f32.mrb[0].mxu0
  %v3755 = vadd.f32 %v3626, %v3754
  %v3756 = vpop.f32.mrb[0].mxu0
  %3757 = vmatprep.mubr.f32.mxu0 0.0
  %3758 = vmatmul.mubr.f32.gmra.mrb[0].mxu0 %v3662
  %v3759 = vpop.f32.mrb[0].mxu0
  %v3760 = vadd.f32 %v3631, %v3759
  %v3761 = vpop.f32.mrb[0].mxu0
  %3762 = vmatprep.mubr.f32.mxu0 0.0
  %3763 = vmatmul.mubr.f32.gmra.mrb[0].mxu0 %v3665
  %v3764 = vpop.f32.mrb[0].mxu0
  %v3765 = vadd.f32 %v3636, %v3764
  %v3766 = vpop.f32.mrb[0].mxu0
  %3767 = vmatprep.mubr.f32.mxu0 0.0
  %3768 = vmatmul.mubr.f32.gmra.mrb[0].mxu0 %v3668
  %v3769 = vpop.f32.mrb[0].mxu0
  %v3770 = vadd.f32 %v3641, %v3769
  %v3771 = vpop.f32.mrb[0].mxu0
  %3772 = vmatprep.mubr.f32.mxu0 0.0
  %3773 = vmatmul.mubr.f32.gmra.mrb[0].mxu0 %v3671
  %v3774 = vpop.f32.mrb[0].mxu0
  %v3775 = vadd.f32 %v3646, %v3774
  %v3776 = vpop.f32.mrb[0].mxu0
  %3777 = vdwg.mxu0
  %v3778 = vld [vmem:[%s12] sm:$0x1]
  %v3780 = vlaneseq
  %v3781 = vshrl.u32 %v3780, 7
  %v3782 = vsub.s32 0, %v3781
  %v3783 = vrot.slane %v3778, %v3782
  %v3785 = vadd.f32 %v3740, %v3783
  %v3786 = vadd.f32 %v3745, %v3783
  %v3787 = vadd.f32 %v3750, %v3783
  %v3788 = vadd.f32 %v3755, %v3783
  %v3789 = vadd.f32 %v3760, %v3783
  %v3790 = vadd.f32 %v3765, %v3783
  %v3791 = vadd.f32 %v3770, %v3783
  %v3792 = vadd.f32 %v3775, %v3783
  %v3793 = vadd.f32 %v187, %v3785
  %v3794 = vadd.f32 %v192, %v3786
  %v3795 = vadd.f32 %v197, %v3787
  %v3796 = vadd.f32 %v202, %v3788
  %v3797 = vadd.f32 %v207, %v3789
  %v3798 = vadd.f32 %v212, %v3790
  %v3799 = vadd.f32 %v217, %v3791
  %v3800 = vadd.f32 %v222, %v3792
  %v3801 = vld [vmem:[%s13] sm:$0x1]
  %v3802 = vld [vmem:[%s14] sm:$0x1]
  %v3803 = vsel %vm234, %v3793, 0.0
  %3804 = vadd.xlane.f32.xlu0 %v3803
  %v3805 = vpop.xlane.xlu0 %3804
  %v3806 = vsel %vm234, %v3794, 0.0
  %3807 = vadd.xlane.f32.xlu0 %v3806
  %v3808 = vpop.xlane.xlu0 %3807
  %v3809 = vsel %vm234, %v3795, 0.0
  %3810 = vadd.xlane.f32.xlu0 %v3809
  %v3811 = vpop.xlane.xlu0 %3810
  %v3812 = vsel %vm234, %v3796, 0.0
  %3813 = vadd.xlane.f32.xlu0 %v3812
  %v3814 = vpop.xlane.xlu0 %3813
  %v3815 = vsel %vm234, %v3797, 0.0
  %3816 = vadd.xlane.f32.xlu0 %v3815
  %v3817 = vpop.xlane.xlu0 %3816
  %v3818 = vsel %vm234, %v3798, 0.0
  %3819 = vadd.xlane.f32.xlu0 %v3818
  %v3820 = vpop.xlane.xlu0 %3819
  %v3821 = vsel %vm234, %v3799, 0.0
  %3822 = vadd.xlane.f32.xlu0 %v3821
  %v3823 = vpop.xlane.xlu0 %3822
  %v3824 = vsel %vm234, %v3800, 0.0
  %3825 = vadd.xlane.f32.xlu0 %v3824
  %v3826 = vpop.xlane.xlu0 %3825
  %v3827 = vrcp.pop 16.0
  %v3828 = vmul.f32 %v3805, %v3827
  %v3829 = vmul.f32 %v3808, %v3827
  %v3830 = vmul.f32 %v3811, %v3827
  %v3831 = vmul.f32 %v3814, %v3827
  %v3832 = vmul.f32 %v3817, %v3827
  %v3833 = vmul.f32 %v3820, %v3827
  %v3834 = vmul.f32 %v3823, %v3827
  %v3835 = vmul.f32 %v3826, %v3827
  %v3836 = vsub.f32 %v3793, %v3828
  %v3837 = vsub.f32 %v3794, %v3829
  %v3838 = vsub.f32 %v3795, %v3830
  %v3839 = vsub.f32 %v3796, %v3831
  %v3840 = vsub.f32 %v3797, %v3832
  %v3841 = vsub.f32 %v3798, %v3833
  %v3842 = vsub.f32 %v3799, %v3834
  %v3843 = vsub.f32 %v3800, %v3835
  %v3844 = vmul.f32 %v3836, %v3836
  %v3845 = vmul.f32 %v3837, %v3837
  %v3846 = vmul.f32 %v3838, %v3838
  %v3847 = vmul.f32 %v3839, %v3839
  %v3848 = vmul.f32 %v3840, %v3840
  %v3849 = vmul.f32 %v3841, %v3841
  %v3850 = vmul.f32 %v3842, %v3842
  %v3851 = vmul.f32 %v3843, %v3843
  %v3852 = vsel %vm234, %v3844, 0.0
  %3853 = vadd.xlane.f32.xlu0 %v3852
  %v3854 = vpop.xlane.xlu0 %3853
  %v3855 = vsel %vm234, %v3845, 0.0
  %3856 = vadd.xlane.f32.xlu0 %v3855
  %v3857 = vpop.xlane.xlu0 %3856
  %v3858 = vsel %vm234, %v3846, 0.0
  %3859 = vadd.xlane.f32.xlu0 %v3858
  %v3860 = vpop.xlane.xlu0 %3859
  %v3861 = vsel %vm234, %v3847, 0.0
  %3862 = vadd.xlane.f32.xlu0 %v3861
  %v3863 = vpop.xlane.xlu0 %3862
  %v3864 = vsel %vm234, %v3848, 0.0
  %3865 = vadd.xlane.f32.xlu0 %v3864
  %v3866 = vpop.xlane.xlu0 %3865
  %v3867 = vsel %vm234, %v3849, 0.0
  %3868 = vadd.xlane.f32.xlu0 %v3867
  %v3869 = vpop.xlane.xlu0 %3868
  %v3870 = vsel %vm234, %v3850, 0.0
  %3871 = vadd.xlane.f32.xlu0 %v3870
  %v3872 = vpop.xlane.xlu0 %3871
  %v3873 = vsel %vm234, %v3851, 0.0
  %3874 = vadd.xlane.f32.xlu0 %v3873
  %v3875 = vpop.xlane.xlu0 %3874
  %v3876 = vmul.f32 %v3854, %v3827
  %v3877 = vmul.f32 %v3857, %v3827
  %v3878 = vmul.f32 %v3860, %v3827
  %v3879 = vmul.f32 %v3863, %v3827
  %v3880 = vmul.f32 %v3866, %v3827
  %v3881 = vmul.f32 %v3869, %v3827
  %v3882 = vmul.f32 %v3872, %v3827
  %v3883 = vmul.f32 %v3875, %v3827
  %v3884 = vadd.f32 %v3876, 1e-05
  %v3885 = vadd.f32 %v3877, 1e-05
  %v3886 = vadd.f32 %v3878, 1e-05
  %v3887 = vadd.f32 %v3879, 1e-05
  %v3888 = vadd.f32 %v3880, 1e-05
  %v3889 = vadd.f32 %v3881, 1e-05
  %v3890 = vadd.f32 %v3882, 1e-05
  %v3891 = vadd.f32 %v3883, 1e-05
  %v3892 = vrsqrt.pop %v3884
  %v3893 = vrsqrt.pop %v3885
  %v3894 = vrsqrt.pop %v3886
  %v3895 = vrsqrt.pop %v3887
  %v3896 = vrsqrt.pop %v3888
  %v3897 = vrsqrt.pop %v3889
  %v3898 = vrsqrt.pop %v3890
  %v3899 = vrsqrt.pop %v3891
  %v3900 = vmul.f32 %v3836, %v3892
  %v3901 = vmul.f32 %v3837, %v3893
  %v3902 = vmul.f32 %v3838, %v3894
  %v3903 = vmul.f32 %v3839, %v3895
  %v3904 = vmul.f32 %v3840, %v3896
  %v3905 = vmul.f32 %v3841, %v3897
  %v3906 = vmul.f32 %v3842, %v3898
  %v3907 = vmul.f32 %v3843, %v3899
  %v3909 = vlaneseq
  %v3910 = vshrl.u32 %v3909, 7
  %v3911 = vsub.s32 0, %v3910
  %v3912 = vrot.slane %v3801, %v3911
  %v3914 = vmul.f32 %v3900, %v3912
  %v3915 = vmul.f32 %v3901, %v3912
  %v3916 = vmul.f32 %v3902, %v3912
  %v3917 = vmul.f32 %v3903, %v3912
  %v3918 = vmul.f32 %v3904, %v3912
  %v3919 = vmul.f32 %v3905, %v3912
  %v3920 = vmul.f32 %v3906, %v3912
  %v3921 = vmul.f32 %v3907, %v3912
  %v3923 = vlaneseq
  %v3924 = vshrl.u32 %v3923, 7
  %v3925 = vsub.s32 0, %v3924
  %v3926 = vrot.slane %v3802, %v3925
  %v3928 = vadd.f32 %v3914, %v3926
  %v3929 = vadd.f32 %v3915, %v3926
  %v3930 = vadd.f32 %v3916, %v3926
  %v3931 = vadd.f32 %v3917, %v3926
  %v3932 = vadd.f32 %v3918, %v3926
  %v3933 = vadd.f32 %v3919, %v3926
  %v3934 = vadd.f32 %v3920, %v3926
  %v3935 = vadd.f32 %v3921, %v3926
  %v3936 = vld [vmem:[%s15] sm:$0xff]
  %v3937 = vld [vmem:[%s15 + $0x8] sm:$0xff]
  %v3938 = vld [vmem:[%s16] sm:$0x1]
  %v3940 = vlaneseq
  %v3941 = vshrl.u32 %v3940, 7
  %v3942 = vsub.s32 0, %v3941
  %v3943 = vrot.slane %v3938, %v3942
  %v3946 = vsel %vm234, %v3928, 0
  %v3949 = vsel %vm234, %v3929, 0
  %v3952 = vsel %vm234, %v3930, 0
  %v3955 = vsel %vm234, %v3931, 0
  %v3958 = vsel %vm234, %v3932, 0
  %v3961 = vsel %vm234, %v3933, 0
  %v3964 = vsel %vm234, %v3934, 0
  %v3967 = vsel %vm234, %v3935, 0
  %3969 = vmatprep.subr.mxu0 0.0
  %3970 = vmatpush1.msra.mxu0 %v3936
  %3971 = vmatprep.subr.mxu0 0.0
  %3972 = vmatpush1.msra.mxu0 %v3937
  %3973 = vmatprep.subr.mxu0 0.0
  %3974 = vmatpush1.msra.mxu0 0.0
  %3975 = vmatprep.subr.mxu0 0.0
  %3976 = vmatpush1.msra.mxu0 0.0
  %3977 = vmatprep.subr.mxu0 0.0
  %3978 = vmatpush1.msra.mxu0 0.0
  %3979 = vmatprep.subr.mxu0 0.0
  %3980 = vmatpush1.msra.mxu0 0.0
  %3981 = vmatprep.subr.mxu0 0.0
  %3982 = vmatpush1.msra.mxu0 0.0
  %3983 = vmatprep.subr.mxu0 0.0
  %3984 = vmatpush1.msra.mxu0 0.0
  %3985 = vmatprep.subr.mxu0 0.0
  %3986 = vmatpush1.msra.mxu0 0.0
  %3987 = vmatprep.subr.mxu0 0.0
  %3988 = vmatpush1.msra.mxu0 0.0
  %3989 = vmatprep.subr.mxu0 0.0
  %3990 = vmatpush1.msra.mxu0 0.0
  %3991 = vmatprep.subr.mxu0 0.0
  %3992 = vmatpush1.msra.mxu0 0.0
  %3993 = vmatprep.subr.mxu0 0.0
  %3994 = vmatpush1.msra.mxu0 0.0
  %3995 = vmatprep.subr.mxu0 0.0
  %3996 = vmatpush1.msra.mxu0 0.0
  %3997 = vmatprep.subr.mxu0 0.0
  %3998 = vmatpush1.msra.mxu0 0.0
  %3999 = vmatprep.subr.mxu0 0.0
  %4000 = vmatpush1.msra.mxu0 0.0
  %4001 = vmatprep.subr.mxu0 0.0
  %4002 = vmatpush1.msra.mxu0 0.0
  %4003 = vmatprep.subr.mxu0 0.0
  %4004 = vmatpush1.msra.mxu0 0.0
  %4005 = vmatprep.subr.mxu0 0.0
  %4006 = vmatpush1.msra.mxu0 0.0
  %4007 = vmatprep.subr.mxu0 0.0
  %4008 = vmatpush1.msra.mxu0 0.0
  %4009 = vmatprep.subr.mxu0 0.0
  %4010 = vmatpush1.msra.mxu0 0.0
  %4011 = vmatprep.subr.mxu0 0.0
  %4012 = vmatpush1.msra.mxu0 0.0
  %4013 = vmatprep.subr.mxu0 0.0
  %4014 = vmatpush1.msra.mxu0 0.0
  %4015 = vmatprep.subr.mxu0 0.0
  %4016 = vmatpush1.msra.mxu0 0.0
  %4017 = vmatprep.subr.mxu0 0.0
  %4018 = vmatpush1.msra.mxu0 0.0
  %4019 = vmatprep.subr.mxu0 0.0
  %4020 = vmatpush1.msra.mxu0 0.0
  %4021 = vmatprep.subr.mxu0 0.0
  %4022 = vmatpush1.msra.mxu0 0.0
  %4023 = vmatprep.subr.mxu0 0.0
  %4024 = vmatpush1.msra.mxu0 0.0
  %4025 = vmatprep.subr.mxu0 0.0
  %4026 = vmatpush1.msra.mxu0 0.0
  %4027 = vmatprep.subr.mxu0 0.0
  %4028 = vmatpush1.msra.mxu0 0.0
  %4029 = vmatprep.subr.mxu0 0.0
  %4030 = vmatpush1.msra.mxu0 0.0
  %4031 = vmatprep.subr.mxu0 0.0
  %4032 = vmatpush1.msra.mxu0 0.0
  %4033 = vmatprep.mubr.f32.mxu0 0.0
  %4034 = vmatmul.mubr.f32.gmra.mrb[0].mxu0 %v3946
  %v4035 = vpop.f32.mrb[0].mxu0
  %v4036 = vadd.f32 %v3943, %v4035
  %v4037 = vpop.f32.mrb[0].mxu0
  %4038 = vmatprep.mubr.f32.mxu0 0.0
  %4039 = vmatmul.mubr.f32.gmra.mrb[0].mxu0 %v3949
  %v4040 = vpop.f32.mrb[0].mxu0
  %v4041 = vadd.f32 %v3943, %v4040
  %v4042 = vpop.f32.mrb[0].mxu0
  %4043 = vmatprep.mubr.f32.mxu0 0.0
  %4044 = vmatmul.mubr.f32.gmra.mrb[0].mxu0 %v3952
  %v4045 = vpop.f32.mrb[0].mxu0
  %v4046 = vadd.f32 %v3943, %v4045
  %v4047 = vpop.f32.mrb[0].mxu0
  %4048 = vmatprep.mubr.f32.mxu0 0.0
  %4049 = vmatmul.mubr.f32.gmra.mrb[0].mxu0 %v3955
  %v4050 = vpop.f32.mrb[0].mxu0
  %v4051 = vadd.f32 %v3943, %v4050
  %v4052 = vpop.f32.mrb[0].mxu0
  %4053 = vmatprep.mubr.f32.mxu0 0.0
  %4054 = vmatmul.mubr.f32.gmra.mrb[0].mxu0 %v3958
  %v4055 = vpop.f32.mrb[0].mxu0
  %v4056 = vadd.f32 %v3943, %v4055
  %v4057 = vpop.f32.mrb[0].mxu0
  %4058 = vmatprep.mubr.f32.mxu0 0.0
  %4059 = vmatmul.mubr.f32.gmra.mrb[0].mxu0 %v3961
  %v4060 = vpop.f32.mrb[0].mxu0
  %v4061 = vadd.f32 %v3943, %v4060
  %v4062 = vpop.f32.mrb[0].mxu0
  %4063 = vmatprep.mubr.f32.mxu0 0.0
  %4064 = vmatmul.mubr.f32.gmra.mrb[0].mxu0 %v3964
  %v4065 = vpop.f32.mrb[0].mxu0
  %v4066 = vadd.f32 %v3943, %v4065
  %v4067 = vpop.f32.mrb[0].mxu0
  %4068 = vmatprep.mubr.f32.mxu0 0.0
  %4069 = vmatmul.mubr.f32.gmra.mrb[0].mxu0 %v3967
  %v4070 = vpop.f32.mrb[0].mxu0
  %v4071 = vadd.f32 %v3943, %v4070
  %v4072 = vpop.f32.mrb[0].mxu0
  %4073 = vdwg.mxu0
  %v4074 = vmul.f32 %v4036, 0.5
  %v4075 = vmul.f32 %v4041, 0.5
  %v4076 = vmul.f32 %v4046, 0.5
  %v4077 = vmul.f32 %v4051, 0.5
  %v4078 = vmul.f32 %v4056, 0.5
  %v4079 = vmul.f32 %v4061, 0.5
  %v4080 = vmul.f32 %v4066, 0.5
  %v4081 = vmul.f32 %v4071, 0.5
  %v4082 = vmul.f32 %v4036, 0.70710677
  %v4083 = vmul.f32 %v4041, 0.70710677
  %v4084 = vmul.f32 %v4046, 0.70710677
  %v4085 = vmul.f32 %v4051, 0.70710677
  %v4086 = vmul.f32 %v4056, 0.70710677
  %v4087 = vmul.f32 %v4061, 0.70710677
  %v4088 = vmul.f32 %v4066, 0.70710677
  %v4089 = vmul.f32 %v4071, 0.70710677
  %v4090 = verf.f32.pop %v4082
  %v4091 = verf.f32.pop %v4083
  %v4092 = verf.f32.pop %v4084
  %v4093 = verf.f32.pop %v4085
  %v4094 = verf.f32.pop %v4086
  %v4095 = verf.f32.pop %v4087
  %v4096 = verf.f32.pop %v4088
  %v4097 = verf.f32.pop %v4089
  %v4098 = vadd.f32 %v4090, 1.0
  %v4099 = vadd.f32 %v4091, 1.0
  %v4100 = vadd.f32 %v4092, 1.0
  %v4101 = vadd.f32 %v4093, 1.0
  %v4102 = vadd.f32 %v4094, 1.0
  %v4103 = vadd.f32 %v4095, 1.0
  %v4104 = vadd.f32 %v4096, 1.0
  %v4105 = vadd.f32 %v4097, 1.0
  %v4106 = vmul.f32 %v4074, %v4098
  %v4107 = vmul.f32 %v4075, %v4099
  %v4108 = vmul.f32 %v4076, %v4100
  %v4109 = vmul.f32 %v4077, %v4101
  %v4110 = vmul.f32 %v4078, %v4102
  %v4111 = vmul.f32 %v4079, %v4103
  %v4112 = vmul.f32 %v4080, %v4104
  %v4113 = vmul.f32 %v4081, %v4105
  %v4114 = vld [vmem:[%s17] sm:$0xff]
  %v4115 = vld [vmem:[%s17 + $0x8] sm:$0xff]
  %v4116 = vld [vmem:[%s17 + $0x10] sm:$0xff]
  %v4117 = vld [vmem:[%s17 + $0x18] sm:$0xff]
  %v4118 = vld [vmem:[%s18] sm:$0x1]
  %v4120 = vlaneseq
  %v4121 = vshrl.u32 %v4120, 7
  %v4122 = vsub.s32 0, %v4121
  %v4123 = vrot.slane %v4118, %v4122
  %vm4125 = vcmask 261120
  %v4127 = vsel %vm4125, %v4106, 0
  %v4130 = vsel %vm4125, %v4107, 0
  %v4133 = vsel %vm4125, %v4108, 0
  %v4136 = vsel %vm4125, %v4109, 0
  %v4139 = vsel %vm4125, %v4110, 0
  %v4142 = vsel %vm4125, %v4111, 0
  %v4145 = vsel %vm4125, %v4112, 0
  %v4148 = vsel %vm4125, %v4113, 0
  %4150 = vmatprep.subr.mxu0 0.0
  %4151 = vmatpush1.msra.mxu0 %v4114
  %4152 = vmatprep.subr.mxu0 0.0
  %4153 = vmatpush1.msra.mxu0 %v4115
  %4154 = vmatprep.subr.mxu0 0.0
  %4155 = vmatpush1.msra.mxu0 %v4116
  %4156 = vmatprep.subr.mxu0 0.0
  %4157 = vmatpush1.msra.mxu0 %v4117
  %4158 = vmatprep.subr.mxu0 0.0
  %4159 = vmatpush1.msra.mxu0 0.0
  %4160 = vmatprep.subr.mxu0 0.0
  %4161 = vmatpush1.msra.mxu0 0.0
  %4162 = vmatprep.subr.mxu0 0.0
  %4163 = vmatpush1.msra.mxu0 0.0
  %4164 = vmatprep.subr.mxu0 0.0
  %4165 = vmatpush1.msra.mxu0 0.0
  %4166 = vmatprep.subr.mxu0 0.0
  %4167 = vmatpush1.msra.mxu0 0.0
  %4168 = vmatprep.subr.mxu0 0.0
  %4169 = vmatpush1.msra.mxu0 0.0
  %4170 = vmatprep.subr.mxu0 0.0
  %4171 = vmatpush1.msra.mxu0 0.0
  %4172 = vmatprep.subr.mxu0 0.0
  %4173 = vmatpush1.msra.mxu0 0.0
  %4174 = vmatprep.subr.mxu0 0.0
  %4175 = vmatpush1.msra.mxu0 0.0
  %4176 = vmatprep.subr.mxu0 0.0
  %4177 = vmatpush1.msra.mxu0 0.0
  %4178 = vmatprep.subr.mxu0 0.0
  %4179 = vmatpush1.msra.mxu0 0.0
  %4180 = vmatprep.subr.mxu0 0.0
  %4181 = vmatpush1.msra.mxu0 0.0
  %4182 = vmatprep.subr.mxu0 0.0
  %4183 = vmatpush1.msra.mxu0 0.0
  %4184 = vmatprep.subr.mxu0 0.0
  %4185 = vmatpush1.msra.mxu0 0.0
  %4186 = vmatprep.subr.mxu0 0.0
  %4187 = vmatpush1.msra.mxu0 0.0
  %4188 = vmatprep.subr.mxu0 0.0
  %4189 = vmatpush1.msra.mxu0 0.0
  %4190 = vmatprep.subr.mxu0 0.0
  %4191 = vmatpush1.msra.mxu0 0.0
  %4192 = vmatprep.subr.mxu0 0.0
  %4193 = vmatpush1.msra.mxu0 0.0
  %4194 = vmatprep.subr.mxu0 0.0
  %4195 = vmatpush1.msra.mxu0 0.0
  %4196 = vmatprep.subr.mxu0 0.0
  %4197 = vmatpush1.msra.mxu0 0.0
  %4198 = vmatprep.subr.mxu0 0.0
  %4199 = vmatpush1.msra.mxu0 0.0
  %4200 = vmatprep.subr.mxu0 0.0
  %4201 = vmatpush1.msra.mxu0 0.0
  %4202 = vmatprep.subr.mxu0 0.0
  %4203 = vmatpush1.msra.mxu0 0.0
  %4204 = vmatprep.subr.mxu0 0.0
  %4205 = vmatpush1.msra.mxu0 0.0
  %4206 = vmatprep.subr.mxu0 0.0
  %4207 = vmatpush1.msra.mxu0 0.0
  %4208 = vmatprep.subr.mxu0 0.0
  %4209 = vmatpush1.msra.mxu0 0.0
  %4210 = vmatprep.subr.mxu0 0.0
  %4211 = vmatpush1.msra.mxu0 0.0
  %4212 = vmatprep.subr.mxu0 0.0
  %4213 = vmatpush1.msra.mxu0 0.0
  %4214 = vmatprep.mubr.f32.mxu0 0.0
  %4215 = vmatmul.mubr.f32.gmra.mrb[0].mxu0 %v4127
  %v4216 = vpop.f32.mrb[0].mxu0
  %v4217 = vadd.f32 %v4123, %v4216
  %v4218 = vpop.f32.mrb[0].mxu0
  %4219 = vmatprep.mubr.f32.mxu0 0.0
  %4220 = vmatmul.mubr.f32.gmra.mrb[0].mxu0 %v4130
  %v4221 = vpop.f32.mrb[0].mxu0
  %v4222 = vadd.f32 %v4123, %v4221
  %v4223 = vpop.f32.mrb[0].mxu0
  %4224 = vmatprep.mubr.f32.mxu0 0.0
  %4225 = vmatmul.mubr.f32.gmra.mrb[0].mxu0 %v4133
  %v4226 = vpop.f32.mrb[0].mxu0
  %v4227 = vadd.f32 %v4123, %v4226
  %v4228 = vpop.f32.mrb[0].mxu0
  %4229 = vmatprep.mubr.f32.mxu0 0.0
  %4230 = vmatmul.mubr.f32.gmra.mrb[0].mxu0 %v4136
  %v4231 = vpop.f32.mrb[0].mxu0
  %v4232 = vadd.f32 %v4123, %v4231
  %v4233 = vpop.f32.mrb[0].mxu0
  %4234 = vmatprep.mubr.f32.mxu0 0.0
  %4235 = vmatmul.mubr.f32.gmra.mrb[0].mxu0 %v4139
  %v4236 = vpop.f32.mrb[0].mxu0
  %v4237 = vadd.f32 %v4123, %v4236
  %v4238 = vpop.f32.mrb[0].mxu0
  %4239 = vmatprep.mubr.f32.mxu0 0.0
  %4240 = vmatmul.mubr.f32.gmra.mrb[0].mxu0 %v4142
  %v4241 = vpop.f32.mrb[0].mxu0
  %v4242 = vadd.f32 %v4123, %v4241
  %v4243 = vpop.f32.mrb[0].mxu0
  %4244 = vmatprep.mubr.f32.mxu0 0.0
  %4245 = vmatmul.mubr.f32.gmra.mrb[0].mxu0 %v4145
  %v4246 = vpop.f32.mrb[0].mxu0
  %v4247 = vadd.f32 %v4123, %v4246
  %v4248 = vpop.f32.mrb[0].mxu0
  %4249 = vmatprep.mubr.f32.mxu0 0.0
  %4250 = vmatmul.mubr.f32.gmra.mrb[0].mxu0 %v4148
  %v4251 = vpop.f32.mrb[0].mxu0
  %v4252 = vadd.f32 %v4123, %v4251
  %v4253 = vpop.f32.mrb[0].mxu0
  %4254 = vdwg.mxu0
  %v4255 = vadd.f32 %v3928, %v4217
  %v4256 = vadd.f32 %v3929, %v4222
  %v4257 = vadd.f32 %v3930, %v4227
  %v4258 = vadd.f32 %v3931, %v4232
  %v4259 = vadd.f32 %v3932, %v4237
  %v4260 = vadd.f32 %v3933, %v4242
  %v4261 = vadd.f32 %v3934, %v4247
  %v4262 = vadd.f32 %v3935, %v4252
  %v4263 = vld [vmem:[%s19] sm:$0x1]
  %v4264 = vld [vmem:[%s20] sm:$0x1]
  %v4265 = vsel %vm234, %v4255, 0.0
  %4266 = vadd.xlane.f32.xlu0 %v4265
  %v4267 = vpop.xlane.xlu0 %4266
  %v4268 = vsel %vm234, %v4256, 0.0
  %4269 = vadd.xlane.f32.xlu0 %v4268
  %v4270 = vpop.xlane.xlu0 %4269
  %v4271 = vsel %vm234, %v4257, 0.0
  %4272 = vadd.xlane.f32.xlu0 %v4271
  %v4273 = vpop.xlane.xlu0 %4272
  %v4274 = vsel %vm234, %v4258, 0.0
  %4275 = vadd.xlane.f32.xlu0 %v4274
  %v4276 = vpop.xlane.xlu0 %4275
  %v4277 = vsel %vm234, %v4259, 0.0
  %4278 = vadd.xlane.f32.xlu0 %v4277
  %v4279 = vpop.xlane.xlu0 %4278
  %v4280 = vsel %vm234, %v4260, 0.0
  %4281 = vadd.xlane.f32.xlu0 %v4280
  %v4282 = vpop.xlane.xlu0 %4281
  %v4283 = vsel %vm234, %v4261, 0.0
  %4284 = vadd.xlane.f32.xlu0 %v4283
  %v4285 = vpop.xlane.xlu0 %4284
  %v4286 = vsel %vm234, %v4262, 0.0
  %4287 = vadd.xlane.f32.xlu0 %v4286
  %v4288 = vpop.xlane.xlu0 %4287
  %v4289 = vmul.f32 %v4267, %v3827
  %v4290 = vmul.f32 %v4270, %v3827
  %v4291 = vmul.f32 %v4273, %v3827
  %v4292 = vmul.f32 %v4276, %v3827
  %v4293 = vmul.f32 %v4279, %v3827
  %v4294 = vmul.f32 %v4282, %v3827
  %v4295 = vmul.f32 %v4285, %v3827
  %v4296 = vmul.f32 %v4288, %v3827
  %v4297 = vsub.f32 %v4255, %v4289
  %v4298 = vsub.f32 %v4256, %v4290
  %v4299 = vsub.f32 %v4257, %v4291
  %v4300 = vsub.f32 %v4258, %v4292
  %v4301 = vsub.f32 %v4259, %v4293
  %v4302 = vsub.f32 %v4260, %v4294
  %v4303 = vsub.f32 %v4261, %v4295
  %v4304 = vsub.f32 %v4262, %v4296
  %v4305 = vmul.f32 %v4297, %v4297
  %v4306 = vmul.f32 %v4298, %v4298
  %v4307 = vmul.f32 %v4299, %v4299
  %v4308 = vmul.f32 %v4300, %v4300
  %v4309 = vmul.f32 %v4301, %v4301
  %v4310 = vmul.f32 %v4302, %v4302
  %v4311 = vmul.f32 %v4303, %v4303
  %v4312 = vmul.f32 %v4304, %v4304
  %v4313 = vsel %vm234, %v4305, 0.0
  %4314 = vadd.xlane.f32.xlu0 %v4313
  %v4315 = vpop.xlane.xlu0 %4314
  %v4316 = vsel %vm234, %v4306, 0.0
  %4317 = vadd.xlane.f32.xlu0 %v4316
  %v4318 = vpop.xlane.xlu0 %4317
  %v4319 = vsel %vm234, %v4307, 0.0
  %4320 = vadd.xlane.f32.xlu0 %v4319
  %v4321 = vpop.xlane.xlu0 %4320
  %v4322 = vsel %vm234, %v4308, 0.0
  %4323 = vadd.xlane.f32.xlu0 %v4322
  %v4324 = vpop.xlane.xlu0 %4323
  %v4325 = vsel %vm234, %v4309, 0.0
  %4326 = vadd.xlane.f32.xlu0 %v4325
  %v4327 = vpop.xlane.xlu0 %4326
  %v4328 = vsel %vm234, %v4310, 0.0
  %4329 = vadd.xlane.f32.xlu0 %v4328
  %v4330 = vpop.xlane.xlu0 %4329
  %v4331 = vsel %vm234, %v4311, 0.0
  %4332 = vadd.xlane.f32.xlu0 %v4331
  %v4333 = vpop.xlane.xlu0 %4332
  %v4334 = vsel %vm234, %v4312, 0.0
  %4335 = vadd.xlane.f32.xlu0 %v4334
  %v4336 = vpop.xlane.xlu0 %4335
  %v4337 = vmul.f32 %v4315, %v3827
  %v4338 = vmul.f32 %v4318, %v3827
  %v4339 = vmul.f32 %v4321, %v3827
  %v4340 = vmul.f32 %v4324, %v3827
  %v4341 = vmul.f32 %v4327, %v3827
  %v4342 = vmul.f32 %v4330, %v3827
  %v4343 = vmul.f32 %v4333, %v3827
  %v4344 = vmul.f32 %v4336, %v3827
  %v4345 = vadd.f32 %v4337, 1e-05
  %v4346 = vadd.f32 %v4338, 1e-05
  %v4347 = vadd.f32 %v4339, 1e-05
  %v4348 = vadd.f32 %v4340, 1e-05
  %v4349 = vadd.f32 %v4341, 1e-05
  %v4350 = vadd.f32 %v4342, 1e-05
  %v4351 = vadd.f32 %v4343, 1e-05
  %v4352 = vadd.f32 %v4344, 1e-05
  %v4353 = vrsqrt.pop %v4345
  %v4354 = vrsqrt.pop %v4346
  %v4355 = vrsqrt.pop %v4347
  %v4356 = vrsqrt.pop %v4348
  %v4357 = vrsqrt.pop %v4349
  %v4358 = vrsqrt.pop %v4350
  %v4359 = vrsqrt.pop %v4351
  %v4360 = vrsqrt.pop %v4352
  %v4361 = vmul.f32 %v4297, %v4353
  %v4362 = vmul.f32 %v4298, %v4354
  %v4363 = vmul.f32 %v4299, %v4355
  %v4364 = vmul.f32 %v4300, %v4356
  %v4365 = vmul.f32 %v4301, %v4357
  %v4366 = vmul.f32 %v4302, %v4358
  %v4367 = vmul.f32 %v4303, %v4359
  %v4368 = vmul.f32 %v4304, %v4360
  %v4370 = vlaneseq
  %v4371 = vshrl.u32 %v4370, 7
  %v4372 = vsub.s32 0, %v4371
  %v4373 = vrot.slane %v4263, %v4372
  %v4375 = vmul.f32 %v4361, %v4373
  %v4376 = vmul.f32 %v4362, %v4373
  %v4377 = vmul.f32 %v4363, %v4373
  %v4378 = vmul.f32 %v4364, %v4373
  %v4379 = vmul.f32 %v4365, %v4373
  %v4380 = vmul.f32 %v4366, %v4373
  %v4381 = vmul.f32 %v4367, %v4373
  %v4382 = vmul.f32 %v4368, %v4373
  %v4384 = vlaneseq
  %v4385 = vshrl.u32 %v4384, 7
  %v4386 = vsub.s32 0, %v4385
  %v4387 = vrot.slane %v4264, %v4386
  %v4389 = vadd.f32 %v4375, %v4387
  %v4390 = vadd.f32 %v4376, %v4387
  %v4391 = vadd.f32 %v4377, %v4387
  %v4392 = vadd.f32 %v4378, %v4387
  %v4393 = vadd.f32 %v4379, %v4387
  %v4394 = vadd.f32 %v4380, %v4387
  %v4395 = vadd.f32 %v4381, %v4387
  %v4396 = vadd.f32 %v4382, %v4387
  %s4397 = scalar_lea.vmem %s5, 32
  %v4398 = vld [vmem:[%s4397] sm:$0xff]
  %v4399 = vld [vmem:[%s4397 + $0x8] sm:$0xff]
  %s4400 = scalar_lea.vmem %s6, 2
  %v4401 = vld [vmem:[%s4400] sm:$0x1]
  %v4403 = vlaneseq
  %v4404 = vshrl.u32 %v4403, 7
  %v4405 = vsub.s32 0, %v4404
  %v4406 = vrot.slane %v4401, %v4405
  %v4409 = vsel %vm234, %v4389, 0
  %v4412 = vsel %vm234, %v4390, 0
  %v4415 = vsel %vm234, %v4391, 0
  %v4418 = vsel %vm234, %v4392, 0
  %v4421 = vsel %vm234, %v4393, 0
  %v4424 = vsel %vm234, %v4394, 0
  %v4427 = vsel %vm234, %v4395, 0
  %v4430 = vsel %vm234, %v4396, 0
  %4432 = vmatprep.subr.mxu0 0.0
  %4433 = vmatpush1.msra.mxu0 %v4398
  %4434 = vmatprep.subr.mxu0 0.0
  %4435 = vmatpush1.msra.mxu0 %v4399
  %4436 = vmatprep.subr.mxu0 0.0
  %4437 = vmatpush1.msra.mxu0 0.0
  %4438 = vmatprep.subr.mxu0 0.0
  %4439 = vmatpush1.msra.mxu0 0.0
  %4440 = vmatprep.subr.mxu0 0.0
  %4441 = vmatpush1.msra.mxu0 0.0
  %4442 = vmatprep.subr.mxu0 0.0
  %4443 = vmatpush1.msra.mxu0 0.0
  %4444 = vmatprep.subr.mxu0 0.0
  %4445 = vmatpush1.msra.mxu0 0.0
  %4446 = vmatprep.subr.mxu0 0.0
  %4447 = vmatpush1.msra.mxu0 0.0
  %4448 = vmatprep.subr.mxu0 0.0
  %4449 = vmatpush1.msra.mxu0 0.0
  %4450 = vmatprep.subr.mxu0 0.0
  %4451 = vmatpush1.msra.mxu0 0.0
  %4452 = vmatprep.subr.mxu0 0.0
  %4453 = vmatpush1.msra.mxu0 0.0
  %4454 = vmatprep.subr.mxu0 0.0
  %4455 = vmatpush1.msra.mxu0 0.0
  %4456 = vmatprep.subr.mxu0 0.0
  %4457 = vmatpush1.msra.mxu0 0.0
  %4458 = vmatprep.subr.mxu0 0.0
  %4459 = vmatpush1.msra.mxu0 0.0
  %4460 = vmatprep.subr.mxu0 0.0
  %4461 = vmatpush1.msra.mxu0 0.0
  %4462 = vmatprep.subr.mxu0 0.0
  %4463 = vmatpush1.msra.mxu0 0.0
  %4464 = vmatprep.subr.mxu0 0.0
  %4465 = vmatpush1.msra.mxu0 0.0
  %4466 = vmatprep.subr.mxu0 0.0
  %4467 = vmatpush1.msra.mxu0 0.0
  %4468 = vmatprep.subr.mxu0 0.0
  %4469 = vmatpush1.msra.mxu0 0.0
  %4470 = vmatprep.subr.mxu0 0.0
  %4471 = vmatpush1.msra.mxu0 0.0
  %4472 = vmatprep.subr.mxu0 0.0
  %4473 = vmatpush1.msra.mxu0 0.0
  %4474 = vmatprep.subr.mxu0 0.0
  %4475 = vmatpush1.msra.mxu0 0.0
  %4476 = vmatprep.subr.mxu0 0.0
  %4477 = vmatpush1.msra.mxu0 0.0
  %4478 = vmatprep.subr.mxu0 0.0
  %4479 = vmatpush1.msra.mxu0 0.0
  %4480 = vmatprep.subr.mxu0 0.0
  %4481 = vmatpush1.msra.mxu0 0.0
  %4482 = vmatprep.subr.mxu0 0.0
  %4483 = vmatpush1.msra.mxu0 0.0
  %4484 = vmatprep.subr.mxu0 0.0
  %4485 = vmatpush1.msra.mxu0 0.0
  %4486 = vmatprep.subr.mxu0 0.0
  %4487 = vmatpush1.msra.mxu0 0.0
  %4488 = vmatprep.subr.mxu0 0.0
  %4489 = vmatpush1.msra.mxu0 0.0
  %4490 = vmatprep.subr.mxu0 0.0
  %4491 = vmatpush1.msra.mxu0 0.0
  %4492 = vmatprep.subr.mxu0 0.0
  %4493 = vmatpush1.msra.mxu0 0.0
  %4494 = vmatprep.subr.mxu0 0.0
  %4495 = vmatpush1.msra.mxu0 0.0
  %4496 = vmatprep.mubr.f32.mxu0 0.0
  %4497 = vmatmul.mubr.f32.gmra.mrb[0].mxu0 %v4409
  %v4498 = vpop.f32.mrb[0].mxu0
  %v4499 = vadd.f32 %v4406, %v4498
  %v4500 = vpop.f32.mrb[0].mxu0
  %4501 = vmatprep.mubr.f32.mxu0 0.0
  %4502 = vmatmul.mubr.f32.gmra.mrb[0].mxu0 %v4412
  %v4503 = vpop.f32.mrb[0].mxu0
  %v4504 = vadd.f32 %v4406, %v4503
  %v4505 = vpop.f32.mrb[0].mxu0
  %4506 = vmatprep.mubr.f32.mxu0 0.0
  %4507 = vmatmul.mubr.f32.gmra.mrb[0].mxu0 %v4415
  %v4508 = vpop.f32.mrb[0].mxu0
  %v4509 = vadd.f32 %v4406, %v4508
  %v4510 = vpop.f32.mrb[0].mxu0
  %4511 = vmatprep.mubr.f32.mxu0 0.0
  %4512 = vmatmul.mubr.f32.gmra.mrb[0].mxu0 %v4418
  %v4513 = vpop.f32.mrb[0].mxu0
  %v4514 = vadd.f32 %v4406, %v4513
  %v4515 = vpop.f32.mrb[0].mxu0
  %4516 = vmatprep.mubr.f32.mxu0 0.0
  %4517 = vmatmul.mubr.f32.gmra.mrb[0].mxu0 %v4421
  %v4518 = vpop.f32.mrb[0].mxu0
  %v4519 = vadd.f32 %v4406, %v4518
  %v4520 = vpop.f32.mrb[0].mxu0
  %4521 = vmatprep.mubr.f32.mxu0 0.0
  %4522 = vmatmul.mubr.f32.gmra.mrb[0].mxu0 %v4424
  %v4523 = vpop.f32.mrb[0].mxu0
  %v4524 = vadd.f32 %v4406, %v4523
  %v4525 = vpop.f32.mrb[0].mxu0
  %4526 = vmatprep.mubr.f32.mxu0 0.0
  %4527 = vmatmul.mubr.f32.gmra.mrb[0].mxu0 %v4427
  %v4528 = vpop.f32.mrb[0].mxu0
  %v4529 = vadd.f32 %v4406, %v4528
  %v4530 = vpop.f32.mrb[0].mxu0
  %4531 = vmatprep.mubr.f32.mxu0 0.0
  %4532 = vmatmul.mubr.f32.gmra.mrb[0].mxu0 %v4430
  %v4533 = vpop.f32.mrb[0].mxu0
  %v4534 = vadd.f32 %v4406, %v4533
  %v4535 = vpop.f32.mrb[0].mxu0
  %4536 = vdwg.mxu0
  %s4537 = scalar_lea.vmem %s7, 32
  %v4538 = vld [vmem:[%s4537] sm:$0xff]
  %v4539 = vld [vmem:[%s4537 + $0x8] sm:$0xff]
  %s4540 = scalar_lea.vmem %s8, 2
  %v4541 = vld [vmem:[%s4540] sm:$0x1]
  %v4543 = vlaneseq
  %v4544 = vshrl.u32 %v4543, 7
  %v4545 = vsub.s32 0, %v4544
  %v4546 = vrot.slane %v4541, %v4545
  %4548 = vmatprep.subr.mxu0 0.0
  %4549 = vmatpush1.msra.mxu0 %v4538
  %4550 = vmatprep.subr.mxu0 0.0
  %4551 = vmatpush1.msra.mxu0 %v4539
  %4552 = vmatprep.subr.mxu0 0.0
  %4553 = vmatpush1.msra.mxu0 0.0
  %4554 = vmatprep.subr.mxu0 0.0
  %4555 = vmatpush1.msra.mxu0 0.0
  %4556 = vmatprep.subr.mxu0 0.0
  %4557 = vmatpush1.msra.mxu0 0.0
  %4558 = vmatprep.subr.mxu0 0.0
  %4559 = vmatpush1.msra.mxu0 0.0
  %4560 = vmatprep.subr.mxu0 0.0
  %4561 = vmatpush1.msra.mxu0 0.0
  %4562 = vmatprep.subr.mxu0 0.0
  %4563 = vmatpush1.msra.mxu0 0.0
  %4564 = vmatprep.subr.mxu0 0.0
  %4565 = vmatpush1.msra.mxu0 0.0
  %4566 = vmatprep.subr.mxu0 0.0
  %4567 = vmatpush1.msra.mxu0 0.0
  %4568 = vmatprep.subr.mxu0 0.0
  %4569 = vmatpush1.msra.mxu0 0.0
  %4570 = vmatprep.subr.mxu0 0.0
  %4571 = vmatpush1.msra.mxu0 0.0
  %4572 = vmatprep.subr.mxu0 0.0
  %4573 = vmatpush1.msra.mxu0 0.0
  %4574 = vmatprep.subr.mxu0 0.0
  %4575 = vmatpush1.msra.mxu0 0.0
  %4576 = vmatprep.subr.mxu0 0.0
  %4577 = vmatpush1.msra.mxu0 0.0
  %4578 = vmatprep.subr.mxu0 0.0
  %4579 = vmatpush1.msra.mxu0 0.0
  %4580 = vmatprep.subr.mxu0 0.0
  %4581 = vmatpush1.msra.mxu0 0.0
  %4582 = vmatprep.subr.mxu0 0.0
  %4583 = vmatpush1.msra.mxu0 0.0
  %4584 = vmatprep.subr.mxu0 0.0
  %4585 = vmatpush1.msra.mxu0 0.0
  %4586 = vmatprep.subr.mxu0 0.0
  %4587 = vmatpush1.msra.mxu0 0.0
  %4588 = vmatprep.subr.mxu0 0.0
  %4589 = vmatpush1.msra.mxu0 0.0
  %4590 = vmatprep.subr.mxu0 0.0
  %4591 = vmatpush1.msra.mxu0 0.0
  %4592 = vmatprep.subr.mxu0 0.0
  %4593 = vmatpush1.msra.mxu0 0.0
  %4594 = vmatprep.subr.mxu0 0.0
  %4595 = vmatpush1.msra.mxu0 0.0
  %4596 = vmatprep.subr.mxu0 0.0
  %4597 = vmatpush1.msra.mxu0 0.0
  %4598 = vmatprep.subr.mxu0 0.0
  %4599 = vmatpush1.msra.mxu0 0.0
  %4600 = vmatprep.subr.mxu0 0.0
  %4601 = vmatpush1.msra.mxu0 0.0
  %4602 = vmatprep.subr.mxu0 0.0
  %4603 = vmatpush1.msra.mxu0 0.0
  %4604 = vmatprep.subr.mxu0 0.0
  %4605 = vmatpush1.msra.mxu0 0.0
  %4606 = vmatprep.subr.mxu0 0.0
  %4607 = vmatpush1.msra.mxu0 0.0
  %4608 = vmatprep.subr.mxu0 0.0
  %4609 = vmatpush1.msra.mxu0 0.0
  %4610 = vmatprep.subr.mxu0 0.0
  %4611 = vmatpush1.msra.mxu0 0.0
  %4612 = vmatprep.mubr.f32.mxu0 0.0
  %4613 = vmatmul.mubr.f32.gmra.mrb[0].mxu0 %v4409
  %v4614 = vpop.f32.mrb[0].mxu0
  %v4615 = vadd.f32 %v4546, %v4614
  %v4616 = vpop.f32.mrb[0].mxu0
  %4617 = vmatprep.mubr.f32.mxu0 0.0
  %4618 = vmatmul.mubr.f32.gmra.mrb[0].mxu0 %v4412
  %v4619 = vpop.f32.mrb[0].mxu0
  %v4620 = vadd.f32 %v4546, %v4619
  %v4621 = vpop.f32.mrb[0].mxu0
  %4622 = vmatprep.mubr.f32.mxu0 0.0
  %4623 = vmatmul.mubr.f32.gmra.mrb[0].mxu0 %v4415
  %v4624 = vpop.f32.mrb[0].mxu0
  %v4625 = vadd.f32 %v4546, %v4624
  %v4626 = vpop.f32.mrb[0].mxu0
  %4627 = vmatprep.mubr.f32.mxu0 0.0
  %4628 = vmatmul.mubr.f32.gmra.mrb[0].mxu0 %v4418
  %v4629 = vpop.f32.mrb[0].mxu0
  %v4630 = vadd.f32 %v4546, %v4629
  %v4631 = vpop.f32.mrb[0].mxu0
  %4632 = vmatprep.mubr.f32.mxu0 0.0
  %4633 = vmatmul.mubr.f32.gmra.mrb[0].mxu0 %v4421
  %v4634 = vpop.f32.mrb[0].mxu0
  %v4635 = vadd.f32 %v4546, %v4634
  %v4636 = vpop.f32.mrb[0].mxu0
  %4637 = vmatprep.mubr.f32.mxu0 0.0
  %4638 = vmatmul.mubr.f32.gmra.mrb[0].mxu0 %v4424
  %v4639 = vpop.f32.mrb[0].mxu0
  %v4640 = vadd.f32 %v4546, %v4639
  %v4641 = vpop.f32.mrb[0].mxu0
  %4642 = vmatprep.mubr.f32.mxu0 0.0
  %4643 = vmatmul.mubr.f32.gmra.mrb[0].mxu0 %v4427
  %v4644 = vpop.f32.mrb[0].mxu0
  %v4645 = vadd.f32 %v4546, %v4644
  %v4646 = vpop.f32.mrb[0].mxu0
  %4647 = vmatprep.mubr.f32.mxu0 0.0
  %4648 = vmatmul.mubr.f32.gmra.mrb[0].mxu0 %v4430
  %v4649 = vpop.f32.mrb[0].mxu0
  %v4650 = vadd.f32 %v4546, %v4649
  %v4651 = vpop.f32.mrb[0].mxu0
  %4652 = vdwg.mxu0
  %s4653 = scalar_lea.vmem %s9, 32
  %v4654 = vld [vmem:[%s4653] sm:$0xff]
  %v4655 = vld [vmem:[%s4653 + $0x8] sm:$0xff]
  %s4656 = scalar_lea.vmem %s10, 2
  %v4657 = vld [vmem:[%s4656] sm:$0x1]
  %v4659 = vlaneseq
  %v4660 = vshrl.u32 %v4659, 7
  %v4661 = vsub.s32 0, %v4660
  %v4662 = vrot.slane %v4657, %v4661
  %4664 = vmatprep.subr.mxu0 0.0
  %4665 = vmatpush1.msra.mxu0 %v4654
  %4666 = vmatprep.subr.mxu0 0.0
  %4667 = vmatpush1.msra.mxu0 %v4655
  %4668 = vmatprep.subr.mxu0 0.0
  %4669 = vmatpush1.msra.mxu0 0.0
  %4670 = vmatprep.subr.mxu0 0.0
  %4671 = vmatpush1.msra.mxu0 0.0
  %4672 = vmatprep.subr.mxu0 0.0
  %4673 = vmatpush1.msra.mxu0 0.0
  %4674 = vmatprep.subr.mxu0 0.0
  %4675 = vmatpush1.msra.mxu0 0.0
  %4676 = vmatprep.subr.mxu0 0.0
  %4677 = vmatpush1.msra.mxu0 0.0
  %4678 = vmatprep.subr.mxu0 0.0
  %4679 = vmatpush1.msra.mxu0 0.0
  %4680 = vmatprep.subr.mxu0 0.0
  %4681 = vmatpush1.msra.mxu0 0.0
  %4682 = vmatprep.subr.mxu0 0.0
  %4683 = vmatpush1.msra.mxu0 0.0
  %4684 = vmatprep.subr.mxu0 0.0
  %4685 = vmatpush1.msra.mxu0 0.0
  %4686 = vmatprep.subr.mxu0 0.0
  %4687 = vmatpush1.msra.mxu0 0.0
  %4688 = vmatprep.subr.mxu0 0.0
  %4689 = vmatpush1.msra.mxu0 0.0
  %4690 = vmatprep.subr.mxu0 0.0
  %4691 = vmatpush1.msra.mxu0 0.0
  %4692 = vmatprep.subr.mxu0 0.0
  %4693 = vmatpush1.msra.mxu0 0.0
  %4694 = vmatprep.subr.mxu0 0.0
  %4695 = vmatpush1.msra.mxu0 0.0
  %4696 = vmatprep.subr.mxu0 0.0
  %4697 = vmatpush1.msra.mxu0 0.0
  %4698 = vmatprep.subr.mxu0 0.0
  %4699 = vmatpush1.msra.mxu0 0.0
  %4700 = vmatprep.subr.mxu0 0.0
  %4701 = vmatpush1.msra.mxu0 0.0
  %4702 = vmatprep.subr.mxu0 0.0
  %4703 = vmatpush1.msra.mxu0 0.0
  %4704 = vmatprep.subr.mxu0 0.0
  %4705 = vmatpush1.msra.mxu0 0.0
  %4706 = vmatprep.subr.mxu0 0.0
  %4707 = vmatpush1.msra.mxu0 0.0
  %4708 = vmatprep.subr.mxu0 0.0
  %4709 = vmatpush1.msra.mxu0 0.0
  %4710 = vmatprep.subr.mxu0 0.0
  %4711 = vmatpush1.msra.mxu0 0.0
  %4712 = vmatprep.subr.mxu0 0.0
  %4713 = vmatpush1.msra.mxu0 0.0
  %4714 = vmatprep.subr.mxu0 0.0
  %4715 = vmatpush1.msra.mxu0 0.0
  %4716 = vmatprep.subr.mxu0 0.0
  %4717 = vmatpush1.msra.mxu0 0.0
  %4718 = vmatprep.subr.mxu0 0.0
  %4719 = vmatpush1.msra.mxu0 0.0
  %4720 = vmatprep.subr.mxu0 0.0
  %4721 = vmatpush1.msra.mxu0 0.0
  %4722 = vmatprep.subr.mxu0 0.0
  %4723 = vmatpush1.msra.mxu0 0.0
  %4724 = vmatprep.subr.mxu0 0.0
  %4725 = vmatpush1.msra.mxu0 0.0
  %4726 = vmatprep.subr.mxu0 0.0
  %4727 = vmatpush1.msra.mxu0 0.0
  %4728 = vmatprep.mubr.f32.mxu0 0.0
  %4729 = vmatmul.mubr.f32.gmra.mrb[0].mxu0 %v4409
  %v4730 = vpop.f32.mrb[0].mxu0
  %v4731 = vadd.f32 %v4662, %v4730
  %v4732 = vpop.f32.mrb[0].mxu0
  %4733 = vmatprep.mubr.f32.mxu0 0.0
  %4734 = vmatmul.mubr.f32.gmra.mrb[0].mxu0 %v4412
  %v4735 = vpop.f32.mrb[0].mxu0
  %v4736 = vadd.f32 %v4662, %v4735
  %v4737 = vpop.f32.mrb[0].mxu0
  %4738 = vmatprep.mubr.f32.mxu0 0.0
  %4739 = vmatmul.mubr.f32.gmra.mrb[0].mxu0 %v4415
  %v4740 = vpop.f32.mrb[0].mxu0
  %v4741 = vadd.f32 %v4662, %v4740
  %v4742 = vpop.f32.mrb[0].mxu0
  %4743 = vmatprep.mubr.f32.mxu0 0.0
  %4744 = vmatmul.mubr.f32.gmra.mrb[0].mxu0 %v4418
  %v4745 = vpop.f32.mrb[0].mxu0
  %v4746 = vadd.f32 %v4662, %v4745
  %v4747 = vpop.f32.mrb[0].mxu0
  %4748 = vmatprep.mubr.f32.mxu0 0.0
  %4749 = vmatmul.mubr.f32.gmra.mrb[0].mxu0 %v4421
  %v4750 = vpop.f32.mrb[0].mxu0
  %v4751 = vadd.f32 %v4662, %v4750
  %v4752 = vpop.f32.mrb[0].mxu0
  %4753 = vmatprep.mubr.f32.mxu0 0.0
  %4754 = vmatmul.mubr.f32.gmra.mrb[0].mxu0 %v4424
  %v4755 = vpop.f32.mrb[0].mxu0
  %v4756 = vadd.f32 %v4662, %v4755
  %v4757 = vpop.f32.mrb[0].mxu0
  %4758 = vmatprep.mubr.f32.mxu0 0.0
  %4759 = vmatmul.mubr.f32.gmra.mrb[0].mxu0 %v4427
  %v4760 = vpop.f32.mrb[0].mxu0
  %v4761 = vadd.f32 %v4662, %v4760
  %v4762 = vpop.f32.mrb[0].mxu0
  %4763 = vmatprep.mubr.f32.mxu0 0.0
  %4764 = vmatmul.mubr.f32.gmra.mrb[0].mxu0 %v4430
  %v4765 = vpop.f32.mrb[0].mxu0
  %v4766 = vadd.f32 %v4662, %v4765
  %v4767 = vpop.f32.mrb[0].mxu0
  %4768 = vdwg.mxu0
  %v4770 = vsel %vm592, %v4499, 0
  %v4773 = vsel %vm592, %v4615, 0
  %4775 = vmatprep.subr.mxu0 0.0
  %4776 = vmatpush1.xpose.msra.mxu0 %v4773
  %4777 = vmatprep.subr.mxu0 0.0
  %4778 = vmatpush1.xpose.msra.mxu0 0.0
  %4779 = vmatprep.subr.mxu0 0.0
  %4780 = vmatpush1.xpose.msra.mxu0 0.0
  %4781 = vmatprep.subr.mxu0 0.0
  %4782 = vmatpush1.xpose.msra.mxu0 0.0
  %4783 = vmatprep.subr.mxu0 0.0
  %4784 = vmatpush1.xpose.msra.mxu0 0.0
  %4785 = vmatprep.subr.mxu0 0.0
  %4786 = vmatpush1.xpose.msra.mxu0 0.0
  %4787 = vmatprep.subr.mxu0 0.0
  %4788 = vmatpush1.xpose.msra.mxu0 0.0
  %4789 = vmatprep.subr.mxu0 0.0
  %4790 = vmatpush1.xpose.msra.mxu0 0.0
  %4791 = vmatprep.subr.mxu0 0.0
  %4792 = vmatpush1.xpose.msra.mxu0 0.0
  %4793 = vmatprep.subr.mxu0 0.0
  %4794 = vmatpush1.xpose.msra.mxu0 0.0
  %4795 = vmatprep.subr.mxu0 0.0
  %4796 = vmatpush1.xpose.msra.mxu0 0.0
  %4797 = vmatprep.subr.mxu0 0.0
  %4798 = vmatpush1.xpose.msra.mxu0 0.0
  %4799 = vmatprep.subr.mxu0 0.0
  %4800 = vmatpush1.xpose.msra.mxu0 0.0
  %4801 = vmatprep.subr.mxu0 0.0
  %4802 = vmatpush1.xpose.msra.mxu0 0.0
  %4803 = vmatprep.subr.mxu0 0.0
  %4804 = vmatpush1.xpose.msra.mxu0 0.0
  %4805 = vmatprep.subr.mxu0 0.0
  %4806 = vmatpush1.xpose.msra.mxu0 0.0
  %4807 = vmatprep.subr.mxu0 0.0
  %4808 = vmatpush1.xpose.msra.mxu0 0.0
  %4809 = vmatprep.subr.mxu0 0.0
  %4810 = vmatpush1.xpose.msra.mxu0 0.0
  %4811 = vmatprep.subr.mxu0 0.0
  %4812 = vmatpush1.xpose.msra.mxu0 0.0
  %4813 = vmatprep.subr.mxu0 0.0
  %4814 = vmatpush1.xpose.msra.mxu0 0.0
  %4815 = vmatprep.subr.mxu0 0.0
  %4816 = vmatpush1.xpose.msra.mxu0 0.0
  %4817 = vmatprep.subr.mxu0 0.0
  %4818 = vmatpush1.xpose.msra.mxu0 0.0
  %4819 = vmatprep.subr.mxu0 0.0
  %4820 = vmatpush1.xpose.msra.mxu0 0.0
  %4821 = vmatprep.subr.mxu0 0.0
  %4822 = vmatpush1.xpose.msra.mxu0 0.0
  %4823 = vmatprep.subr.mxu0 0.0
  %4824 = vmatpush1.xpose.msra.mxu0 0.0
  %4825 = vmatprep.subr.mxu0 0.0
  %4826 = vmatpush1.xpose.msra.mxu0 0.0
  %4827 = vmatprep.subr.mxu0 0.0
  %4828 = vmatpush1.xpose.msra.mxu0 0.0
  %4829 = vmatprep.subr.mxu0 0.0
  %4830 = vmatpush1.xpose.msra.mxu0 0.0
  %4831 = vmatprep.subr.mxu0 0.0
  %4832 = vmatpush1.xpose.msra.mxu0 0.0
  %4833 = vmatprep.subr.mxu0 0.0
  %4834 = vmatpush1.xpose.msra.mxu0 0.0
  %4835 = vmatprep.subr.mxu0 0.0
  %4836 = vmatpush1.xpose.msra.mxu0 0.0
  %4837 = vmatprep.subr.mxu0 0.0
  %4838 = vmatpush1.xpose.msra.mxu0 0.0
  %4839 = vmatprep.mubr.f32.mxu0 0.0
  %4840 = vmatmul.mubr.f32.gmra.mrb[0].mxu0 %v4770
  %v4841 = vpop.f32.mrb[0].mxu0
  %v4842 = vadd.f32 0.0, %v4841
  %v4843 = vpop.f32.mrb[0].mxu0
  %4844 = vdwg.mxu0
  %v4846 = vsel %vm592, %v4504, 0
  %v4849 = vsel %vm592, %v4620, 0
  %4851 = vmatprep.subr.mxu0 0.0
  %4852 = vmatpush1.xpose.msra.mxu0 %v4849
  %4853 = vmatprep.subr.mxu0 0.0
  %4854 = vmatpush1.xpose.msra.mxu0 0.0
  %4855 = vmatprep.subr.mxu0 0.0
  %4856 = vmatpush1.xpose.msra.mxu0 0.0
  %4857 = vmatprep.subr.mxu0 0.0
  %4858 = vmatpush1.xpose.msra.mxu0 0.0
  %4859 = vmatprep.subr.mxu0 0.0
  %4860 = vmatpush1.xpose.msra.mxu0 0.0
  %4861 = vmatprep.subr.mxu0 0.0
  %4862 = vmatpush1.xpose.msra.mxu0 0.0
  %4863 = vmatprep.subr.mxu0 0.0
  %4864 = vmatpush1.xpose.msra.mxu0 0.0
  %4865 = vmatprep.subr.mxu0 0.0
  %4866 = vmatpush1.xpose.msra.mxu0 0.0
  %4867 = vmatprep.subr.mxu0 0.0
  %4868 = vmatpush1.xpose.msra.mxu0 0.0
  %4869 = vmatprep.subr.mxu0 0.0
  %4870 = vmatpush1.xpose.msra.mxu0 0.0
  %4871 = vmatprep.subr.mxu0 0.0
  %4872 = vmatpush1.xpose.msra.mxu0 0.0
  %4873 = vmatprep.subr.mxu0 0.0
  %4874 = vmatpush1.xpose.msra.mxu0 0.0
  %4875 = vmatprep.subr.mxu0 0.0
  %4876 = vmatpush1.xpose.msra.mxu0 0.0
  %4877 = vmatprep.subr.mxu0 0.0
  %4878 = vmatpush1.xpose.msra.mxu0 0.0
  %4879 = vmatprep.subr.mxu0 0.0
  %4880 = vmatpush1.xpose.msra.mxu0 0.0
  %4881 = vmatprep.subr.mxu0 0.0
  %4882 = vmatpush1.xpose.msra.mxu0 0.0
  %4883 = vmatprep.subr.mxu0 0.0
  %4884 = vmatpush1.xpose.msra.mxu0 0.0
  %4885 = vmatprep.subr.mxu0 0.0
  %4886 = vmatpush1.xpose.msra.mxu0 0.0
  %4887 = vmatprep.subr.mxu0 0.0
  %4888 = vmatpush1.xpose.msra.mxu0 0.0
  %4889 = vmatprep.subr.mxu0 0.0
  %4890 = vmatpush1.xpose.msra.mxu0 0.0
  %4891 = vmatprep.subr.mxu0 0.0
  %4892 = vmatpush1.xpose.msra.mxu0 0.0
  %4893 = vmatprep.subr.mxu0 0.0
  %4894 = vmatpush1.xpose.msra.mxu0 0.0
  %4895 = vmatprep.subr.mxu0 0.0
  %4896 = vmatpush1.xpose.msra.mxu0 0.0
  %4897 = vmatprep.subr.mxu0 0.0
  %4898 = vmatpush1.xpose.msra.mxu0 0.0
  %4899 = vmatprep.subr.mxu0 0.0
  %4900 = vmatpush1.xpose.msra.mxu0 0.0
  %4901 = vmatprep.subr.mxu0 0.0
  %4902 = vmatpush1.xpose.msra.mxu0 0.0
  %4903 = vmatprep.subr.mxu0 0.0
  %4904 = vmatpush1.xpose.msra.mxu0 0.0
  %4905 = vmatprep.subr.mxu0 0.0
  %4906 = vmatpush1.xpose.msra.mxu0 0.0
  %4907 = vmatprep.subr.mxu0 0.0
  %4908 = vmatpush1.xpose.msra.mxu0 0.0
  %4909 = vmatprep.subr.mxu0 0.0
  %4910 = vmatpush1.xpose.msra.mxu0 0.0
  %4911 = vmatprep.subr.mxu0 0.0
  %4912 = vmatpush1.xpose.msra.mxu0 0.0
  %4913 = vmatprep.subr.mxu0 0.0
  %4914 = vmatpush1.xpose.msra.mxu0 0.0
  %4915 = vmatprep.mubr.f32.mxu0 0.0
  %4916 = vmatmul.mubr.f32.gmra.mrb[0].mxu0 %v4846
  %v4917 = vpop.f32.mrb[0].mxu0
  %v4918 = vadd.f32 0.0, %v4917
  %v4919 = vpop.f32.mrb[0].mxu0
  %4920 = vdwg.mxu0
  %v4922 = vsel %vm592, %v4509, 0
  %v4925 = vsel %vm592, %v4625, 0
  %4927 = vmatprep.subr.mxu0 0.0
  %4928 = vmatpush1.xpose.msra.mxu0 %v4925
  %4929 = vmatprep.subr.mxu0 0.0
  %4930 = vmatpush1.xpose.msra.mxu0 0.0
  %4931 = vmatprep.subr.mxu0 0.0
  %4932 = vmatpush1.xpose.msra.mxu0 0.0
  %4933 = vmatprep.subr.mxu0 0.0
  %4934 = vmatpush1.xpose.msra.mxu0 0.0
  %4935 = vmatprep.subr.mxu0 0.0
  %4936 = vmatpush1.xpose.msra.mxu0 0.0
  %4937 = vmatprep.subr.mxu0 0.0
  %4938 = vmatpush1.xpose.msra.mxu0 0.0
  %4939 = vmatprep.subr.mxu0 0.0
  %4940 = vmatpush1.xpose.msra.mxu0 0.0
  %4941 = vmatprep.subr.mxu0 0.0
  %4942 = vmatpush1.xpose.msra.mxu0 0.0
  %4943 = vmatprep.subr.mxu0 0.0
  %4944 = vmatpush1.xpose.msra.mxu0 0.0
  %4945 = vmatprep.subr.mxu0 0.0
  %4946 = vmatpush1.xpose.msra.mxu0 0.0
  %4947 = vmatprep.subr.mxu0 0.0
  %4948 = vmatpush1.xpose.msra.mxu0 0.0
  %4949 = vmatprep.subr.mxu0 0.0
  %4950 = vmatpush1.xpose.msra.mxu0 0.0
  %4951 = vmatprep.subr.mxu0 0.0
  %4952 = vmatpush1.xpose.msra.mxu0 0.0
  %4953 = vmatprep.subr.mxu0 0.0
  %4954 = vmatpush1.xpose.msra.mxu0 0.0
  %4955 = vmatprep.subr.mxu0 0.0
  %4956 = vmatpush1.xpose.msra.mxu0 0.0
  %4957 = vmatprep.subr.mxu0 0.0
  %4958 = vmatpush1.xpose.msra.mxu0 0.0
  %4959 = vmatprep.subr.mxu0 0.0
  %4960 = vmatpush1.xpose.msra.mxu0 0.0
  %4961 = vmatprep.subr.mxu0 0.0
  %4962 = vmatpush1.xpose.msra.mxu0 0.0
  %4963 = vmatprep.subr.mxu0 0.0
  %4964 = vmatpush1.xpose.msra.mxu0 0.0
  %4965 = vmatprep.subr.mxu0 0.0
  %4966 = vmatpush1.xpose.msra.mxu0 0.0
  %4967 = vmatprep.subr.mxu0 0.0
  %4968 = vmatpush1.xpose.msra.mxu0 0.0
  %4969 = vmatprep.subr.mxu0 0.0
  %4970 = vmatpush1.xpose.msra.mxu0 0.0
  %4971 = vmatprep.subr.mxu0 0.0
  %4972 = vmatpush1.xpose.msra.mxu0 0.0
  %4973 = vmatprep.subr.mxu0 0.0
  %4974 = vmatpush1.xpose.msra.mxu0 0.0
  %4975 = vmatprep.subr.mxu0 0.0
  %4976 = vmatpush1.xpose.msra.mxu0 0.0
  %4977 = vmatprep.subr.mxu0 0.0
  %4978 = vmatpush1.xpose.msra.mxu0 0.0
  %4979 = vmatprep.subr.mxu0 0.0
  %4980 = vmatpush1.xpose.msra.mxu0 0.0
  %4981 = vmatprep.subr.mxu0 0.0
  %4982 = vmatpush1.xpose.msra.mxu0 0.0
  %4983 = vmatprep.subr.mxu0 0.0
  %4984 = vmatpush1.xpose.msra.mxu0 0.0
  %4985 = vmatprep.subr.mxu0 0.0
  %4986 = vmatpush1.xpose.msra.mxu0 0.0
  %4987 = vmatprep.subr.mxu0 0.0
  %4988 = vmatpush1.xpose.msra.mxu0 0.0
  %4989 = vmatprep.subr.mxu0 0.0
  %4990 = vmatpush1.xpose.msra.mxu0 0.0
  %4991 = vmatprep.mubr.f32.mxu0 0.0
  %4992 = vmatmul.mubr.f32.gmra.mrb[0].mxu0 %v4922
  %v4993 = vpop.f32.mrb[0].mxu0
  %v4994 = vadd.f32 0.0, %v4993
  %v4995 = vpop.f32.mrb[0].mxu0
  %4996 = vdwg.mxu0
  %v4998 = vsel %vm592, %v4514, 0
  %v5001 = vsel %vm592, %v4630, 0
  %5003 = vmatprep.subr.mxu0 0.0
  %5004 = vmatpush1.xpose.msra.mxu0 %v5001
  %5005 = vmatprep.subr.mxu0 0.0
  %5006 = vmatpush1.xpose.msra.mxu0 0.0
  %5007 = vmatprep.subr.mxu0 0.0
  %5008 = vmatpush1.xpose.msra.mxu0 0.0
  %5009 = vmatprep.subr.mxu0 0.0
  %5010 = vmatpush1.xpose.msra.mxu0 0.0
  %5011 = vmatprep.subr.mxu0 0.0
  %5012 = vmatpush1.xpose.msra.mxu0 0.0
  %5013 = vmatprep.subr.mxu0 0.0
  %5014 = vmatpush1.xpose.msra.mxu0 0.0
  %5015 = vmatprep.subr.mxu0 0.0
  %5016 = vmatpush1.xpose.msra.mxu0 0.0
  %5017 = vmatprep.subr.mxu0 0.0
  %5018 = vmatpush1.xpose.msra.mxu0 0.0
  %5019 = vmatprep.subr.mxu0 0.0
  %5020 = vmatpush1.xpose.msra.mxu0 0.0
  %5021 = vmatprep.subr.mxu0 0.0
  %5022 = vmatpush1.xpose.msra.mxu0 0.0
  %5023 = vmatprep.subr.mxu0 0.0
  %5024 = vmatpush1.xpose.msra.mxu0 0.0
  %5025 = vmatprep.subr.mxu0 0.0
  %5026 = vmatpush1.xpose.msra.mxu0 0.0
  %5027 = vmatprep.subr.mxu0 0.0
  %5028 = vmatpush1.xpose.msra.mxu0 0.0
  %5029 = vmatprep.subr.mxu0 0.0
  %5030 = vmatpush1.xpose.msra.mxu0 0.0
  %5031 = vmatprep.subr.mxu0 0.0
  %5032 = vmatpush1.xpose.msra.mxu0 0.0
  %5033 = vmatprep.subr.mxu0 0.0
  %5034 = vmatpush1.xpose.msra.mxu0 0.0
  %5035 = vmatprep.subr.mxu0 0.0
  %5036 = vmatpush1.xpose.msra.mxu0 0.0
  %5037 = vmatprep.subr.mxu0 0.0
  %5038 = vmatpush1.xpose.msra.mxu0 0.0
  %5039 = vmatprep.subr.mxu0 0.0
  %5040 = vmatpush1.xpose.msra.mxu0 0.0
  %5041 = vmatprep.subr.mxu0 0.0
  %5042 = vmatpush1.xpose.msra.mxu0 0.0
  %5043 = vmatprep.subr.mxu0 0.0
  %5044 = vmatpush1.xpose.msra.mxu0 0.0
  %5045 = vmatprep.subr.mxu0 0.0
  %5046 = vmatpush1.xpose.msra.mxu0 0.0
  %5047 = vmatprep.subr.mxu0 0.0
  %5048 = vmatpush1.xpose.msra.mxu0 0.0
  %5049 = vmatprep.subr.mxu0 0.0
  %5050 = vmatpush1.xpose.msra.mxu0 0.0
  %5051 = vmatprep.subr.mxu0 0.0
  %5052 = vmatpush1.xpose.msra.mxu0 0.0
  %5053 = vmatprep.subr.mxu0 0.0
  %5054 = vmatpush1.xpose.msra.mxu0 0.0
  %5055 = vmatprep.subr.mxu0 0.0
  %5056 = vmatpush1.xpose.msra.mxu0 0.0
  %5057 = vmatprep.subr.mxu0 0.0
  %5058 = vmatpush1.xpose.msra.mxu0 0.0
  %5059 = vmatprep.subr.mxu0 0.0
  %5060 = vmatpush1.xpose.msra.mxu0 0.0
  %5061 = vmatprep.subr.mxu0 0.0
  %5062 = vmatpush1.xpose.msra.mxu0 0.0
  %5063 = vmatprep.subr.mxu0 0.0
  %5064 = vmatpush1.xpose.msra.mxu0 0.0
  %5065 = vmatprep.subr.mxu0 0.0
  %5066 = vmatpush1.xpose.msra.mxu0 0.0
  %5067 = vmatprep.mubr.f32.mxu0 0.0
  %5068 = vmatmul.mubr.f32.gmra.mrb[0].mxu0 %v4998
  %v5069 = vpop.f32.mrb[0].mxu0
  %v5070 = vadd.f32 0.0, %v5069
  %v5071 = vpop.f32.mrb[0].mxu0
  %5072 = vdwg.mxu0
  %v5074 = vsel %vm592, %v4519, 0
  %v5077 = vsel %vm592, %v4635, 0
  %5079 = vmatprep.subr.mxu0 0.0
  %5080 = vmatpush1.xpose.msra.mxu0 %v5077
  %5081 = vmatprep.subr.mxu0 0.0
  %5082 = vmatpush1.xpose.msra.mxu0 0.0
  %5083 = vmatprep.subr.mxu0 0.0
  %5084 = vmatpush1.xpose.msra.mxu0 0.0
  %5085 = vmatprep.subr.mxu0 0.0
  %5086 = vmatpush1.xpose.msra.mxu0 0.0
  %5087 = vmatprep.subr.mxu0 0.0
  %5088 = vmatpush1.xpose.msra.mxu0 0.0
  %5089 = vmatprep.subr.mxu0 0.0
  %5090 = vmatpush1.xpose.msra.mxu0 0.0
  %5091 = vmatprep.subr.mxu0 0.0
  %5092 = vmatpush1.xpose.msra.mxu0 0.0
  %5093 = vmatprep.subr.mxu0 0.0
  %5094 = vmatpush1.xpose.msra.mxu0 0.0
  %5095 = vmatprep.subr.mxu0 0.0
  %5096 = vmatpush1.xpose.msra.mxu0 0.0
  %5097 = vmatprep.subr.mxu0 0.0
  %5098 = vmatpush1.xpose.msra.mxu0 0.0
  %5099 = vmatprep.subr.mxu0 0.0
  %5100 = vmatpush1.xpose.msra.mxu0 0.0
  %5101 = vmatprep.subr.mxu0 0.0
  %5102 = vmatpush1.xpose.msra.mxu0 0.0
  %5103 = vmatprep.subr.mxu0 0.0
  %5104 = vmatpush1.xpose.msra.mxu0 0.0
  %5105 = vmatprep.subr.mxu0 0.0
  %5106 = vmatpush1.xpose.msra.mxu0 0.0
  %5107 = vmatprep.subr.mxu0 0.0
  %5108 = vmatpush1.xpose.msra.mxu0 0.0
  %5109 = vmatprep.subr.mxu0 0.0
  %5110 = vmatpush1.xpose.msra.mxu0 0.0
  %5111 = vmatprep.subr.mxu0 0.0
  %5112 = vmatpush1.xpose.msra.mxu0 0.0
  %5113 = vmatprep.subr.mxu0 0.0
  %5114 = vmatpush1.xpose.msra.mxu0 0.0
  %5115 = vmatprep.subr.mxu0 0.0
  %5116 = vmatpush1.xpose.msra.mxu0 0.0
  %5117 = vmatprep.subr.mxu0 0.0
  %5118 = vmatpush1.xpose.msra.mxu0 0.0
  %5119 = vmatprep.subr.mxu0 0.0
  %5120 = vmatpush1.xpose.msra.mxu0 0.0
  %5121 = vmatprep.subr.mxu0 0.0
  %5122 = vmatpush1.xpose.msra.mxu0 0.0
  %5123 = vmatprep.subr.mxu0 0.0
  %5124 = vmatpush1.xpose.msra.mxu0 0.0
  %5125 = vmatprep.subr.mxu0 0.0
  %5126 = vmatpush1.xpose.msra.mxu0 0.0
  %5127 = vmatprep.subr.mxu0 0.0
  %5128 = vmatpush1.xpose.msra.mxu0 0.0
  %5129 = vmatprep.subr.mxu0 0.0
  %5130 = vmatpush1.xpose.msra.mxu0 0.0
  %5131 = vmatprep.subr.mxu0 0.0
  %5132 = vmatpush1.xpose.msra.mxu0 0.0
  %5133 = vmatprep.subr.mxu0 0.0
  %5134 = vmatpush1.xpose.msra.mxu0 0.0
  %5135 = vmatprep.subr.mxu0 0.0
  %5136 = vmatpush1.xpose.msra.mxu0 0.0
  %5137 = vmatprep.subr.mxu0 0.0
  %5138 = vmatpush1.xpose.msra.mxu0 0.0
  %5139 = vmatprep.subr.mxu0 0.0
  %5140 = vmatpush1.xpose.msra.mxu0 0.0
  %5141 = vmatprep.subr.mxu0 0.0
  %5142 = vmatpush1.xpose.msra.mxu0 0.0
  %5143 = vmatprep.mubr.f32.mxu0 0.0
  %5144 = vmatmul.mubr.f32.gmra.mrb[0].mxu0 %v5074
  %v5145 = vpop.f32.mrb[0].mxu0
  %v5146 = vadd.f32 0.0, %v5145
  %v5147 = vpop.f32.mrb[0].mxu0
  %5148 = vdwg.mxu0
  %v5150 = vsel %vm592, %v4524, 0
  %v5153 = vsel %vm592, %v4640, 0
  %5155 = vmatprep.subr.mxu0 0.0
  %5156 = vmatpush1.xpose.msra.mxu0 %v5153
  %5157 = vmatprep.subr.mxu0 0.0
  %5158 = vmatpush1.xpose.msra.mxu0 0.0
  %5159 = vmatprep.subr.mxu0 0.0
  %5160 = vmatpush1.xpose.msra.mxu0 0.0
  %5161 = vmatprep.subr.mxu0 0.0
  %5162 = vmatpush1.xpose.msra.mxu0 0.0
  %5163 = vmatprep.subr.mxu0 0.0
  %5164 = vmatpush1.xpose.msra.mxu0 0.0
  %5165 = vmatprep.subr.mxu0 0.0
  %5166 = vmatpush1.xpose.msra.mxu0 0.0
  %5167 = vmatprep.subr.mxu0 0.0
  %5168 = vmatpush1.xpose.msra.mxu0 0.0
  %5169 = vmatprep.subr.mxu0 0.0
  %5170 = vmatpush1.xpose.msra.mxu0 0.0
  %5171 = vmatprep.subr.mxu0 0.0
  %5172 = vmatpush1.xpose.msra.mxu0 0.0
  %5173 = vmatprep.subr.mxu0 0.0
  %5174 = vmatpush1.xpose.msra.mxu0 0.0
  %5175 = vmatprep.subr.mxu0 0.0
  %5176 = vmatpush1.xpose.msra.mxu0 0.0
  %5177 = vmatprep.subr.mxu0 0.0
  %5178 = vmatpush1.xpose.msra.mxu0 0.0
  %5179 = vmatprep.subr.mxu0 0.0
  %5180 = vmatpush1.xpose.msra.mxu0 0.0
  %5181 = vmatprep.subr.mxu0 0.0
  %5182 = vmatpush1.xpose.msra.mxu0 0.0
  %5183 = vmatprep.subr.mxu0 0.0
  %5184 = vmatpush1.xpose.msra.mxu0 0.0
  %5185 = vmatprep.subr.mxu0 0.0
  %5186 = vmatpush1.xpose.msra.mxu0 0.0
  %5187 = vmatprep.subr.mxu0 0.0
  %5188 = vmatpush1.xpose.msra.mxu0 0.0
  %5189 = vmatprep.subr.mxu0 0.0
  %5190 = vmatpush1.xpose.msra.mxu0 0.0
  %5191 = vmatprep.subr.mxu0 0.0
  %5192 = vmatpush1.xpose.msra.mxu0 0.0
  %5193 = vmatprep.subr.mxu0 0.0
  %5194 = vmatpush1.xpose.msra.mxu0 0.0
  %5195 = vmatprep.subr.mxu0 0.0
  %5196 = vmatpush1.xpose.msra.mxu0 0.0
  %5197 = vmatprep.subr.mxu0 0.0
  %5198 = vmatpush1.xpose.msra.mxu0 0.0
  %5199 = vmatprep.subr.mxu0 0.0
  %5200 = vmatpush1.xpose.msra.mxu0 0.0
  %5201 = vmatprep.subr.mxu0 0.0
  %5202 = vmatpush1.xpose.msra.mxu0 0.0
  %5203 = vmatprep.subr.mxu0 0.0
  %5204 = vmatpush1.xpose.msra.mxu0 0.0
  %5205 = vmatprep.subr.mxu0 0.0
  %5206 = vmatpush1.xpose.msra.mxu0 0.0
  %5207 = vmatprep.subr.mxu0 0.0
  %5208 = vmatpush1.xpose.msra.mxu0 0.0
  %5209 = vmatprep.subr.mxu0 0.0
  %5210 = vmatpush1.xpose.msra.mxu0 0.0
  %5211 = vmatprep.subr.mxu0 0.0
  %5212 = vmatpush1.xpose.msra.mxu0 0.0
  %5213 = vmatprep.subr.mxu0 0.0
  %5214 = vmatpush1.xpose.msra.mxu0 0.0
  %5215 = vmatprep.subr.mxu0 0.0
  %5216 = vmatpush1.xpose.msra.mxu0 0.0
  %5217 = vmatprep.subr.mxu0 0.0
  %5218 = vmatpush1.xpose.msra.mxu0 0.0
  %5219 = vmatprep.mubr.f32.mxu0 0.0
  %5220 = vmatmul.mubr.f32.gmra.mrb[0].mxu0 %v5150
  %v5221 = vpop.f32.mrb[0].mxu0
  %v5222 = vadd.f32 0.0, %v5221
  %v5223 = vpop.f32.mrb[0].mxu0
  %5224 = vdwg.mxu0
  %v5226 = vsel %vm592, %v4529, 0
  %v5229 = vsel %vm592, %v4645, 0
  %5231 = vmatprep.subr.mxu0 0.0
  %5232 = vmatpush1.xpose.msra.mxu0 %v5229
  %5233 = vmatprep.subr.mxu0 0.0
  %5234 = vmatpush1.xpose.msra.mxu0 0.0
  %5235 = vmatprep.subr.mxu0 0.0
  %5236 = vmatpush1.xpose.msra.mxu0 0.0
  %5237 = vmatprep.subr.mxu0 0.0
  %5238 = vmatpush1.xpose.msra.mxu0 0.0
  %5239 = vmatprep.subr.mxu0 0.0
  %5240 = vmatpush1.xpose.msra.mxu0 0.0
  %5241 = vmatprep.subr.mxu0 0.0
  %5242 = vmatpush1.xpose.msra.mxu0 0.0
  %5243 = vmatprep.subr.mxu0 0.0
  %5244 = vmatpush1.xpose.msra.mxu0 0.0
  %5245 = vmatprep.subr.mxu0 0.0
  %5246 = vmatpush1.xpose.msra.mxu0 0.0
  %5247 = vmatprep.subr.mxu0 0.0
  %5248 = vmatpush1.xpose.msra.mxu0 0.0
  %5249 = vmatprep.subr.mxu0 0.0
  %5250 = vmatpush1.xpose.msra.mxu0 0.0
  %5251 = vmatprep.subr.mxu0 0.0
  %5252 = vmatpush1.xpose.msra.mxu0 0.0
  %5253 = vmatprep.subr.mxu0 0.0
  %5254 = vmatpush1.xpose.msra.mxu0 0.0
  %5255 = vmatprep.subr.mxu0 0.0
  %5256 = vmatpush1.xpose.msra.mxu0 0.0
  %5257 = vmatprep.subr.mxu0 0.0
  %5258 = vmatpush1.xpose.msra.mxu0 0.0
  %5259 = vmatprep.subr.mxu0 0.0
  %5260 = vmatpush1.xpose.msra.mxu0 0.0
  %5261 = vmatprep.subr.mxu0 0.0
  %5262 = vmatpush1.xpose.msra.mxu0 0.0
  %5263 = vmatprep.subr.mxu0 0.0
  %5264 = vmatpush1.xpose.msra.mxu0 0.0
  %5265 = vmatprep.subr.mxu0 0.0
  %5266 = vmatpush1.xpose.msra.mxu0 0.0
  %5267 = vmatprep.subr.mxu0 0.0
  %5268 = vmatpush1.xpose.msra.mxu0 0.0
  %5269 = vmatprep.subr.mxu0 0.0
  %5270 = vmatpush1.xpose.msra.mxu0 0.0
  %5271 = vmatprep.subr.mxu0 0.0
  %5272 = vmatpush1.xpose.msra.mxu0 0.0
  %5273 = vmatprep.subr.mxu0 0.0
  %5274 = vmatpush1.xpose.msra.mxu0 0.0
  %5275 = vmatprep.subr.mxu0 0.0
  %5276 = vmatpush1.xpose.msra.mxu0 0.0
  %5277 = vmatprep.subr.mxu0 0.0
  %5278 = vmatpush1.xpose.msra.mxu0 0.0
  %5279 = vmatprep.subr.mxu0 0.0
  %5280 = vmatpush1.xpose.msra.mxu0 0.0
  %5281 = vmatprep.subr.mxu0 0.0
  %5282 = vmatpush1.xpose.msra.mxu0 0.0
  %5283 = vmatprep.subr.mxu0 0.0
  %5284 = vmatpush1.xpose.msra.mxu0 0.0
  %5285 = vmatprep.subr.mxu0 0.0
  %5286 = vmatpush1.xpose.msra.mxu0 0.0
  %5287 = vmatprep.subr.mxu0 0.0
  %5288 = vmatpush1.xpose.msra.mxu0 0.0
  %5289 = vmatprep.subr.mxu0 0.0
  %5290 = vmatpush1.xpose.msra.mxu0 0.0
  %5291 = vmatprep.subr.mxu0 0.0
  %5292 = vmatpush1.xpose.msra.mxu0 0.0
  %5293 = vmatprep.subr.mxu0 0.0
  %5294 = vmatpush1.xpose.msra.mxu0 0.0
  %5295 = vmatprep.mubr.f32.mxu0 0.0
  %5296 = vmatmul.mubr.f32.gmra.mrb[0].mxu0 %v5226
  %v5297 = vpop.f32.mrb[0].mxu0
  %v5298 = vadd.f32 0.0, %v5297
  %v5299 = vpop.f32.mrb[0].mxu0
  %5300 = vdwg.mxu0
  %v5302 = vsel %vm592, %v4534, 0
  %v5305 = vsel %vm592, %v4650, 0
  %5307 = vmatprep.subr.mxu0 0.0
  %5308 = vmatpush1.xpose.msra.mxu0 %v5305
  %5309 = vmatprep.subr.mxu0 0.0
  %5310 = vmatpush1.xpose.msra.mxu0 0.0
  %5311 = vmatprep.subr.mxu0 0.0
  %5312 = vmatpush1.xpose.msra.mxu0 0.0
  %5313 = vmatprep.subr.mxu0 0.0
  %5314 = vmatpush1.xpose.msra.mxu0 0.0
  %5315 = vmatprep.subr.mxu0 0.0
  %5316 = vmatpush1.xpose.msra.mxu0 0.0
  %5317 = vmatprep.subr.mxu0 0.0
  %5318 = vmatpush1.xpose.msra.mxu0 0.0
  %5319 = vmatprep.subr.mxu0 0.0
  %5320 = vmatpush1.xpose.msra.mxu0 0.0
  %5321 = vmatprep.subr.mxu0 0.0
  %5322 = vmatpush1.xpose.msra.mxu0 0.0
  %5323 = vmatprep.subr.mxu0 0.0
  %5324 = vmatpush1.xpose.msra.mxu0 0.0
  %5325 = vmatprep.subr.mxu0 0.0
  %5326 = vmatpush1.xpose.msra.mxu0 0.0
  %5327 = vmatprep.subr.mxu0 0.0
  %5328 = vmatpush1.xpose.msra.mxu0 0.0
  %5329 = vmatprep.subr.mxu0 0.0
  %5330 = vmatpush1.xpose.msra.mxu0 0.0
  %5331 = vmatprep.subr.mxu0 0.0
  %5332 = vmatpush1.xpose.msra.mxu0 0.0
  %5333 = vmatprep.subr.mxu0 0.0
  %5334 = vmatpush1.xpose.msra.mxu0 0.0
  %5335 = vmatprep.subr.mxu0 0.0
  %5336 = vmatpush1.xpose.msra.mxu0 0.0
  %5337 = vmatprep.subr.mxu0 0.0
  %5338 = vmatpush1.xpose.msra.mxu0 0.0
  %5339 = vmatprep.subr.mxu0 0.0
  %5340 = vmatpush1.xpose.msra.mxu0 0.0
  %5341 = vmatprep.subr.mxu0 0.0
  %5342 = vmatpush1.xpose.msra.mxu0 0.0
  %5343 = vmatprep.subr.mxu0 0.0
  %5344 = vmatpush1.xpose.msra.mxu0 0.0
  %5345 = vmatprep.subr.mxu0 0.0
  %5346 = vmatpush1.xpose.msra.mxu0 0.0
  %5347 = vmatprep.subr.mxu0 0.0
  %5348 = vmatpush1.xpose.msra.mxu0 0.0
  %5349 = vmatprep.subr.mxu0 0.0
  %5350 = vmatpush1.xpose.msra.mxu0 0.0
  %5351 = vmatprep.subr.mxu0 0.0
  %5352 = vmatpush1.xpose.msra.mxu0 0.0
  %5353 = vmatprep.subr.mxu0 0.0
  %5354 = vmatpush1.xpose.msra.mxu0 0.0
  %5355 = vmatprep.subr.mxu0 0.0
  %5356 = vmatpush1.xpose.msra.mxu0 0.0
  %5357 = vmatprep.subr.mxu0 0.0
  %5358 = vmatpush1.xpose.msra.mxu0 0.0
  %5359 = vmatprep.subr.mxu0 0.0
  %5360 = vmatpush1.xpose.msra.mxu0 0.0
  %5361 = vmatprep.subr.mxu0 0.0
  %5362 = vmatpush1.xpose.msra.mxu0 0.0
  %5363 = vmatprep.subr.mxu0 0.0
  %5364 = vmatpush1.xpose.msra.mxu0 0.0
  %5365 = vmatprep.subr.mxu0 0.0
  %5366 = vmatpush1.xpose.msra.mxu0 0.0
  %5367 = vmatprep.subr.mxu0 0.0
  %5368 = vmatpush1.xpose.msra.mxu0 0.0
  %5369 = vmatprep.subr.mxu0 0.0
  %5370 = vmatpush1.xpose.msra.mxu0 0.0
  %5371 = vmatprep.mubr.f32.mxu0 0.0
  %5372 = vmatmul.mubr.f32.gmra.mrb[0].mxu0 %v5302
  %v5373 = vpop.f32.mrb[0].mxu0
  %v5374 = vadd.f32 0.0, %v5373
  %v5375 = vpop.f32.mrb[0].mxu0
  %5376 = vdwg.mxu0
  %v5377 = vmul.f32 %v4842, 0.35355338
  %v5378 = vmul.f32 %v4918, 0.35355338
  %v5379 = vmul.f32 %v4994, 0.35355338
  %v5380 = vmul.f32 %v5070, 0.35355338
  %v5381 = vmul.f32 %v5146, 0.35355338
  %v5382 = vmul.f32 %v5222, 0.35355338
  %v5383 = vmul.f32 %v5298, 0.35355338
  %v5384 = vmul.f32 %v5374, 0.35355338
  %v5385 = vadd.f32 %v5377, %v1201
  %v5386 = vadd.f32 %v5378, %v1202
  %v5387 = vadd.f32 %v5379, %v1203
  %v5388 = vadd.f32 %v5380, %v1204
  %v5389 = vadd.f32 %v5381, %v1205
  %v5390 = vadd.f32 %v5382, %v1206
  %v5391 = vadd.f32 %v5383, %v1207
  %v5392 = vadd.f32 %v5384, %v1208
  %v5393 = vsel %vm592, %v5385, -inf
  %5394 = vmax.xlane.f32.xlu0 %v5393
  %v5395 = vpop.xlane.xlu0 %5394
  %v5396 = vsel %vm592, %v5386, -inf
  %5397 = vmax.xlane.f32.xlu0 %v5396
  %v5398 = vpop.xlane.xlu0 %5397
  %v5399 = vsel %vm592, %v5387, -inf
  %5400 = vmax.xlane.f32.xlu0 %v5399
  %v5401 = vpop.xlane.xlu0 %5400
  %v5402 = vsel %vm592, %v5388, -inf
  %5403 = vmax.xlane.f32.xlu0 %v5402
  %v5404 = vpop.xlane.xlu0 %5403
  %v5405 = vsel %vm592, %v5389, -inf
  %5406 = vmax.xlane.f32.xlu0 %v5405
  %v5407 = vpop.xlane.xlu0 %5406
  %v5408 = vsel %vm592, %v5390, -inf
  %5409 = vmax.xlane.f32.xlu0 %v5408
  %v5410 = vpop.xlane.xlu0 %5409
  %v5411 = vsel %vm592, %v5391, -inf
  %5412 = vmax.xlane.f32.xlu0 %v5411
  %v5413 = vpop.xlane.xlu0 %5412
  %v5414 = vsel %vm592, %v5392, -inf
  %5415 = vmax.xlane.f32.xlu0 %v5414
  %v5416 = vpop.xlane.xlu0 %5415
  %v5417 = vsub.f32 %v5385, %v5395
  %v5418 = vsub.f32 %v5386, %v5398
  %v5419 = vsub.f32 %v5387, %v5401
  %v5420 = vsub.f32 %v5388, %v5404
  %v5421 = vsub.f32 %v5389, %v5407
  %v5422 = vsub.f32 %v5390, %v5410
  %v5423 = vsub.f32 %v5391, %v5413
  %v5424 = vsub.f32 %v5392, %v5416
  %v5425 = vmul.f32 %v5417, 1.442695
  %v5426 = vpow.pop %v5425
  %v5427 = vmul.f32 %v5418, 1.442695
  %v5428 = vpow.pop %v5427
  %v5429 = vmul.f32 %v5419, 1.442695
  %v5430 = vpow.pop %v5429
  %v5431 = vmul.f32 %v5420, 1.442695
  %v5432 = vpow.pop %v5431
  %v5433 = vmul.f32 %v5421, 1.442695
  %v5434 = vpow.pop %v5433
  %v5435 = vmul.f32 %v5422, 1.442695
  %v5436 = vpow.pop %v5435
  %v5437 = vmul.f32 %v5423, 1.442695
  %v5438 = vpow.pop %v5437
  %v5439 = vmul.f32 %v5424, 1.442695
  %v5440 = vpow.pop %v5439
  %v5441 = vsel %vm592, %v5426, 0.0
  %5442 = vadd.xlane.f32.xlu0 %v5441
  %v5443 = vpop.xlane.xlu0 %5442
  %v5444 = vsel %vm592, %v5428, 0.0
  %5445 = vadd.xlane.f32.xlu0 %v5444
  %v5446 = vpop.xlane.xlu0 %5445
  %v5447 = vsel %vm592, %v5430, 0.0
  %5448 = vadd.xlane.f32.xlu0 %v5447
  %v5449 = vpop.xlane.xlu0 %5448
  %v5450 = vsel %vm592, %v5432, 0.0
  %5451 = vadd.xlane.f32.xlu0 %v5450
  %v5452 = vpop.xlane.xlu0 %5451
  %v5453 = vsel %vm592, %v5434, 0.0
  %5454 = vadd.xlane.f32.xlu0 %v5453
  %v5455 = vpop.xlane.xlu0 %5454
  %v5456 = vsel %vm592, %v5436, 0.0
  %5457 = vadd.xlane.f32.xlu0 %v5456
  %v5458 = vpop.xlane.xlu0 %5457
  %v5459 = vsel %vm592, %v5438, 0.0
  %5460 = vadd.xlane.f32.xlu0 %v5459
  %v5461 = vpop.xlane.xlu0 %5460
  %v5462 = vsel %vm592, %v5440, 0.0
  %5463 = vadd.xlane.f32.xlu0 %v5462
  %v5464 = vpop.xlane.xlu0 %5463
  %v5465 = vrcp.pop %v5443
  %v5466 = vrcp.pop %v5446
  %v5467 = vrcp.pop %v5449
  %v5468 = vrcp.pop %v5452
  %v5469 = vrcp.pop %v5455
  %v5470 = vrcp.pop %v5458
  %v5471 = vrcp.pop %v5461
  %v5472 = vrcp.pop %v5464
  %v5473 = vmul.f32 %v5426, %v5465
  %v5474 = vmul.f32 %v5428, %v5466
  %v5475 = vmul.f32 %v5430, %v5467
  %v5476 = vmul.f32 %v5432, %v5468
  %v5477 = vmul.f32 %v5434, %v5469
  %v5478 = vmul.f32 %v5436, %v5470
  %v5479 = vmul.f32 %v5438, %v5471
  %v5480 = vmul.f32 %v5440, %v5472
  %v5482 = vsel %vm592, %v5473, 0
  %5484 = vmatprep.subr.mxu0 0.0
  %5485 = vmatpush1.msra.mxu0 %v4731
  %5486 = vmatprep.subr.mxu0 0.0
  %5487 = vmatpush1.msra.mxu0 0.0
  %5488 = vmatprep.subr.mxu0 0.0
  %5489 = vmatpush1.msra.mxu0 0.0
  %5490 = vmatprep.subr.mxu0 0.0
  %5491 = vmatpush1.msra.mxu0 0.0
  %5492 = vmatprep.subr.mxu0 0.0
  %5493 = vmatpush1.msra.mxu0 0.0
  %5494 = vmatprep.subr.mxu0 0.0
  %5495 = vmatpush1.msra.mxu0 0.0
  %5496 = vmatprep.subr.mxu0 0.0
  %5497 = vmatpush1.msra.mxu0 0.0
  %5498 = vmatprep.subr.mxu0 0.0
  %5499 = vmatpush1.msra.mxu0 0.0
  %5500 = vmatprep.subr.mxu0 0.0
  %5501 = vmatpush1.msra.mxu0 0.0
  %5502 = vmatprep.subr.mxu0 0.0
  %5503 = vmatpush1.msra.mxu0 0.0
  %5504 = vmatprep.subr.mxu0 0.0
  %5505 = vmatpush1.msra.mxu0 0.0
  %5506 = vmatprep.subr.mxu0 0.0
  %5507 = vmatpush1.msra.mxu0 0.0
  %5508 = vmatprep.subr.mxu0 0.0
  %5509 = vmatpush1.msra.mxu0 0.0
  %5510 = vmatprep.subr.mxu0 0.0
  %5511 = vmatpush1.msra.mxu0 0.0
  %5512 = vmatprep.subr.mxu0 0.0
  %5513 = vmatpush1.msra.mxu0 0.0
  %5514 = vmatprep.subr.mxu0 0.0
  %5515 = vmatpush1.msra.mxu0 0.0
  %5516 = vmatprep.subr.mxu0 0.0
  %5517 = vmatpush1.msra.mxu0 0.0
  %5518 = vmatprep.subr.mxu0 0.0
  %5519 = vmatpush1.msra.mxu0 0.0
  %5520 = vmatprep.subr.mxu0 0.0
  %5521 = vmatpush1.msra.mxu0 0.0
  %5522 = vmatprep.subr.mxu0 0.0
  %5523 = vmatpush1.msra.mxu0 0.0
  %5524 = vmatprep.subr.mxu0 0.0
  %5525 = vmatpush1.msra.mxu0 0.0
  %5526 = vmatprep.subr.mxu0 0.0
  %5527 = vmatpush1.msra.mxu0 0.0
  %5528 = vmatprep.subr.mxu0 0.0
  %5529 = vmatpush1.msra.mxu0 0.0
  %5530 = vmatprep.subr.mxu0 0.0
  %5531 = vmatpush1.msra.mxu0 0.0
  %5532 = vmatprep.subr.mxu0 0.0
  %5533 = vmatpush1.msra.mxu0 0.0
  %5534 = vmatprep.subr.mxu0 0.0
  %5535 = vmatpush1.msra.mxu0 0.0
  %5536 = vmatprep.subr.mxu0 0.0
  %5537 = vmatpush1.msra.mxu0 0.0
  %5538 = vmatprep.subr.mxu0 0.0
  %5539 = vmatpush1.msra.mxu0 0.0
  %5540 = vmatprep.subr.mxu0 0.0
  %5541 = vmatpush1.msra.mxu0 0.0
  %5542 = vmatprep.subr.mxu0 0.0
  %5543 = vmatpush1.msra.mxu0 0.0
  %5544 = vmatprep.subr.mxu0 0.0
  %5545 = vmatpush1.msra.mxu0 0.0
  %5546 = vmatprep.subr.mxu0 0.0
  %5547 = vmatpush1.msra.mxu0 0.0
  %5548 = vmatprep.mubr.f32.mxu0 0.0
  %5549 = vmatmul.mubr.f32.gmra.mrb[0].mxu0 %v5482
  %v5550 = vpop.f32.mrb[0].mxu0
  %v5551 = vadd.f32 0.0, %v5550
  %v5552 = vpop.f32.mrb[0].mxu0
  %5553 = vdwg.mxu0
  %v5555 = vsel %vm592, %v5474, 0
  %5557 = vmatprep.subr.mxu0 0.0
  %5558 = vmatpush1.msra.mxu0 %v4736
  %5559 = vmatprep.subr.mxu0 0.0
  %5560 = vmatpush1.msra.mxu0 0.0
  %5561 = vmatprep.subr.mxu0 0.0
  %5562 = vmatpush1.msra.mxu0 0.0
  %5563 = vmatprep.subr.mxu0 0.0
  %5564 = vmatpush1.msra.mxu0 0.0
  %5565 = vmatprep.subr.mxu0 0.0
  %5566 = vmatpush1.msra.mxu0 0.0
  %5567 = vmatprep.subr.mxu0 0.0
  %5568 = vmatpush1.msra.mxu0 0.0
  %5569 = vmatprep.subr.mxu0 0.0
  %5570 = vmatpush1.msra.mxu0 0.0
  %5571 = vmatprep.subr.mxu0 0.0
  %5572 = vmatpush1.msra.mxu0 0.0
  %5573 = vmatprep.subr.mxu0 0.0
  %5574 = vmatpush1.msra.mxu0 0.0
  %5575 = vmatprep.subr.mxu0 0.0
  %5576 = vmatpush1.msra.mxu0 0.0
  %5577 = vmatprep.subr.mxu0 0.0
  %5578 = vmatpush1.msra.mxu0 0.0
  %5579 = vmatprep.subr.mxu0 0.0
  %5580 = vmatpush1.msra.mxu0 0.0
  %5581 = vmatprep.subr.mxu0 0.0
  %5582 = vmatpush1.msra.mxu0 0.0
  %5583 = vmatprep.subr.mxu0 0.0
  %5584 = vmatpush1.msra.mxu0 0.0
  %5585 = vmatprep.subr.mxu0 0.0
  %5586 = vmatpush1.msra.mxu0 0.0
  %5587 = vmatprep.subr.mxu0 0.0
  %5588 = vmatpush1.msra.mxu0 0.0
  %5589 = vmatprep.subr.mxu0 0.0
  %5590 = vmatpush1.msra.mxu0 0.0
  %5591 = vmatprep.subr.mxu0 0.0
  %5592 = vmatpush1.msra.mxu0 0.0
  %5593 = vmatprep.subr.mxu0 0.0
  %5594 = vmatpush1.msra.mxu0 0.0
  %5595 = vmatprep.subr.mxu0 0.0
  %5596 = vmatpush1.msra.mxu0 0.0
  %5597 = vmatprep.subr.mxu0 0.0
  %5598 = vmatpush1.msra.mxu0 0.0
  %5599 = vmatprep.subr.mxu0 0.0
  %5600 = vmatpush1.msra.mxu0 0.0
  %5601 = vmatprep.subr.mxu0 0.0
  %5602 = vmatpush1.msra.mxu0 0.0
  %5603 = vmatprep.subr.mxu0 0.0
  %5604 = vmatpush1.msra.mxu0 0.0
  %5605 = vmatprep.subr.mxu0 0.0
  %5606 = vmatpush1.msra.mxu0 0.0
  %5607 = vmatprep.subr.mxu0 0.0
  %5608 = vmatpush1.msra.mxu0 0.0
  %5609 = vmatprep.subr.mxu0 0.0
  %5610 = vmatpush1.msra.mxu0 0.0
  %5611 = vmatprep.subr.mxu0 0.0
  %5612 = vmatpush1.msra.mxu0 0.0
  %5613 = vmatprep.subr.mxu0 0.0
  %5614 = vmatpush1.msra.mxu0 0.0
  %5615 = vmatprep.subr.mxu0 0.0
  %5616 = vmatpush1.msra.mxu0 0.0
  %5617 = vmatprep.subr.mxu0 0.0
  %5618 = vmatpush1.msra.mxu0 0.0
  %5619 = vmatprep.subr.mxu0 0.0
  %5620 = vmatpush1.msra.mxu0 0.0
  %5621 = vmatprep.mubr.f32.mxu0 0.0
  %5622 = vmatmul.mubr.f32.gmra.mrb[0].mxu0 %v5555
  %v5623 = vpop.f32.mrb[0].mxu0
  %v5624 = vadd.f32 0.0, %v5623
  %v5625 = vpop.f32.mrb[0].mxu0
  %5626 = vdwg.mxu0
  %v5628 = vsel %vm592, %v5475, 0
  %5630 = vmatprep.subr.mxu0 0.0
  %5631 = vmatpush1.msra.mxu0 %v4741
  %5632 = vmatprep.subr.mxu0 0.0
  %5633 = vmatpush1.msra.mxu0 0.0
  %5634 = vmatprep.subr.mxu0 0.0
  %5635 = vmatpush1.msra.mxu0 0.0
  %5636 = vmatprep.subr.mxu0 0.0
  %5637 = vmatpush1.msra.mxu0 0.0
  %5638 = vmatprep.subr.mxu0 0.0
  %5639 = vmatpush1.msra.mxu0 0.0
  %5640 = vmatprep.subr.mxu0 0.0
  %5641 = vmatpush1.msra.mxu0 0.0
  %5642 = vmatprep.subr.mxu0 0.0
  %5643 = vmatpush1.msra.mxu0 0.0
  %5644 = vmatprep.subr.mxu0 0.0
  %5645 = vmatpush1.msra.mxu0 0.0
  %5646 = vmatprep.subr.mxu0 0.0
  %5647 = vmatpush1.msra.mxu0 0.0
  %5648 = vmatprep.subr.mxu0 0.0
  %5649 = vmatpush1.msra.mxu0 0.0
  %5650 = vmatprep.subr.mxu0 0.0
  %5651 = vmatpush1.msra.mxu0 0.0
  %5652 = vmatprep.subr.mxu0 0.0
  %5653 = vmatpush1.msra.mxu0 0.0
  %5654 = vmatprep.subr.mxu0 0.0
  %5655 = vmatpush1.msra.mxu0 0.0
  %5656 = vmatprep.subr.mxu0 0.0
  %5657 = vmatpush1.msra.mxu0 0.0
  %5658 = vmatprep.subr.mxu0 0.0
  %5659 = vmatpush1.msra.mxu0 0.0
  %5660 = vmatprep.subr.mxu0 0.0
  %5661 = vmatpush1.msra.mxu0 0.0
  %5662 = vmatprep.subr.mxu0 0.0
  %5663 = vmatpush1.msra.mxu0 0.0
  %5664 = vmatprep.subr.mxu0 0.0
  %5665 = vmatpush1.msra.mxu0 0.0
  %5666 = vmatprep.subr.mxu0 0.0
  %5667 = vmatpush1.msra.mxu0 0.0
  %5668 = vmatprep.subr.mxu0 0.0
  %5669 = vmatpush1.msra.mxu0 0.0
  %5670 = vmatprep.subr.mxu0 0.0
  %5671 = vmatpush1.msra.mxu0 0.0
  %5672 = vmatprep.subr.mxu0 0.0
  %5673 = vmatpush1.msra.mxu0 0.0
  %5674 = vmatprep.subr.mxu0 0.0
  %5675 = vmatpush1.msra.mxu0 0.0
  %5676 = vmatprep.subr.mxu0 0.0
  %5677 = vmatpush1.msra.mxu0 0.0
  %5678 = vmatprep.subr.mxu0 0.0
  %5679 = vmatpush1.msra.mxu0 0.0
  %5680 = vmatprep.subr.mxu0 0.0
  %5681 = vmatpush1.msra.mxu0 0.0
  %5682 = vmatprep.subr.mxu0 0.0
  %5683 = vmatpush1.msra.mxu0 0.0
  %5684 = vmatprep.subr.mxu0 0.0
  %5685 = vmatpush1.msra.mxu0 0.0
  %5686 = vmatprep.subr.mxu0 0.0
  %5687 = vmatpush1.msra.mxu0 0.0
  %5688 = vmatprep.subr.mxu0 0.0
  %5689 = vmatpush1.msra.mxu0 0.0
  %5690 = vmatprep.subr.mxu0 0.0
  %5691 = vmatpush1.msra.mxu0 0.0
  %5692 = vmatprep.subr.mxu0 0.0
  %5693 = vmatpush1.msra.mxu0 0.0
  %5694 = vmatprep.mubr.f32.mxu0 0.0
  %5695 = vmatmul.mubr.f32.gmra.mrb[0].mxu0 %v5628
  %v5696 = vpop.f32.mrb[0].mxu0
  %v5697 = vadd.f32 0.0, %v5696
  %v5698 = vpop.f32.mrb[0].mxu0
  %5699 = vdwg.mxu0
  %v5701 = vsel %vm592, %v5476, 0
  %5703 = vmatprep.subr.mxu0 0.0
  %5704 = vmatpush1.msra.mxu0 %v4746
  %5705 = vmatprep.subr.mxu0 0.0
  %5706 = vmatpush1.msra.mxu0 0.0
  %5707 = vmatprep.subr.mxu0 0.0
  %5708 = vmatpush1.msra.mxu0 0.0
  %5709 = vmatprep.subr.mxu0 0.0
  %5710 = vmatpush1.msra.mxu0 0.0
  %5711 = vmatprep.subr.mxu0 0.0
  %5712 = vmatpush1.msra.mxu0 0.0
  %5713 = vmatprep.subr.mxu0 0.0
  %5714 = vmatpush1.msra.mxu0 0.0
  %5715 = vmatprep.subr.mxu0 0.0
  %5716 = vmatpush1.msra.mxu0 0.0
  %5717 = vmatprep.subr.mxu0 0.0
  %5718 = vmatpush1.msra.mxu0 0.0
  %5719 = vmatprep.subr.mxu0 0.0
  %5720 = vmatpush1.msra.mxu0 0.0
  %5721 = vmatprep.subr.mxu0 0.0
  %5722 = vmatpush1.msra.mxu0 0.0
  %5723 = vmatprep.subr.mxu0 0.0
  %5724 = vmatpush1.msra.mxu0 0.0
  %5725 = vmatprep.subr.mxu0 0.0
  %5726 = vmatpush1.msra.mxu0 0.0
  %5727 = vmatprep.subr.mxu0 0.0
  %5728 = vmatpush1.msra.mxu0 0.0
  %5729 = vmatprep.subr.mxu0 0.0
  %5730 = vmatpush1.msra.mxu0 0.0
  %5731 = vmatprep.subr.mxu0 0.0
  %5732 = vmatpush1.msra.mxu0 0.0
  %5733 = vmatprep.subr.mxu0 0.0
  %5734 = vmatpush1.msra.mxu0 0.0
  %5735 = vmatprep.subr.mxu0 0.0
  %5736 = vmatpush1.msra.mxu0 0.0
  %5737 = vmatprep.subr.mxu0 0.0
  %5738 = vmatpush1.msra.mxu0 0.0
  %5739 = vmatprep.subr.mxu0 0.0
  %5740 = vmatpush1.msra.mxu0 0.0
  %5741 = vmatprep.subr.mxu0 0.0
  %5742 = vmatpush1.msra.mxu0 0.0
  %5743 = vmatprep.subr.mxu0 0.0
  %5744 = vmatpush1.msra.mxu0 0.0
  %5745 = vmatprep.subr.mxu0 0.0
  %5746 = vmatpush1.msra.mxu0 0.0
  %5747 = vmatprep.subr.mxu0 0.0
  %5748 = vmatpush1.msra.mxu0 0.0
  %5749 = vmatprep.subr.mxu0 0.0
  %5750 = vmatpush1.msra.mxu0 0.0
  %5751 = vmatprep.subr.mxu0 0.0
  %5752 = vmatpush1.msra.mxu0 0.0
  %5753 = vmatprep.subr.mxu0 0.0
  %5754 = vmatpush1.msra.mxu0 0.0
  %5755 = vmatprep.subr.mxu0 0.0
  %5756 = vmatpush1.msra.mxu0 0.0
  %5757 = vmatprep.subr.mxu0 0.0
  %5758 = vmatpush1.msra.mxu0 0.0
  %5759 = vmatprep.subr.mxu0 0.0
  %5760 = vmatpush1.msra.mxu0 0.0
  %5761 = vmatprep.subr.mxu0 0.0
  %5762 = vmatpush1.msra.mxu0 0.0
  %5763 = vmatprep.subr.mxu0 0.0
  %5764 = vmatpush1.msra.mxu0 0.0
  %5765 = vmatprep.subr.mxu0 0.0
  %5766 = vmatpush1.msra.mxu0 0.0
  %5767 = vmatprep.mubr.f32.mxu0 0.0
  %5768 = vmatmul.mubr.f32.gmra.mrb[0].mxu0 %v5701
  %v5769 = vpop.f32.mrb[0].mxu0
  %v5770 = vadd.f32 0.0, %v5769
  %v5771 = vpop.f32.mrb[0].mxu0
  %5772 = vdwg.mxu0
  %v5774 = vsel %vm592, %v5477, 0
  %5776 = vmatprep.subr.mxu0 0.0
  %5777 = vmatpush1.msra.mxu0 %v4751
  %5778 = vmatprep.subr.mxu0 0.0
  %5779 = vmatpush1.msra.mxu0 0.0
  %5780 = vmatprep.subr.mxu0 0.0
  %5781 = vmatpush1.msra.mxu0 0.0
  %5782 = vmatprep.subr.mxu0 0.0
  %5783 = vmatpush1.msra.mxu0 0.0
  %5784 = vmatprep.subr.mxu0 0.0
  %5785 = vmatpush1.msra.mxu0 0.0
  %5786 = vmatprep.subr.mxu0 0.0
  %5787 = vmatpush1.msra.mxu0 0.0
  %5788 = vmatprep.subr.mxu0 0.0
  %5789 = vmatpush1.msra.mxu0 0.0
  %5790 = vmatprep.subr.mxu0 0.0
  %5791 = vmatpush1.msra.mxu0 0.0
  %5792 = vmatprep.subr.mxu0 0.0
  %5793 = vmatpush1.msra.mxu0 0.0
  %5794 = vmatprep.subr.mxu0 0.0
  %5795 = vmatpush1.msra.mxu0 0.0
  %5796 = vmatprep.subr.mxu0 0.0
  %5797 = vmatpush1.msra.mxu0 0.0
  %5798 = vmatprep.subr.mxu0 0.0
  %5799 = vmatpush1.msra.mxu0 0.0
  %5800 = vmatprep.subr.mxu0 0.0
  %5801 = vmatpush1.msra.mxu0 0.0
  %5802 = vmatprep.subr.mxu0 0.0
  %5803 = vmatpush1.msra.mxu0 0.0
  %5804 = vmatprep.subr.mxu0 0.0
  %5805 = vmatpush1.msra.mxu0 0.0
  %5806 = vmatprep.subr.mxu0 0.0
  %5807 = vmatpush1.msra.mxu0 0.0
  %5808 = vmatprep.subr.mxu0 0.0
  %5809 = vmatpush1.msra.mxu0 0.0
  %5810 = vmatprep.subr.mxu0 0.0
  %5811 = vmatpush1.msra.mxu0 0.0
  %5812 = vmatprep.subr.mxu0 0.0
  %5813 = vmatpush1.msra.mxu0 0.0
  %5814 = vmatprep.subr.mxu0 0.0
  %5815 = vmatpush1.msra.mxu0 0.0
  %5816 = vmatprep.subr.mxu0 0.0
  %5817 = vmatpush1.msra.mxu0 0.0
  %5818 = vmatprep.subr.mxu0 0.0
  %5819 = vmatpush1.msra.mxu0 0.0
  %5820 = vmatprep.subr.mxu0 0.0
  %5821 = vmatpush1.msra.mxu0 0.0
  %5822 = vmatprep.subr.mxu0 0.0
  %5823 = vmatpush1.msra.mxu0 0.0
  %5824 = vmatprep.subr.mxu0 0.0
  %5825 = vmatpush1.msra.mxu0 0.0
  %5826 = vmatprep.subr.mxu0 0.0
  %5827 = vmatpush1.msra.mxu0 0.0
  %5828 = vmatprep.subr.mxu0 0.0
  %5829 = vmatpush1.msra.mxu0 0.0
  %5830 = vmatprep.subr.mxu0 0.0
  %5831 = vmatpush1.msra.mxu0 0.0
  %5832 = vmatprep.subr.mxu0 0.0
  %5833 = vmatpush1.msra.mxu0 0.0
  %5834 = vmatprep.subr.mxu0 0.0
  %5835 = vmatpush1.msra.mxu0 0.0
  %5836 = vmatprep.subr.mxu0 0.0
  %5837 = vmatpush1.msra.mxu0 0.0
  %5838 = vmatprep.subr.mxu0 0.0
  %5839 = vmatpush1.msra.mxu0 0.0
  %5840 = vmatprep.mubr.f32.mxu0 0.0
  %5841 = vmatmul.mubr.f32.gmra.mrb[0].mxu0 %v5774
  %v5842 = vpop.f32.mrb[0].mxu0
  %v5843 = vadd.f32 0.0, %v5842
  %v5844 = vpop.f32.mrb[0].mxu0
  %5845 = vdwg.mxu0
  %v5847 = vsel %vm592, %v5478, 0
  %5849 = vmatprep.subr.mxu0 0.0
  %5850 = vmatpush1.msra.mxu0 %v4756
  %5851 = vmatprep.subr.mxu0 0.0
  %5852 = vmatpush1.msra.mxu0 0.0
  %5853 = vmatprep.subr.mxu0 0.0
  %5854 = vmatpush1.msra.mxu0 0.0
  %5855 = vmatprep.subr.mxu0 0.0
  %5856 = vmatpush1.msra.mxu0 0.0
  %5857 = vmatprep.subr.mxu0 0.0
  %5858 = vmatpush1.msra.mxu0 0.0
  %5859 = vmatprep.subr.mxu0 0.0
  %5860 = vmatpush1.msra.mxu0 0.0
  %5861 = vmatprep.subr.mxu0 0.0
  %5862 = vmatpush1.msra.mxu0 0.0
  %5863 = vmatprep.subr.mxu0 0.0
  %5864 = vmatpush1.msra.mxu0 0.0
  %5865 = vmatprep.subr.mxu0 0.0
  %5866 = vmatpush1.msra.mxu0 0.0
  %5867 = vmatprep.subr.mxu0 0.0
  %5868 = vmatpush1.msra.mxu0 0.0
  %5869 = vmatprep.subr.mxu0 0.0
  %5870 = vmatpush1.msra.mxu0 0.0
  %5871 = vmatprep.subr.mxu0 0.0
  %5872 = vmatpush1.msra.mxu0 0.0
  %5873 = vmatprep.subr.mxu0 0.0
  %5874 = vmatpush1.msra.mxu0 0.0
  %5875 = vmatprep.subr.mxu0 0.0
  %5876 = vmatpush1.msra.mxu0 0.0
  %5877 = vmatprep.subr.mxu0 0.0
  %5878 = vmatpush1.msra.mxu0 0.0
  %5879 = vmatprep.subr.mxu0 0.0
  %5880 = vmatpush1.msra.mxu0 0.0
  %5881 = vmatprep.subr.mxu0 0.0
  %5882 = vmatpush1.msra.mxu0 0.0
  %5883 = vmatprep.subr.mxu0 0.0
  %5884 = vmatpush1.msra.mxu0 0.0
  %5885 = vmatprep.subr.mxu0 0.0
  %5886 = vmatpush1.msra.mxu0 0.0
  %5887 = vmatprep.subr.mxu0 0.0
  %5888 = vmatpush1.msra.mxu0 0.0
  %5889 = vmatprep.subr.mxu0 0.0
  %5890 = vmatpush1.msra.mxu0 0.0
  %5891 = vmatprep.subr.mxu0 0.0
  %5892 = vmatpush1.msra.mxu0 0.0
  %5893 = vmatprep.subr.mxu0 0.0
  %5894 = vmatpush1.msra.mxu0 0.0
  %5895 = vmatprep.subr.mxu0 0.0
  %5896 = vmatpush1.msra.mxu0 0.0
  %5897 = vmatprep.subr.mxu0 0.0
  %5898 = vmatpush1.msra.mxu0 0.0
  %5899 = vmatprep.subr.mxu0 0.0
  %5900 = vmatpush1.msra.mxu0 0.0
  %5901 = vmatprep.subr.mxu0 0.0
  %5902 = vmatpush1.msra.mxu0 0.0
  %5903 = vmatprep.subr.mxu0 0.0
  %5904 = vmatpush1.msra.mxu0 0.0
  %5905 = vmatprep.subr.mxu0 0.0
  %5906 = vmatpush1.msra.mxu0 0.0
  %5907 = vmatprep.subr.mxu0 0.0
  %5908 = vmatpush1.msra.mxu0 0.0
  %5909 = vmatprep.subr.mxu0 0.0
  %5910 = vmatpush1.msra.mxu0 0.0
  %5911 = vmatprep.subr.mxu0 0.0
  %5912 = vmatpush1.msra.mxu0 0.0
  %5913 = vmatprep.mubr.f32.mxu0 0.0
  %5914 = vmatmul.mubr.f32.gmra.mrb[0].mxu0 %v5847
  %v5915 = vpop.f32.mrb[0].mxu0
  %v5916 = vadd.f32 0.0, %v5915
  %v5917 = vpop.f32.mrb[0].mxu0
  %5918 = vdwg.mxu0
  %v5920 = vsel %vm592, %v5479, 0
  %5922 = vmatprep.subr.mxu0 0.0
  %5923 = vmatpush1.msra.mxu0 %v4761
  %5924 = vmatprep.subr.mxu0 0.0
  %5925 = vmatpush1.msra.mxu0 0.0
  %5926 = vmatprep.subr.mxu0 0.0
  %5927 = vmatpush1.msra.mxu0 0.0
  %5928 = vmatprep.subr.mxu0 0.0
  %5929 = vmatpush1.msra.mxu0 0.0
  %5930 = vmatprep.subr.mxu0 0.0
  %5931 = vmatpush1.msra.mxu0 0.0
  %5932 = vmatprep.subr.mxu0 0.0
  %5933 = vmatpush1.msra.mxu0 0.0
  %5934 = vmatprep.subr.mxu0 0.0
  %5935 = vmatpush1.msra.mxu0 0.0
  %5936 = vmatprep.subr.mxu0 0.0
  %5937 = vmatpush1.msra.mxu0 0.0
  %5938 = vmatprep.subr.mxu0 0.0
  %5939 = vmatpush1.msra.mxu0 0.0
  %5940 = vmatprep.subr.mxu0 0.0
  %5941 = vmatpush1.msra.mxu0 0.0
  %5942 = vmatprep.subr.mxu0 0.0
  %5943 = vmatpush1.msra.mxu0 0.0
  %5944 = vmatprep.subr.mxu0 0.0
  %5945 = vmatpush1.msra.mxu0 0.0
  %5946 = vmatprep.subr.mxu0 0.0
  %5947 = vmatpush1.msra.mxu0 0.0
  %5948 = vmatprep.subr.mxu0 0.0
  %5949 = vmatpush1.msra.mxu0 0.0
  %5950 = vmatprep.subr.mxu0 0.0
  %5951 = vmatpush1.msra.mxu0 0.0
  %5952 = vmatprep.subr.mxu0 0.0
  %5953 = vmatpush1.msra.mxu0 0.0
  %5954 = vmatprep.subr.mxu0 0.0
  %5955 = vmatpush1.msra.mxu0 0.0
  %5956 = vmatprep.subr.mxu0 0.0
  %5957 = vmatpush1.msra.mxu0 0.0
  %5958 = vmatprep.subr.mxu0 0.0
  %5959 = vmatpush1.msra.mxu0 0.0
  %5960 = vmatprep.subr.mxu0 0.0
  %5961 = vmatpush1.msra.mxu0 0.0
  %5962 = vmatprep.subr.mxu0 0.0
  %5963 = vmatpush1.msra.mxu0 0.0
  %5964 = vmatprep.subr.mxu0 0.0
  %5965 = vmatpush1.msra.mxu0 0.0
  %5966 = vmatprep.subr.mxu0 0.0
  %5967 = vmatpush1.msra.mxu0 0.0
  %5968 = vmatprep.subr.mxu0 0.0
  %5969 = vmatpush1.msra.mxu0 0.0
  %5970 = vmatprep.subr.mxu0 0.0
  %5971 = vmatpush1.msra.mxu0 0.0
  %5972 = vmatprep.subr.mxu0 0.0
  %5973 = vmatpush1.msra.mxu0 0.0
  %5974 = vmatprep.subr.mxu0 0.0
  %5975 = vmatpush1.msra.mxu0 0.0
  %5976 = vmatprep.subr.mxu0 0.0
  %5977 = vmatpush1.msra.mxu0 0.0
  %5978 = vmatprep.subr.mxu0 0.0
  %5979 = vmatpush1.msra.mxu0 0.0
  %5980 = vmatprep.subr.mxu0 0.0
  %5981 = vmatpush1.msra.mxu0 0.0
  %5982 = vmatprep.subr.mxu0 0.0
  %5983 = vmatpush1.msra.mxu0 0.0
  %5984 = vmatprep.subr.mxu0 0.0
  %5985 = vmatpush1.msra.mxu0 0.0
  %5986 = vmatprep.mubr.f32.mxu0 0.0
  %5987 = vmatmul.mubr.f32.gmra.mrb[0].mxu0 %v5920
  %v5988 = vpop.f32.mrb[0].mxu0
  %v5989 = vadd.f32 0.0, %v5988
  %v5990 = vpop.f32.mrb[0].mxu0
  %5991 = vdwg.mxu0
  %v5993 = vsel %vm592, %v5480, 0
  %5995 = vmatprep.subr.mxu0 0.0
  %5996 = vmatpush1.msra.mxu0 %v4766
  %5997 = vmatprep.subr.mxu0 0.0
  %5998 = vmatpush1.msra.mxu0 0.0
  %5999 = vmatprep.subr.mxu0 0.0
  %6000 = vmatpush1.msra.mxu0 0.0
  %6001 = vmatprep.subr.mxu0 0.0
  %6002 = vmatpush1.msra.mxu0 0.0
  %6003 = vmatprep.subr.mxu0 0.0
  %6004 = vmatpush1.msra.mxu0 0.0
  %6005 = vmatprep.subr.mxu0 0.0
  %6006 = vmatpush1.msra.mxu0 0.0
  %6007 = vmatprep.subr.mxu0 0.0
  %6008 = vmatpush1.msra.mxu0 0.0
  %6009 = vmatprep.subr.mxu0 0.0
  %6010 = vmatpush1.msra.mxu0 0.0
  %6011 = vmatprep.subr.mxu0 0.0
  %6012 = vmatpush1.msra.mxu0 0.0
  %6013 = vmatprep.subr.mxu0 0.0
  %6014 = vmatpush1.msra.mxu0 0.0
  %6015 = vmatprep.subr.mxu0 0.0
  %6016 = vmatpush1.msra.mxu0 0.0
  %6017 = vmatprep.subr.mxu0 0.0
  %6018 = vmatpush1.msra.mxu0 0.0
  %6019 = vmatprep.subr.mxu0 0.0
  %6020 = vmatpush1.msra.mxu0 0.0
  %6021 = vmatprep.subr.mxu0 0.0
  %6022 = vmatpush1.msra.mxu0 0.0
  %6023 = vmatprep.subr.mxu0 0.0
  %6024 = vmatpush1.msra.mxu0 0.0
  %6025 = vmatprep.subr.mxu0 0.0
  %6026 = vmatpush1.msra.mxu0 0.0
  %6027 = vmatprep.subr.mxu0 0.0
  %6028 = vmatpush1.msra.mxu0 0.0
  %6029 = vmatprep.subr.mxu0 0.0
  %6030 = vmatpush1.msra.mxu0 0.0
  %6031 = vmatprep.subr.mxu0 0.0
  %6032 = vmatpush1.msra.mxu0 0.0
  %6033 = vmatprep.subr.mxu0 0.0
  %6034 = vmatpush1.msra.mxu0 0.0
  %6035 = vmatprep.subr.mxu0 0.0
  %6036 = vmatpush1.msra.mxu0 0.0
  %6037 = vmatprep.subr.mxu0 0.0
  %6038 = vmatpush1.msra.mxu0 0.0
  %6039 = vmatprep.subr.mxu0 0.0
  %6040 = vmatpush1.msra.mxu0 0.0
  %6041 = vmatprep.subr.mxu0 0.0
  %6042 = vmatpush1.msra.mxu0 0.0
  %6043 = vmatprep.subr.mxu0 0.0
  %6044 = vmatpush1.msra.mxu0 0.0
  %6045 = vmatprep.subr.mxu0 0.0
  %6046 = vmatpush1.msra.mxu0 0.0
  %6047 = vmatprep.subr.mxu0 0.0
  %6048 = vmatpush1.msra.mxu0 0.0
  %6049 = vmatprep.subr.mxu0 0.0
  %6050 = vmatpush1.msra.mxu0 0.0
  %6051 = vmatprep.subr.mxu0 0.0
  %6052 = vmatpush1.msra.mxu0 0.0
  %6053 = vmatprep.subr.mxu0 0.0
  %6054 = vmatpush1.msra.mxu0 0.0
  %6055 = vmatprep.subr.mxu0 0.0
  %6056 = vmatpush1.msra.mxu0 0.0
  %6057 = vmatprep.subr.mxu0 0.0
  %6058 = vmatpush1.msra.mxu0 0.0
  %6059 = vmatprep.mubr.f32.mxu0 0.0
  %6060 = vmatmul.mubr.f32.gmra.mrb[0].mxu0 %v5993
  %v6061 = vpop.f32.mrb[0].mxu0
  %v6062 = vadd.f32 0.0, %v6061
  %v6063 = vpop.f32.mrb[0].mxu0
  %6064 = vdwg.mxu0
  %s6065 = scalar_lea.vmem %s11, 16
  %v6066 = vld [vmem:[%s6065] sm:$0xff]
  %s6067 = scalar_lea.vmem %s5, 48
  %v6068 = vld [vmem:[%s6067] sm:$0xff]
  %v6069 = vld [vmem:[%s6067 + $0x8] sm:$0xff]
  %s6070 = scalar_lea.vmem %s6, 3
  %v6071 = vld [vmem:[%s6070] sm:$0x1]
  %v6073 = vlaneseq
  %v6074 = vshrl.u32 %v6073, 7
  %v6075 = vsub.s32 0, %v6074
  %v6076 = vrot.slane %v6071, %v6075
  %6078 = vmatprep.subr.mxu0 0.0
  %6079 = vmatpush1.msra.mxu0 %v6068
  %6080 = vmatprep.subr.mxu0 0.0
  %6081 = vmatpush1.msra.mxu0 %v6069
  %6082 = vmatprep.subr.mxu0 0.0
  %6083 = vmatpush1.msra.mxu0 0.0
  %6084 = vmatprep.subr.mxu0 0.0
  %6085 = vmatpush1.msra.mxu0 0.0
  %6086 = vmatprep.subr.mxu0 0.0
  %6087 = vmatpush1.msra.mxu0 0.0
  %6088 = vmatprep.subr.mxu0 0.0
  %6089 = vmatpush1.msra.mxu0 0.0
  %6090 = vmatprep.subr.mxu0 0.0
  %6091 = vmatpush1.msra.mxu0 0.0
  %6092 = vmatprep.subr.mxu0 0.0
  %6093 = vmatpush1.msra.mxu0 0.0
  %6094 = vmatprep.subr.mxu0 0.0
  %6095 = vmatpush1.msra.mxu0 0.0
  %6096 = vmatprep.subr.mxu0 0.0
  %6097 = vmatpush1.msra.mxu0 0.0
  %6098 = vmatprep.subr.mxu0 0.0
  %6099 = vmatpush1.msra.mxu0 0.0
  %6100 = vmatprep.subr.mxu0 0.0
  %6101 = vmatpush1.msra.mxu0 0.0
  %6102 = vmatprep.subr.mxu0 0.0
  %6103 = vmatpush1.msra.mxu0 0.0
  %6104 = vmatprep.subr.mxu0 0.0
  %6105 = vmatpush1.msra.mxu0 0.0
  %6106 = vmatprep.subr.mxu0 0.0
  %6107 = vmatpush1.msra.mxu0 0.0
  %6108 = vmatprep.subr.mxu0 0.0
  %6109 = vmatpush1.msra.mxu0 0.0
  %6110 = vmatprep.subr.mxu0 0.0
  %6111 = vmatpush1.msra.mxu0 0.0
  %6112 = vmatprep.subr.mxu0 0.0
  %6113 = vmatpush1.msra.mxu0 0.0
  %6114 = vmatprep.subr.mxu0 0.0
  %6115 = vmatpush1.msra.mxu0 0.0
  %6116 = vmatprep.subr.mxu0 0.0
  %6117 = vmatpush1.msra.mxu0 0.0
  %6118 = vmatprep.subr.mxu0 0.0
  %6119 = vmatpush1.msra.mxu0 0.0
  %6120 = vmatprep.subr.mxu0 0.0
  %6121 = vmatpush1.msra.mxu0 0.0
  %6122 = vmatprep.subr.mxu0 0.0
  %6123 = vmatpush1.msra.mxu0 0.0
  %6124 = vmatprep.subr.mxu0 0.0
  %6125 = vmatpush1.msra.mxu0 0.0
  %6126 = vmatprep.subr.mxu0 0.0
  %6127 = vmatpush1.msra.mxu0 0.0
  %6128 = vmatprep.subr.mxu0 0.0
  %6129 = vmatpush1.msra.mxu0 0.0
  %6130 = vmatprep.subr.mxu0 0.0
  %6131 = vmatpush1.msra.mxu0 0.0
  %6132 = vmatprep.subr.mxu0 0.0
  %6133 = vmatpush1.msra.mxu0 0.0
  %6134 = vmatprep.subr.mxu0 0.0
  %6135 = vmatpush1.msra.mxu0 0.0
  %6136 = vmatprep.subr.mxu0 0.0
  %6137 = vmatpush1.msra.mxu0 0.0
  %6138 = vmatprep.subr.mxu0 0.0
  %6139 = vmatpush1.msra.mxu0 0.0
  %6140 = vmatprep.subr.mxu0 0.0
  %6141 = vmatpush1.msra.mxu0 0.0
  %6142 = vmatprep.mubr.f32.mxu0 0.0
  %6143 = vmatmul.mubr.f32.gmra.mrb[0].mxu0 %v4409
  %v6144 = vpop.f32.mrb[0].mxu0
  %v6145 = vadd.f32 %v6076, %v6144
  %v6146 = vpop.f32.mrb[0].mxu0
  %6147 = vmatprep.mubr.f32.mxu0 0.0
  %6148 = vmatmul.mubr.f32.gmra.mrb[0].mxu0 %v4412
  %v6149 = vpop.f32.mrb[0].mxu0
  %v6150 = vadd.f32 %v6076, %v6149
  %v6151 = vpop.f32.mrb[0].mxu0
  %6152 = vmatprep.mubr.f32.mxu0 0.0
  %6153 = vmatmul.mubr.f32.gmra.mrb[0].mxu0 %v4415
  %v6154 = vpop.f32.mrb[0].mxu0
  %v6155 = vadd.f32 %v6076, %v6154
  %v6156 = vpop.f32.mrb[0].mxu0
  %6157 = vmatprep.mubr.f32.mxu0 0.0
  %6158 = vmatmul.mubr.f32.gmra.mrb[0].mxu0 %v4418
  %v6159 = vpop.f32.mrb[0].mxu0
  %v6160 = vadd.f32 %v6076, %v6159
  %v6161 = vpop.f32.mrb[0].mxu0
  %6162 = vmatprep.mubr.f32.mxu0 0.0
  %6163 = vmatmul.mubr.f32.gmra.mrb[0].mxu0 %v4421
  %v6164 = vpop.f32.mrb[0].mxu0
  %v6165 = vadd.f32 %v6076, %v6164
  %v6166 = vpop.f32.mrb[0].mxu0
  %6167 = vmatprep.mubr.f32.mxu0 0.0
  %6168 = vmatmul.mubr.f32.gmra.mrb[0].mxu0 %v4424
  %v6169 = vpop.f32.mrb[0].mxu0
  %v6170 = vadd.f32 %v6076, %v6169
  %v6171 = vpop.f32.mrb[0].mxu0
  %6172 = vmatprep.mubr.f32.mxu0 0.0
  %6173 = vmatmul.mubr.f32.gmra.mrb[0].mxu0 %v4427
  %v6174 = vpop.f32.mrb[0].mxu0
  %v6175 = vadd.f32 %v6076, %v6174
  %v6176 = vpop.f32.mrb[0].mxu0
  %6177 = vmatprep.mubr.f32.mxu0 0.0
  %6178 = vmatmul.mubr.f32.gmra.mrb[0].mxu0 %v4430
  %v6179 = vpop.f32.mrb[0].mxu0
  %v6180 = vadd.f32 %v6076, %v6179
  %v6181 = vpop.f32.mrb[0].mxu0
  %6182 = vdwg.mxu0
  %s6183 = scalar_lea.vmem %s7, 48
  %v6184 = vld [vmem:[%s6183] sm:$0xff]
  %v6185 = vld [vmem:[%s6183 + $0x8] sm:$0xff]
  %s6186 = scalar_lea.vmem %s8, 3
  %v6187 = vld [vmem:[%s6186] sm:$0x1]
  %v6189 = vlaneseq
  %v6190 = vshrl.u32 %v6189, 7
  %v6191 = vsub.s32 0, %v6190
  %v6192 = vrot.slane %v6187, %v6191
  %6194 = vmatprep.subr.mxu0 0.0
  %6195 = vmatpush1.msra.mxu0 %v6184
  %6196 = vmatprep.subr.mxu0 0.0
  %6197 = vmatpush1.msra.mxu0 %v6185
  %6198 = vmatprep.subr.mxu0 0.0
  %6199 = vmatpush1.msra.mxu0 0.0
  %6200 = vmatprep.subr.mxu0 0.0
  %6201 = vmatpush1.msra.mxu0 0.0
  %6202 = vmatprep.subr.mxu0 0.0
  %6203 = vmatpush1.msra.mxu0 0.0
  %6204 = vmatprep.subr.mxu0 0.0
  %6205 = vmatpush1.msra.mxu0 0.0
  %6206 = vmatprep.subr.mxu0 0.0
  %6207 = vmatpush1.msra.mxu0 0.0
  %6208 = vmatprep.subr.mxu0 0.0
  %6209 = vmatpush1.msra.mxu0 0.0
  %6210 = vmatprep.subr.mxu0 0.0
  %6211 = vmatpush1.msra.mxu0 0.0
  %6212 = vmatprep.subr.mxu0 0.0
  %6213 = vmatpush1.msra.mxu0 0.0
  %6214 = vmatprep.subr.mxu0 0.0
  %6215 = vmatpush1.msra.mxu0 0.0
  %6216 = vmatprep.subr.mxu0 0.0
  %6217 = vmatpush1.msra.mxu0 0.0
  %6218 = vmatprep.subr.mxu0 0.0
  %6219 = vmatpush1.msra.mxu0 0.0
  %6220 = vmatprep.subr.mxu0 0.0
  %6221 = vmatpush1.msra.mxu0 0.0
  %6222 = vmatprep.subr.mxu0 0.0
  %6223 = vmatpush1.msra.mxu0 0.0
  %6224 = vmatprep.subr.mxu0 0.0
  %6225 = vmatpush1.msra.mxu0 0.0
  %6226 = vmatprep.subr.mxu0 0.0
  %6227 = vmatpush1.msra.mxu0 0.0
  %6228 = vmatprep.subr.mxu0 0.0
  %6229 = vmatpush1.msra.mxu0 0.0
  %6230 = vmatprep.subr.mxu0 0.0
  %6231 = vmatpush1.msra.mxu0 0.0
  %6232 = vmatprep.subr.mxu0 0.0
  %6233 = vmatpush1.msra.mxu0 0.0
  %6234 = vmatprep.subr.mxu0 0.0
  %6235 = vmatpush1.msra.mxu0 0.0
  %6236 = vmatprep.subr.mxu0 0.0
  %6237 = vmatpush1.msra.mxu0 0.0
  %6238 = vmatprep.subr.mxu0 0.0
  %6239 = vmatpush1.msra.mxu0 0.0
  %6240 = vmatprep.subr.mxu0 0.0
  %6241 = vmatpush1.msra.mxu0 0.0
  %6242 = vmatprep.subr.mxu0 0.0
  %6243 = vmatpush1.msra.mxu0 0.0
  %6244 = vmatprep.subr.mxu0 0.0
  %6245 = vmatpush1.msra.mxu0 0.0
  %6246 = vmatprep.subr.mxu0 0.0
  %6247 = vmatpush1.msra.mxu0 0.0
  %6248 = vmatprep.subr.mxu0 0.0
  %6249 = vmatpush1.msra.mxu0 0.0
  %6250 = vmatprep.subr.mxu0 0.0
  %6251 = vmatpush1.msra.mxu0 0.0
  %6252 = vmatprep.subr.mxu0 0.0
  %6253 = vmatpush1.msra.mxu0 0.0
  %6254 = vmatprep.subr.mxu0 0.0
  %6255 = vmatpush1.msra.mxu0 0.0
  %6256 = vmatprep.subr.mxu0 0.0
  %6257 = vmatpush1.msra.mxu0 0.0
  %6258 = vmatprep.mubr.f32.mxu0 0.0
  %6259 = vmatmul.mubr.f32.gmra.mrb[0].mxu0 %v4409
  %v6260 = vpop.f32.mrb[0].mxu0
  %v6261 = vadd.f32 %v6192, %v6260
  %v6262 = vpop.f32.mrb[0].mxu0
  %6263 = vmatprep.mubr.f32.mxu0 0.0
  %6264 = vmatmul.mubr.f32.gmra.mrb[0].mxu0 %v4412
  %v6265 = vpop.f32.mrb[0].mxu0
  %v6266 = vadd.f32 %v6192, %v6265
  %v6267 = vpop.f32.mrb[0].mxu0
  %6268 = vmatprep.mubr.f32.mxu0 0.0
  %6269 = vmatmul.mubr.f32.gmra.mrb[0].mxu0 %v4415
  %v6270 = vpop.f32.mrb[0].mxu0
  %v6271 = vadd.f32 %v6192, %v6270
  %v6272 = vpop.f32.mrb[0].mxu0
  %6273 = vmatprep.mubr.f32.mxu0 0.0
  %6274 = vmatmul.mubr.f32.gmra.mrb[0].mxu0 %v4418
  %v6275 = vpop.f32.mrb[0].mxu0
  %v6276 = vadd.f32 %v6192, %v6275
  %v6277 = vpop.f32.mrb[0].mxu0
  %6278 = vmatprep.mubr.f32.mxu0 0.0
  %6279 = vmatmul.mubr.f32.gmra.mrb[0].mxu0 %v4421
  %v6280 = vpop.f32.mrb[0].mxu0
  %v6281 = vadd.f32 %v6192, %v6280
  %v6282 = vpop.f32.mrb[0].mxu0
  %6283 = vmatprep.mubr.f32.mxu0 0.0
  %6284 = vmatmul.mubr.f32.gmra.mrb[0].mxu0 %v4424
  %v6285 = vpop.f32.mrb[0].mxu0
  %v6286 = vadd.f32 %v6192, %v6285
  %v6287 = vpop.f32.mrb[0].mxu0
  %6288 = vmatprep.mubr.f32.mxu0 0.0
  %6289 = vmatmul.mubr.f32.gmra.mrb[0].mxu0 %v4427
  %v6290 = vpop.f32.mrb[0].mxu0
  %v6291 = vadd.f32 %v6192, %v6290
  %v6292 = vpop.f32.mrb[0].mxu0
  %6293 = vmatprep.mubr.f32.mxu0 0.0
  %6294 = vmatmul.mubr.f32.gmra.mrb[0].mxu0 %v4430
  %v6295 = vpop.f32.mrb[0].mxu0
  %v6296 = vadd.f32 %v6192, %v6295
  %v6297 = vpop.f32.mrb[0].mxu0
  %6298 = vdwg.mxu0
  %s6299 = scalar_lea.vmem %s9, 48
  %v6300 = vld [vmem:[%s6299] sm:$0xff]
  %v6301 = vld [vmem:[%s6299 + $0x8] sm:$0xff]
  %s6302 = scalar_lea.vmem %s10, 3
  %v6303 = vld [vmem:[%s6302] sm:$0x1]
  %v6305 = vlaneseq
  %v6306 = vshrl.u32 %v6305, 7
  %v6307 = vsub.s32 0, %v6306
  %v6308 = vrot.slane %v6303, %v6307
  %6310 = vmatprep.subr.mxu0 0.0
  %6311 = vmatpush1.msra.mxu0 %v6300
  %6312 = vmatprep.subr.mxu0 0.0
  %6313 = vmatpush1.msra.mxu0 %v6301
  %6314 = vmatprep.subr.mxu0 0.0
  %6315 = vmatpush1.msra.mxu0 0.0
  %6316 = vmatprep.subr.mxu0 0.0
  %6317 = vmatpush1.msra.mxu0 0.0
  %6318 = vmatprep.subr.mxu0 0.0
  %6319 = vmatpush1.msra.mxu0 0.0
  %6320 = vmatprep.subr.mxu0 0.0
  %6321 = vmatpush1.msra.mxu0 0.0
  %6322 = vmatprep.subr.mxu0 0.0
  %6323 = vmatpush1.msra.mxu0 0.0
  %6324 = vmatprep.subr.mxu0 0.0
  %6325 = vmatpush1.msra.mxu0 0.0
  %6326 = vmatprep.subr.mxu0 0.0
  %6327 = vmatpush1.msra.mxu0 0.0
  %6328 = vmatprep.subr.mxu0 0.0
  %6329 = vmatpush1.msra.mxu0 0.0
  %6330 = vmatprep.subr.mxu0 0.0
  %6331 = vmatpush1.msra.mxu0 0.0
  %6332 = vmatprep.subr.mxu0 0.0
  %6333 = vmatpush1.msra.mxu0 0.0
  %6334 = vmatprep.subr.mxu0 0.0
  %6335 = vmatpush1.msra.mxu0 0.0
  %6336 = vmatprep.subr.mxu0 0.0
  %6337 = vmatpush1.msra.mxu0 0.0
  %6338 = vmatprep.subr.mxu0 0.0
  %6339 = vmatpush1.msra.mxu0 0.0
  %6340 = vmatprep.subr.mxu0 0.0
  %6341 = vmatpush1.msra.mxu0 0.0
  %6342 = vmatprep.subr.mxu0 0.0
  %6343 = vmatpush1.msra.mxu0 0.0
  %6344 = vmatprep.subr.mxu0 0.0
  %6345 = vmatpush1.msra.mxu0 0.0
  %6346 = vmatprep.subr.mxu0 0.0
  %6347 = vmatpush1.msra.mxu0 0.0
  %6348 = vmatprep.subr.mxu0 0.0
  %6349 = vmatpush1.msra.mxu0 0.0
  %6350 = vmatprep.subr.mxu0 0.0
  %6351 = vmatpush1.msra.mxu0 0.0
  %6352 = vmatprep.subr.mxu0 0.0
  %6353 = vmatpush1.msra.mxu0 0.0
  %6354 = vmatprep.subr.mxu0 0.0
  %6355 = vmatpush1.msra.mxu0 0.0
  %6356 = vmatprep.subr.mxu0 0.0
  %6357 = vmatpush1.msra.mxu0 0.0
  %6358 = vmatprep.subr.mxu0 0.0
  %6359 = vmatpush1.msra.mxu0 0.0
  %6360 = vmatprep.subr.mxu0 0.0
  %6361 = vmatpush1.msra.mxu0 0.0
  %6362 = vmatprep.subr.mxu0 0.0
  %6363 = vmatpush1.msra.mxu0 0.0
  %6364 = vmatprep.subr.mxu0 0.0
  %6365 = vmatpush1.msra.mxu0 0.0
  %6366 = vmatprep.subr.mxu0 0.0
  %6367 = vmatpush1.msra.mxu0 0.0
  %6368 = vmatprep.subr.mxu0 0.0
  %6369 = vmatpush1.msra.mxu0 0.0
  %6370 = vmatprep.subr.mxu0 0.0
  %6371 = vmatpush1.msra.mxu0 0.0
  %6372 = vmatprep.subr.mxu0 0.0
  %6373 = vmatpush1.msra.mxu0 0.0
  %6374 = vmatprep.mubr.f32.mxu0 0.0
  %6375 = vmatmul.mubr.f32.gmra.mrb[0].mxu0 %v4409
  %v6376 = vpop.f32.mrb[0].mxu0
  %v6377 = vadd.f32 %v6308, %v6376
  %v6378 = vpop.f32.mrb[0].mxu0
  %6379 = vmatprep.mubr.f32.mxu0 0.0
  %6380 = vmatmul.mubr.f32.gmra.mrb[0].mxu0 %v4412
  %v6381 = vpop.f32.mrb[0].mxu0
  %v6382 = vadd.f32 %v6308, %v6381
  %v6383 = vpop.f32.mrb[0].mxu0
  %6384 = vmatprep.mubr.f32.mxu0 0.0
  %6385 = vmatmul.mubr.f32.gmra.mrb[0].mxu0 %v4415
  %v6386 = vpop.f32.mrb[0].mxu0
  %v6387 = vadd.f32 %v6308, %v6386
  %v6388 = vpop.f32.mrb[0].mxu0
  %6389 = vmatprep.mubr.f32.mxu0 0.0
  %6390 = vmatmul.mubr.f32.gmra.mrb[0].mxu0 %v4418
  %v6391 = vpop.f32.mrb[0].mxu0
  %v6392 = vadd.f32 %v6308, %v6391
  %v6393 = vpop.f32.mrb[0].mxu0
  %6394 = vmatprep.mubr.f32.mxu0 0.0
  %6395 = vmatmul.mubr.f32.gmra.mrb[0].mxu0 %v4421
  %v6396 = vpop.f32.mrb[0].mxu0
  %v6397 = vadd.f32 %v6308, %v6396
  %v6398 = vpop.f32.mrb[0].mxu0
  %6399 = vmatprep.mubr.f32.mxu0 0.0
  %6400 = vmatmul.mubr.f32.gmra.mrb[0].mxu0 %v4424
  %v6401 = vpop.f32.mrb[0].mxu0
  %v6402 = vadd.f32 %v6308, %v6401
  %v6403 = vpop.f32.mrb[0].mxu0
  %6404 = vmatprep.mubr.f32.mxu0 0.0
  %6405 = vmatmul.mubr.f32.gmra.mrb[0].mxu0 %v4427
  %v6406 = vpop.f32.mrb[0].mxu0
  %v6407 = vadd.f32 %v6308, %v6406
  %v6408 = vpop.f32.mrb[0].mxu0
  %6409 = vmatprep.mubr.f32.mxu0 0.0
  %6410 = vmatmul.mubr.f32.gmra.mrb[0].mxu0 %v4430
  %v6411 = vpop.f32.mrb[0].mxu0
  %v6412 = vadd.f32 %v6308, %v6411
  %v6413 = vpop.f32.mrb[0].mxu0
  %6414 = vdwg.mxu0
  %v6416 = vsel %vm592, %v6145, 0
  %v6419 = vsel %vm592, %v6261, 0
  %6421 = vmatprep.subr.mxu0 0.0
  %6422 = vmatpush1.xpose.msra.mxu0 %v6419
  %6423 = vmatprep.subr.mxu0 0.0
  %6424 = vmatpush1.xpose.msra.mxu0 0.0
  %6425 = vmatprep.subr.mxu0 0.0
  %6426 = vmatpush1.xpose.msra.mxu0 0.0
  %6427 = vmatprep.subr.mxu0 0.0
  %6428 = vmatpush1.xpose.msra.mxu0 0.0
  %6429 = vmatprep.subr.mxu0 0.0
  %6430 = vmatpush1.xpose.msra.mxu0 0.0
  %6431 = vmatprep.subr.mxu0 0.0
  %6432 = vmatpush1.xpose.msra.mxu0 0.0
  %6433 = vmatprep.subr.mxu0 0.0
  %6434 = vmatpush1.xpose.msra.mxu0 0.0
  %6435 = vmatprep.subr.mxu0 0.0
  %6436 = vmatpush1.xpose.msra.mxu0 0.0
  %6437 = vmatprep.subr.mxu0 0.0
  %6438 = vmatpush1.xpose.msra.mxu0 0.0
  %6439 = vmatprep.subr.mxu0 0.0
  %6440 = vmatpush1.xpose.msra.mxu0 0.0
  %6441 = vmatprep.subr.mxu0 0.0
  %6442 = vmatpush1.xpose.msra.mxu0 0.0
  %6443 = vmatprep.subr.mxu0 0.0
  %6444 = vmatpush1.xpose.msra.mxu0 0.0
  %6445 = vmatprep.subr.mxu0 0.0
  %6446 = vmatpush1.xpose.msra.mxu0 0.0
  %6447 = vmatprep.subr.mxu0 0.0
  %6448 = vmatpush1.xpose.msra.mxu0 0.0
  %6449 = vmatprep.subr.mxu0 0.0
  %6450 = vmatpush1.xpose.msra.mxu0 0.0
  %6451 = vmatprep.subr.mxu0 0.0
  %6452 = vmatpush1.xpose.msra.mxu0 0.0
  %6453 = vmatprep.subr.mxu0 0.0
  %6454 = vmatpush1.xpose.msra.mxu0 0.0
  %6455 = vmatprep.subr.mxu0 0.0
  %6456 = vmatpush1.xpose.msra.mxu0 0.0
  %6457 = vmatprep.subr.mxu0 0.0
  %6458 = vmatpush1.xpose.msra.mxu0 0.0
  %6459 = vmatprep.subr.mxu0 0.0
  %6460 = vmatpush1.xpose.msra.mxu0 0.0
  %6461 = vmatprep.subr.mxu0 0.0
  %6462 = vmatpush1.xpose.msra.mxu0 0.0
  %6463 = vmatprep.subr.mxu0 0.0
  %6464 = vmatpush1.xpose.msra.mxu0 0.0
  %6465 = vmatprep.subr.mxu0 0.0
  %6466 = vmatpush1.xpose.msra.mxu0 0.0
  %6467 = vmatprep.subr.mxu0 0.0
  %6468 = vmatpush1.xpose.msra.mxu0 0.0
  %6469 = vmatprep.subr.mxu0 0.0
  %6470 = vmatpush1.xpose.msra.mxu0 0.0
  %6471 = vmatprep.subr.mxu0 0.0
  %6472 = vmatpush1.xpose.msra.mxu0 0.0
  %6473 = vmatprep.subr.mxu0 0.0
  %6474 = vmatpush1.xpose.msra.mxu0 0.0
  %6475 = vmatprep.subr.mxu0 0.0
  %6476 = vmatpush1.xpose.msra.mxu0 0.0
  %6477 = vmatprep.subr.mxu0 0.0
  %6478 = vmatpush1.xpose.msra.mxu0 0.0
  %6479 = vmatprep.subr.mxu0 0.0
  %6480 = vmatpush1.xpose.msra.mxu0 0.0
  %6481 = vmatprep.subr.mxu0 0.0
  %6482 = vmatpush1.xpose.msra.mxu0 0.0
  %6483 = vmatprep.subr.mxu0 0.0
  %6484 = vmatpush1.xpose.msra.mxu0 0.0
  %6485 = vmatprep.mubr.f32.mxu0 0.0
  %6486 = vmatmul.mubr.f32.gmra.mrb[0].mxu0 %v6416
  %v6487 = vpop.f32.mrb[0].mxu0
  %v6488 = vadd.f32 0.0, %v6487
  %v6489 = vpop.f32.mrb[0].mxu0
  %6490 = vdwg.mxu0
  %v6492 = vsel %vm592, %v6150, 0
  %v6495 = vsel %vm592, %v6266, 0
  %6497 = vmatprep.subr.mxu0 0.0
  %6498 = vmatpush1.xpose.msra.mxu0 %v6495
  %6499 = vmatprep.subr.mxu0 0.0
  %6500 = vmatpush1.xpose.msra.mxu0 0.0
  %6501 = vmatprep.subr.mxu0 0.0
  %6502 = vmatpush1.xpose.msra.mxu0 0.0
  %6503 = vmatprep.subr.mxu0 0.0
  %6504 = vmatpush1.xpose.msra.mxu0 0.0
  %6505 = vmatprep.subr.mxu0 0.0
  %6506 = vmatpush1.xpose.msra.mxu0 0.0
  %6507 = vmatprep.subr.mxu0 0.0
  %6508 = vmatpush1.xpose.msra.mxu0 0.0
  %6509 = vmatprep.subr.mxu0 0.0
  %6510 = vmatpush1.xpose.msra.mxu0 0.0
  %6511 = vmatprep.subr.mxu0 0.0
  %6512 = vmatpush1.xpose.msra.mxu0 0.0
  %6513 = vmatprep.subr.mxu0 0.0
  %6514 = vmatpush1.xpose.msra.mxu0 0.0
  %6515 = vmatprep.subr.mxu0 0.0
  %6516 = vmatpush1.xpose.msra.mxu0 0.0
  %6517 = vmatprep.subr.mxu0 0.0
  %6518 = vmatpush1.xpose.msra.mxu0 0.0
  %6519 = vmatprep.subr.mxu0 0.0
  %6520 = vmatpush1.xpose.msra.mxu0 0.0
  %6521 = vmatprep.subr.mxu0 0.0
  %6522 = vmatpush1.xpose.msra.mxu0 0.0
  %6523 = vmatprep.subr.mxu0 0.0
  %6524 = vmatpush1.xpose.msra.mxu0 0.0
  %6525 = vmatprep.subr.mxu0 0.0
  %6526 = vmatpush1.xpose.msra.mxu0 0.0
  %6527 = vmatprep.subr.mxu0 0.0
  %6528 = vmatpush1.xpose.msra.mxu0 0.0
  %6529 = vmatprep.subr.mxu0 0.0
  %6530 = vmatpush1.xpose.msra.mxu0 0.0
  %6531 = vmatprep.subr.mxu0 0.0
  %6532 = vmatpush1.xpose.msra.mxu0 0.0
  %6533 = vmatprep.subr.mxu0 0.0
  %6534 = vmatpush1.xpose.msra.mxu0 0.0
  %6535 = vmatprep.subr.mxu0 0.0
  %6536 = vmatpush1.xpose.msra.mxu0 0.0
  %6537 = vmatprep.subr.mxu0 0.0
  %6538 = vmatpush1.xpose.msra.mxu0 0.0
  %6539 = vmatprep.subr.mxu0 0.0
  %6540 = vmatpush1.xpose.msra.mxu0 0.0
  %6541 = vmatprep.subr.mxu0 0.0
  %6542 = vmatpush1.xpose.msra.mxu0 0.0
  %6543 = vmatprep.subr.mxu0 0.0
  %6544 = vmatpush1.xpose.msra.mxu0 0.0
  %6545 = vmatprep.subr.mxu0 0.0
  %6546 = vmatpush1.xpose.msra.mxu0 0.0
  %6547 = vmatprep.subr.mxu0 0.0
  %6548 = vmatpush1.xpose.msra.mxu0 0.0
  %6549 = vmatprep.subr.mxu0 0.0
  %6550 = vmatpush1.xpose.msra.mxu0 0.0
  %6551 = vmatprep.subr.mxu0 0.0
  %6552 = vmatpush1.xpose.msra.mxu0 0.0
  %6553 = vmatprep.subr.mxu0 0.0
  %6554 = vmatpush1.xpose.msra.mxu0 0.0
  %6555 = vmatprep.subr.mxu0 0.0
  %6556 = vmatpush1.xpose.msra.mxu0 0.0
  %6557 = vmatprep.subr.mxu0 0.0
  %6558 = vmatpush1.xpose.msra.mxu0 0.0
  %6559 = vmatprep.subr.mxu0 0.0
  %6560 = vmatpush1.xpose.msra.mxu0 0.0
  %6561 = vmatprep.mubr.f32.mxu0 0.0
  %6562 = vmatmul.mubr.f32.gmra.mrb[0].mxu0 %v6492
  %v6563 = vpop.f32.mrb[0].mxu0
  %v6564 = vadd.f32 0.0, %v6563
  %v6565 = vpop.f32.mrb[0].mxu0
  %6566 = vdwg.mxu0
  %v6568 = vsel %vm592, %v6155, 0
  %v6571 = vsel %vm592, %v6271, 0
  %6573 = vmatprep.subr.mxu0 0.0
  %6574 = vmatpush1.xpose.msra.mxu0 %v6571
  %6575 = vmatprep.subr.mxu0 0.0
  %6576 = vmatpush1.xpose.msra.mxu0 0.0
  %6577 = vmatprep.subr.mxu0 0.0
  %6578 = vmatpush1.xpose.msra.mxu0 0.0
  %6579 = vmatprep.subr.mxu0 0.0
  %6580 = vmatpush1.xpose.msra.mxu0 0.0
  %6581 = vmatprep.subr.mxu0 0.0
  %6582 = vmatpush1.xpose.msra.mxu0 0.0
  %6583 = vmatprep.subr.mxu0 0.0
  %6584 = vmatpush1.xpose.msra.mxu0 0.0
  %6585 = vmatprep.subr.mxu0 0.0
  %6586 = vmatpush1.xpose.msra.mxu0 0.0
  %6587 = vmatprep.subr.mxu0 0.0
  %6588 = vmatpush1.xpose.msra.mxu0 0.0
  %6589 = vmatprep.subr.mxu0 0.0
  %6590 = vmatpush1.xpose.msra.mxu0 0.0
  %6591 = vmatprep.subr.mxu0 0.0
  %6592 = vmatpush1.xpose.msra.mxu0 0.0
  %6593 = vmatprep.subr.mxu0 0.0
  %6594 = vmatpush1.xpose.msra.mxu0 0.0
  %6595 = vmatprep.subr.mxu0 0.0
  %6596 = vmatpush1.xpose.msra.mxu0 0.0
  %6597 = vmatprep.subr.mxu0 0.0
  %6598 = vmatpush1.xpose.msra.mxu0 0.0
  %6599 = vmatprep.subr.mxu0 0.0
  %6600 = vmatpush1.xpose.msra.mxu0 0.0
  %6601 = vmatprep.subr.mxu0 0.0
  %6602 = vmatpush1.xpose.msra.mxu0 0.0
  %6603 = vmatprep.subr.mxu0 0.0
  %6604 = vmatpush1.xpose.msra.mxu0 0.0
  %6605 = vmatprep.subr.mxu0 0.0
  %6606 = vmatpush1.xpose.msra.mxu0 0.0
  %6607 = vmatprep.subr.mxu0 0.0
  %6608 = vmatpush1.xpose.msra.mxu0 0.0
  %6609 = vmatprep.subr.mxu0 0.0
  %6610 = vmatpush1.xpose.msra.mxu0 0.0
  %6611 = vmatprep.subr.mxu0 0.0
  %6612 = vmatpush1.xpose.msra.mxu0 0.0
  %6613 = vmatprep.subr.mxu0 0.0
  %6614 = vmatpush1.xpose.msra.mxu0 0.0
  %6615 = vmatprep.subr.mxu0 0.0
  %6616 = vmatpush1.xpose.msra.mxu0 0.0
  %6617 = vmatprep.subr.mxu0 0.0
  %6618 = vmatpush1.xpose.msra.mxu0 0.0
  %6619 = vmatprep.subr.mxu0 0.0
  %6620 = vmatpush1.xpose.msra.mxu0 0.0
  %6621 = vmatprep.subr.mxu0 0.0
  %6622 = vmatpush1.xpose.msra.mxu0 0.0
  %6623 = vmatprep.subr.mxu0 0.0
  %6624 = vmatpush1.xpose.msra.mxu0 0.0
  %6625 = vmatprep.subr.mxu0 0.0
  %6626 = vmatpush1.xpose.msra.mxu0 0.0
  %6627 = vmatprep.subr.mxu0 0.0
  %6628 = vmatpush1.xpose.msra.mxu0 0.0
  %6629 = vmatprep.subr.mxu0 0.0
  %6630 = vmatpush1.xpose.msra.mxu0 0.0
  %6631 = vmatprep.subr.mxu0 0.0
  %6632 = vmatpush1.xpose.msra.mxu0 0.0
  %6633 = vmatprep.subr.mxu0 0.0
  %6634 = vmatpush1.xpose.msra.mxu0 0.0
  %6635 = vmatprep.subr.mxu0 0.0
  %6636 = vmatpush1.xpose.msra.mxu0 0.0
  %6637 = vmatprep.mubr.f32.mxu0 0.0
  %6638 = vmatmul.mubr.f32.gmra.mrb[0].mxu0 %v6568
  %v6639 = vpop.f32.mrb[0].mxu0
  %v6640 = vadd.f32 0.0, %v6639
  %v6641 = vpop.f32.mrb[0].mxu0
  %6642 = vdwg.mxu0
  %v6644 = vsel %vm592, %v6160, 0
  %v6647 = vsel %vm592, %v6276, 0
  %6649 = vmatprep.subr.mxu0 0.0
  %6650 = vmatpush1.xpose.msra.mxu0 %v6647
  %6651 = vmatprep.subr.mxu0 0.0
  %6652 = vmatpush1.xpose.msra.mxu0 0.0
  %6653 = vmatprep.subr.mxu0 0.0
  %6654 = vmatpush1.xpose.msra.mxu0 0.0
  %6655 = vmatprep.subr.mxu0 0.0
  %6656 = vmatpush1.xpose.msra.mxu0 0.0
  %6657 = vmatprep.subr.mxu0 0.0
  %6658 = vmatpush1.xpose.msra.mxu0 0.0
  %6659 = vmatprep.subr.mxu0 0.0
  %6660 = vmatpush1.xpose.msra.mxu0 0.0
  %6661 = vmatprep.subr.mxu0 0.0
  %6662 = vmatpush1.xpose.msra.mxu0 0.0
  %6663 = vmatprep.subr.mxu0 0.0
  %6664 = vmatpush1.xpose.msra.mxu0 0.0
  %6665 = vmatprep.subr.mxu0 0.0
  %6666 = vmatpush1.xpose.msra.mxu0 0.0
  %6667 = vmatprep.subr.mxu0 0.0
  %6668 = vmatpush1.xpose.msra.mxu0 0.0
  %6669 = vmatprep.subr.mxu0 0.0
  %6670 = vmatpush1.xpose.msra.mxu0 0.0
  %6671 = vmatprep.subr.mxu0 0.0
  %6672 = vmatpush1.xpose.msra.mxu0 0.0
  %6673 = vmatprep.subr.mxu0 0.0
  %6674 = vmatpush1.xpose.msra.mxu0 0.0
  %6675 = vmatprep.subr.mxu0 0.0
  %6676 = vmatpush1.xpose.msra.mxu0 0.0
  %6677 = vmatprep.subr.mxu0 0.0
  %6678 = vmatpush1.xpose.msra.mxu0 0.0
  %6679 = vmatprep.subr.mxu0 0.0
  %6680 = vmatpush1.xpose.msra.mxu0 0.0
  %6681 = vmatprep.subr.mxu0 0.0
  %6682 = vmatpush1.xpose.msra.mxu0 0.0
  %6683 = vmatprep.subr.mxu0 0.0
  %6684 = vmatpush1.xpose.msra.mxu0 0.0
  %6685 = vmatprep.subr.mxu0 0.0
  %6686 = vmatpush1.xpose.msra.mxu0 0.0
  %6687 = vmatprep.subr.mxu0 0.0
  %6688 = vmatpush1.xpose.msra.mxu0 0.0
  %6689 = vmatprep.subr.mxu0 0.0
  %6690 = vmatpush1.xpose.msra.mxu0 0.0
  %6691 = vmatprep.subr.mxu0 0.0
  %6692 = vmatpush1.xpose.msra.mxu0 0.0
  %6693 = vmatprep.subr.mxu0 0.0
  %6694 = vmatpush1.xpose.msra.mxu0 0.0
  %6695 = vmatprep.subr.mxu0 0.0
  %6696 = vmatpush1.xpose.msra.mxu0 0.0
  %6697 = vmatprep.subr.mxu0 0.0
  %6698 = vmatpush1.xpose.msra.mxu0 0.0
  %6699 = vmatprep.subr.mxu0 0.0
  %6700 = vmatpush1.xpose.msra.mxu0 0.0
  %6701 = vmatprep.subr.mxu0 0.0
  %6702 = vmatpush1.xpose.msra.mxu0 0.0
  %6703 = vmatprep.subr.mxu0 0.0
  %6704 = vmatpush1.xpose.msra.mxu0 0.0
  %6705 = vmatprep.subr.mxu0 0.0
  %6706 = vmatpush1.xpose.msra.mxu0 0.0
  %6707 = vmatprep.subr.mxu0 0.0
  %6708 = vmatpush1.xpose.msra.mxu0 0.0
  %6709 = vmatprep.subr.mxu0 0.0
  %6710 = vmatpush1.xpose.msra.mxu0 0.0
  %6711 = vmatprep.subr.mxu0 0.0
  %6712 = vmatpush1.xpose.msra.mxu0 0.0
  %6713 = vmatprep.mubr.f32.mxu0 0.0
  %6714 = vmatmul.mubr.f32.gmra.mrb[0].mxu0 %v6644
  %v6715 = vpop.f32.mrb[0].mxu0
  %v6716 = vadd.f32 0.0, %v6715
  %v6717 = vpop.f32.mrb[0].mxu0
  %6718 = vdwg.mxu0
  %v6720 = vsel %vm592, %v6165, 0
  %v6723 = vsel %vm592, %v6281, 0
  %6725 = vmatprep.subr.mxu0 0.0
  %6726 = vmatpush1.xpose.msra.mxu0 %v6723
  %6727 = vmatprep.subr.mxu0 0.0
  %6728 = vmatpush1.xpose.msra.mxu0 0.0
  %6729 = vmatprep.subr.mxu0 0.0
  %6730 = vmatpush1.xpose.msra.mxu0 0.0
  %6731 = vmatprep.subr.mxu0 0.0
  %6732 = vmatpush1.xpose.msra.mxu0 0.0
  %6733 = vmatprep.subr.mxu0 0.0
  %6734 = vmatpush1.xpose.msra.mxu0 0.0
  %6735 = vmatprep.subr.mxu0 0.0
  %6736 = vmatpush1.xpose.msra.mxu0 0.0
  %6737 = vmatprep.subr.mxu0 0.0
  %6738 = vmatpush1.xpose.msra.mxu0 0.0
  %6739 = vmatprep.subr.mxu0 0.0
  %6740 = vmatpush1.xpose.msra.mxu0 0.0
  %6741 = vmatprep.subr.mxu0 0.0
  %6742 = vmatpush1.xpose.msra.mxu0 0.0
  %6743 = vmatprep.subr.mxu0 0.0
  %6744 = vmatpush1.xpose.msra.mxu0 0.0
  %6745 = vmatprep.subr.mxu0 0.0
  %6746 = vmatpush1.xpose.msra.mxu0 0.0
  %6747 = vmatprep.subr.mxu0 0.0
  %6748 = vmatpush1.xpose.msra.mxu0 0.0
  %6749 = vmatprep.subr.mxu0 0.0
  %6750 = vmatpush1.xpose.msra.mxu0 0.0
  %6751 = vmatprep.subr.mxu0 0.0
  %6752 = vmatpush1.xpose.msra.mxu0 0.0
  %6753 = vmatprep.subr.mxu0 0.0
  %6754 = vmatpush1.xpose.msra.mxu0 0.0
  %6755 = vmatprep.subr.mxu0 0.0
  %6756 = vmatpush1.xpose.msra.mxu0 0.0
  %6757 = vmatprep.subr.mxu0 0.0
  %6758 = vmatpush1.xpose.msra.mxu0 0.0
  %6759 = vmatprep.subr.mxu0 0.0
  %6760 = vmatpush1.xpose.msra.mxu0 0.0
  %6761 = vmatprep.subr.mxu0 0.0
  %6762 = vmatpush1.xpose.msra.mxu0 0.0
  %6763 = vmatprep.subr.mxu0 0.0
  %6764 = vmatpush1.xpose.msra.mxu0 0.0
  %6765 = vmatprep.subr.mxu0 0.0
  %6766 = vmatpush1.xpose.msra.mxu0 0.0
  %6767 = vmatprep.subr.mxu0 0.0
  %6768 = vmatpush1.xpose.msra.mxu0 0.0
  %6769 = vmatprep.subr.mxu0 0.0
  %6770 = vmatpush1.xpose.msra.mxu0 0.0
  %6771 = vmatprep.subr.mxu0 0.0
  %6772 = vmatpush1.xpose.msra.mxu0 0.0
  %6773 = vmatprep.subr.mxu0 0.0
  %6774 = vmatpush1.xpose.msra.mxu0 0.0
  %6775 = vmatprep.subr.mxu0 0.0
  %6776 = vmatpush1.xpose.msra.mxu0 0.0
  %6777 = vmatprep.subr.mxu0 0.0
  %6778 = vmatpush1.xpose.msra.mxu0 0.0
  %6779 = vmatprep.subr.mxu0 0.0
  %6780 = vmatpush1.xpose.msra.mxu0 0.0
  %6781 = vmatprep.subr.mxu0 0.0
  %6782 = vmatpush1.xpose.msra.mxu0 0.0
  %6783 = vmatprep.subr.mxu0 0.0
  %6784 = vmatpush1.xpose.msra.mxu0 0.0
  %6785 = vmatprep.subr.mxu0 0.0
  %6786 = vmatpush1.xpose.msra.mxu0 0.0
  %6787 = vmatprep.subr.mxu0 0.0
  %6788 = vmatpush1.xpose.msra.mxu0 0.0
  %6789 = vmatprep.mubr.f32.mxu0 0.0
  %6790 = vmatmul.mubr.f32.gmra.mrb[0].mxu0 %v6720
  %v6791 = vpop.f32.mrb[0].mxu0
  %v6792 = vadd.f32 0.0, %v6791
  %v6793 = vpop.f32.mrb[0].mxu0
  %6794 = vdwg.mxu0
  %v6796 = vsel %vm592, %v6170, 0
  %v6799 = vsel %vm592, %v6286, 0
  %6801 = vmatprep.subr.mxu0 0.0
  %6802 = vmatpush1.xpose.msra.mxu0 %v6799
  %6803 = vmatprep.subr.mxu0 0.0
  %6804 = vmatpush1.xpose.msra.mxu0 0.0
  %6805 = vmatprep.subr.mxu0 0.0
  %6806 = vmatpush1.xpose.msra.mxu0 0.0
  %6807 = vmatprep.subr.mxu0 0.0
  %6808 = vmatpush1.xpose.msra.mxu0 0.0
  %6809 = vmatprep.subr.mxu0 0.0
  %6810 = vmatpush1.xpose.msra.mxu0 0.0
  %6811 = vmatprep.subr.mxu0 0.0
  %6812 = vmatpush1.xpose.msra.mxu0 0.0
  %6813 = vmatprep.subr.mxu0 0.0
  %6814 = vmatpush1.xpose.msra.mxu0 0.0
  %6815 = vmatprep.subr.mxu0 0.0
  %6816 = vmatpush1.xpose.msra.mxu0 0.0
  %6817 = vmatprep.subr.mxu0 0.0
  %6818 = vmatpush1.xpose.msra.mxu0 0.0
  %6819 = vmatprep.subr.mxu0 0.0
  %6820 = vmatpush1.xpose.msra.mxu0 0.0
  %6821 = vmatprep.subr.mxu0 0.0
  %6822 = vmatpush1.xpose.msra.mxu0 0.0
  %6823 = vmatprep.subr.mxu0 0.0
  %6824 = vmatpush1.xpose.msra.mxu0 0.0
  %6825 = vmatprep.subr.mxu0 0.0
  %6826 = vmatpush1.xpose.msra.mxu0 0.0
  %6827 = vmatprep.subr.mxu0 0.0
  %6828 = vmatpush1.xpose.msra.mxu0 0.0
  %6829 = vmatprep.subr.mxu0 0.0
  %6830 = vmatpush1.xpose.msra.mxu0 0.0
  %6831 = vmatprep.subr.mxu0 0.0
  %6832 = vmatpush1.xpose.msra.mxu0 0.0
  %6833 = vmatprep.subr.mxu0 0.0
  %6834 = vmatpush1.xpose.msra.mxu0 0.0
  %6835 = vmatprep.subr.mxu0 0.0
  %6836 = vmatpush1.xpose.msra.mxu0 0.0
  %6837 = vmatprep.subr.mxu0 0.0
  %6838 = vmatpush1.xpose.msra.mxu0 0.0
  %6839 = vmatprep.subr.mxu0 0.0
  %6840 = vmatpush1.xpose.msra.mxu0 0.0
  %6841 = vmatprep.subr.mxu0 0.0
  %6842 = vmatpush1.xpose.msra.mxu0 0.0
  %6843 = vmatprep.subr.mxu0 0.0
  %6844 = vmatpush1.xpose.msra.mxu0 0.0
  %6845 = vmatprep.subr.mxu0 0.0
  %6846 = vmatpush1.xpose.msra.mxu0 0.0
  %6847 = vmatprep.subr.mxu0 0.0
  %6848 = vmatpush1.xpose.msra.mxu0 0.0
  %6849 = vmatprep.subr.mxu0 0.0
  %6850 = vmatpush1.xpose.msra.mxu0 0.0
  %6851 = vmatprep.subr.mxu0 0.0
  %6852 = vmatpush1.xpose.msra.mxu0 0.0
  %6853 = vmatprep.subr.mxu0 0.0
  %6854 = vmatpush1.xpose.msra.mxu0 0.0
  %6855 = vmatprep.subr.mxu0 0.0
  %6856 = vmatpush1.xpose.msra.mxu0 0.0
  %6857 = vmatprep.subr.mxu0 0.0
  %6858 = vmatpush1.xpose.msra.mxu0 0.0
  %6859 = vmatprep.subr.mxu0 0.0
  %6860 = vmatpush1.xpose.msra.mxu0 0.0
  %6861 = vmatprep.subr.mxu0 0.0
  %6862 = vmatpush1.xpose.msra.mxu0 0.0
  %6863 = vmatprep.subr.mxu0 0.0
  %6864 = vmatpush1.xpose.msra.mxu0 0.0
  %6865 = vmatprep.mubr.f32.mxu0 0.0
  %6866 = vmatmul.mubr.f32.gmra.mrb[0].mxu0 %v6796
  %v6867 = vpop.f32.mrb[0].mxu0
  %v6868 = vadd.f32 0.0, %v6867
  %v6869 = vpop.f32.mrb[0].mxu0
  %6870 = vdwg.mxu0
  %v6872 = vsel %vm592, %v6175, 0
  %v6875 = vsel %vm592, %v6291, 0
  %6877 = vmatprep.subr.mxu0 0.0
  %6878 = vmatpush1.xpose.msra.mxu0 %v6875
  %6879 = vmatprep.subr.mxu0 0.0
  %6880 = vmatpush1.xpose.msra.mxu0 0.0
  %6881 = vmatprep.subr.mxu0 0.0
  %6882 = vmatpush1.xpose.msra.mxu0 0.0
  %6883 = vmatprep.subr.mxu0 0.0
  %6884 = vmatpush1.xpose.msra.mxu0 0.0
  %6885 = vmatprep.subr.mxu0 0.0
  %6886 = vmatpush1.xpose.msra.mxu0 0.0
  %6887 = vmatprep.subr.mxu0 0.0
  %6888 = vmatpush1.xpose.msra.mxu0 0.0
  %6889 = vmatprep.subr.mxu0 0.0
  %6890 = vmatpush1.xpose.msra.mxu0 0.0
  %6891 = vmatprep.subr.mxu0 0.0
  %6892 = vmatpush1.xpose.msra.mxu0 0.0
  %6893 = vmatprep.subr.mxu0 0.0
  %6894 = vmatpush1.xpose.msra.mxu0 0.0
  %6895 = vmatprep.subr.mxu0 0.0
  %6896 = vmatpush1.xpose.msra.mxu0 0.0
  %6897 = vmatprep.subr.mxu0 0.0
  %6898 = vmatpush1.xpose.msra.mxu0 0.0
  %6899 = vmatprep.subr.mxu0 0.0
  %6900 = vmatpush1.xpose.msra.mxu0 0.0
  %6901 = vmatprep.subr.mxu0 0.0
  %6902 = vmatpush1.xpose.msra.mxu0 0.0
  %6903 = vmatprep.subr.mxu0 0.0
  %6904 = vmatpush1.xpose.msra.mxu0 0.0
  %6905 = vmatprep.subr.mxu0 0.0
  %6906 = vmatpush1.xpose.msra.mxu0 0.0
  %6907 = vmatprep.subr.mxu0 0.0
  %6908 = vmatpush1.xpose.msra.mxu0 0.0
  %6909 = vmatprep.subr.mxu0 0.0
  %6910 = vmatpush1.xpose.msra.mxu0 0.0
  %6911 = vmatprep.subr.mxu0 0.0
  %6912 = vmatpush1.xpose.msra.mxu0 0.0
  %6913 = vmatprep.subr.mxu0 0.0
  %6914 = vmatpush1.xpose.msra.mxu0 0.0
  %6915 = vmatprep.subr.mxu0 0.0
  %6916 = vmatpush1.xpose.msra.mxu0 0.0
  %6917 = vmatprep.subr.mxu0 0.0
  %6918 = vmatpush1.xpose.msra.mxu0 0.0
  %6919 = vmatprep.subr.mxu0 0.0
  %6920 = vmatpush1.xpose.msra.mxu0 0.0
  %6921 = vmatprep.subr.mxu0 0.0
  %6922 = vmatpush1.xpose.msra.mxu0 0.0
  %6923 = vmatprep.subr.mxu0 0.0
  %6924 = vmatpush1.xpose.msra.mxu0 0.0
  %6925 = vmatprep.subr.mxu0 0.0
  %6926 = vmatpush1.xpose.msra.mxu0 0.0
  %6927 = vmatprep.subr.mxu0 0.0
  %6928 = vmatpush1.xpose.msra.mxu0 0.0
  %6929 = vmatprep.subr.mxu0 0.0
  %6930 = vmatpush1.xpose.msra.mxu0 0.0
  %6931 = vmatprep.subr.mxu0 0.0
  %6932 = vmatpush1.xpose.msra.mxu0 0.0
  %6933 = vmatprep.subr.mxu0 0.0
  %6934 = vmatpush1.xpose.msra.mxu0 0.0
  %6935 = vmatprep.subr.mxu0 0.0
  %6936 = vmatpush1.xpose.msra.mxu0 0.0
  %6937 = vmatprep.subr.mxu0 0.0
  %6938 = vmatpush1.xpose.msra.mxu0 0.0
  %6939 = vmatprep.subr.mxu0 0.0
  %6940 = vmatpush1.xpose.msra.mxu0 0.0
  %6941 = vmatprep.mubr.f32.mxu0 0.0
  %6942 = vmatmul.mubr.f32.gmra.mrb[0].mxu0 %v6872
  %v6943 = vpop.f32.mrb[0].mxu0
  %v6944 = vadd.f32 0.0, %v6943
  %v6945 = vpop.f32.mrb[0].mxu0
  %6946 = vdwg.mxu0
  %v6948 = vsel %vm592, %v6180, 0
  %v6951 = vsel %vm592, %v6296, 0
  %6953 = vmatprep.subr.mxu0 0.0
  %6954 = vmatpush1.xpose.msra.mxu0 %v6951
  %6955 = vmatprep.subr.mxu0 0.0
  %6956 = vmatpush1.xpose.msra.mxu0 0.0
  %6957 = vmatprep.subr.mxu0 0.0
  %6958 = vmatpush1.xpose.msra.mxu0 0.0
  %6959 = vmatprep.subr.mxu0 0.0
  %6960 = vmatpush1.xpose.msra.mxu0 0.0
  %6961 = vmatprep.subr.mxu0 0.0
  %6962 = vmatpush1.xpose.msra.mxu0 0.0
  %6963 = vmatprep.subr.mxu0 0.0
  %6964 = vmatpush1.xpose.msra.mxu0 0.0
  %6965 = vmatprep.subr.mxu0 0.0
  %6966 = vmatpush1.xpose.msra.mxu0 0.0
  %6967 = vmatprep.subr.mxu0 0.0
  %6968 = vmatpush1.xpose.msra.mxu0 0.0
  %6969 = vmatprep.subr.mxu0 0.0
  %6970 = vmatpush1.xpose.msra.mxu0 0.0
  %6971 = vmatprep.subr.mxu0 0.0
  %6972 = vmatpush1.xpose.msra.mxu0 0.0
  %6973 = vmatprep.subr.mxu0 0.0
  %6974 = vmatpush1.xpose.msra.mxu0 0.0
  %6975 = vmatprep.subr.mxu0 0.0
  %6976 = vmatpush1.xpose.msra.mxu0 0.0
  %6977 = vmatprep.subr.mxu0 0.0
  %6978 = vmatpush1.xpose.msra.mxu0 0.0
  %6979 = vmatprep.subr.mxu0 0.0
  %6980 = vmatpush1.xpose.msra.mxu0 0.0
  %6981 = vmatprep.subr.mxu0 0.0
  %6982 = vmatpush1.xpose.msra.mxu0 0.0
  %6983 = vmatprep.subr.mxu0 0.0
  %6984 = vmatpush1.xpose.msra.mxu0 0.0
  %6985 = vmatprep.subr.mxu0 0.0
  %6986 = vmatpush1.xpose.msra.mxu0 0.0
  %6987 = vmatprep.subr.mxu0 0.0
  %6988 = vmatpush1.xpose.msra.mxu0 0.0
  %6989 = vmatprep.subr.mxu0 0.0
  %6990 = vmatpush1.xpose.msra.mxu0 0.0
  %6991 = vmatprep.subr.mxu0 0.0
  %6992 = vmatpush1.xpose.msra.mxu0 0.0
  %6993 = vmatprep.subr.mxu0 0.0
  %6994 = vmatpush1.xpose.msra.mxu0 0.0
  %6995 = vmatprep.subr.mxu0 0.0
  %6996 = vmatpush1.xpose.msra.mxu0 0.0
  %6997 = vmatprep.subr.mxu0 0.0
  %6998 = vmatpush1.xpose.msra.mxu0 0.0
  %6999 = vmatprep.subr.mxu0 0.0
  %7000 = vmatpush1.xpose.msra.mxu0 0.0
  %7001 = vmatprep.subr.mxu0 0.0
  %7002 = vmatpush1.xpose.msra.mxu0 0.0
  %7003 = vmatprep.subr.mxu0 0.0
  %7004 = vmatpush1.xpose.msra.mxu0 0.0
  %7005 = vmatprep.subr.mxu0 0.0
  %7006 = vmatpush1.xpose.msra.mxu0 0.0
  %7007 = vmatprep.subr.mxu0 0.0
  %7008 = vmatpush1.xpose.msra.mxu0 0.0
  %7009 = vmatprep.subr.mxu0 0.0
  %7010 = vmatpush1.xpose.msra.mxu0 0.0
  %7011 = vmatprep.subr.mxu0 0.0
  %7012 = vmatpush1.xpose.msra.mxu0 0.0
  %7013 = vmatprep.subr.mxu0 0.0
  %7014 = vmatpush1.xpose.msra.mxu0 0.0
  %7015 = vmatprep.subr.mxu0 0.0
  %7016 = vmatpush1.xpose.msra.mxu0 0.0
  %7017 = vmatprep.mubr.f32.mxu0 0.0
  %7018 = vmatmul.mubr.f32.gmra.mrb[0].mxu0 %v6948
  %v7019 = vpop.f32.mrb[0].mxu0
  %v7020 = vadd.f32 0.0, %v7019
  %v7021 = vpop.f32.mrb[0].mxu0
  %7022 = vdwg.mxu0
  %v7023 = vmul.f32 %v6488, 0.35355338
  %v7024 = vmul.f32 %v6564, 0.35355338
  %v7025 = vmul.f32 %v6640, 0.35355338
  %v7026 = vmul.f32 %v6716, 0.35355338
  %v7027 = vmul.f32 %v6792, 0.35355338
  %v7028 = vmul.f32 %v6868, 0.35355338
  %v7029 = vmul.f32 %v6944, 0.35355338
  %v7030 = vmul.f32 %v7020, 0.35355338
  %v7031 = vadd.f32 %v7023, %v2838
  %v7032 = vadd.f32 %v7024, %v2839
  %v7033 = vadd.f32 %v7025, %v2840
  %v7034 = vadd.f32 %v7026, %v2841
  %v7035 = vadd.f32 %v7027, %v2842
  %v7036 = vadd.f32 %v7028, %v2843
  %v7037 = vadd.f32 %v7029, %v2844
  %v7038 = vadd.f32 %v7030, %v2845
  %v7039 = vsel %vm592, %v7031, -inf
  %7040 = vmax.xlane.f32.xlu0 %v7039
  %v7041 = vpop.xlane.xlu0 %7040
  %v7042 = vsel %vm592, %v7032, -inf
  %7043 = vmax.xlane.f32.xlu0 %v7042
  %v7044 = vpop.xlane.xlu0 %7043
  %v7045 = vsel %vm592, %v7033, -inf
  %7046 = vmax.xlane.f32.xlu0 %v7045
  %v7047 = vpop.xlane.xlu0 %7046
  %v7048 = vsel %vm592, %v7034, -inf
  %7049 = vmax.xlane.f32.xlu0 %v7048
  %v7050 = vpop.xlane.xlu0 %7049
  %v7051 = vsel %vm592, %v7035, -inf
  %7052 = vmax.xlane.f32.xlu0 %v7051
  %v7053 = vpop.xlane.xlu0 %7052
  %v7054 = vsel %vm592, %v7036, -inf
  %7055 = vmax.xlane.f32.xlu0 %v7054
  %v7056 = vpop.xlane.xlu0 %7055
  %v7057 = vsel %vm592, %v7037, -inf
  %7058 = vmax.xlane.f32.xlu0 %v7057
  %v7059 = vpop.xlane.xlu0 %7058
  %v7060 = vsel %vm592, %v7038, -inf
  %7061 = vmax.xlane.f32.xlu0 %v7060
  %v7062 = vpop.xlane.xlu0 %7061
  %v7063 = vsub.f32 %v7031, %v7041
  %v7064 = vsub.f32 %v7032, %v7044
  %v7065 = vsub.f32 %v7033, %v7047
  %v7066 = vsub.f32 %v7034, %v7050
  %v7067 = vsub.f32 %v7035, %v7053
  %v7068 = vsub.f32 %v7036, %v7056
  %v7069 = vsub.f32 %v7037, %v7059
  %v7070 = vsub.f32 %v7038, %v7062
  %v7071 = vmul.f32 %v7063, 1.442695
  %v7072 = vpow.pop %v7071
  %v7073 = vmul.f32 %v7064, 1.442695
  %v7074 = vpow.pop %v7073
  %v7075 = vmul.f32 %v7065, 1.442695
  %v7076 = vpow.pop %v7075
  %v7077 = vmul.f32 %v7066, 1.442695
  %v7078 = vpow.pop %v7077
  %v7079 = vmul.f32 %v7067, 1.442695
  %v7080 = vpow.pop %v7079
  %v7081 = vmul.f32 %v7068, 1.442695
  %v7082 = vpow.pop %v7081
  %v7083 = vmul.f32 %v7069, 1.442695
  %v7084 = vpow.pop %v7083
  %v7085 = vmul.f32 %v7070, 1.442695
  %v7086 = vpow.pop %v7085
  %v7087 = vsel %vm592, %v7072, 0.0
  %7088 = vadd.xlane.f32.xlu0 %v7087
  %v7089 = vpop.xlane.xlu0 %7088
  %v7090 = vsel %vm592, %v7074, 0.0
  %7091 = vadd.xlane.f32.xlu0 %v7090
  %v7092 = vpop.xlane.xlu0 %7091
  %v7093 = vsel %vm592, %v7076, 0.0
  %7094 = vadd.xlane.f32.xlu0 %v7093
  %v7095 = vpop.xlane.xlu0 %7094
  %v7096 = vsel %vm592, %v7078, 0.0
  %7097 = vadd.xlane.f32.xlu0 %v7096
  %v7098 = vpop.xlane.xlu0 %7097
  %v7099 = vsel %vm592, %v7080, 0.0
  %7100 = vadd.xlane.f32.xlu0 %v7099
  %v7101 = vpop.xlane.xlu0 %7100
  %v7102 = vsel %vm592, %v7082, 0.0
  %7103 = vadd.xlane.f32.xlu0 %v7102
  %v7104 = vpop.xlane.xlu0 %7103
  %v7105 = vsel %vm592, %v7084, 0.0
  %7106 = vadd.xlane.f32.xlu0 %v7105
  %v7107 = vpop.xlane.xlu0 %7106
  %v7108 = vsel %vm592, %v7086, 0.0
  %7109 = vadd.xlane.f32.xlu0 %v7108
  %v7110 = vpop.xlane.xlu0 %7109
  %v7111 = vrcp.pop %v7089
  %v7112 = vrcp.pop %v7092
  %v7113 = vrcp.pop %v7095
  %v7114 = vrcp.pop %v7098
  %v7115 = vrcp.pop %v7101
  %v7116 = vrcp.pop %v7104
  %v7117 = vrcp.pop %v7107
  %v7118 = vrcp.pop %v7110
  %v7119 = vmul.f32 %v7072, %v7111
  %v7120 = vmul.f32 %v7074, %v7112
  %v7121 = vmul.f32 %v7076, %v7113
  %v7122 = vmul.f32 %v7078, %v7114
  %v7123 = vmul.f32 %v7080, %v7115
  %v7124 = vmul.f32 %v7082, %v7116
  %v7125 = vmul.f32 %v7084, %v7117
  %v7126 = vmul.f32 %v7086, %v7118
  %v7128 = vsel %vm592, %v7119, 0
  %7130 = vmatprep.subr.mxu0 0.0
  %7131 = vmatpush1.msra.mxu0 %v6377
  %7132 = vmatprep.subr.mxu0 0.0
  %7133 = vmatpush1.msra.mxu0 0.0
  %7134 = vmatprep.subr.mxu0 0.0
  %7135 = vmatpush1.msra.mxu0 0.0
  %7136 = vmatprep.subr.mxu0 0.0
  %7137 = vmatpush1.msra.mxu0 0.0
  %7138 = vmatprep.subr.mxu0 0.0
  %7139 = vmatpush1.msra.mxu0 0.0
  %7140 = vmatprep.subr.mxu0 0.0
  %7141 = vmatpush1.msra.mxu0 0.0
  %7142 = vmatprep.subr.mxu0 0.0
  %7143 = vmatpush1.msra.mxu0 0.0
  %7144 = vmatprep.subr.mxu0 0.0
  %7145 = vmatpush1.msra.mxu0 0.0
  %7146 = vmatprep.subr.mxu0 0.0
  %7147 = vmatpush1.msra.mxu0 0.0
  %7148 = vmatprep.subr.mxu0 0.0
  %7149 = vmatpush1.msra.mxu0 0.0
  %7150 = vmatprep.subr.mxu0 0.0
  %7151 = vmatpush1.msra.mxu0 0.0
  %7152 = vmatprep.subr.mxu0 0.0
  %7153 = vmatpush1.msra.mxu0 0.0
  %7154 = vmatprep.subr.mxu0 0.0
  %7155 = vmatpush1.msra.mxu0 0.0
  %7156 = vmatprep.subr.mxu0 0.0
  %7157 = vmatpush1.msra.mxu0 0.0
  %7158 = vmatprep.subr.mxu0 0.0
  %7159 = vmatpush1.msra.mxu0 0.0
  %7160 = vmatprep.subr.mxu0 0.0
  %7161 = vmatpush1.msra.mxu0 0.0
  %7162 = vmatprep.subr.mxu0 0.0
  %7163 = vmatpush1.msra.mxu0 0.0
  %7164 = vmatprep.subr.mxu0 0.0
  %7165 = vmatpush1.msra.mxu0 0.0
  %7166 = vmatprep.subr.mxu0 0.0
  %7167 = vmatpush1.msra.mxu0 0.0
  %7168 = vmatprep.subr.mxu0 0.0
  %7169 = vmatpush1.msra.mxu0 0.0
  %7170 = vmatprep.subr.mxu0 0.0
  %7171 = vmatpush1.msra.mxu0 0.0
  %7172 = vmatprep.subr.mxu0 0.0
  %7173 = vmatpush1.msra.mxu0 0.0
  %7174 = vmatprep.subr.mxu0 0.0
  %7175 = vmatpush1.msra.mxu0 0.0
  %7176 = vmatprep.subr.mxu0 0.0
  %7177 = vmatpush1.msra.mxu0 0.0
  %7178 = vmatprep.subr.mxu0 0.0
  %7179 = vmatpush1.msra.mxu0 0.0
  %7180 = vmatprep.subr.mxu0 0.0
  %7181 = vmatpush1.msra.mxu0 0.0
  %7182 = vmatprep.subr.mxu0 0.0
  %7183 = vmatpush1.msra.mxu0 0.0
  %7184 = vmatprep.subr.mxu0 0.0
  %7185 = vmatpush1.msra.mxu0 0.0
  %7186 = vmatprep.subr.mxu0 0.0
  %7187 = vmatpush1.msra.mxu0 0.0
  %7188 = vmatprep.subr.mxu0 0.0
  %7189 = vmatpush1.msra.mxu0 0.0
  %7190 = vmatprep.subr.mxu0 0.0
  %7191 = vmatpush1.msra.mxu0 0.0
  %7192 = vmatprep.subr.mxu0 0.0
  %7193 = vmatpush1.msra.mxu0 0.0
  %7194 = vmatprep.mubr.f32.mxu0 0.0
  %7195 = vmatmul.mubr.f32.gmra.mrb[0].mxu0 %v7128
  %v7196 = vpop.f32.mrb[0].mxu0
  %v7197 = vadd.f32 0.0, %v7196
  %v7198 = vpop.f32.mrb[0].mxu0
  %7199 = vdwg.mxu0
  %v7201 = vsel %vm592, %v7120, 0
  %7203 = vmatprep.subr.mxu0 0.0
  %7204 = vmatpush1.msra.mxu0 %v6382
  %7205 = vmatprep.subr.mxu0 0.0
  %7206 = vmatpush1.msra.mxu0 0.0
  %7207 = vmatprep.subr.mxu0 0.0
  %7208 = vmatpush1.msra.mxu0 0.0
  %7209 = vmatprep.subr.mxu0 0.0
  %7210 = vmatpush1.msra.mxu0 0.0
  %7211 = vmatprep.subr.mxu0 0.0
  %7212 = vmatpush1.msra.mxu0 0.0
  %7213 = vmatprep.subr.mxu0 0.0
  %7214 = vmatpush1.msra.mxu0 0.0
  %7215 = vmatprep.subr.mxu0 0.0
  %7216 = vmatpush1.msra.mxu0 0.0
  %7217 = vmatprep.subr.mxu0 0.0
  %7218 = vmatpush1.msra.mxu0 0.0
  %7219 = vmatprep.subr.mxu0 0.0
  %7220 = vmatpush1.msra.mxu0 0.0
  %7221 = vmatprep.subr.mxu0 0.0
  %7222 = vmatpush1.msra.mxu0 0.0
  %7223 = vmatprep.subr.mxu0 0.0
  %7224 = vmatpush1.msra.mxu0 0.0
  %7225 = vmatprep.subr.mxu0 0.0
  %7226 = vmatpush1.msra.mxu0 0.0
  %7227 = vmatprep.subr.mxu0 0.0
  %7228 = vmatpush1.msra.mxu0 0.0
  %7229 = vmatprep.subr.mxu0 0.0
  %7230 = vmatpush1.msra.mxu0 0.0
  %7231 = vmatprep.subr.mxu0 0.0
  %7232 = vmatpush1.msra.mxu0 0.0
  %7233 = vmatprep.subr.mxu0 0.0
  %7234 = vmatpush1.msra.mxu0 0.0
  %7235 = vmatprep.subr.mxu0 0.0
  %7236 = vmatpush1.msra.mxu0 0.0
  %7237 = vmatprep.subr.mxu0 0.0
  %7238 = vmatpush1.msra.mxu0 0.0
  %7239 = vmatprep.subr.mxu0 0.0
  %7240 = vmatpush1.msra.mxu0 0.0
  %7241 = vmatprep.subr.mxu0 0.0
  %7242 = vmatpush1.msra.mxu0 0.0
  %7243 = vmatprep.subr.mxu0 0.0
  %7244 = vmatpush1.msra.mxu0 0.0
  %7245 = vmatprep.subr.mxu0 0.0
  %7246 = vmatpush1.msra.mxu0 0.0
  %7247 = vmatprep.subr.mxu0 0.0
  %7248 = vmatpush1.msra.mxu0 0.0
  %7249 = vmatprep.subr.mxu0 0.0
  %7250 = vmatpush1.msra.mxu0 0.0
  %7251 = vmatprep.subr.mxu0 0.0
  %7252 = vmatpush1.msra.mxu0 0.0
  %7253 = vmatprep.subr.mxu0 0.0
  %7254 = vmatpush1.msra.mxu0 0.0
  %7255 = vmatprep.subr.mxu0 0.0
  %7256 = vmatpush1.msra.mxu0 0.0
  %7257 = vmatprep.subr.mxu0 0.0
  %7258 = vmatpush1.msra.mxu0 0.0
  %7259 = vmatprep.subr.mxu0 0.0
  %7260 = vmatpush1.msra.mxu0 0.0
  %7261 = vmatprep.subr.mxu0 0.0
  %7262 = vmatpush1.msra.mxu0 0.0
  %7263 = vmatprep.subr.mxu0 0.0
  %7264 = vmatpush1.msra.mxu0 0.0
  %7265 = vmatprep.subr.mxu0 0.0
  %7266 = vmatpush1.msra.mxu0 0.0
  %7267 = vmatprep.mubr.f32.mxu0 0.0
  %7268 = vmatmul.mubr.f32.gmra.mrb[0].mxu0 %v7201
  %v7269 = vpop.f32.mrb[0].mxu0
  %v7270 = vadd.f32 0.0, %v7269
  %v7271 = vpop.f32.mrb[0].mxu0
  %7272 = vdwg.mxu0
  %v7274 = vsel %vm592, %v7121, 0
  %7276 = vmatprep.subr.mxu0 0.0
  %7277 = vmatpush1.msra.mxu0 %v6387
  %7278 = vmatprep.subr.mxu0 0.0
  %7279 = vmatpush1.msra.mxu0 0.0
  %7280 = vmatprep.subr.mxu0 0.0
  %7281 = vmatpush1.msra.mxu0 0.0
  %7282 = vmatprep.subr.mxu0 0.0
  %7283 = vmatpush1.msra.mxu0 0.0
  %7284 = vmatprep.subr.mxu0 0.0
  %7285 = vmatpush1.msra.mxu0 0.0
  %7286 = vmatprep.subr.mxu0 0.0
  %7287 = vmatpush1.msra.mxu0 0.0
  %7288 = vmatprep.subr.mxu0 0.0
  %7289 = vmatpush1.msra.mxu0 0.0
  %7290 = vmatprep.subr.mxu0 0.0
  %7291 = vmatpush1.msra.mxu0 0.0
  %7292 = vmatprep.subr.mxu0 0.0
  %7293 = vmatpush1.msra.mxu0 0.0
  %7294 = vmatprep.subr.mxu0 0.0
  %7295 = vmatpush1.msra.mxu0 0.0
  %7296 = vmatprep.subr.mxu0 0.0
  %7297 = vmatpush1.msra.mxu0 0.0
  %7298 = vmatprep.subr.mxu0 0.0
  %7299 = vmatpush1.msra.mxu0 0.0
  %7300 = vmatprep.subr.mxu0 0.0
  %7301 = vmatpush1.msra.mxu0 0.0
  %7302 = vmatprep.subr.mxu0 0.0
  %7303 = vmatpush1.msra.mxu0 0.0
  %7304 = vmatprep.subr.mxu0 0.0
  %7305 = vmatpush1.msra.mxu0 0.0
  %7306 = vmatprep.subr.mxu0 0.0
  %7307 = vmatpush1.msra.mxu0 0.0
  %7308 = vmatprep.subr.mxu0 0.0
  %7309 = vmatpush1.msra.mxu0 0.0
  %7310 = vmatprep.subr.mxu0 0.0
  %7311 = vmatpush1.msra.mxu0 0.0
  %7312 = vmatprep.subr.mxu0 0.0
  %7313 = vmatpush1.msra.mxu0 0.0
  %7314 = vmatprep.subr.mxu0 0.0
  %7315 = vmatpush1.msra.mxu0 0.0
  %7316 = vmatprep.subr.mxu0 0.0
  %7317 = vmatpush1.msra.mxu0 0.0
  %7318 = vmatprep.subr.mxu0 0.0
  %7319 = vmatpush1.msra.mxu0 0.0
  %7320 = vmatprep.subr.mxu0 0.0
  %7321 = vmatpush1.msra.mxu0 0.0
  %7322 = vmatprep.subr.mxu0 0.0
  %7323 = vmatpush1.msra.mxu0 0.0
  %7324 = vmatprep.subr.mxu0 0.0
  %7325 = vmatpush1.msra.mxu0 0.0
  %7326 = vmatprep.subr.mxu0 0.0
  %7327 = vmatpush1.msra.mxu0 0.0
  %7328 = vmatprep.subr.mxu0 0.0
  %7329 = vmatpush1.msra.mxu0 0.0
  %7330 = vmatprep.subr.mxu0 0.0
  %7331 = vmatpush1.msra.mxu0 0.0
  %7332 = vmatprep.subr.mxu0 0.0
  %7333 = vmatpush1.msra.mxu0 0.0
  %7334 = vmatprep.subr.mxu0 0.0
  %7335 = vmatpush1.msra.mxu0 0.0
  %7336 = vmatprep.subr.mxu0 0.0
  %7337 = vmatpush1.msra.mxu0 0.0
  %7338 = vmatprep.subr.mxu0 0.0
  %7339 = vmatpush1.msra.mxu0 0.0
  %7340 = vmatprep.mubr.f32.mxu0 0.0
  %7341 = vmatmul.mubr.f32.gmra.mrb[0].mxu0 %v7274
  %v7342 = vpop.f32.mrb[0].mxu0
  %v7343 = vadd.f32 0.0, %v7342
  %v7344 = vpop.f32.mrb[0].mxu0
  %7345 = vdwg.mxu0
  %v7347 = vsel %vm592, %v7122, 0
  %7349 = vmatprep.subr.mxu0 0.0
  %7350 = vmatpush1.msra.mxu0 %v6392
  %7351 = vmatprep.subr.mxu0 0.0
  %7352 = vmatpush1.msra.mxu0 0.0
  %7353 = vmatprep.subr.mxu0 0.0
  %7354 = vmatpush1.msra.mxu0 0.0
  %7355 = vmatprep.subr.mxu0 0.0
  %7356 = vmatpush1.msra.mxu0 0.0
  %7357 = vmatprep.subr.mxu0 0.0
  %7358 = vmatpush1.msra.mxu0 0.0
  %7359 = vmatprep.subr.mxu0 0.0
  %7360 = vmatpush1.msra.mxu0 0.0
  %7361 = vmatprep.subr.mxu0 0.0
  %7362 = vmatpush1.msra.mxu0 0.0
  %7363 = vmatprep.subr.mxu0 0.0
  %7364 = vmatpush1.msra.mxu0 0.0
  %7365 = vmatprep.subr.mxu0 0.0
  %7366 = vmatpush1.msra.mxu0 0.0
  %7367 = vmatprep.subr.mxu0 0.0
  %7368 = vmatpush1.msra.mxu0 0.0
  %7369 = vmatprep.subr.mxu0 0.0
  %7370 = vmatpush1.msra.mxu0 0.0
  %7371 = vmatprep.subr.mxu0 0.0
  %7372 = vmatpush1.msra.mxu0 0.0
  %7373 = vmatprep.subr.mxu0 0.0
  %7374 = vmatpush1.msra.mxu0 0.0
  %7375 = vmatprep.subr.mxu0 0.0
  %7376 = vmatpush1.msra.mxu0 0.0
  %7377 = vmatprep.subr.mxu0 0.0
  %7378 = vmatpush1.msra.mxu0 0.0
  %7379 = vmatprep.subr.mxu0 0.0
  %7380 = vmatpush1.msra.mxu0 0.0
  %7381 = vmatprep.subr.mxu0 0.0
  %7382 = vmatpush1.msra.mxu0 0.0
  %7383 = vmatprep.subr.mxu0 0.0
  %7384 = vmatpush1.msra.mxu0 0.0
  %7385 = vmatprep.subr.mxu0 0.0
  %7386 = vmatpush1.msra.mxu0 0.0
  %7387 = vmatprep.subr.mxu0 0.0
  %7388 = vmatpush1.msra.mxu0 0.0
  %7389 = vmatprep.subr.mxu0 0.0
  %7390 = vmatpush1.msra.mxu0 0.0
  %7391 = vmatprep.subr.mxu0 0.0
  %7392 = vmatpush1.msra.mxu0 0.0
  %7393 = vmatprep.subr.mxu0 0.0
  %7394 = vmatpush1.msra.mxu0 0.0
  %7395 = vmatprep.subr.mxu0 0.0
  %7396 = vmatpush1.msra.mxu0 0.0
  %7397 = vmatprep.subr.mxu0 0.0
  %7398 = vmatpush1.msra.mxu0 0.0
  %7399 = vmatprep.subr.mxu0 0.0
  %7400 = vmatpush1.msra.mxu0 0.0
  %7401 = vmatprep.subr.mxu0 0.0
  %7402 = vmatpush1.msra.mxu0 0.0
  %7403 = vmatprep.subr.mxu0 0.0
  %7404 = vmatpush1.msra.mxu0 0.0
  %7405 = vmatprep.subr.mxu0 0.0
  %7406 = vmatpush1.msra.mxu0 0.0
  %7407 = vmatprep.subr.mxu0 0.0
  %7408 = vmatpush1.msra.mxu0 0.0
  %7409 = vmatprep.subr.mxu0 0.0
  %7410 = vmatpush1.msra.mxu0 0.0
  %7411 = vmatprep.subr.mxu0 0.0
  %7412 = vmatpush1.msra.mxu0 0.0
  %7413 = vmatprep.mubr.f32.mxu0 0.0
  %7414 = vmatmul.mubr.f32.gmra.mrb[0].mxu0 %v7347
  %v7415 = vpop.f32.mrb[0].mxu0
  %v7416 = vadd.f32 0.0, %v7415
  %v7417 = vpop.f32.mrb[0].mxu0
  %7418 = vdwg.mxu0
  %v7420 = vsel %vm592, %v7123, 0
  %7422 = vmatprep.subr.mxu0 0.0
  %7423 = vmatpush1.msra.mxu0 %v6397
  %7424 = vmatprep.subr.mxu0 0.0
  %7425 = vmatpush1.msra.mxu0 0.0
  %7426 = vmatprep.subr.mxu0 0.0
  %7427 = vmatpush1.msra.mxu0 0.0
  %7428 = vmatprep.subr.mxu0 0.0
  %7429 = vmatpush1.msra.mxu0 0.0
  %7430 = vmatprep.subr.mxu0 0.0
  %7431 = vmatpush1.msra.mxu0 0.0
  %7432 = vmatprep.subr.mxu0 0.0
  %7433 = vmatpush1.msra.mxu0 0.0
  %7434 = vmatprep.subr.mxu0 0.0
  %7435 = vmatpush1.msra.mxu0 0.0
  %7436 = vmatprep.subr.mxu0 0.0
  %7437 = vmatpush1.msra.mxu0 0.0
  %7438 = vmatprep.subr.mxu0 0.0
  %7439 = vmatpush1.msra.mxu0 0.0
  %7440 = vmatprep.subr.mxu0 0.0
  %7441 = vmatpush1.msra.mxu0 0.0
  %7442 = vmatprep.subr.mxu0 0.0
  %7443 = vmatpush1.msra.mxu0 0.0
  %7444 = vmatprep.subr.mxu0 0.0
  %7445 = vmatpush1.msra.mxu0 0.0
  %7446 = vmatprep.subr.mxu0 0.0
  %7447 = vmatpush1.msra.mxu0 0.0
  %7448 = vmatprep.subr.mxu0 0.0
  %7449 = vmatpush1.msra.mxu0 0.0
  %7450 = vmatprep.subr.mxu0 0.0
  %7451 = vmatpush1.msra.mxu0 0.0
  %7452 = vmatprep.subr.mxu0 0.0
  %7453 = vmatpush1.msra.mxu0 0.0
  %7454 = vmatprep.subr.mxu0 0.0
  %7455 = vmatpush1.msra.mxu0 0.0
  %7456 = vmatprep.subr.mxu0 0.0
  %7457 = vmatpush1.msra.mxu0 0.0
  %7458 = vmatprep.subr.mxu0 0.0
  %7459 = vmatpush1.msra.mxu0 0.0
  %7460 = vmatprep.subr.mxu0 0.0
  %7461 = vmatpush1.msra.mxu0 0.0
  %7462 = vmatprep.subr.mxu0 0.0
  %7463 = vmatpush1.msra.mxu0 0.0
  %7464 = vmatprep.subr.mxu0 0.0
  %7465 = vmatpush1.msra.mxu0 0.0
  %7466 = vmatprep.subr.mxu0 0.0
  %7467 = vmatpush1.msra.mxu0 0.0
  %7468 = vmatprep.subr.mxu0 0.0
  %7469 = vmatpush1.msra.mxu0 0.0
  %7470 = vmatprep.subr.mxu0 0.0
  %7471 = vmatpush1.msra.mxu0 0.0
  %7472 = vmatprep.subr.mxu0 0.0
  %7473 = vmatpush1.msra.mxu0 0.0
  %7474 = vmatprep.subr.mxu0 0.0
  %7475 = vmatpush1.msra.mxu0 0.0
  %7476 = vmatprep.subr.mxu0 0.0
  %7477 = vmatpush1.msra.mxu0 0.0
  %7478 = vmatprep.subr.mxu0 0.0
  %7479 = vmatpush1.msra.mxu0 0.0
  %7480 = vmatprep.subr.mxu0 0.0
  %7481 = vmatpush1.msra.mxu0 0.0
  %7482 = vmatprep.subr.mxu0 0.0
  %7483 = vmatpush1.msra.mxu0 0.0
  %7484 = vmatprep.subr.mxu0 0.0
  %7485 = vmatpush1.msra.mxu0 0.0
  %7486 = vmatprep.mubr.f32.mxu0 0.0
  %7487 = vmatmul.mubr.f32.gmra.mrb[0].mxu0 %v7420
  %v7488 = vpop.f32.mrb[0].mxu0
  %v7489 = vadd.f32 0.0, %v7488
  %v7490 = vpop.f32.mrb[0].mxu0
  %7491 = vdwg.mxu0
  %v7493 = vsel %vm592, %v7124, 0
  %7495 = vmatprep.subr.mxu0 0.0
  %7496 = vmatpush1.msra.mxu0 %v6402
  %7497 = vmatprep.subr.mxu0 0.0
  %7498 = vmatpush1.msra.mxu0 0.0
  %7499 = vmatprep.subr.mxu0 0.0
  %7500 = vmatpush1.msra.mxu0 0.0
  %7501 = vmatprep.subr.mxu0 0.0
  %7502 = vmatpush1.msra.mxu0 0.0
  %7503 = vmatprep.subr.mxu0 0.0
  %7504 = vmatpush1.msra.mxu0 0.0
  %7505 = vmatprep.subr.mxu0 0.0
  %7506 = vmatpush1.msra.mxu0 0.0
  %7507 = vmatprep.subr.mxu0 0.0
  %7508 = vmatpush1.msra.mxu0 0.0
  %7509 = vmatprep.subr.mxu0 0.0
  %7510 = vmatpush1.msra.mxu0 0.0
  %7511 = vmatprep.subr.mxu0 0.0
  %7512 = vmatpush1.msra.mxu0 0.0
  %7513 = vmatprep.subr.mxu0 0.0
  %7514 = vmatpush1.msra.mxu0 0.0
  %7515 = vmatprep.subr.mxu0 0.0
  %7516 = vmatpush1.msra.mxu0 0.0
  %7517 = vmatprep.subr.mxu0 0.0
  %7518 = vmatpush1.msra.mxu0 0.0
  %7519 = vmatprep.subr.mxu0 0.0
  %7520 = vmatpush1.msra.mxu0 0.0
  %7521 = vmatprep.subr.mxu0 0.0
  %7522 = vmatpush1.msra.mxu0 0.0
  %7523 = vmatprep.subr.mxu0 0.0
  %7524 = vmatpush1.msra.mxu0 0.0
  %7525 = vmatprep.subr.mxu0 0.0
  %7526 = vmatpush1.msra.mxu0 0.0
  %7527 = vmatprep.subr.mxu0 0.0
  %7528 = vmatpush1.msra.mxu0 0.0
  %7529 = vmatprep.subr.mxu0 0.0
  %7530 = vmatpush1.msra.mxu0 0.0
  %7531 = vmatprep.subr.mxu0 0.0
  %7532 = vmatpush1.msra.mxu0 0.0
  %7533 = vmatprep.subr.mxu0 0.0
  %7534 = vmatpush1.msra.mxu0 0.0
  %7535 = vmatprep.subr.mxu0 0.0
  %7536 = vmatpush1.msra.mxu0 0.0
  %7537 = vmatprep.subr.mxu0 0.0
  %7538 = vmatpush1.msra.mxu0 0.0
  %7539 = vmatprep.subr.mxu0 0.0
  %7540 = vmatpush1.msra.mxu0 0.0
  %7541 = vmatprep.subr.mxu0 0.0
  %7542 = vmatpush1.msra.mxu0 0.0
  %7543 = vmatprep.subr.mxu0 0.0
  %7544 = vmatpush1.msra.mxu0 0.0
  %7545 = vmatprep.subr.mxu0 0.0
  %7546 = vmatpush1.msra.mxu0 0.0
  %7547 = vmatprep.subr.mxu0 0.0
  %7548 = vmatpush1.msra.mxu0 0.0
  %7549 = vmatprep.subr.mxu0 0.0
  %7550 = vmatpush1.msra.mxu0 0.0
  %7551 = vmatprep.subr.mxu0 0.0
  %7552 = vmatpush1.msra.mxu0 0.0
  %7553 = vmatprep.subr.mxu0 0.0
  %7554 = vmatpush1.msra.mxu0 0.0
  %7555 = vmatprep.subr.mxu0 0.0
  %7556 = vmatpush1.msra.mxu0 0.0
  %7557 = vmatprep.subr.mxu0 0.0
  %7558 = vmatpush1.msra.mxu0 0.0
  %7559 = vmatprep.mubr.f32.mxu0 0.0
  %7560 = vmatmul.mubr.f32.gmra.mrb[0].mxu0 %v7493
  %v7561 = vpop.f32.mrb[0].mxu0
  %v7562 = vadd.f32 0.0, %v7561
  %v7563 = vpop.f32.mrb[0].mxu0
  %7564 = vdwg.mxu0
  %v7566 = vsel %vm592, %v7125, 0
  %7568 = vmatprep.subr.mxu0 0.0
  %7569 = vmatpush1.msra.mxu0 %v6407
  %7570 = vmatprep.subr.mxu0 0.0
  %7571 = vmatpush1.msra.mxu0 0.0
  %7572 = vmatprep.subr.mxu0 0.0
  %7573 = vmatpush1.msra.mxu0 0.0
  %7574 = vmatprep.subr.mxu0 0.0
  %7575 = vmatpush1.msra.mxu0 0.0
  %7576 = vmatprep.subr.mxu0 0.0
  %7577 = vmatpush1.msra.mxu0 0.0
  %7578 = vmatprep.subr.mxu0 0.0
  %7579 = vmatpush1.msra.mxu0 0.0
  %7580 = vmatprep.subr.mxu0 0.0
  %7581 = vmatpush1.msra.mxu0 0.0
  %7582 = vmatprep.subr.mxu0 0.0
  %7583 = vmatpush1.msra.mxu0 0.0
  %7584 = vmatprep.subr.mxu0 0.0
  %7585 = vmatpush1.msra.mxu0 0.0
  %7586 = vmatprep.subr.mxu0 0.0
  %7587 = vmatpush1.msra.mxu0 0.0
  %7588 = vmatprep.subr.mxu0 0.0
  %7589 = vmatpush1.msra.mxu0 0.0
  %7590 = vmatprep.subr.mxu0 0.0
  %7591 = vmatpush1.msra.mxu0 0.0
  %7592 = vmatprep.subr.mxu0 0.0
  %7593 = vmatpush1.msra.mxu0 0.0
  %7594 = vmatprep.subr.mxu0 0.0
  %7595 = vmatpush1.msra.mxu0 0.0
  %7596 = vmatprep.subr.mxu0 0.0
  %7597 = vmatpush1.msra.mxu0 0.0
  %7598 = vmatprep.subr.mxu0 0.0
  %7599 = vmatpush1.msra.mxu0 0.0
  %7600 = vmatprep.subr.mxu0 0.0
  %7601 = vmatpush1.msra.mxu0 0.0
  %7602 = vmatprep.subr.mxu0 0.0
  %7603 = vmatpush1.msra.mxu0 0.0
  %7604 = vmatprep.subr.mxu0 0.0
  %7605 = vmatpush1.msra.mxu0 0.0
  %7606 = vmatprep.subr.mxu0 0.0
  %7607 = vmatpush1.msra.mxu0 0.0
  %7608 = vmatprep.subr.mxu0 0.0
  %7609 = vmatpush1.msra.mxu0 0.0
  %7610 = vmatprep.subr.mxu0 0.0
  %7611 = vmatpush1.msra.mxu0 0.0
  %7612 = vmatprep.subr.mxu0 0.0
  %7613 = vmatpush1.msra.mxu0 0.0
  %7614 = vmatprep.subr.mxu0 0.0
  %7615 = vmatpush1.msra.mxu0 0.0
  %7616 = vmatprep.subr.mxu0 0.0
  %7617 = vmatpush1.msra.mxu0 0.0
  %7618 = vmatprep.subr.mxu0 0.0
  %7619 = vmatpush1.msra.mxu0 0.0
  %7620 = vmatprep.subr.mxu0 0.0
  %7621 = vmatpush1.msra.mxu0 0.0
  %7622 = vmatprep.subr.mxu0 0.0
  %7623 = vmatpush1.msra.mxu0 0.0
  %7624 = vmatprep.subr.mxu0 0.0
  %7625 = vmatpush1.msra.mxu0 0.0
  %7626 = vmatprep.subr.mxu0 0.0
  %7627 = vmatpush1.msra.mxu0 0.0
  %7628 = vmatprep.subr.mxu0 0.0
  %7629 = vmatpush1.msra.mxu0 0.0
  %7630 = vmatprep.subr.mxu0 0.0
  %7631 = vmatpush1.msra.mxu0 0.0
  %7632 = vmatprep.mubr.f32.mxu0 0.0
  %7633 = vmatmul.mubr.f32.gmra.mrb[0].mxu0 %v7566
  %v7634 = vpop.f32.mrb[0].mxu0
  %v7635 = vadd.f32 0.0, %v7634
  %v7636 = vpop.f32.mrb[0].mxu0
  %7637 = vdwg.mxu0
  %v7639 = vsel %vm592, %v7126, 0
  %7641 = vmatprep.subr.mxu0 0.0
  %7642 = vmatpush1.msra.mxu0 %v6412
  %7643 = vmatprep.subr.mxu0 0.0
  %7644 = vmatpush1.msra.mxu0 0.0
  %7645 = vmatprep.subr.mxu0 0.0
  %7646 = vmatpush1.msra.mxu0 0.0
  %7647 = vmatprep.subr.mxu0 0.0
  %7648 = vmatpush1.msra.mxu0 0.0
  %7649 = vmatprep.subr.mxu0 0.0
  %7650 = vmatpush1.msra.mxu0 0.0
  %7651 = vmatprep.subr.mxu0 0.0
  %7652 = vmatpush1.msra.mxu0 0.0
  %7653 = vmatprep.subr.mxu0 0.0
  %7654 = vmatpush1.msra.mxu0 0.0
  %7655 = vmatprep.subr.mxu0 0.0
  %7656 = vmatpush1.msra.mxu0 0.0
  %7657 = vmatprep.subr.mxu0 0.0
  %7658 = vmatpush1.msra.mxu0 0.0
  %7659 = vmatprep.subr.mxu0 0.0
  %7660 = vmatpush1.msra.mxu0 0.0
  %7661 = vmatprep.subr.mxu0 0.0
  %7662 = vmatpush1.msra.mxu0 0.0
  %7663 = vmatprep.subr.mxu0 0.0
  %7664 = vmatpush1.msra.mxu0 0.0
  %7665 = vmatprep.subr.mxu0 0.0
  %7666 = vmatpush1.msra.mxu0 0.0
  %7667 = vmatprep.subr.mxu0 0.0
  %7668 = vmatpush1.msra.mxu0 0.0
  %7669 = vmatprep.subr.mxu0 0.0
  %7670 = vmatpush1.msra.mxu0 0.0
  %7671 = vmatprep.subr.mxu0 0.0
  %7672 = vmatpush1.msra.mxu0 0.0
  %7673 = vmatprep.subr.mxu0 0.0
  %7674 = vmatpush1.msra.mxu0 0.0
  %7675 = vmatprep.subr.mxu0 0.0
  %7676 = vmatpush1.msra.mxu0 0.0
  %7677 = vmatprep.subr.mxu0 0.0
  %7678 = vmatpush1.msra.mxu0 0.0
  %7679 = vmatprep.subr.mxu0 0.0
  %7680 = vmatpush1.msra.mxu0 0.0
  %7681 = vmatprep.subr.mxu0 0.0
  %7682 = vmatpush1.msra.mxu0 0.0
  %7683 = vmatprep.subr.mxu0 0.0
  %7684 = vmatpush1.msra.mxu0 0.0
  %7685 = vmatprep.subr.mxu0 0.0
  %7686 = vmatpush1.msra.mxu0 0.0
  %7687 = vmatprep.subr.mxu0 0.0
  %7688 = vmatpush1.msra.mxu0 0.0
  %7689 = vmatprep.subr.mxu0 0.0
  %7690 = vmatpush1.msra.mxu0 0.0
  %7691 = vmatprep.subr.mxu0 0.0
  %7692 = vmatpush1.msra.mxu0 0.0
  %7693 = vmatprep.subr.mxu0 0.0
  %7694 = vmatpush1.msra.mxu0 0.0
  %7695 = vmatprep.subr.mxu0 0.0
  %7696 = vmatpush1.msra.mxu0 0.0
  %7697 = vmatprep.subr.mxu0 0.0
  %7698 = vmatpush1.msra.mxu0 0.0
  %7699 = vmatprep.subr.mxu0 0.0
  %7700 = vmatpush1.msra.mxu0 0.0
  %7701 = vmatprep.subr.mxu0 0.0
  %7702 = vmatpush1.msra.mxu0 0.0
  %7703 = vmatprep.subr.mxu0 0.0
  %7704 = vmatpush1.msra.mxu0 0.0
  %7705 = vmatprep.mubr.f32.mxu0 0.0
  %7706 = vmatmul.mubr.f32.gmra.mrb[0].mxu0 %v7639
  %v7707 = vpop.f32.mrb[0].mxu0
  %v7708 = vadd.f32 0.0, %v7707
  %v7709 = vpop.f32.mrb[0].mxu0
  %7710 = vdwg.mxu0
  %s7711 = scalar_lea.vmem %s11, 24
  %v7712 = vld [vmem:[%s7711] sm:$0xff]
  %v7714 = vsel %vm592, %v7197, 0
  %v7717 = vsel %vm592, %v7270, 0
  %v7720 = vsel %vm592, %v7343, 0
  %v7723 = vsel %vm592, %v7416, 0
  %v7726 = vsel %vm592, %v7489, 0
  %v7729 = vsel %vm592, %v7562, 0
  %v7732 = vsel %vm592, %v7635, 0
  %v7735 = vsel %vm592, %v7708, 0
  %7737 = vmatprep.subr.mxu0 0.0
  %7738 = vmatpush1.msra.mxu0 %v7712
  %7739 = vmatprep.subr.mxu0 0.0
  %7740 = vmatpush1.msra.mxu0 0.0
  %7741 = vmatprep.subr.mxu0 0.0
  %7742 = vmatpush1.msra.mxu0 0.0
  %7743 = vmatprep.subr.mxu0 0.0
  %7744 = vmatpush1.msra.mxu0 0.0
  %7745 = vmatprep.subr.mxu0 0.0
  %7746 = vmatpush1.msra.mxu0 0.0
  %7747 = vmatprep.subr.mxu0 0.0
  %7748 = vmatpush1.msra.mxu0 0.0
  %7749 = vmatprep.subr.mxu0 0.0
  %7750 = vmatpush1.msra.mxu0 0.0
  %7751 = vmatprep.subr.mxu0 0.0
  %7752 = vmatpush1.msra.mxu0 0.0
  %7753 = vmatprep.subr.mxu0 0.0
  %7754 = vmatpush1.msra.mxu0 0.0
  %7755 = vmatprep.subr.mxu0 0.0
  %7756 = vmatpush1.msra.mxu0 0.0
  %7757 = vmatprep.subr.mxu0 0.0
  %7758 = vmatpush1.msra.mxu0 0.0
  %7759 = vmatprep.subr.mxu0 0.0
  %7760 = vmatpush1.msra.mxu0 0.0
  %7761 = vmatprep.subr.mxu0 0.0
  %7762 = vmatpush1.msra.mxu0 0.0
  %7763 = vmatprep.subr.mxu0 0.0
  %7764 = vmatpush1.msra.mxu0 0.0
  %7765 = vmatprep.subr.mxu0 0.0
  %7766 = vmatpush1.msra.mxu0 0.0
  %7767 = vmatprep.subr.mxu0 0.0
  %7768 = vmatpush1.msra.mxu0 0.0
  %7769 = vmatprep.subr.mxu0 0.0
  %7770 = vmatpush1.msra.mxu0 0.0
  %7771 = vmatprep.subr.mxu0 0.0
  %7772 = vmatpush1.msra.mxu0 0.0
  %7773 = vmatprep.subr.mxu0 0.0
  %7774 = vmatpush1.msra.mxu0 0.0
  %7775 = vmatprep.subr.mxu0 0.0
  %7776 = vmatpush1.msra.mxu0 0.0
  %7777 = vmatprep.subr.mxu0 0.0
  %7778 = vmatpush1.msra.mxu0 0.0
  %7779 = vmatprep.subr.mxu0 0.0
  %7780 = vmatpush1.msra.mxu0 0.0
  %7781 = vmatprep.subr.mxu0 0.0
  %7782 = vmatpush1.msra.mxu0 0.0
  %7783 = vmatprep.subr.mxu0 0.0
  %7784 = vmatpush1.msra.mxu0 0.0
  %7785 = vmatprep.subr.mxu0 0.0
  %7786 = vmatpush1.msra.mxu0 0.0
  %7787 = vmatprep.subr.mxu0 0.0
  %7788 = vmatpush1.msra.mxu0 0.0
  %7789 = vmatprep.subr.mxu0 0.0
  %7790 = vmatpush1.msra.mxu0 0.0
  %7791 = vmatprep.subr.mxu0 0.0
  %7792 = vmatpush1.msra.mxu0 0.0
  %7793 = vmatprep.subr.mxu0 0.0
  %7794 = vmatpush1.msra.mxu0 0.0
  %7795 = vmatprep.subr.mxu0 0.0
  %7796 = vmatpush1.msra.mxu0 0.0
  %7797 = vmatprep.subr.mxu0 0.0
  %7798 = vmatpush1.msra.mxu0 0.0
  %7799 = vmatprep.subr.mxu0 0.0
  %7800 = vmatpush1.msra.mxu0 0.0
  %7801 = vmatprep.mubr.f32.mxu0 0.0
  %7802 = vmatmul.mubr.f32.gmra.mrb[0].mxu0 %v7714
  %v7803 = vpop.f32.mrb[0].mxu0
  %v7804 = vadd.f32 0.0, %v7803
  %v7805 = vpop.f32.mrb[0].mxu0
  %7806 = vmatprep.mubr.f32.mxu0 0.0
  %7807 = vmatmul.mubr.f32.gmra.mrb[0].mxu0 %v7717
  %v7808 = vpop.f32.mrb[0].mxu0
  %v7809 = vadd.f32 0.0, %v7808
  %v7810 = vpop.f32.mrb[0].mxu0
  %7811 = vmatprep.mubr.f32.mxu0 0.0
  %7812 = vmatmul.mubr.f32.gmra.mrb[0].mxu0 %v7720
  %v7813 = vpop.f32.mrb[0].mxu0
  %v7814 = vadd.f32 0.0, %v7813
  %v7815 = vpop.f32.mrb[0].mxu0
  %7816 = vmatprep.mubr.f32.mxu0 0.0
  %7817 = vmatmul.mubr.f32.gmra.mrb[0].mxu0 %v7723
  %v7818 = vpop.f32.mrb[0].mxu0
  %v7819 = vadd.f32 0.0, %v7818
  %v7820 = vpop.f32.mrb[0].mxu0
  %7821 = vmatprep.mubr.f32.mxu0 0.0
  %7822 = vmatmul.mubr.f32.gmra.mrb[0].mxu0 %v7726
  %v7823 = vpop.f32.mrb[0].mxu0
  %v7824 = vadd.f32 0.0, %v7823
  %v7825 = vpop.f32.mrb[0].mxu0
  %7826 = vmatprep.mubr.f32.mxu0 0.0
  %7827 = vmatmul.mubr.f32.gmra.mrb[0].mxu0 %v7729
  %v7828 = vpop.f32.mrb[0].mxu0
  %v7829 = vadd.f32 0.0, %v7828
  %v7830 = vpop.f32.mrb[0].mxu0
  %7831 = vmatprep.mubr.f32.mxu0 0.0
  %7832 = vmatmul.mubr.f32.gmra.mrb[0].mxu0 %v7732
  %v7833 = vpop.f32.mrb[0].mxu0
  %v7834 = vadd.f32 0.0, %v7833
  %v7835 = vpop.f32.mrb[0].mxu0
  %7836 = vmatprep.mubr.f32.mxu0 0.0
  %7837 = vmatmul.mubr.f32.gmra.mrb[0].mxu0 %v7735
  %v7838 = vpop.f32.mrb[0].mxu0
  %v7839 = vadd.f32 0.0, %v7838
  %v7840 = vpop.f32.mrb[0].mxu0
  %7841 = vdwg.mxu0
  %v7843 = vsel %vm592, %v5551, 0
  %v7846 = vsel %vm592, %v5624, 0
  %v7849 = vsel %vm592, %v5697, 0
  %v7852 = vsel %vm592, %v5770, 0
  %v7855 = vsel %vm592, %v5843, 0
  %v7858 = vsel %vm592, %v5916, 0
  %v7861 = vsel %vm592, %v5989, 0
  %v7864 = vsel %vm592, %v6062, 0
  %7866 = vmatprep.subr.mxu0 0.0
  %7867 = vmatpush1.msra.mxu0 %v6066
  %7868 = vmatprep.subr.mxu0 0.0
  %7869 = vmatpush1.msra.mxu0 0.0
  %7870 = vmatprep.subr.mxu0 0.0
  %7871 = vmatpush1.msra.mxu0 0.0
  %7872 = vmatprep.subr.mxu0 0.0
  %7873 = vmatpush1.msra.mxu0 0.0
  %7874 = vmatprep.subr.mxu0 0.0
  %7875 = vmatpush1.msra.mxu0 0.0
  %7876 = vmatprep.subr.mxu0 0.0
  %7877 = vmatpush1.msra.mxu0 0.0
  %7878 = vmatprep.subr.mxu0 0.0
  %7879 = vmatpush1.msra.mxu0 0.0
  %7880 = vmatprep.subr.mxu0 0.0
  %7881 = vmatpush1.msra.mxu0 0.0
  %7882 = vmatprep.subr.mxu0 0.0
  %7883 = vmatpush1.msra.mxu0 0.0
  %7884 = vmatprep.subr.mxu0 0.0
  %7885 = vmatpush1.msra.mxu0 0.0
  %7886 = vmatprep.subr.mxu0 0.0
  %7887 = vmatpush1.msra.mxu0 0.0
  %7888 = vmatprep.subr.mxu0 0.0
  %7889 = vmatpush1.msra.mxu0 0.0
  %7890 = vmatprep.subr.mxu0 0.0
  %7891 = vmatpush1.msra.mxu0 0.0
  %7892 = vmatprep.subr.mxu0 0.0
  %7893 = vmatpush1.msra.mxu0 0.0
  %7894 = vmatprep.subr.mxu0 0.0
  %7895 = vmatpush1.msra.mxu0 0.0
  %7896 = vmatprep.subr.mxu0 0.0
  %7897 = vmatpush1.msra.mxu0 0.0
  %7898 = vmatprep.subr.mxu0 0.0
  %7899 = vmatpush1.msra.mxu0 0.0
  %7900 = vmatprep.subr.mxu0 0.0
  %7901 = vmatpush1.msra.mxu0 0.0
  %7902 = vmatprep.subr.mxu0 0.0
  %7903 = vmatpush1.msra.mxu0 0.0
  %7904 = vmatprep.subr.mxu0 0.0
  %7905 = vmatpush1.msra.mxu0 0.0
  %7906 = vmatprep.subr.mxu0 0.0
  %7907 = vmatpush1.msra.mxu0 0.0
  %7908 = vmatprep.subr.mxu0 0.0
  %7909 = vmatpush1.msra.mxu0 0.0
  %7910 = vmatprep.subr.mxu0 0.0
  %7911 = vmatpush1.msra.mxu0 0.0
  %7912 = vmatprep.subr.mxu0 0.0
  %7913 = vmatpush1.msra.mxu0 0.0
  %7914 = vmatprep.subr.mxu0 0.0
  %7915 = vmatpush1.msra.mxu0 0.0
  %7916 = vmatprep.subr.mxu0 0.0
  %7917 = vmatpush1.msra.mxu0 0.0
  %7918 = vmatprep.subr.mxu0 0.0
  %7919 = vmatpush1.msra.mxu0 0.0
  %7920 = vmatprep.subr.mxu0 0.0
  %7921 = vmatpush1.msra.mxu0 0.0
  %7922 = vmatprep.subr.mxu0 0.0
  %7923 = vmatpush1.msra.mxu0 0.0
  %7924 = vmatprep.subr.mxu0 0.0
  %7925 = vmatpush1.msra.mxu0 0.0
  %7926 = vmatprep.subr.mxu0 0.0
  %7927 = vmatpush1.msra.mxu0 0.0
  %7928 = vmatprep.subr.mxu0 0.0
  %7929 = vmatpush1.msra.mxu0 0.0
  %7930 = vmatprep.mubr.f32.mxu0 0.0
  %7931 = vmatmul.mubr.f32.gmra.mrb[0].mxu0 %v7843
  %v7932 = vpop.f32.mrb[0].mxu0
  %v7933 = vadd.f32 %v7804, %v7932
  %v7934 = vpop.f32.mrb[0].mxu0
  %7935 = vmatprep.mubr.f32.mxu0 0.0
  %7936 = vmatmul.mubr.f32.gmra.mrb[0].mxu0 %v7846
  %v7937 = vpop.f32.mrb[0].mxu0
  %v7938 = vadd.f32 %v7809, %v7937
  %v7939 = vpop.f32.mrb[0].mxu0
  %7940 = vmatprep.mubr.f32.mxu0 0.0
  %7941 = vmatmul.mubr.f32.gmra.mrb[0].mxu0 %v7849
  %v7942 = vpop.f32.mrb[0].mxu0
  %v7943 = vadd.f32 %v7814, %v7942
  %v7944 = vpop.f32.mrb[0].mxu0
  %7945 = vmatprep.mubr.f32.mxu0 0.0
  %7946 = vmatmul.mubr.f32.gmra.mrb[0].mxu0 %v7852
  %v7947 = vpop.f32.mrb[0].mxu0
  %v7948 = vadd.f32 %v7819, %v7947
  %v7949 = vpop.f32.mrb[0].mxu0
  %7950 = vmatprep.mubr.f32.mxu0 0.0
  %7951 = vmatmul.mubr.f32.gmra.mrb[0].mxu0 %v7855
  %v7952 = vpop.f32.mrb[0].mxu0
  %v7953 = vadd.f32 %v7824, %v7952
  %v7954 = vpop.f32.mrb[0].mxu0
  %7955 = vmatprep.mubr.f32.mxu0 0.0
  %7956 = vmatmul.mubr.f32.gmra.mrb[0].mxu0 %v7858
  %v7957 = vpop.f32.mrb[0].mxu0
  %v7958 = vadd.f32 %v7829, %v7957
  %v7959 = vpop.f32.mrb[0].mxu0
  %7960 = vmatprep.mubr.f32.mxu0 0.0
  %7961 = vmatmul.mubr.f32.gmra.mrb[0].mxu0 %v7861
  %v7962 = vpop.f32.mrb[0].mxu0
  %v7963 = vadd.f32 %v7834, %v7962
  %v7964 = vpop.f32.mrb[0].mxu0
  %7965 = vmatprep.mubr.f32.mxu0 0.0
  %7966 = vmatmul.mubr.f32.gmra.mrb[0].mxu0 %v7864
  %v7967 = vpop.f32.mrb[0].mxu0
  %v7968 = vadd.f32 %v7839, %v7967
  %v7969 = vpop.f32.mrb[0].mxu0
  %7970 = vdwg.mxu0
  %s7971 = scalar_lea.vmem %s12, 1
  %v7972 = vld [vmem:[%s7971] sm:$0x1]
  %v7974 = vlaneseq
  %v7975 = vshrl.u32 %v7974, 7
  %v7976 = vsub.s32 0, %v7975
  %v7977 = vrot.slane %v7972, %v7976
  %v7979 = vadd.f32 %v7933, %v7977
  %v7980 = vadd.f32 %v7938, %v7977
  %v7981 = vadd.f32 %v7943, %v7977
  %v7982 = vadd.f32 %v7948, %v7977
  %v7983 = vadd.f32 %v7953, %v7977
  %v7984 = vadd.f32 %v7958, %v7977
  %v7985 = vadd.f32 %v7963, %v7977
  %v7986 = vadd.f32 %v7968, %v7977
  %v7987 = vadd.f32 %v4389, %v7979
  %v7988 = vadd.f32 %v4390, %v7980
  %v7989 = vadd.f32 %v4391, %v7981
  %v7990 = vadd.f32 %v4392, %v7982
  %v7991 = vadd.f32 %v4393, %v7983
  %v7992 = vadd.f32 %v4394, %v7984
  %v7993 = vadd.f32 %v4395, %v7985
  %v7994 = vadd.f32 %v4396, %v7986
  %s7995 = scalar_lea.vmem %s13, 1
  %v7996 = vld [vmem:[%s7995] sm:$0x1]
  %s7997 = scalar_lea.vmem %s14, 1
  %v7998 = vld [vmem:[%s7997] sm:$0x1]
  %v7999 = vsel %vm234, %v7987, 0.0
  %8000 = vadd.xlane.f32.xlu0 %v7999
  %v8001 = vpop.xlane.xlu0 %8000
  %v8002 = vsel %vm234, %v7988, 0.0
  %8003 = vadd.xlane.f32.xlu0 %v8002
  %v8004 = vpop.xlane.xlu0 %8003
  %v8005 = vsel %vm234, %v7989, 0.0
  %8006 = vadd.xlane.f32.xlu0 %v8005
  %v8007 = vpop.xlane.xlu0 %8006
  %v8008 = vsel %vm234, %v7990, 0.0
  %8009 = vadd.xlane.f32.xlu0 %v8008
  %v8010 = vpop.xlane.xlu0 %8009
  %v8011 = vsel %vm234, %v7991, 0.0
  %8012 = vadd.xlane.f32.xlu0 %v8011
  %v8013 = vpop.xlane.xlu0 %8012
  %v8014 = vsel %vm234, %v7992, 0.0
  %8015 = vadd.xlane.f32.xlu0 %v8014
  %v8016 = vpop.xlane.xlu0 %8015
  %v8017 = vsel %vm234, %v7993, 0.0
  %8018 = vadd.xlane.f32.xlu0 %v8017
  %v8019 = vpop.xlane.xlu0 %8018
  %v8020 = vsel %vm234, %v7994, 0.0
  %8021 = vadd.xlane.f32.xlu0 %v8020
  %v8022 = vpop.xlane.xlu0 %8021
  %v8023 = vmul.f32 %v8001, %v3827
  %v8024 = vmul.f32 %v8004, %v3827
  %v8025 = vmul.f32 %v8007, %v3827
  %v8026 = vmul.f32 %v8010, %v3827
  %v8027 = vmul.f32 %v8013, %v3827
  %v8028 = vmul.f32 %v8016, %v3827
  %v8029 = vmul.f32 %v8019, %v3827
  %v8030 = vmul.f32 %v8022, %v3827
  %v8031 = vsub.f32 %v7987, %v8023
  %v8032 = vsub.f32 %v7988, %v8024
  %v8033 = vsub.f32 %v7989, %v8025
  %v8034 = vsub.f32 %v7990, %v8026
  %v8035 = vsub.f32 %v7991, %v8027
  %v8036 = vsub.f32 %v7992, %v8028
  %v8037 = vsub.f32 %v7993, %v8029
  %v8038 = vsub.f32 %v7994, %v8030
  %v8039 = vmul.f32 %v8031, %v8031
  %v8040 = vmul.f32 %v8032, %v8032
  %v8041 = vmul.f32 %v8033, %v8033
  %v8042 = vmul.f32 %v8034, %v8034
  %v8043 = vmul.f32 %v8035, %v8035
  %v8044 = vmul.f32 %v8036, %v8036
  %v8045 = vmul.f32 %v8037, %v8037
  %v8046 = vmul.f32 %v8038, %v8038
  %v8047 = vsel %vm234, %v8039, 0.0
  %8048 = vadd.xlane.f32.xlu0 %v8047
  %v8049 = vpop.xlane.xlu0 %8048
  %v8050 = vsel %vm234, %v8040, 0.0
  %8051 = vadd.xlane.f32.xlu0 %v8050
  %v8052 = vpop.xlane.xlu0 %8051
  %v8053 = vsel %vm234, %v8041, 0.0
  %8054 = vadd.xlane.f32.xlu0 %v8053
  %v8055 = vpop.xlane.xlu0 %8054
  %v8056 = vsel %vm234, %v8042, 0.0
  %8057 = vadd.xlane.f32.xlu0 %v8056
  %v8058 = vpop.xlane.xlu0 %8057
  %v8059 = vsel %vm234, %v8043, 0.0
  %8060 = vadd.xlane.f32.xlu0 %v8059
  %v8061 = vpop.xlane.xlu0 %8060
  %v8062 = vsel %vm234, %v8044, 0.0
  %8063 = vadd.xlane.f32.xlu0 %v8062
  %v8064 = vpop.xlane.xlu0 %8063
  %v8065 = vsel %vm234, %v8045, 0.0
  %8066 = vadd.xlane.f32.xlu0 %v8065
  %v8067 = vpop.xlane.xlu0 %8066
  %v8068 = vsel %vm234, %v8046, 0.0
  %8069 = vadd.xlane.f32.xlu0 %v8068
  %v8070 = vpop.xlane.xlu0 %8069
  %v8071 = vmul.f32 %v8049, %v3827
  %v8072 = vmul.f32 %v8052, %v3827
  %v8073 = vmul.f32 %v8055, %v3827
  %v8074 = vmul.f32 %v8058, %v3827
  %v8075 = vmul.f32 %v8061, %v3827
  %v8076 = vmul.f32 %v8064, %v3827
  %v8077 = vmul.f32 %v8067, %v3827
  %v8078 = vmul.f32 %v8070, %v3827
  %v8079 = vadd.f32 %v8071, 1e-05
  %v8080 = vadd.f32 %v8072, 1e-05
  %v8081 = vadd.f32 %v8073, 1e-05
  %v8082 = vadd.f32 %v8074, 1e-05
  %v8083 = vadd.f32 %v8075, 1e-05
  %v8084 = vadd.f32 %v8076, 1e-05
  %v8085 = vadd.f32 %v8077, 1e-05
  %v8086 = vadd.f32 %v8078, 1e-05
  %v8087 = vrsqrt.pop %v8079
  %v8088 = vrsqrt.pop %v8080
  %v8089 = vrsqrt.pop %v8081
  %v8090 = vrsqrt.pop %v8082
  %v8091 = vrsqrt.pop %v8083
  %v8092 = vrsqrt.pop %v8084
  %v8093 = vrsqrt.pop %v8085
  %v8094 = vrsqrt.pop %v8086
  %v8095 = vmul.f32 %v8031, %v8087
  %v8096 = vmul.f32 %v8032, %v8088
  %v8097 = vmul.f32 %v8033, %v8089
  %v8098 = vmul.f32 %v8034, %v8090
  %v8099 = vmul.f32 %v8035, %v8091
  %v8100 = vmul.f32 %v8036, %v8092
  %v8101 = vmul.f32 %v8037, %v8093
  %v8102 = vmul.f32 %v8038, %v8094
  %v8104 = vlaneseq
  %v8105 = vshrl.u32 %v8104, 7
  %v8106 = vsub.s32 0, %v8105
  %v8107 = vrot.slane %v7996, %v8106
  %v8109 = vmul.f32 %v8095, %v8107
  %v8110 = vmul.f32 %v8096, %v8107
  %v8111 = vmul.f32 %v8097, %v8107
  %v8112 = vmul.f32 %v8098, %v8107
  %v8113 = vmul.f32 %v8099, %v8107
  %v8114 = vmul.f32 %v8100, %v8107
  %v8115 = vmul.f32 %v8101, %v8107
  %v8116 = vmul.f32 %v8102, %v8107
  %v8118 = vlaneseq
  %v8119 = vshrl.u32 %v8118, 7
  %v8120 = vsub.s32 0, %v8119
  %v8121 = vrot.slane %v7998, %v8120
  %v8123 = vadd.f32 %v8109, %v8121
  %v8124 = vadd.f32 %v8110, %v8121
  %v8125 = vadd.f32 %v8111, %v8121
  %v8126 = vadd.f32 %v8112, %v8121
  %v8127 = vadd.f32 %v8113, %v8121
  %v8128 = vadd.f32 %v8114, %v8121
  %v8129 = vadd.f32 %v8115, %v8121
  %v8130 = vadd.f32 %v8116, %v8121
  %s8131 = scalar_lea.vmem %s15, 16
  %v8132 = vld [vmem:[%s8131] sm:$0xff]
  %v8133 = vld [vmem:[%s8131 + $0x8] sm:$0xff]
  %s8134 = scalar_lea.vmem %s16, 1
  %v8135 = vld [vmem:[%s8134] sm:$0x1]
  %v8137 = vlaneseq
  %v8138 = vshrl.u32 %v8137, 7
  %v8139 = vsub.s32 0, %v8138
  %v8140 = vrot.slane %v8135, %v8139
  %v8143 = vsel %vm234, %v8123, 0
  %v8146 = vsel %vm234, %v8124, 0
  %v8149 = vsel %vm234, %v8125, 0
  %v8152 = vsel %vm234, %v8126, 0
  %v8155 = vsel %vm234, %v8127, 0
  %v8158 = vsel %vm234, %v8128, 0
  %v8161 = vsel %vm234, %v8129, 0
  %v8164 = vsel %vm234, %v8130, 0
  %8166 = vmatprep.subr.mxu0 0.0
  %8167 = vmatpush1.msra.mxu0 %v8132
  %8168 = vmatprep.subr.mxu0 0.0
  %8169 = vmatpush1.msra.mxu0 %v8133
  %8170 = vmatprep.subr.mxu0 0.0
  %8171 = vmatpush1.msra.mxu0 0.0
  %8172 = vmatprep.subr.mxu0 0.0
  %8173 = vmatpush1.msra.mxu0 0.0
  %8174 = vmatprep.subr.mxu0 0.0
  %8175 = vmatpush1.msra.mxu0 0.0
  %8176 = vmatprep.subr.mxu0 0.0
  %8177 = vmatpush1.msra.mxu0 0.0
  %8178 = vmatprep.subr.mxu0 0.0
  %8179 = vmatpush1.msra.mxu0 0.0
  %8180 = vmatprep.subr.mxu0 0.0
  %8181 = vmatpush1.msra.mxu0 0.0
  %8182 = vmatprep.subr.mxu0 0.0
  %8183 = vmatpush1.msra.mxu0 0.0
  %8184 = vmatprep.subr.mxu0 0.0
  %8185 = vmatpush1.msra.mxu0 0.0
  %8186 = vmatprep.subr.mxu0 0.0
  %8187 = vmatpush1.msra.mxu0 0.0
  %8188 = vmatprep.subr.mxu0 0.0
  %8189 = vmatpush1.msra.mxu0 0.0
  %8190 = vmatprep.subr.mxu0 0.0
  %8191 = vmatpush1.msra.mxu0 0.0
  %8192 = vmatprep.subr.mxu0 0.0
  %8193 = vmatpush1.msra.mxu0 0.0
  %8194 = vmatprep.subr.mxu0 0.0
  %8195 = vmatpush1.msra.mxu0 0.0
  %8196 = vmatprep.subr.mxu0 0.0
  %8197 = vmatpush1.msra.mxu0 0.0
  %8198 = vmatprep.subr.mxu0 0.0
  %8199 = vmatpush1.msra.mxu0 0.0
  %8200 = vmatprep.subr.mxu0 0.0
  %8201 = vmatpush1.msra.mxu0 0.0
  %8202 = vmatprep.subr.mxu0 0.0
  %8203 = vmatpush1.msra.mxu0 0.0
  %8204 = vmatprep.subr.mxu0 0.0
  %8205 = vmatpush1.msra.mxu0 0.0
  %8206 = vmatprep.subr.mxu0 0.0
  %8207 = vmatpush1.msra.mxu0 0.0
  %8208 = vmatprep.subr.mxu0 0.0
  %8209 = vmatpush1.msra.mxu0 0.0
  %8210 = vmatprep.subr.mxu0 0.0
  %8211 = vmatpush1.msra.mxu0 0.0
  %8212 = vmatprep.subr.mxu0 0.0
  %8213 = vmatpush1.msra.mxu0 0.0
  %8214 = vmatprep.subr.mxu0 0.0
  %8215 = vmatpush1.msra.mxu0 0.0
  %8216 = vmatprep.subr.mxu0 0.0
  %8217 = vmatpush1.msra.mxu0 0.0
  %8218 = vmatprep.subr.mxu0 0.0
  %8219 = vmatpush1.msra.mxu0 0.0
  %8220 = vmatprep.subr.mxu0 0.0
  %8221 = vmatpush1.msra.mxu0 0.0
  %8222 = vmatprep.subr.mxu0 0.0
  %8223 = vmatpush1.msra.mxu0 0.0
  %8224 = vmatprep.subr.mxu0 0.0
  %8225 = vmatpush1.msra.mxu0 0.0
  %8226 = vmatprep.subr.mxu0 0.0
  %8227 = vmatpush1.msra.mxu0 0.0
  %8228 = vmatprep.subr.mxu0 0.0
  %8229 = vmatpush1.msra.mxu0 0.0
  %8230 = vmatprep.mubr.f32.mxu0 0.0
  %8231 = vmatmul.mubr.f32.gmra.mrb[0].mxu0 %v8143
  %v8232 = vpop.f32.mrb[0].mxu0
  %v8233 = vadd.f32 %v8140, %v8232
  %v8234 = vpop.f32.mrb[0].mxu0
  %8235 = vmatprep.mubr.f32.mxu0 0.0
  %8236 = vmatmul.mubr.f32.gmra.mrb[0].mxu0 %v8146
  %v8237 = vpop.f32.mrb[0].mxu0
  %v8238 = vadd.f32 %v8140, %v8237
  %v8239 = vpop.f32.mrb[0].mxu0
  %8240 = vmatprep.mubr.f32.mxu0 0.0
  %8241 = vmatmul.mubr.f32.gmra.mrb[0].mxu0 %v8149
  %v8242 = vpop.f32.mrb[0].mxu0
  %v8243 = vadd.f32 %v8140, %v8242
  %v8244 = vpop.f32.mrb[0].mxu0
  %8245 = vmatprep.mubr.f32.mxu0 0.0
  %8246 = vmatmul.mubr.f32.gmra.mrb[0].mxu0 %v8152
  %v8247 = vpop.f32.mrb[0].mxu0
  %v8248 = vadd.f32 %v8140, %v8247
  %v8249 = vpop.f32.mrb[0].mxu0
  %8250 = vmatprep.mubr.f32.mxu0 0.0
  %8251 = vmatmul.mubr.f32.gmra.mrb[0].mxu0 %v8155
  %v8252 = vpop.f32.mrb[0].mxu0
  %v8253 = vadd.f32 %v8140, %v8252
  %v8254 = vpop.f32.mrb[0].mxu0
  %8255 = vmatprep.mubr.f32.mxu0 0.0
  %8256 = vmatmul.mubr.f32.gmra.mrb[0].mxu0 %v8158
  %v8257 = vpop.f32.mrb[0].mxu0
  %v8258 = vadd.f32 %v8140, %v8257
  %v8259 = vpop.f32.mrb[0].mxu0
  %8260 = vmatprep.mubr.f32.mxu0 0.0
  %8261 = vmatmul.mubr.f32.gmra.mrb[0].mxu0 %v8161
  %v8262 = vpop.f32.mrb[0].mxu0
  %v8263 = vadd.f32 %v8140, %v8262
  %v8264 = vpop.f32.mrb[0].mxu0
  %8265 = vmatprep.mubr.f32.mxu0 0.0
  %8266 = vmatmul.mubr.f32.gmra.mrb[0].mxu0 %v8164
  %v8267 = vpop.f32.mrb[0].mxu0
  %v8268 = vadd.f32 %v8140, %v8267
  %v8269 = vpop.f32.mrb[0].mxu0
  %8270 = vdwg.mxu0
  %v8271 = vmul.f32 %v8233, 0.5
  %v8272 = vmul.f32 %v8238, 0.5
  %v8273 = vmul.f32 %v8243, 0.5
  %v8274 = vmul.f32 %v8248, 0.5
  %v8275 = vmul.f32 %v8253, 0.5
  %v8276 = vmul.f32 %v8258, 0.5
  %v8277 = vmul.f32 %v8263, 0.5
  %v8278 = vmul.f32 %v8268, 0.5
  %v8279 = vmul.f32 %v8233, 0.70710677
  %v8280 = vmul.f32 %v8238, 0.70710677
  %v8281 = vmul.f32 %v8243, 0.70710677
  %v8282 = vmul.f32 %v8248, 0.70710677
  %v8283 = vmul.f32 %v8253, 0.70710677
  %v8284 = vmul.f32 %v8258, 0.70710677
  %v8285 = vmul.f32 %v8263, 0.70710677
  %v8286 = vmul.f32 %v8268, 0.70710677
  %v8287 = verf.f32.pop %v8279
  %v8288 = verf.f32.pop %v8280
  %v8289 = verf.f32.pop %v8281
  %v8290 = verf.f32.pop %v8282
  %v8291 = verf.f32.pop %v8283
  %v8292 = verf.f32.pop %v8284
  %v8293 = verf.f32.pop %v8285
  %v8294 = verf.f32.pop %v8286
  %v8295 = vadd.f32 %v8287, 1.0
  %v8296 = vadd.f32 %v8288, 1.0
  %v8297 = vadd.f32 %v8289, 1.0
  %v8298 = vadd.f32 %v8290, 1.0
  %v8299 = vadd.f32 %v8291, 1.0
  %v8300 = vadd.f32 %v8292, 1.0
  %v8301 = vadd.f32 %v8293, 1.0
  %v8302 = vadd.f32 %v8294, 1.0
  %v8303 = vmul.f32 %v8271, %v8295
  %v8304 = vmul.f32 %v8272, %v8296
  %v8305 = vmul.f32 %v8273, %v8297
  %v8306 = vmul.f32 %v8274, %v8298
  %v8307 = vmul.f32 %v8275, %v8299
  %v8308 = vmul.f32 %v8276, %v8300
  %v8309 = vmul.f32 %v8277, %v8301
  %v8310 = vmul.f32 %v8278, %v8302
  %s8311 = scalar_lea.vmem %s17, 32
  %v8312 = vld [vmem:[%s8311] sm:$0xff]
  %v8313 = vld [vmem:[%s8311 + $0x8] sm:$0xff]
  %v8314 = vld [vmem:[%s8311 + $0x10] sm:$0xff]
  %v8315 = vld [vmem:[%s8311 + $0x18] sm:$0xff]
  %s8316 = scalar_lea.vmem %s18, 1
  %v8317 = vld [vmem:[%s8316] sm:$0x1]
  %v8319 = vlaneseq
  %v8320 = vshrl.u32 %v8319, 7
  %v8321 = vsub.s32 0, %v8320
  %v8322 = vrot.slane %v8317, %v8321
  %v8325 = vsel %vm4125, %v8303, 0
  %v8328 = vsel %vm4125, %v8304, 0
  %v8331 = vsel %vm4125, %v8305, 0
  %v8334 = vsel %vm4125, %v8306, 0
  %v8337 = vsel %vm4125, %v8307, 0
  %v8340 = vsel %vm4125, %v8308, 0
  %v8343 = vsel %vm4125, %v8309, 0
  %v8346 = vsel %vm4125, %v8310, 0
  %8348 = vmatprep.subr.mxu0 0.0
  %8349 = vmatpush1.msra.mxu0 %v8312
  %8350 = vmatprep.subr.mxu0 0.0
  %8351 = vmatpush1.msra.mxu0 %v8313
  %8352 = vmatprep.subr.mxu0 0.0
  %8353 = vmatpush1.msra.mxu0 %v8314
  %8354 = vmatprep.subr.mxu0 0.0
  %8355 = vmatpush1.msra.mxu0 %v8315
  %8356 = vmatprep.subr.mxu0 0.0
  %8357 = vmatpush1.msra.mxu0 0.0
  %8358 = vmatprep.subr.mxu0 0.0
  %8359 = vmatpush1.msra.mxu0 0.0
  %8360 = vmatprep.subr.mxu0 0.0
  %8361 = vmatpush1.msra.mxu0 0.0
  %8362 = vmatprep.subr.mxu0 0.0
  %8363 = vmatpush1.msra.mxu0 0.0
  %8364 = vmatprep.subr.mxu0 0.0
  %8365 = vmatpush1.msra.mxu0 0.0
  %8366 = vmatprep.subr.mxu0 0.0
  %8367 = vmatpush1.msra.mxu0 0.0
  %8368 = vmatprep.subr.mxu0 0.0
  %8369 = vmatpush1.msra.mxu0 0.0
  %8370 = vmatprep.subr.mxu0 0.0
  %8371 = vmatpush1.msra.mxu0 0.0
  %8372 = vmatprep.subr.mxu0 0.0
  %8373 = vmatpush1.msra.mxu0 0.0
  %8374 = vmatprep.subr.mxu0 0.0
  %8375 = vmatpush1.msra.mxu0 0.0
  %8376 = vmatprep.subr.mxu0 0.0
  %8377 = vmatpush1.msra.mxu0 0.0
  %8378 = vmatprep.subr.mxu0 0.0
  %8379 = vmatpush1.msra.mxu0 0.0
  %8380 = vmatprep.subr.mxu0 0.0
  %8381 = vmatpush1.msra.mxu0 0.0
  %8382 = vmatprep.subr.mxu0 0.0
  %8383 = vmatpush1.msra.mxu0 0.0
  %8384 = vmatprep.subr.mxu0 0.0
  %8385 = vmatpush1.msra.mxu0 0.0
  %8386 = vmatprep.subr.mxu0 0.0
  %8387 = vmatpush1.msra.mxu0 0.0
  %8388 = vmatprep.subr.mxu0 0.0
  %8389 = vmatpush1.msra.mxu0 0.0
  %8390 = vmatprep.subr.mxu0 0.0
  %8391 = vmatpush1.msra.mxu0 0.0
  %8392 = vmatprep.subr.mxu0 0.0
  %8393 = vmatpush1.msra.mxu0 0.0
  %8394 = vmatprep.subr.mxu0 0.0
  %8395 = vmatpush1.msra.mxu0 0.0
  %8396 = vmatprep.subr.mxu0 0.0
  %8397 = vmatpush1.msra.mxu0 0.0
  %8398 = vmatprep.subr.mxu0 0.0
  %8399 = vmatpush1.msra.mxu0 0.0
  %8400 = vmatprep.subr.mxu0 0.0
  %8401 = vmatpush1.msra.mxu0 0.0
  %8402 = vmatprep.subr.mxu0 0.0
  %8403 = vmatpush1.msra.mxu0 0.0
  %8404 = vmatprep.subr.mxu0 0.0
  %8405 = vmatpush1.msra.mxu0 0.0
  %8406 = vmatprep.subr.mxu0 0.0
  %8407 = vmatpush1.msra.mxu0 0.0
  %8408 = vmatprep.subr.mxu0 0.0
  %8409 = vmatpush1.msra.mxu0 0.0
  %8410 = vmatprep.subr.mxu0 0.0
  %8411 = vmatpush1.msra.mxu0 0.0
  %8412 = vmatprep.mubr.f32.mxu0 0.0
  %8413 = vmatmul.mubr.f32.gmra.mrb[0].mxu0 %v8325
  %v8414 = vpop.f32.mrb[0].mxu0
  %v8415 = vadd.f32 %v8322, %v8414
  %v8416 = vpop.f32.mrb[0].mxu0
  %8417 = vmatprep.mubr.f32.mxu0 0.0
  %8418 = vmatmul.mubr.f32.gmra.mrb[0].mxu0 %v8328
  %v8419 = vpop.f32.mrb[0].mxu0
  %v8420 = vadd.f32 %v8322, %v8419
  %v8421 = vpop.f32.mrb[0].mxu0
  %8422 = vmatprep.mubr.f32.mxu0 0.0
  %8423 = vmatmul.mubr.f32.gmra.mrb[0].mxu0 %v8331
  %v8424 = vpop.f32.mrb[0].mxu0
  %v8425 = vadd.f32 %v8322, %v8424
  %v8426 = vpop.f32.mrb[0].mxu0
  %8427 = vmatprep.mubr.f32.mxu0 0.0
  %8428 = vmatmul.mubr.f32.gmra.mrb[0].mxu0 %v8334
  %v8429 = vpop.f32.mrb[0].mxu0
  %v8430 = vadd.f32 %v8322, %v8429
  %v8431 = vpop.f32.mrb[0].mxu0
  %8432 = vmatprep.mubr.f32.mxu0 0.0
  %8433 = vmatmul.mubr.f32.gmra.mrb[0].mxu0 %v8337
  %v8434 = vpop.f32.mrb[0].mxu0
  %v8435 = vadd.f32 %v8322, %v8434
  %v8436 = vpop.f32.mrb[0].mxu0
  %8437 = vmatprep.mubr.f32.mxu0 0.0
  %8438 = vmatmul.mubr.f32.gmra.mrb[0].mxu0 %v8340
  %v8439 = vpop.f32.mrb[0].mxu0
  %v8440 = vadd.f32 %v8322, %v8439
  %v8441 = vpop.f32.mrb[0].mxu0
  %8442 = vmatprep.mubr.f32.mxu0 0.0
  %8443 = vmatmul.mubr.f32.gmra.mrb[0].mxu0 %v8343
  %v8444 = vpop.f32.mrb[0].mxu0
  %v8445 = vadd.f32 %v8322, %v8444
  %v8446 = vpop.f32.mrb[0].mxu0
  %8447 = vmatprep.mubr.f32.mxu0 0.0
  %8448 = vmatmul.mubr.f32.gmra.mrb[0].mxu0 %v8346
  %v8449 = vpop.f32.mrb[0].mxu0
  %v8450 = vadd.f32 %v8322, %v8449
  %v8451 = vpop.f32.mrb[0].mxu0
  %8452 = vdwg.mxu0
  %v8453 = vadd.f32 %v8123, %v8415
  %v8454 = vadd.f32 %v8124, %v8420
  %v8455 = vadd.f32 %v8125, %v8425
  %v8456 = vadd.f32 %v8126, %v8430
  %v8457 = vadd.f32 %v8127, %v8435
  %v8458 = vadd.f32 %v8128, %v8440
  %v8459 = vadd.f32 %v8129, %v8445
  %v8460 = vadd.f32 %v8130, %v8450
  %s8461 = scalar_lea.vmem %s19, 1
  %v8462 = vld [vmem:[%s8461] sm:$0x1]
  %s8463 = scalar_lea.vmem %s20, 1
  %v8464 = vld [vmem:[%s8463] sm:$0x1]
  %v8465 = vsel %vm234, %v8453, 0.0
  %8466 = vadd.xlane.f32.xlu0 %v8465
  %v8467 = vpop.xlane.xlu0 %8466
  %v8468 = vsel %vm234, %v8454, 0.0
  %8469 = vadd.xlane.f32.xlu0 %v8468
  %v8470 = vpop.xlane.xlu0 %8469
  %v8471 = vsel %vm234, %v8455, 0.0
  %8472 = vadd.xlane.f32.xlu0 %v8471
  %v8473 = vpop.xlane.xlu0 %8472
  %v8474 = vsel %vm234, %v8456, 0.0
  %8475 = vadd.xlane.f32.xlu0 %v8474
  %v8476 = vpop.xlane.xlu0 %8475
  %v8477 = vsel %vm234, %v8457, 0.0
  %8478 = vadd.xlane.f32.xlu0 %v8477
  %v8479 = vpop.xlane.xlu0 %8478
  %v8480 = vsel %vm234, %v8458, 0.0
  %8481 = vadd.xlane.f32.xlu0 %v8480
  %v8482 = vpop.xlane.xlu0 %8481
  %v8483 = vsel %vm234, %v8459, 0.0
  %8484 = vadd.xlane.f32.xlu0 %v8483
  %v8485 = vpop.xlane.xlu0 %8484
  %v8486 = vsel %vm234, %v8460, 0.0
  %8487 = vadd.xlane.f32.xlu0 %v8486
  %v8488 = vpop.xlane.xlu0 %8487
  %v8489 = vmul.f32 %v8467, %v3827
  %v8490 = vmul.f32 %v8470, %v3827
  %v8491 = vmul.f32 %v8473, %v3827
  %v8492 = vmul.f32 %v8476, %v3827
  %v8493 = vmul.f32 %v8479, %v3827
  %v8494 = vmul.f32 %v8482, %v3827
  %v8495 = vmul.f32 %v8485, %v3827
  %v8496 = vmul.f32 %v8488, %v3827
  %v8497 = vsub.f32 %v8453, %v8489
  %v8498 = vsub.f32 %v8454, %v8490
  %v8499 = vsub.f32 %v8455, %v8491
  %v8500 = vsub.f32 %v8456, %v8492
  %v8501 = vsub.f32 %v8457, %v8493
  %v8502 = vsub.f32 %v8458, %v8494
  %v8503 = vsub.f32 %v8459, %v8495
  %v8504 = vsub.f32 %v8460, %v8496
  %v8505 = vmul.f32 %v8497, %v8497
  %v8506 = vmul.f32 %v8498, %v8498
  %v8507 = vmul.f32 %v8499, %v8499
  %v8508 = vmul.f32 %v8500, %v8500
  %v8509 = vmul.f32 %v8501, %v8501
  %v8510 = vmul.f32 %v8502, %v8502
  %v8511 = vmul.f32 %v8503, %v8503
  %v8512 = vmul.f32 %v8504, %v8504
  %v8513 = vsel %vm234, %v8505, 0.0
  %8514 = vadd.xlane.f32.xlu0 %v8513
  %v8515 = vpop.xlane.xlu0 %8514
  %v8516 = vsel %vm234, %v8506, 0.0
  %8517 = vadd.xlane.f32.xlu0 %v8516
  %v8518 = vpop.xlane.xlu0 %8517
  %v8519 = vsel %vm234, %v8507, 0.0
  %8520 = vadd.xlane.f32.xlu0 %v8519
  %v8521 = vpop.xlane.xlu0 %8520
  %v8522 = vsel %vm234, %v8508, 0.0
  %8523 = vadd.xlane.f32.xlu0 %v8522
  %v8524 = vpop.xlane.xlu0 %8523
  %v8525 = vsel %vm234, %v8509, 0.0
  %8526 = vadd.xlane.f32.xlu0 %v8525
  %v8527 = vpop.xlane.xlu0 %8526
  %v8528 = vsel %vm234, %v8510, 0.0
  %8529 = vadd.xlane.f32.xlu0 %v8528
  %v8530 = vpop.xlane.xlu0 %8529
  %v8531 = vsel %vm234, %v8511, 0.0
  %8532 = vadd.xlane.f32.xlu0 %v8531
  %v8533 = vpop.xlane.xlu0 %8532
  %v8534 = vsel %vm234, %v8512, 0.0
  %8535 = vadd.xlane.f32.xlu0 %v8534
  %v8536 = vpop.xlane.xlu0 %8535
  %v8537 = vmul.f32 %v8515, %v3827
  %v8538 = vmul.f32 %v8518, %v3827
  %v8539 = vmul.f32 %v8521, %v3827
  %v8540 = vmul.f32 %v8524, %v3827
  %v8541 = vmul.f32 %v8527, %v3827
  %v8542 = vmul.f32 %v8530, %v3827
  %v8543 = vmul.f32 %v8533, %v3827
  %v8544 = vmul.f32 %v8536, %v3827
  %v8545 = vadd.f32 %v8537, 1e-05
  %v8546 = vadd.f32 %v8538, 1e-05
  %v8547 = vadd.f32 %v8539, 1e-05
  %v8548 = vadd.f32 %v8540, 1e-05
  %v8549 = vadd.f32 %v8541, 1e-05
  %v8550 = vadd.f32 %v8542, 1e-05
  %v8551 = vadd.f32 %v8543, 1e-05
  %v8552 = vadd.f32 %v8544, 1e-05
  %v8553 = vrsqrt.pop %v8545
  %v8554 = vrsqrt.pop %v8546
  %v8555 = vrsqrt.pop %v8547
  %v8556 = vrsqrt.pop %v8548
  %v8557 = vrsqrt.pop %v8549
  %v8558 = vrsqrt.pop %v8550
  %v8559 = vrsqrt.pop %v8551
  %v8560 = vrsqrt.pop %v8552
  %v8561 = vmul.f32 %v8497, %v8553
  %v8562 = vmul.f32 %v8498, %v8554
  %v8563 = vmul.f32 %v8499, %v8555
  %v8564 = vmul.f32 %v8500, %v8556
  %v8565 = vmul.f32 %v8501, %v8557
  %v8566 = vmul.f32 %v8502, %v8558
  %v8567 = vmul.f32 %v8503, %v8559
  %v8568 = vmul.f32 %v8504, %v8560
  %v8570 = vlaneseq
  %v8571 = vshrl.u32 %v8570, 7
  %v8572 = vsub.s32 0, %v8571
  %v8573 = vrot.slane %v8462, %v8572
  %v8575 = vmul.f32 %v8561, %v8573
  %v8576 = vmul.f32 %v8562, %v8573
  %v8577 = vmul.f32 %v8563, %v8573
  %v8578 = vmul.f32 %v8564, %v8573
  %v8579 = vmul.f32 %v8565, %v8573
  %v8580 = vmul.f32 %v8566, %v8573
  %v8581 = vmul.f32 %v8567, %v8573
  %v8582 = vmul.f32 %v8568, %v8573
  %v8584 = vlaneseq
  %v8585 = vshrl.u32 %v8584, 7
  %v8586 = vsub.s32 0, %v8585
  %v8587 = vrot.slane %v8464, %v8586
  %v8589 = vadd.f32 %v8575, %v8587
  %v8590 = vadd.f32 %v8576, %v8587
  %v8591 = vadd.f32 %v8577, %v8587
  %v8592 = vadd.f32 %v8578, %v8587
  %v8593 = vadd.f32 %v8579, %v8587
  %v8594 = vadd.f32 %v8580, %v8587
  %v8595 = vadd.f32 %v8581, %v8587
  %v8596 = vadd.f32 %v8582, %v8587
  %v8605 = vrot.slane %v8590, 7
  %vm8606 = vcmask 1041409
  %v8607 = vsel %vm8606, %v8605, %v8589
  %v8608 = vrot.slane %v8591, 6
  %vm8609 = vcmask 1042434
  %v8610 = vsel %vm8609, %v8608, %v8607
  %v8611 = vrot.slane %v8592, 5
  %vm8612 = vcmask 1043459
  %v8613 = vsel %vm8612, %v8611, %v8610
  %v8614 = vrot.slane %v8593, 4
  %vm8615 = vcmask 1044484
  %v8616 = vsel %vm8615, %v8614, %v8613
  %v8617 = vrot.slane %v8594, 3
  %vm8618 = vcmask 1045509
  %v8619 = vsel %vm8618, %v8617, %v8616
  %v8620 = vrot.slane %v8595, 2
  %vm8621 = vcmask 1046534
  %v8622 = vsel %vm8621, %v8620, %v8619
  %v8623 = vrot.slane %v8596, 1
  %vm8624 = vcmask 1047559
  %v8625 = vsel %vm8624, %v8623, %v8622
  %v8627 = vrot.slane %v8589, 1
  %v8628 = vsel %vm8606, %v8590, %v8627
  %v8629 = vrot.slane %v8591, 7
  %v8630 = vsel %vm8609, %v8629, %v8628
  %v8631 = vrot.slane %v8592, 6
  %v8632 = vsel %vm8612, %v8631, %v8630
  %v8633 = vrot.slane %v8593, 5
  %v8634 = vsel %vm8615, %v8633, %v8632
  %v8635 = vrot.slane %v8594, 4
  %v8636 = vsel %vm8618, %v8635, %v8634
  %v8637 = vrot.slane %v8595, 3
  %v8638 = vsel %vm8621, %v8637, %v8636
  %v8639 = vrot.slane %v8596, 2
  %v8640 = vsel %vm8624, %v8639, %v8638
  %8641 = vrot.lane.b32.xlu0 %v8640, 16
  %v8642 = vpop.permute.xlu0 %8641
  %v8644 = vrot.slane %v8589, 2
  %v8645 = vrot.slane %v8590, 1
  %v8646 = vsel %vm8606, %v8645, %v8644
  %v8647 = vsel %vm8609, %v8591, %v8646
  %v8648 = vrot.slane %v8592, 7
  %v8649 = vsel %vm8612, %v8648, %v8647
  %v8650 = vrot.slane %v8593, 6
  %v8651 = vsel %vm8615, %v8650, %v8649
  %v8652 = vrot.slane %v8594, 5
  %v8653 = vsel %vm8618, %v8652, %v8651
  %v8654 = vrot.slane %v8595, 4
  %v8655 = vsel %vm8621, %v8654, %v8653
  %v8656 = vrot.slane %v8596, 3
  %v8657 = vsel %vm8624, %v8656, %v8655
  %8658 = vrot.lane.b32.xlu0 %v8657, 32
  %v8659 = vpop.permute.xlu0 %8658
  %v8661 = vrot.slane %v8589, 3
  %v8662 = vrot.slane %v8590, 2
  %v8663 = vsel %vm8606, %v8662, %v8661
  %v8664 = vrot.slane %v8591, 1
  %v8665 = vsel %vm8609, %v8664, %v8663
  %v8666 = vsel %vm8612, %v8592, %v8665
  %v8667 = vrot.slane %v8593, 7
  %v8668 = vsel %vm8615, %v8667, %v8666
  %v8669 = vrot.slane %v8594, 6
  %v8670 = vsel %vm8618, %v8669, %v8668
  %v8671 = vrot.slane %v8595, 5
  %v8672 = vsel %vm8621, %v8671, %v8670
  %v8673 = vrot.slane %v8596, 4
  %v8674 = vsel %vm8624, %v8673, %v8672
  %8675 = vrot.lane.b32.xlu0 %v8674, 48
  %v8676 = vpop.permute.xlu0 %8675
  %v8678 = vrot.slane %v8589, 4
  %v8679 = vrot.slane %v8590, 3
  %v8680 = vsel %vm8606, %v8679, %v8678
  %v8681 = vrot.slane %v8591, 2
  %v8682 = vsel %vm8609, %v8681, %v8680
  %v8683 = vrot.slane %v8592, 1
  %v8684 = vsel %vm8612, %v8683, %v8682
  %v8685 = vsel %vm8615, %v8593, %v8684
  %v8686 = vrot.slane %v8594, 7
  %v8687 = vsel %vm8618, %v8686, %v8685
  %v8688 = vrot.slane %v8595, 6
  %v8689 = vsel %vm8621, %v8688, %v8687
  %v8690 = vrot.slane %v8596, 5
  %v8691 = vsel %vm8624, %v8690, %v8689
  %8692 = vrot.lane.b32.xlu0 %v8691, 64
  %v8693 = vpop.permute.xlu0 %8692
  %v8695 = vrot.slane %v8589, 5
  %v8696 = vrot.slane %v8590, 4
  %v8697 = vsel %vm8606, %v8696, %v8695
  %v8698 = vrot.slane %v8591, 3
  %v8699 = vsel %vm8609, %v8698, %v8697
  %v8700 = vrot.slane %v8592, 2
  %v8701 = vsel %vm8612, %v8700, %v8699
  %v8702 = vrot.slane %v8593, 1
  %v8703 = vsel %vm8615, %v8702, %v8701
  %v8704 = vsel %vm8618, %v8594, %v8703
  %v8705 = vrot.slane %v8595, 7
  %v8706 = vsel %vm8621, %v8705, %v8704
  %v8707 = vrot.slane %v8596, 6
  %v8708 = vsel %vm8624, %v8707, %v8706
  %8709 = vrot.lane.b32.xlu0 %v8708, 80
  %v8710 = vpop.permute.xlu0 %8709
  %v8712 = vrot.slane %v8589, 6
  %v8713 = vrot.slane %v8590, 5
  %v8714 = vsel %vm8606, %v8713, %v8712
  %v8715 = vrot.slane %v8591, 4
  %v8716 = vsel %vm8609, %v8715, %v8714
  %v8717 = vrot.slane %v8592, 3
  %v8718 = vsel %vm8612, %v8717, %v8716
  %v8719 = vrot.slane %v8593, 2
  %v8720 = vsel %vm8615, %v8719, %v8718
  %v8721 = vrot.slane %v8594, 1
  %v8722 = vsel %vm8618, %v8721, %v8720
  %v8723 = vsel %vm8621, %v8595, %v8722
  %v8724 = vrot.slane %v8596, 7
  %v8725 = vsel %vm8624, %v8724, %v8723
  %8726 = vrot.lane.b32.xlu0 %v8725, 96
  %v8727 = vpop.permute.xlu0 %8726
  %v8729 = vrot.slane %v8589, 7
  %v8730 = vrot.slane %v8590, 6
  %v8731 = vsel %vm8606, %v8730, %v8729
  %v8732 = vrot.slane %v8591, 5
  %v8733 = vsel %vm8609, %v8732, %v8731
  %v8734 = vrot.slane %v8592, 4
  %v8735 = vsel %vm8612, %v8734, %v8733
  %v8736 = vrot.slane %v8593, 3
  %v8737 = vsel %vm8615, %v8736, %v8735
  %v8738 = vrot.slane %v8594, 2
  %v8739 = vsel %vm8618, %v8738, %v8737
  %v8740 = vrot.slane %v8595, 1
  %v8741 = vsel %vm8621, %v8740, %v8739
  %v8742 = vsel %vm8624, %v8596, %v8741
  %8743 = vrot.lane.b32.xlu0 %v8742, 112
  %v8744 = vpop.permute.xlu0 %8743
  %v8746 = vsel %vm234, %v8625, %v8642
  %v8747 = vsel %vm4125, %v8746, %v8659
  %vm8748 = vcmask 392192
  %v8749 = vsel %vm8748, %v8747, %v8676
  %vm8750 = vcmask 523264
  %v8751 = vsel %vm8750, %v8749, %v8693
  %vm8752 = vcmask 654336
  %v8753 = vsel %vm8752, %v8751, %v8710
  %vm8754 = vcmask 785408
  %v8755 = vsel %vm8754, %v8753, %v8727
  %vm8756 = vcmask 916480
  %v8757 = vsel %vm8756, %v8755, %v8744
  %v8758 = vld [vmem:[%s21] sm:$0xff]
  %v8759 = vld [vmem:[%s21 + $0x8] sm:$0xff]
  %v8760 = vld [vmem:[%s21 + $0x10] sm:$0xff]
  %v8761 = vld [vmem:[%s21 + $0x18] sm:$0xff]
  %v8762 = vld [vmem:[%s21 + $0x20] sm:$0xff]
  %v8763 = vld [vmem:[%s21 + $0x28] sm:$0xff]
  %v8764 = vld [vmem:[%s21 + $0x30] sm:$0xff]
  %v8765 = vld [vmem:[%s21 + $0x38] sm:$0xff]
  %v8766 = vld [vmem:[%s21 + $0x40] sm:$0xff]
  %v8767 = vld [vmem:[%s21 + $0x48] sm:$0xff]
  %v8768 = vld [vmem:[%s21 + $0x50] sm:$0xff]
  %v8769 = vld [vmem:[%s21 + $0x58] sm:$0xff]
  %v8770 = vld [vmem:[%s21 + $0x60] sm:$0xff]
  %v8771 = vld [vmem:[%s21 + $0x68] sm:$0xff]
  %v8772 = vld [vmem:[%s21 + $0x70] sm:$0xff]
  %v8773 = vld [vmem:[%s21 + $0x78] sm:$0xff]
  %v8774 = vld [vmem:[%s22] sm:$0x1]
  %v8776 = vlaneseq
  %v8777 = vshrl.u32 %v8776, 7
  %v8778 = vsub.s32 0, %v8777
  %v8779 = vrot.slane %v8774, %v8778
  %8781 = vmatprep.subr.mxu0 0.0
  %8782 = vmatpush1.msra.mxu0 %v8758
  %8783 = vmatprep.subr.mxu0 0.0
  %8784 = vmatpush1.msra.mxu0 %v8759
  %8785 = vmatprep.subr.mxu0 0.0
  %8786 = vmatpush1.msra.mxu0 %v8760
  %8787 = vmatprep.subr.mxu0 0.0
  %8788 = vmatpush1.msra.mxu0 %v8761
  %8789 = vmatprep.subr.mxu0 0.0
  %8790 = vmatpush1.msra.mxu0 %v8762
  %8791 = vmatprep.subr.mxu0 0.0
  %8792 = vmatpush1.msra.mxu0 %v8763
  %8793 = vmatprep.subr.mxu0 0.0
  %8794 = vmatpush1.msra.mxu0 %v8764
  %8795 = vmatprep.subr.mxu0 0.0
  %8796 = vmatpush1.msra.mxu0 %v8765
  %8797 = vmatprep.subr.mxu0 0.0
  %8798 = vmatpush1.msra.mxu0 %v8766
  %8799 = vmatprep.subr.mxu0 0.0
  %8800 = vmatpush1.msra.mxu0 %v8767
  %8801 = vmatprep.subr.mxu0 0.0
  %8802 = vmatpush1.msra.mxu0 %v8768
  %8803 = vmatprep.subr.mxu0 0.0
  %8804 = vmatpush1.msra.mxu0 %v8769
  %8805 = vmatprep.subr.mxu0 0.0
  %8806 = vmatpush1.msra.mxu0 %v8770
  %8807 = vmatprep.subr.mxu0 0.0
  %8808 = vmatpush1.msra.mxu0 %v8771
  %8809 = vmatprep.subr.mxu0 0.0
  %8810 = vmatpush1.msra.mxu0 %v8772
  %8811 = vmatprep.subr.mxu0 0.0
  %8812 = vmatpush1.msra.mxu0 %v8773
  %8813 = vmatprep.subr.mxu0 0.0
  %8814 = vmatpush1.msra.mxu0 0.0
  %8815 = vmatprep.subr.mxu0 0.0
  %8816 = vmatpush1.msra.mxu0 0.0
  %8817 = vmatprep.subr.mxu0 0.0
  %8818 = vmatpush1.msra.mxu0 0.0
  %8819 = vmatprep.subr.mxu0 0.0
  %8820 = vmatpush1.msra.mxu0 0.0
  %8821 = vmatprep.subr.mxu0 0.0
  %8822 = vmatpush1.msra.mxu0 0.0
  %8823 = vmatprep.subr.mxu0 0.0
  %8824 = vmatpush1.msra.mxu0 0.0
  %8825 = vmatprep.subr.mxu0 0.0
  %8826 = vmatpush1.msra.mxu0 0.0
  %8827 = vmatprep.subr.mxu0 0.0
  %8828 = vmatpush1.msra.mxu0 0.0
  %8829 = vmatprep.subr.mxu0 0.0
  %8830 = vmatpush1.msra.mxu0 0.0
  %8831 = vmatprep.subr.mxu0 0.0
  %8832 = vmatpush1.msra.mxu0 0.0
  %8833 = vmatprep.subr.mxu0 0.0
  %8834 = vmatpush1.msra.mxu0 0.0
  %8835 = vmatprep.subr.mxu0 0.0
  %8836 = vmatpush1.msra.mxu0 0.0
  %8837 = vmatprep.subr.mxu0 0.0
  %8838 = vmatpush1.msra.mxu0 0.0
  %8839 = vmatprep.subr.mxu0 0.0
  %8840 = vmatpush1.msra.mxu0 0.0
  %8841 = vmatprep.subr.mxu0 0.0
  %8842 = vmatpush1.msra.mxu0 0.0
  %8843 = vmatprep.subr.mxu0 0.0
  %8844 = vmatpush1.msra.mxu0 0.0
  %8845 = vmatprep.mubr.f32.mxu0 0.0
  %8846 = vmatmul.mubr.f32.gmra.mrb[0].mxu0 %v8757
  %v8847 = vpop.f32.mrb[0].mxu0
  %v8848 = vadd.f32 %v8779, %v8847
  %v8849 = vpop.f32.mrb[0].mxu0
  %8850 = vdwg.mxu0
  %v8851 = vld [vmem:[%s2] sm:$0xff]
  %8853 = vset.pattern.permute.xlu0 0
  %8854 = vperm.xlu0 %8853, %v8851
  %v8855 = vpop.permute.xlu0 %8854
  %v8857 = vmul.f32 %v8848, %v8855
  %v8858 = vld [vmem:[%s1] sm:$0xff]
  %8860 = vset.pattern.permute.xlu0 0
  %8861 = vperm.xlu0 %8860, %v8858
  %v8862 = vpop.permute.xlu0 %8861
  %v8864 = vadd.f32 %v8857, %v8862
  %8865 = vst.msk [vmem:[%s23] sm:$0xff] %vm592, %v8864
  // Predicated region
  $region94: #{patchtst_forward.1} parent=0 // pred_check
    _
  $region95: #{patchtst_forward.1} parent=0 // pred_check_branch
    %8867 = sbr.rel (0) target = $region97
  $region96: #{patchtst_forward.1} parent=0 // pred_region
    _
  $region97: #{patchtst_forward.1} parent=0 // pred_fallthru
    _
  // Predicated region
  $region98: #{patchtst_forward.1} parent=0 // pred_check
    _
  $region99: #{patchtst_forward.1} parent=0 // pred_check_branch
    %8869 = sbr.rel (0) target = $region101
  $region100: #{patchtst_forward.1} parent=0 // pred_region
    _
  $region101: #{patchtst_forward.1} parent=0 // pred_fallthru
    _

</llo_original>
